<compile_context>
chip_gen: v6e
topology: v6e:2x2x1
jax: 0.10.0
libtpu: 0.0.40
codegen_flags: <defaults>
</compile_context>

<pallas_src>
import functools
import math

import jax
import jax.numpy as jnp
from jax.experimental import pallas as pl
from jax.experimental.pallas import tpu as pltpu


# ---------------------------------------------------------------------------
# Hardware / tile helpers
# ---------------------------------------------------------------------------
def _vmem_capacity_bytes():
    """Physical VMEM of this chip; conservative fallback if the query fails."""
    try:
        return int(pltpu.get_tpu_info().vmem_capacity_bytes)
    except Exception:
        return 64 * 1024 * 1024   # v7x per-core size; safe lower bound everywhere


def _pick_tile(dim, pref, align):
    """Largest tile <= pref that divides dim and is a multiple of align, else full."""
    if dim <= pref:
        return dim
    t = (pref // align) * align
    while t >= align:
        if dim % t == 0:
            return t
        t -= align
    return dim


def _encoder_vmem_estimate(tile_m, E, F, group, stacked_arrays):
    """Rough per-step VMEM bytes: double-buffered weight + I/O blocks, the layer-carry
    scratch, and the large in-kernel temporaries (qkv, FFN intermediate, grouped
    attention buffers with their sublane padding)."""
    w_bytes = sum(math.prod(a.shape[1:]) * a.dtype.itemsize for a in stacked_arrays)
    io_bytes = 2 * tile_m * E * 4                         # x block + out block (f32)
    state = tile_m * E * 4                                # layer-carry scratch
    pad = max(1, 8 // max(1, min(group, 8)))              # sublane padding of (G,B,Dh)
    temps = (tile_m * 3 * E * 4                           # fused qkv
             + tile_m * F * 4                             # FFN intermediate
             + 6 * tile_m * pad * 128 * 4                 # per-head grouped q/k/v/s/p/o
             + 5 * tile_m * E * 4)                        # LN / residual / concat temps
    return 2 * (w_bytes + io_bytes) + state + temps


def _pick_row_tile(M, group, fits):
    """Largest row tile that divides M, covers whole attention groups of `group` rows,
    is 8-sublane aligned (unless it equals M), and passes the VMEM-budget predicate.
    Maximizing the tile minimizes re-streaming of the per-layer weight slabs."""
    step = group * 8 // math.gcd(group, 8)                # lcm(group, 8)
    cands = sorted({M} | {t for t in range(step, M, step) if M % t == 0}, reverse=True)
    for t in cands:
        if fits(t):
            return t
    return cands[-1]


# ---------------------------------------------------------------------------
# Tiled matmul + bias kernel (patch projection)
# ---------------------------------------------------------------------------
def _matmul_bias_kernel(x_ref, w_ref, b_ref, o_ref, acc_ref):
    @pl.when(pl.program_id(2) == 0)
    def _():
        acc_ref[...] = jnp.zeros_like(acc_ref)

    acc_ref[...] += jnp.dot(x_ref[...], w_ref[...],
                            preferred_element_type=jnp.float32)

    @pl.when(pl.program_id(2) == pl.num_programs(2) - 1)
    def _():
        o_ref[...] = (acc_ref[...] + b_ref[...]).astype(o_ref.dtype)


def matmul_bias(x, w, b, *, tm=256, tn=256, tk=512):
    """x: (M, K), w: (K, N), b: (N,) -> (M, N) f32.  bf16 operands, f32 accumulate."""
    M, K = x.shape
    K2, N = w.shape
    assert K == K2
    tm = _pick_tile(M, tm, 8)
    tn = _pick_tile(N, tn, 128)
    tk = _pick_tile(K, tk, 128)
    grid = (M // tm, N // tn, K // tk)
    return pl.pallas_call(
        _matmul_bias_kernel,
        out_shape=jax.ShapeDtypeStruct((M, N), jnp.float32),
        grid_spec=pltpu.PrefetchScalarGridSpec(
            num_scalar_prefetch=0,
            grid=grid,
            in_specs=[
                pl.BlockSpec((tm, tk), lambda i, j, k: (i, k)),
                pl.BlockSpec((tk, tn), lambda i, j, k: (k, j)),
                pl.BlockSpec((1, tn), lambda i, j, k: (0, j)),
            ],
            out_specs=pl.BlockSpec((tm, tn), lambda i, j, k: (i, j)),
            scratch_shapes=[pltpu.VMEM((tm, tn), jnp.float32)],
        ),
        compiler_params=pltpu.CompilerParams(
            dimension_semantics=("parallel", "parallel", "arbitrary")),
    )(x.astype(jnp.bfloat16), w.astype(jnp.bfloat16),
      b.reshape(1, N).astype(jnp.float32))


# ---------------------------------------------------------------------------
# Fused multi-layer pre-norm transformer encoder kernel
#   grid = (row_tiles, num_layers); layer state carried in VMEM scratch.
#   Rows are n-major / b-minor; attention is restricted to groups of `group_size`
#   (= image batch B) consecutive rows (batch_first=False semantics).
# ---------------------------------------------------------------------------
def _encoder_stack_kernel(x_ref, wqkv_ref, bqkv_ref, wo_ref, bo_ref,
                          n1w_ref, n1b_ref, n2w_ref, n2b_ref,
                          w1_ref, b1_ref, w2_ref, b2_ref,
                          o_ref, state_ref, *, num_heads, head_dim, group_size):
    l = pl.program_id(1)

    @pl.when(l == 0)
    def _():
        state_ref[...] = x_ref[...]

    x = state_ref[...]                        # (tm, E) f32, carried across layers
    tm, E = x.shape
    B = group_size
    G = tm // B                               # whole attention groups in this tile
    Dh = head_dim
    scale = 1.0 / math.sqrt(Dh)

    def layer_norm(v, w, b):
        mu = jnp.mean(v, axis=-1, keepdims=True)
        var = jnp.mean((v - mu) ** 2, axis=-1, keepdims=True)
        return (v - mu) * jax.lax.rsqrt(var + 1e-5) * w + b

    # ---- self-attention block (pre-norm), group-restricted ----
    h1 = layer_norm(x, n1w_ref[0], n1b_ref[0])
    qkv = jnp.dot(h1.astype(jnp.bfloat16), wqkv_ref[0],
                  preferred_element_type=jnp.float32) + bqkv_ref[0]   # (tm, 3E)
    q = qkv[:, :E] * scale
    k = qkv[:, E:2 * E]
    v = qkv[:, 2 * E:]

    heads = []
    for h in range(num_heads):
        sl = slice(h * Dh, (h + 1) * Dh)
        q4 = q[:, sl].reshape(G, B, Dh)
        k4 = k[:, sl].reshape(G, B, Dh)
        v4 = v[:, sl].reshape(G, B, Dh)
        if B <= 8:
            # Small groups: VPU broadcast-multiply + lane reduce.  Avoids padded
            # (B,Dh)x(Dh,B) micro-matmuls and any (tm,tm) score matrix.
            s = jnp.concatenate(
                [jnp.sum(q4 * k4[:, j:j + 1, :], axis=-1, keepdims=True)
                 for j in range(B)], axis=-1)                          # (G, B, B)
            s = s - jnp.max(s, axis=-1, keepdims=True)
            p = jnp.exp(s)
            p = p / jnp.sum(p, axis=-1, keepdims=True)
            oh = sum([p[:, :, j:j + 1] * v4[:, j:j + 1, :] for j in range(B)])
        else:
            # Larger groups: batched MXU matmuls over the group axis.
            s = jnp.einsum('gid,gjd->gij', q4.astype(jnp.bfloat16),
                           k4.astype(jnp.bfloat16),
                           preferred_element_type=jnp.float32)         # (G, B, B)
            s = s - jnp.max(s, axis=-1, keepdims=True)
            p = jnp.exp(s)
            p = p / jnp.sum(p, axis=-1, keepdims=True)
            oh = jnp.einsum('gij,gjd->gid', p.astype(jnp.bfloat16),
                            v4.astype(jnp.bfloat16),
                            preferred_element_type=jnp.float32)
        heads.append(oh.reshape(tm, Dh))

    attn = jnp.concatenate(heads, axis=-1)                             # (tm, E)
    proj = jnp.dot(attn.astype(jnp.bfloat16), wo_ref[0],
                   preferred_element_type=jnp.float32) + bo_ref[0]
    x2 = x + proj

    # ---- feed-forward block (pre-norm), ReLU (PyTorch default) ----
    h2 = layer_norm(x2, n2w_ref[0], n2b_ref[0])
    f = jnp.dot(h2.astype(jnp.bfloat16), w1_ref[0],
                preferred_element_type=jnp.float32) + b1_ref[0]
    f = jnp.maximum(f, 0.0)
    f = jnp.dot(f.astype(jnp.bfloat16), w2_ref[0],
                preferred_element_type=jnp.float32) + b2_ref[0]

    out = x2 + f
    state_ref[...] = out

    @pl.when(l == pl.num_programs(1) - 1)
    def _():
        o_ref[...] = out.astype(o_ref.dtype)


def _replicated_layer_spec(arr):
    rank = arr.ndim

    def imap(t, l, _rank=rank):
        return (l,) + (0,) * (_rank - 1)

    return pl.BlockSpec((1,) + arr.shape[1:], imap)


def encoder_stack_call(x_flat, stacked, num_heads, head_dim, group_size):
    M, E = x_flat.shape
    L = stacked["wqkv"].shape[0]
    F = stacked["w1"].shape[-1]

    ordered_keys = ("wqkv", "bqkv", "wo", "bo", "n1w", "n1b", "n2w", "n2b",
                    "w1", "b1", "w2", "b2")
    ordered = [stacked[k] for k in ordered_keys]

    # Generation-aware sizing: fit the row tile + double-buffered weight slabs in a
    # fraction of this chip's physical VMEM (v5e/v6e: 128 MiB, v7x: 64 MiB).
    cap = _vmem_capacity_bytes()
    budget = int(cap * 0.6)
    tile_m = _pick_row_tile(
        M, group_size,
        lambda t: _encoder_vmem_estimate(t, E, F, group_size, ordered) <= budget)
    grid = (M // tile_m, L)

    in_specs = [pl.BlockSpec((tile_m, E), lambda t, l: (t, 0))]
    in_specs += [_replicated_layer_spec(a) for a in ordered]

    kernel = functools.partial(_encoder_stack_kernel, num_heads=num_heads,
                               head_dim=head_dim, group_size=group_size)
    return pl.pallas_call(
        kernel,
        out_shape=jax.ShapeDtypeStruct((M, E), jnp.float32),
        grid_spec=pltpu.PrefetchScalarGridSpec(
            num_scalar_prefetch=0,
            grid=grid,
            in_specs=in_specs,
            out_specs=pl.BlockSpec((tile_m, E), lambda t, l: (t, 0)),
            scratch_shapes=[pltpu.VMEM((tile_m, E), jnp.float32)],
        ),
        compiler_params=pltpu.CompilerParams(
            dimension_semantics=("parallel", "arbitrary"),
            vmem_limit_bytes=int(cap * 0.75),
        ),
    )(x_flat.astype(jnp.float32), *ordered)


# ---------------------------------------------------------------------------
# Wrapper-side weight preparation: stack the 4 layers, fuse QKV, cast to bf16
# ---------------------------------------------------------------------------
def _stack_layer_params(layers, E):
    def st(fn, dtype):
        return jnp.stack([fn(l) for l in layers], axis=0).astype(dtype)

    return dict(
        wqkv=st(lambda l: l["in_proj_w"].T, jnp.bfloat16),        # (L, E, 3E)
        bqkv=st(lambda l: l["in_proj_b"].reshape(1, -1), jnp.float32),
        wo=st(lambda l: l["out_proj_w"].T, jnp.bfloat16),         # (L, E, E)
        bo=st(lambda l: l["out_proj_b"].reshape(1, E), jnp.float32),
        n1w=st(lambda l: l["n1w"].reshape(1, E), jnp.float32),
        n1b=st(lambda l: l["n1b"].reshape(1, E), jnp.float32),
        n2w=st(lambda l: l["n2w"].reshape(1, E), jnp.float32),
        n2b=st(lambda l: l["n2b"].reshape(1, E), jnp.float32),
        w1=st(lambda l: l["w1"].T, jnp.bfloat16),                 # (L, E, F)
        b1=st(lambda l: l["b1"].reshape(1, -1), jnp.float32),     # (L, 1, F)
        w2=st(lambda l: l["w2"].T, jnp.bfloat16),                 # (L, F, E)
        b2=st(lambda l: l["b2"].reshape(1, E), jnp.float32),      # (L, 1, E)
    )


# ---------------------------------------------------------------------------
# Parameter init (deterministic, synthetic)
# ---------------------------------------------------------------------------
def init_params(key, patch_size, img_size, in_chans, embed_dim, num_classes,
                num_layers=4, dim_ff=2048):
    keys = list(jax.random.split(key, 8 + num_layers * 12))
    it = iter(keys)

    def rnd(shape, scale=0.05):
        return (scale * jax.random.normal(next(it), shape)).astype(jnp.float32)

    n_patches = (img_size // patch_size) ** 2
    params = {
        "conv_w": rnd((embed_dim, in_chans, patch_size, patch_size)),  # Conv2d weight
        "conv_b": rnd((embed_dim,)),
        "cls": rnd((1, 1, embed_dim)),
        "pos": rnd((1, n_patches + 1, embed_dim)),
        "cls_w": rnd((num_classes, embed_dim)),   # Linear weight (out, in)
        "cls_b": rnd((num_classes,)),
        "layers": [],
    }
    for _ in range(num_layers):
        params["layers"].append(dict(
            in_proj_w=rnd((3 * embed_dim, embed_dim)),
            in_proj_b=rnd((3 * embed_dim,)),
            out_proj_w=rnd((embed_dim, embed_dim)),
            out_proj_b=rnd((embed_dim,)),
            n1w=1.0 + rnd((embed_dim,)),
            n1b=rnd((embed_dim,)),
            n2w=1.0 + rnd((embed_dim,)),
            n2b=rnd((embed_dim,)),
            w1=rnd((dim_ff, embed_dim)),
            b1=rnd((dim_ff,)),
            w2=rnd((embed_dim, dim_ff)),
            b2=rnd((embed_dim,)),
        ))
    return params


# ---------------------------------------------------------------------------
# Full forward pass
# ---------------------------------------------------------------------------
def image_transformer_forward(x, params, patch_size, num_heads=8):
    B, C, H, W = x.shape
    P = patch_size
    hp, wp = H // P, W // P
    n_patches = hp * wp
    E = params["conv_w"].shape[0]
    assert E % num_heads == 0

    # --- patch embedding: stride==kernel Conv2d == per-patch matmul (Pallas) ---
    # bf16 cast is fused into the patch transpose so x makes a single HBM pass.
    patches = (x.astype(jnp.bfloat16)
                 .reshape(B, C, hp, P, wp, P)
                 .transpose(0, 2, 4, 1, 3, 5)              # (B, hp, wp, C, P, P)
                 .reshape(B * n_patches, C * P * P))
    w_proj = params["conv_w"].reshape(E, C * P * P).T      # (C*P*P, E)
    emb = matmul_bias(patches, w_proj, params["conv_b"])   # (B*n_patches, E) f32
    emb = emb.reshape(B, n_patches, E)

    cls_tok = jnp.broadcast_to(params["cls"], (B, 1, E))
    tok = jnp.concatenate([cls_tok, emb], axis=1) + params["pos"]   # (B, N, E)
    Nseq = n_patches + 1

    # --- transformer encoder (PyTorch batch_first=False semantics) ---
    # Rows ordered n-major / b-minor (row = n*B + b); self-attention mixes only the B
    # rows sharing a token index n, so the encoder is block-diagonal over groups of B
    # consecutive rows.
    # NOTE: because the module returns only classifier(x[:, 0]) and the cls group
    # (rows 0..B-1) never attends to patch-token groups, restricting the encoder to
    # those B rows would give an additional ~Nseq x speedup with identical logits.
    # Kept general here so all token features are still computed.
    x_flat = tok.transpose(1, 0, 2).reshape(Nseq * B, E).astype(jnp.float32)

    head_dim = E // num_heads
    stacked = _stack_layer_params(params["layers"], E)
    x_flat = encoder_stack_call(x_flat, stacked, num_heads, head_dim, group_size=B)

    # --- classifier on x[:, 0] (cls rows), plain XLA: num_classes << 128 lanes ---
    cls_out = x_flat[:B, :]                                          # (B, E)
    logits = cls_out @ params["cls_w"].T.astype(jnp.float32) + params["cls_b"]
    return logits


if __name__ == "__main__":
    patch_size, img_size, in_chans, embed_dim, num_classes = 4, 16, 4, 32, 10
    key = jax.random.PRNGKey(0)
    kp, kx = jax.random.split(key)
    params = init_params(kp, patch_size, img_size, in_chans, embed_dim, num_classes)
    x = jax.random.normal(kx, (2, in_chans, img_size, img_size), dtype=jnp.float32)

    fwd = jax.jit(functools.partial(image_transformer_forward, patch_size=patch_size))
    logits = fwd(x, params)
    jax.block_until_ready(logits)
    assert logits.shape == (2, num_classes), logits.shape
    print("KERNEL_OK")
</pallas_src>

<mosaic_0001>
module attributes {stable_mosaic.version = 11 : i64} {
  func.func @_matmul_bias_kernel(%arg0: i32, %arg1: i32, %arg2: i32, %arg3: memref<32x64xbf16, #tpu.memory_space<vmem>>, %arg4: memref<64x32xbf16, #tpu.memory_space<vmem>>, %arg5: memref<1x32xf32, #tpu.memory_space<vmem>>, %arg6: memref<32x32xf32, #tpu.memory_space<vmem>>, %arg7: memref<32x32xf32, #tpu.memory_space<vmem>>) attributes {dimension_semantics = [#tpu.dimension_semantics<parallel>, #tpu.dimension_semantics<parallel>, #tpu.dimension_semantics<arbitrary>], iteration_bounds = array<i64: 1, 1, 1>, scalar_prefetch = 0 : i64, scratch_operands = 1 : i64, tpu.core_type = #tpu.core_type<tc>, window_params = [{transform_indices = @transform_0, window_bounds = array<i64: 32, 64>}, {transform_indices = @transform_1, window_bounds = array<i64: 64, 32>}, {transform_indices = @transform_2, window_bounds = array<i64: 1, 32>}, {transform_indices = @transform_3, window_bounds = array<i64: 32, 32>}]} {
    %c0_i32 = arith.constant 0 : i32
    %0 = arith.cmpi eq, %arg2, %c0_i32 : i32
    %1 = arith.extui %0 : i1 to i32
    %c0_i32_0 = arith.constant 0 : i32
    %2 = arith.cmpi ne, %1, %c0_i32_0 : i32
    scf.if %2 {
      %cst_10 = arith.constant 0.000000e+00 : f32
      %12 = vector.broadcast %cst_10 : f32 to vector<32x32xf32>
      %c0_11 = arith.constant 0 : index
      %c0_12 = arith.constant 0 : index
      %13 = vector.load %arg7[%c0_11, %c0_12] : memref<32x32xf32, #tpu.memory_space<vmem>>, vector<32x32xf32>
      tpu.vector_store %arg7[%c0_11, %c0_12], %12 {strides = array<i32>} : memref<32x32xf32, #tpu.memory_space<vmem>>, vector<32x32xf32>,
    } else {
    }
    %c0 = arith.constant 0 : index
    %c0_1 = arith.constant 0 : index
    %3 = vector.load %arg7[%c0, %c0_1] : memref<32x32xf32, #tpu.memory_space<vmem>>, vector<32x32xf32>
    %c0_2 = arith.constant 0 : index
    %c0_3 = arith.constant 0 : index
    %4 = vector.load %arg3[%c0_2, %c0_3] : memref<32x64xbf16, #tpu.memory_space<vmem>>, vector<32x64xbf16>
    %c0_4 = arith.constant 0 : index
    %c0_5 = arith.constant 0 : index
    %5 = vector.load %arg4[%c0_4, %c0_5] : memref<64x32xbf16, #tpu.memory_space<vmem>>, vector<64x32xbf16>
    %cst = arith.constant dense<0.000000e+00> : vector<32x32xf32>
    %6 = tpu.matmul %4, %5, %cst {dimension_numbers = #tpu.dot_dimension_numbers<[1], [0], [0], [1], [0, 0, 1, 1], [], []>} : vector<32x64xbf16>, vector<64x32xbf16>, vector<32x32xf32> -> vector<32x32xf32>
    %7 = arith.addf %3, %6 : vector<32x32xf32>
    %c0_6 = arith.constant 0 : index
    %c0_7 = arith.constant 0 : index
    %8 = vector.load %arg7[%c0_6, %c0_7] : memref<32x32xf32, #tpu.memory_space<vmem>>, vector<32x32xf32>
    tpu.vector_store %arg7[%c0_6, %c0_7], %7 {strides = array<i32>} : memref<32x32xf32, #tpu.memory_space<vmem>>, vector<32x32xf32>,
    %c0_i32_8 = arith.constant 0 : i32
    %9 = arith.cmpi eq, %arg2, %c0_i32_8 : i32
    %10 = arith.extui %9 : i1 to i32
    %c0_i32_9 = arith.constant 0 : i32
    %11 = arith.cmpi ne, %10, %c0_i32_9 : i32
    scf.if %11 {
      %c0_10 = arith.constant 0 : index
      %c0_11 = arith.constant 0 : index
      %12 = vector.load %arg7[%c0_10, %c0_11] : memref<32x32xf32, #tpu.memory_space<vmem>>, vector<32x32xf32>
      %c0_12 = arith.constant 0 : index
      %c0_13 = arith.constant 0 : index
      %13 = vector.load %arg5[%c0_12, %c0_13] : memref<1x32xf32, #tpu.memory_space<vmem>>, vector<1x32xf32>
      %14 = vector.broadcast %13 : vector<1x32xf32> to vector<32x32xf32>
      %15 = arith.addf %12, %14 : vector<32x32xf32>
      %c0_14 = arith.constant 0 : index
      %c0_15 = arith.constant 0 : index
      %16 = vector.load %arg6[%c0_14, %c0_15] : memref<32x32xf32, #tpu.memory_space<vmem>>, vector<32x32xf32>
      tpu.vector_store %arg6[%c0_14, %c0_15], %15 {strides = array<i32>} : memref<32x32xf32, #tpu.memory_space<vmem>>, vector<32x32xf32>,
    } else {
    }
    return
  }
  func.func @transform_0(%arg0: i32, %arg1: i32, %arg2: i32) -> (i32, i32) {
    %c0_i32 = arith.constant 0 : i32
    return %arg0, %arg2 : i32, i32
  }
  func.func @transform_1(%arg0: i32, %arg1: i32, %arg2: i32) -> (i32, i32) {
    %c0_i32 = arith.constant 0 : i32
    return %arg2, %arg1 : i32, i32
  }
  func.func @transform_2(%arg0: i32, %arg1: i32, %arg2: i32) -> (i32, i32) {
    %c0_i32 = arith.constant 0 : i32
    %c0_i32_0 = arith.constant 0 : i32
    return %c0_i32, %arg1 : i32, i32
  }
  func.func @transform_3(%arg0: i32, %arg1: i32, %arg2: i32) -> (i32, i32) {
    %c0_i32 = arith.constant 0 : i32
    return %arg0, %arg1 : i32, i32
  }
}

module attributes {stable_mosaic.version = 11 : i64} {
  func.func @_encoder_stack_kernel(%arg0: i32, %arg1: i32, %arg2: memref<34x32xf32, #tpu.memory_space<vmem>>, %arg3: memref<1x32x96xbf16, #tpu.memory_space<vmem>>, %arg4: memref<1x1x96xf32, #tpu.memory_space<vmem>>, %arg5: memref<1x32x32xbf16, #tpu.memory_space<vmem>>, %arg6: memref<1x1x32xf32, #tpu.memory_space<vmem>>, %arg7: memref<1x1x32xf32, #tpu.memory_space<vmem>>, %arg8: memref<1x1x32xf32, #tpu.memory_space<vmem>>, %arg9: memref<1x1x32xf32, #tpu.memory_space<vmem>>, %arg10: memref<1x1x32xf32, #tpu.memory_space<vmem>>, %arg11: memref<1x32x2048xbf16, #tpu.memory_space<vmem>>, %arg12: memref<1x1x2048xf32, #tpu.memory_space<vmem>>, %arg13: memref<1x2048x32xbf16, #tpu.memory_space<vmem>>, %arg14: memref<1x1x32xf32, #tpu.memory_space<vmem>>, %arg15: memref<34x32xf32, #tpu.memory_space<vmem>>, %arg16: memref<34x32xf32, #tpu.memory_space<vmem>>) attributes {dimension_semantics = [#tpu.dimension_semantics<parallel>, #tpu.dimension_semantics<arbitrary>], iteration_bounds = array<i64: 1, 4>, scalar_prefetch = 0 : i64, scratch_operands = 1 : i64, tpu.core_type = #tpu.core_type<tc>, window_params = [{transform_indices = @transform_0, window_bounds = array<i64: 34, 32>}, {transform_indices = @transform_1, window_bounds = array<i64: 1, 32, 96>}, {transform_indices = @transform_2, window_bounds = array<i64: 1, 1, 96>}, {transform_indices = @transform_3, window_bounds = array<i64: 1, 32, 32>}, {transform_indices = @transform_4, window_bounds = array<i64: 1, 1, 32>}, {transform_indices = @transform_5, window_bounds = array<i64: 1, 1, 32>}, {transform_indices = @transform_6, window_bounds = array<i64: 1, 1, 32>}, {transform_indices = @transform_7, window_bounds = array<i64: 1, 1, 32>}, {transform_indices = @transform_8, window_bounds = array<i64: 1, 1, 32>}, {transform_indices = @transform_9, window_bounds = array<i64: 1, 32, 2048>}, {transform_indices = @transform_10, window_bounds = array<i64: 1, 1, 2048>}, {transform_indices = @transform_11, window_bounds = array<i64: 1, 2048, 32>}, {transform_indices = @transform_12, window_bounds = array<i64: 1, 1, 32>}, {transform_indices = @transform_13, window_bounds = array<i64: 34, 32>}]} {
    %c0_i32 = arith.constant 0 : i32
    %0 = arith.cmpi eq, %arg1, %c0_i32 : i32
    %1 = arith.extui %0 : i1 to i32
    %c0_i32_0 = arith.constant 0 : i32
    %2 = arith.cmpi ne, %1, %c0_i32_0 : i32
    scf.if %2 {
      %c0_96 = arith.constant 0 : index
      %c0_97 = arith.constant 0 : index
      %422 = vector.load %arg2[%c0_96, %c0_97] : memref<34x32xf32, #tpu.memory_space<vmem>>, vector<34x32xf32>
      %c0_98 = arith.constant 0 : index
      %c0_99 = arith.constant 0 : index
      %423 = vector.load %arg16[%c0_98, %c0_99] : memref<34x32xf32, #tpu.memory_space<vmem>>, vector<34x32xf32>
      tpu.vector_store %arg16[%c0_98, %c0_99], %422 {strides = array<i32>} : memref<34x32xf32, #tpu.memory_space<vmem>>, vector<34x32xf32>,
    } else {
    }
    %c0 = arith.constant 0 : index
    %c0_1 = arith.constant 0 : index
    %3 = vector.load %arg16[%c0, %c0_1] : memref<34x32xf32, #tpu.memory_space<vmem>>, vector<34x32xf32>
    %c0_2 = arith.constant 0 : index
    %c0_3 = arith.constant 0 : index
    %c0_4 = arith.constant 0 : index
    %4 = vector.load %arg7[%c0_2, %c0_3, %c0_4] : memref<1x1x32xf32, #tpu.memory_space<vmem>>, vector<1x1x32xf32>
    %5 = vector.shape_cast %4 : vector<1x1x32xf32> to vector<1x32xf32>
    %c0_5 = arith.constant 0 : index
    %c0_6 = arith.constant 0 : index
    %c0_7 = arith.constant 0 : index
    %6 = vector.load %arg8[%c0_5, %c0_6, %c0_7] : memref<1x1x32xf32, #tpu.memory_space<vmem>>, vector<1x1x32xf32>
    %7 = vector.shape_cast %6 : vector<1x1x32xf32> to vector<1x32xf32>
    %cst = arith.constant dense<0.000000e+00> : vector<34xf32>
    %8 = vector.multi_reduction <add>, %3, %cst [1] : vector<34x32xf32> to vector<34xf32>
    %9 = vector.shape_cast %8 : vector<34xf32> to vector<34x1xf32>
    %cst_8 = arith.constant 3.200000e+01 : f32
    %10 = vector.broadcast %cst_8 : f32 to vector<34x1xf32>
    %11 = arith.divf %9, %10 : vector<34x1xf32>
    %12 = vector.broadcast %11 : vector<34x1xf32> to vector<34x32xf32>
    %13 = arith.subf %3, %12 : vector<34x32xf32>
    %14 = arith.mulf %13, %13 : vector<34x32xf32>
    %cst_9 = arith.constant dense<0.000000e+00> : vector<34xf32>
    %15 = vector.multi_reduction <add>, %14, %cst_9 [1] : vector<34x32xf32> to vector<34xf32>
    %16 = vector.shape_cast %15 : vector<34xf32> to vector<34x1xf32>
    %cst_10 = arith.constant 3.200000e+01 : f32
    %17 = vector.broadcast %cst_10 : f32 to vector<34x1xf32>
    %18 = arith.divf %16, %17 : vector<34x1xf32>
    %19 = vector.broadcast %11 : vector<34x1xf32> to vector<34x32xf32>
    %20 = arith.subf %3, %19 : vector<34x32xf32>
    %cst_11 = arith.constant 9.99999974E-6 : f32
    %21 = vector.broadcast %cst_11 : f32 to vector<34x1xf32>
    %22 = arith.addf %18, %21 : vector<34x1xf32>
    %23 = math.rsqrt %22 : vector<34x1xf32>
    %24 = vector.broadcast %23 : vector<34x1xf32> to vector<34x32xf32>
    %25 = arith.mulf %20, %24 : vector<34x32xf32>
    %26 = vector.broadcast %5 : vector<1x32xf32> to vector<34x32xf32>
    %27 = arith.mulf %25, %26 : vector<34x32xf32>
    %28 = vector.broadcast %7 : vector<1x32xf32> to vector<34x32xf32>
    %29 = arith.addf %27, %28 : vector<34x32xf32>
    %30 = arith.truncf %29 : vector<34x32xf32> to vector<34x32xbf16>
    %c0_12 = arith.constant 0 : index
    %c0_13 = arith.constant 0 : index
    %c0_14 = arith.constant 0 : index
    %31 = vector.load %arg3[%c0_12, %c0_13, %c0_14] : memref<1x32x96xbf16, #tpu.memory_space<vmem>>, vector<1x32x96xbf16>
    %32 = vector.shape_cast %31 : vector<1x32x96xbf16> to vector<32x96xbf16>
    %cst_15 = arith.constant dense<0.000000e+00> : vector<34x96xf32>
    %33 = tpu.matmul %30, %32, %cst_15 {dimension_numbers = #tpu.dot_dimension_numbers<[1], [0], [0], [1], [0, 0, 1, 1], [], []>} : vector<34x32xbf16>, vector<32x96xbf16>, vector<34x96xf32> -> vector<34x96xf32>
    %c0_16 = arith.constant 0 : index
    %c0_17 = arith.constant 0 : index
    %c0_18 = arith.constant 0 : index
    %34 = vector.load %arg4[%c0_16, %c0_17, %c0_18] : memref<1x1x96xf32, #tpu.memory_space<vmem>>, vector<1x1x96xf32>
    %35 = vector.shape_cast %34 : vector<1x1x96xf32> to vector<1x96xf32>
    %36 = vector.broadcast %35 : vector<1x96xf32> to vector<34x96xf32>
    %37 = arith.addf %33, %36 : vector<34x96xf32>
    %38 = vector.extract_strided_slice %37 {offsets = [0, 0], sizes = [34, 32], strides = [1, 1]} : vector<34x96xf32> to vector<34x32xf32>
    %cst_19 = arith.constant 5.000000e-01 : f32
    %39 = vector.broadcast %cst_19 : f32 to vector<34x32xf32>
    %40 = arith.mulf %38, %39 : vector<34x32xf32>
    %41 = vector.extract_strided_slice %37 {offsets = [0, 32], sizes = [34, 32], strides = [1, 1]} : vector<34x96xf32> to vector<34x32xf32>
    %42 = vector.extract_strided_slice %37 {offsets = [0, 64], sizes = [34, 32], strides = [1, 1]} : vector<34x96xf32> to vector<34x32xf32>
    %43 = vector.extract_strided_slice %40 {offsets = [0, 0], sizes = [34, 4], strides = [1, 1]} : vector<34x32xf32> to vector<34x4xf32>
    %44 = vector.shape_cast %43 : vector<34x4xf32> to vector<17x2x4xf32>
    %45 = vector.extract_strided_slice %41 {offsets = [0, 0], sizes = [34, 4], strides = [1, 1]} : vector<34x32xf32> to vector<34x4xf32>
    %46 = vector.shape_cast %45 : vector<34x4xf32> to vector<17x2x4xf32>
    %47 = vector.extract_strided_slice %42 {offsets = [0, 0], sizes = [34, 4], strides = [1, 1]} : vector<34x32xf32> to vector<34x4xf32>
    %48 = vector.shape_cast %47 : vector<34x4xf32> to vector<17x2x4xf32>
    %49 = vector.extract_strided_slice %46 {offsets = [0, 0, 0], sizes = [17, 1, 4], strides = [1, 1, 1]} : vector<17x2x4xf32> to vector<17x1x4xf32>
    %50 = vector.broadcast %49 : vector<17x1x4xf32> to vector<17x2x4xf32>
    %51 = arith.mulf %44, %50 : vector<17x2x4xf32>
    %cst_20 = arith.constant dense<0.000000e+00> : vector<17x2xf32>
    %52 = vector.multi_reduction <add>, %51, %cst_20 [2] : vector<17x2x4xf32> to vector<17x2xf32>
    %53 = vector.shape_cast %52 : vector<17x2xf32> to vector<17x2x1xf32>
    %54 = vector.extract_strided_slice %46 {offsets = [0, 1, 0], sizes = [17, 1, 4], strides = [1, 1, 1]} : vector<17x2x4xf32> to vector<17x1x4xf32>
    %55 = vector.broadcast %54 : vector<17x1x4xf32> to vector<17x2x4xf32>
    %56 = arith.mulf %44, %55 : vector<17x2x4xf32>
    %cst_21 = arith.constant dense<0.000000e+00> : vector<17x2xf32>
    %57 = vector.multi_reduction <add>, %56, %cst_21 [2] : vector<17x2x4xf32> to vector<17x2xf32>
    %58 = vector.shape_cast %57 : vector<17x2xf32> to vector<17x2x1xf32>
    %59 = tpu.concatenate %53, %58 in 2 : vector<17x2x1xf32>, vector<17x2x1xf32> -> vector<17x2x2xf32>
    %cst_22 = arith.constant dense<0xFF800000> : vector<17x2xf32>
    %60 = vector.multi_reduction <maximumf>, %59, %cst_22 [2] : vector<17x2x2xf32> to vector<17x2xf32>
    %61 = vector.shape_cast %60 : vector<17x2xf32> to vector<17x2x1xf32>
    %62 = vector.broadcast %61 : vector<17x2x1xf32> to vector<17x2x2xf32>
    %63 = arith.subf %59, %62 : vector<17x2x2xf32>
    %64 = math.exp %63 : vector<17x2x2xf32>
    %cst_23 = arith.constant dense<0.000000e+00> : vector<17x2xf32>
    %65 = vector.multi_reduction <add>, %64, %cst_23 [2] : vector<17x2x2xf32> to vector<17x2xf32>
    %66 = vector.shape_cast %65 : vector<17x2xf32> to vector<17x2x1xf32>
    %67 = vector.broadcast %66 : vector<17x2x1xf32> to vector<17x2x2xf32>
    %68 = arith.divf %64, %67 : vector<17x2x2xf32>
    %69 = vector.extract_strided_slice %68 {offsets = [0, 0, 0], sizes = [17, 2, 1], strides = [1, 1, 1]} : vector<17x2x2xf32> to vector<17x2x1xf32>
    %70 = vector.extract_strided_slice %48 {offsets = [0, 0, 0], sizes = [17, 1, 4], strides = [1, 1, 1]} : vector<17x2x4xf32> to vector<17x1x4xf32>
    %71 = vector.broadcast %69 : vector<17x2x1xf32> to vector<17x2x4xf32>
    %72 = vector.broadcast %70 : vector<17x1x4xf32> to vector<17x2x4xf32>
    %73 = arith.mulf %71, %72 : vector<17x2x4xf32>
    %74 = vector.extract_strided_slice %68 {offsets = [0, 0, 1], sizes = [17, 2, 1], strides = [1, 1, 1]} : vector<17x2x2xf32> to vector<17x2x1xf32>
    %75 = vector.extract_strided_slice %48 {offsets = [0, 1, 0], sizes = [17, 1, 4], strides = [1, 1, 1]} : vector<17x2x4xf32> to vector<17x1x4xf32>
    %76 = vector.broadcast %74 : vector<17x2x1xf32> to vector<17x2x4xf32>
    %77 = vector.broadcast %75 : vector<17x1x4xf32> to vector<17x2x4xf32>
    %78 = arith.mulf %76, %77 : vector<17x2x4xf32>
    %cst_24 = arith.constant 0.000000e+00 : f32
    %79 = vector.broadcast %cst_24 : f32 to vector<17x2x4xf32>
    %80 = arith.addf %79, %73 : vector<17x2x4xf32>
    %81 = arith.addf %80, %78 : vector<17x2x4xf32>
    %82 = vector.shape_cast %81 : vector<17x2x4xf32> to vector<34x4xf32>
    %83 = vector.extract_strided_slice %40 {offsets = [0, 4], sizes = [34, 4], strides = [1, 1]} : vector<34x32xf32> to vector<34x4xf32>
    %84 = vector.shape_cast %83 : vector<34x4xf32> to vector<17x2x4xf32>
    %85 = vector.extract_strided_slice %41 {offsets = [0, 4], sizes = [34, 4], strides = [1, 1]} : vector<34x32xf32> to vector<34x4xf32>
    %86 = vector.shape_cast %85 : vector<34x4xf32> to vector<17x2x4xf32>
    %87 = vector.extract_strided_slice %42 {offsets = [0, 4], sizes = [34, 4], strides = [1, 1]} : vector<34x32xf32> to vector<34x4xf32>
    %88 = vector.shape_cast %87 : vector<34x4xf32> to vector<17x2x4xf32>
    %89 = vector.extract_strided_slice %86 {offsets = [0, 0, 0], sizes = [17, 1, 4], strides = [1, 1, 1]} : vector<17x2x4xf32> to vector<17x1x4xf32>
    %90 = vector.broadcast %89 : vector<17x1x4xf32> to vector<17x2x4xf32>
    %91 = arith.mulf %84, %90 : vector<17x2x4xf32>
    %cst_25 = arith.constant dense<0.000000e+00> : vector<17x2xf32>
    %92 = vector.multi_reduction <add>, %91, %cst_25 [2] : vector<17x2x4xf32> to vector<17x2xf32>
    %93 = vector.shape_cast %92 : vector<17x2xf32> to vector<17x2x1xf32>
    %94 = vector.extract_strided_slice %86 {offsets = [0, 1, 0], sizes = [17, 1, 4], strides = [1, 1, 1]} : vector<17x2x4xf32> to vector<17x1x4xf32>
    %95 = vector.broadcast %94 : vector<17x1x4xf32> to vector<17x2x4xf32>
    %96 = arith.mulf %84, %95 : vector<17x2x4xf32>
    %cst_26 = arith.constant dense<0.000000e+00> : vector<17x2xf32>
    %97 = vector.multi_reduction <add>, %96, %cst_26 [2] : vector<17x2x4xf32> to vector<17x2xf32>
    %98 = vector.shape_cast %97 : vector<17x2xf32> to vector<17x2x1xf32>
    %99 = tpu.concatenate %93, %98 in 2 : vector<17x2x1xf32>, vector<17x2x1xf32> -> vector<17x2x2xf32>
    %cst_27 = arith.constant dense<0xFF800000> : vector<17x2xf32>
    %100 = vector.multi_reduction <maximumf>, %99, %cst_27 [2] : vector<17x2x2xf32> to vector<17x2xf32>
    %101 = vector.shape_cast %100 : vector<17x2xf32> to vector<17x2x1xf32>
    %102 = vector.broadcast %101 : vector<17x2x1xf32> to vector<17x2x2xf32>
    %103 = arith.subf %99, %102 : vector<17x2x2xf32>
    %104 = math.exp %103 : vector<17x2x2xf32>
    %cst_28 = arith.constant dense<0.000000e+00> : vector<17x2xf32>
    %105 = vector.multi_reduction <add>, %104, %cst_28 [2] : vector<17x2x2xf32> to vector<17x2xf32>
    %106 = vector.shape_cast %105 : vector<17x2xf32> to vector<17x2x1xf32>
    %107 = vector.broadcast %106 : vector<17x2x1xf32> to vector<17x2x2xf32>
    %108 = arith.divf %104, %107 : vector<17x2x2xf32>
    %109 = vector.extract_strided_slice %108 {offsets = [0, 0, 0], sizes = [17, 2, 1], strides = [1, 1, 1]} : vector<17x2x2xf32> to vector<17x2x1xf32>
    %110 = vector.extract_strided_slice %88 {offsets = [0, 0, 0], sizes = [17, 1, 4], strides = [1, 1, 1]} : vector<17x2x4xf32> to vector<17x1x4xf32>
    %111 = vector.broadcast %109 : vector<17x2x1xf32> to vector<17x2x4xf32>
    %112 = vector.broadcast %110 : vector<17x1x4xf32> to vector<17x2x4xf32>
    %113 = arith.mulf %111, %112 : vector<17x2x4xf32>
    %114 = vector.extract_strided_slice %108 {offsets = [0, 0, 1], sizes = [17, 2, 1], strides = [1, 1, 1]} : vector<17x2x2xf32> to vector<17x2x1xf32>
    %115 = vector.extract_strided_slice %88 {offsets = [0, 1, 0], sizes = [17, 1, 4], strides = [1, 1, 1]} : vector<17x2x4xf32> to vector<17x1x4xf32>
    %116 = vector.broadcast %114 : vector<17x2x1xf32> to vector<17x2x4xf32>
    %117 = vector.broadcast %115 : vector<17x1x4xf32> to vector<17x2x4xf32>
    %118 = arith.mulf %116, %117 : vector<17x2x4xf32>
    %cst_29 = arith.constant 0.000000e+00 : f32
    %119 = vector.broadcast %cst_29 : f32 to vector<17x2x4xf32>
    %120 = arith.addf %119, %113 : vector<17x2x4xf32>
    %121 = arith.addf %120, %118 : vector<17x2x4xf32>
    %122 = vector.shape_cast %121 : vector<17x2x4xf32> to vector<34x4xf32>
    %123 = vector.extract_strided_slice %40 {offsets = [0, 8], sizes = [34, 4], strides = [1, 1]} : vector<34x32xf32> to vector<34x4xf32>
    %124 = vector.shape_cast %123 : vector<34x4xf32> to vector<17x2x4xf32>
    %125 = vector.extract_strided_slice %41 {offsets = [0, 8], sizes = [34, 4], strides = [1, 1]} : vector<34x32xf32> to vector<34x4xf32>
    %126 = vector.shape_cast %125 : vector<34x4xf32> to vector<17x2x4xf32>
    %127 = vector.extract_strided_slice %42 {offsets = [0, 8], sizes = [34, 4], strides = [1, 1]} : vector<34x32xf32> to vector<34x4xf32>
    %128 = vector.shape_cast %127 : vector<34x4xf32> to vector<17x2x4xf32>
    %129 = vector.extract_strided_slice %126 {offsets = [0, 0, 0], sizes = [17, 1, 4], strides = [1, 1, 1]} : vector<17x2x4xf32> to vector<17x1x4xf32>
    %130 = vector.broadcast %129 : vector<17x1x4xf32> to vector<17x2x4xf32>
    %131 = arith.mulf %124, %130 : vector<17x2x4xf32>
    %cst_30 = arith.constant dense<0.000000e+00> : vector<17x2xf32>
    %132 = vector.multi_reduction <add>, %131, %cst_30 [2] : vector<17x2x4xf32> to vector<17x2xf32>
    %133 = vector.shape_cast %132 : vector<17x2xf32> to vector<17x2x1xf32>
    %134 = vector.extract_strided_slice %126 {offsets = [0, 1, 0], sizes = [17, 1, 4], strides = [1, 1, 1]} : vector<17x2x4xf32> to vector<17x1x4xf32>
    %135 = vector.broadcast %134 : vector<17x1x4xf32> to vector<17x2x4xf32>
    %136 = arith.mulf %124, %135 : vector<17x2x4xf32>
    %cst_31 = arith.constant dense<0.000000e+00> : vector<17x2xf32>
    %137 = vector.multi_reduction <add>, %136, %cst_31 [2] : vector<17x2x4xf32> to vector<17x2xf32>
    %138 = vector.shape_cast %137 : vector<17x2xf32> to vector<17x2x1xf32>
    %139 = tpu.concatenate %133, %138 in 2 : vector<17x2x1xf32>, vector<17x2x1xf32> -> vector<17x2x2xf32>
    %cst_32 = arith.constant dense<0xFF800000> : vector<17x2xf32>
    %140 = vector.multi_reduction <maximumf>, %139, %cst_32 [2] : vector<17x2x2xf32> to vector<17x2xf32>
    %141 = vector.shape_cast %140 : vector<17x2xf32> to vector<17x2x1xf32>
    %142 = vector.broadcast %141 : vector<17x2x1xf32> to vector<17x2x2xf32>
    %143 = arith.subf %139, %142 : vector<17x2x2xf32>
    %144 = math.exp %143 : vector<17x2x2xf32>
    %cst_33 = arith.constant dense<0.000000e+00> : vector<17x2xf32>
    %145 = vector.multi_reduction <add>, %144, %cst_33 [2] : vector<17x2x2xf32> to vector<17x2xf32>
    %146 = vector.shape_cast %145 : vector<17x2xf32> to vector<17x2x1xf32>
    %147 = vector.broadcast %146 : vector<17x2x1xf32> to vector<17x2x2xf32>
    %148 = arith.divf %144, %147 : vector<17x2x2xf32>
    %149 = vector.extract_strided_slice %148 {offsets = [0, 0, 0], sizes = [17, 2, 1], strides = [1, 1, 1]} : vector<17x2x2xf32> to vector<17x2x1xf32>
    %150 = vector.extract_strided_slice %128 {offsets = [0, 0, 0], sizes = [17, 1, 4], strides = [1, 1, 1]} : vector<17x2x4xf32> to vector<17x1x4xf32>
    %151 = vector.broadcast %149 : vector<17x2x1xf32> to vector<17x2x4xf32>
    %152 = vector.broadcast %150 : vector<17x1x4xf32> to vector<17x2x4xf32>
    %153 = arith.mulf %151, %152 : vector<17x2x4xf32>
    %154 = vector.extract_strided_slice %148 {offsets = [0, 0, 1], sizes = [17, 2, 1], strides = [1, 1, 1]} : vector<17x2x2xf32> to vector<17x2x1xf32>
    %155 = vector.extract_strided_slice %128 {offsets = [0, 1, 0], sizes = [17, 1, 4], strides = [1, 1, 1]} : vector<17x2x4xf32> to vector<17x1x4xf32>
    %156 = vector.broadcast %154 : vector<17x2x1xf32> to vector<17x2x4xf32>
    %157 = vector.broadcast %155 : vector<17x1x4xf32> to vector<17x2x4xf32>
    %158 = arith.mulf %156, %157 : vector<17x2x4xf32>
    %cst_34 = arith.constant 0.000000e+00 : f32
    %159 = vector.broadcast %cst_34 : f32 to vector<17x2x4xf32>
    %160 = arith.addf %159, %153 : vector<17x2x4xf32>
    %161 = arith.addf %160, %158 : vector<17x2x4xf32>
    %162 = vector.shape_cast %161 : vector<17x2x4xf32> to vector<34x4xf32>
    %163 = vector.extract_strided_slice %40 {offsets = [0, 12], sizes = [34, 4], strides = [1, 1]} : vector<34x32xf32> to vector<34x4xf32>
    %164 = vector.shape_cast %163 : vector<34x4xf32> to vector<17x2x4xf32>
    %165 = vector.extract_strided_slice %41 {offsets = [0, 12], sizes = [34, 4], strides = [1, 1]} : vector<34x32xf32> to vector<34x4xf32>
    %166 = vector.shape_cast %165 : vector<34x4xf32> to vector<17x2x4xf32>
    %167 = vector.extract_strided_slice %42 {offsets = [0, 12], sizes = [34, 4], strides = [1, 1]} : vector<34x32xf32> to vector<34x4xf32>
    %168 = vector.shape_cast %167 : vector<34x4xf32> to vector<17x2x4xf32>
    %169 = vector.extract_strided_slice %166 {offsets = [0, 0, 0], sizes = [17, 1, 4], strides = [1, 1, 1]} : vector<17x2x4xf32> to vector<17x1x4xf32>
    %170 = vector.broadcast %169 : vector<17x1x4xf32> to vector<17x2x4xf32>
    %171 = arith.mulf %164, %170 : vector<17x2x4xf32>
    %cst_35 = arith.constant dense<0.000000e+00> : vector<17x2xf32>
    %172 = vector.multi_reduction <add>, %171, %cst_35 [2] : vector<17x2x4xf32> to vector<17x2xf32>
    %173 = vector.shape_cast %172 : vector<17x2xf32> to vector<17x2x1xf32>
    %174 = vector.extract_strided_slice %166 {offsets = [0, 1, 0], sizes = [17, 1, 4], strides = [1, 1, 1]} : vector<17x2x4xf32> to vector<17x1x4xf32>
    %175 = vector.broadcast %174 : vector<17x1x4xf32> to vector<17x2x4xf32>
    %176 = arith.mulf %164, %175 : vector<17x2x4xf32>
    %cst_36 = arith.constant dense<0.000000e+00> : vector<17x2xf32>
    %177 = vector.multi_reduction <add>, %176, %cst_36 [2] : vector<17x2x4xf32> to vector<17x2xf32>
    %178 = vector.shape_cast %177 : vector<17x2xf32> to vector<17x2x1xf32>
    %179 = tpu.concatenate %173, %178 in 2 : vector<17x2x1xf32>, vector<17x2x1xf32> -> vector<17x2x2xf32>
    %cst_37 = arith.constant dense<0xFF800000> : vector<17x2xf32>
    %180 = vector.multi_reduction <maximumf>, %179, %cst_37 [2] : vector<17x2x2xf32> to vector<17x2xf32>
    %181 = vector.shape_cast %180 : vector<17x2xf32> to vector<17x2x1xf32>
    %182 = vector.broadcast %181 : vector<17x2x1xf32> to vector<17x2x2xf32>
    %183 = arith.subf %179, %182 : vector<17x2x2xf32>
    %184 = math.exp %183 : vector<17x2x2xf32>
    %cst_38 = arith.constant dense<0.000000e+00> : vector<17x2xf32>
    %185 = vector.multi_reduction <add>, %184, %cst_38 [2] : vector<17x2x2xf32> to vector<17x2xf32>
    %186 = vector.shape_cast %185 : vector<17x2xf32> to vector<17x2x1xf32>
    %187 = vector.broadcast %186 : vector<17x2x1xf32> to vector<17x2x2xf32>
    %188 = arith.divf %184, %187 : vector<17x2x2xf32>
    %189 = vector.extract_strided_slice %188 {offsets = [0, 0, 0], sizes = [17, 2, 1], strides = [1, 1, 1]} : vector<17x2x2xf32> to vector<17x2x1xf32>
    %190 = vector.extract_strided_slice %168 {offsets = [0, 0, 0], sizes = [17, 1, 4], strides = [1, 1, 1]} : vector<17x2x4xf32> to vector<17x1x4xf32>
    %191 = vector.broadcast %189 : vector<17x2x1xf32> to vector<17x2x4xf32>
    %192 = vector.broadcast %190 : vector<17x1x4xf32> to vector<17x2x4xf32>
    %193 = arith.mulf %191, %192 : vector<17x2x4xf32>
    %194 = vector.extract_strided_slice %188 {offsets = [0, 0, 1], sizes = [17, 2, 1], strides = [1, 1, 1]} : vector<17x2x2xf32> to vector<17x2x1xf32>
    %195 = vector.extract_strided_slice %168 {offsets = [0, 1, 0], sizes = [17, 1, 4], strides = [1, 1, 1]} : vector<17x2x4xf32> to vector<17x1x4xf32>
    %196 = vector.broadcast %194 : vector<17x2x1xf32> to vector<17x2x4xf32>
    %197 = vector.broadcast %195 : vector<17x1x4xf32> to vector<17x2x4xf32>
    %198 = arith.mulf %196, %197 : vector<17x2x4xf32>
    %cst_39 = arith.constant 0.000000e+00 : f32
    %199 = vector.broadcast %cst_39 : f32 to vector<17x2x4xf32>
    %200 = arith.addf %199, %193 : vector<17x2x4xf32>
    %201 = arith.addf %200, %198 : vector<17x2x4xf32>
    %202 = vector.shape_cast %201 : vector<17x2x4xf32> to vector<34x4xf32>
    %203 = vector.extract_strided_slice %40 {offsets = [0, 16], sizes = [34, 4], strides = [1, 1]} : vector<34x32xf32> to vector<34x4xf32>
    %204 = vector.shape_cast %203 : vector<34x4xf32> to vector<17x2x4xf32>
    %205 = vector.extract_strided_slice %41 {offsets = [0, 16], sizes = [34, 4], strides = [1, 1]} : vector<34x32xf32> to vector<34x4xf32>
    %206 = vector.shape_cast %205 : vector<34x4xf32> to vector<17x2x4xf32>
    %207 = vector.extract_strided_slice %42 {offsets = [0, 16], sizes = [34, 4], strides = [1, 1]} : vector<34x32xf32> to vector<34x4xf32>
    %208 = vector.shape_cast %207 : vector<34x4xf32> to vector<17x2x4xf32>
    %209 = vector.extract_strided_slice %206 {offsets = [0, 0, 0], sizes = [17, 1, 4], strides = [1, 1, 1]} : vector<17x2x4xf32> to vector<17x1x4xf32>
    %210 = vector.broadcast %209 : vector<17x1x4xf32> to vector<17x2x4xf32>
    %211 = arith.mulf %204, %210 : vector<17x2x4xf32>
    %cst_40 = arith.constant dense<0.000000e+00> : vector<17x2xf32>
    %212 = vector.multi_reduction <add>, %211, %cst_40 [2] : vector<17x2x4xf32> to vector<17x2xf32>
    %213 = vector.shape_cast %212 : vector<17x2xf32> to vector<17x2x1xf32>
    %214 = vector.extract_strided_slice %206 {offsets = [0, 1, 0], sizes = [17, 1, 4], strides = [1, 1, 1]} : vector<17x2x4xf32> to vector<17x1x4xf32>
    %215 = vector.broadcast %214 : vector<17x1x4xf32> to vector<17x2x4xf32>
    %216 = arith.mulf %204, %215 : vector<17x2x4xf32>
    %cst_41 = arith.constant dense<0.000000e+00> : vector<17x2xf32>
    %217 = vector.multi_reduction <add>, %216, %cst_41 [2] : vector<17x2x4xf32> to vector<17x2xf32>
    %218 = vector.shape_cast %217 : vector<17x2xf32> to vector<17x2x1xf32>
    %219 = tpu.concatenate %213, %218 in 2 : vector<17x2x1xf32>, vector<17x2x1xf32> -> vector<17x2x2xf32>
    %cst_42 = arith.constant dense<0xFF800000> : vector<17x2xf32>
    %220 = vector.multi_reduction <maximumf>, %219, %cst_42 [2] : vector<17x2x2xf32> to vector<17x2xf32>
    %221 = vector.shape_cast %220 : vector<17x2xf32> to vector<17x2x1xf32>
    %222 = vector.broadcast %221 : vector<17x2x1xf32> to vector<17x2x2xf32>
    %223 = arith.subf %219, %222 : vector<17x2x2xf32>
    %224 = math.exp %223 : vector<17x2x2xf32>
    %cst_43 = arith.constant dense<0.000000e+00> : vector<17x2xf32>
    %225 = vector.multi_reduction <add>, %224, %cst_43 [2] : vector<17x2x2xf32> to vector<17x2xf32>
    %226 = vector.shape_cast %225 : vector<17x2xf32> to vector<17x2x1xf32>
    %227 = vector.broadcast %226 : vector<17x2x1xf32> to vector<17x2x2xf32>
    %228 = arith.divf %224, %227 : vector<17x2x2xf32>
    %229 = vector.extract_strided_slice %228 {offsets = [0, 0, 0], sizes = [17, 2, 1], strides = [1, 1, 1]} : vector<17x2x2xf32> to vector<17x2x1xf32>
    %230 = vector.extract_strided_slice %208 {offsets = [0, 0, 0], sizes = [17, 1, 4], strides = [1, 1, 1]} : vector<17x2x4xf32> to vector<17x1x4xf32>
    %231 = vector.broadcast %229 : vector<17x2x1xf32> to vector<17x2x4xf32>
    %232 = vector.broadcast %230 : vector<17x1x4xf32> to vector<17x2x4xf32>
    %233 = arith.mulf %231, %232 : vector<17x2x4xf32>
    %234 = vector.extract_strided_slice %228 {offsets = [0, 0, 1], sizes = [17, 2, 1], strides = [1, 1, 1]} : vector<17x2x2xf32> to vector<17x2x1xf32>
    %235 = vector.extract_strided_slice %208 {offsets = [0, 1, 0], sizes = [17, 1, 4], strides = [1, 1, 1]} : vector<17x2x4xf32> to vector<17x1x4xf32>
    %236 = vector.broadcast %234 : vector<17x2x1xf32> to vector<17x2x4xf32>
    %237 = vector.broadcast %235 : vector<17x1x4xf32> to vector<17x2x4xf32>
    %238 = arith.mulf %236, %237 : vector<17x2x4xf32>
    %cst_44 = arith.constant 0.000000e+00 : f32
    %239 = vector.broadcast %cst_44 : f32 to vector<17x2x4xf32>
    %240 = arith.addf %239, %233 : vector<17x2x4xf32>
    %241 = arith.addf %240, %238 : vector<17x2x4xf32>
    %242 = vector.shape_cast %241 : vector<17x2x4xf32> to vector<34x4xf32>
    %243 = vector.extract_strided_slice %40 {offsets = [0, 20], sizes = [34, 4], strides = [1, 1]} : vector<34x32xf32> to vector<34x4xf32>
    %244 = vector.shape_cast %243 : vector<34x4xf32> to vector<17x2x4xf32>
    %245 = vector.extract_strided_slice %41 {offsets = [0, 20], sizes = [34, 4], strides = [1, 1]} : vector<34x32xf32> to vector<34x4xf32>
    %246 = vector.shape_cast %245 : vector<34x4xf32> to vector<17x2x4xf32>
    %247 = vector.extract_strided_slice %42 {offsets = [0, 20], sizes = [34, 4], strides = [1, 1]} : vector<34x32xf32> to vector<34x4xf32>
    %248 = vector.shape_cast %247 : vector<34x4xf32> to vector<17x2x4xf32>
    %249 = vector.extract_strided_slice %246 {offsets = [0, 0, 0], sizes = [17, 1, 4], strides = [1, 1, 1]} : vector<17x2x4xf32> to vector<17x1x4xf32>
    %250 = vector.broadcast %249 : vector<17x1x4xf32> to vector<17x2x4xf32>
    %251 = arith.mulf %244, %250 : vector<17x2x4xf32>
    %cst_45 = arith.constant dense<0.000000e+00> : vector<17x2xf32>
    %252 = vector.multi_reduction <add>, %251, %cst_45 [2] : vector<17x2x4xf32> to vector<17x2xf32>
    %253 = vector.shape_cast %252 : vector<17x2xf32> to vector<17x2x1xf32>
    %254 = vector.extract_strided_slice %246 {offsets = [0, 1, 0], sizes = [17, 1, 4], strides = [1, 1, 1]} : vector<17x2x4xf32> to vector<17x1x4xf32>
    %255 = vector.broadcast %254 : vector<17x1x4xf32> to vector<17x2x4xf32>
    %256 = arith.mulf %244, %255 : vector<17x2x4xf32>
    %cst_46 = arith.constant dense<0.000000e+00> : vector<17x2xf32>
    %257 = vector.multi_reduction <add>, %256, %cst_46 [2] : vector<17x2x4xf32> to vector<17x2xf32>
    %258 = vector.shape_cast %257 : vector<17x2xf32> to vector<17x2x1xf32>
    %259 = tpu.concatenate %253, %258 in 2 : vector<17x2x1xf32>, vector<17x2x1xf32> -> vector<17x2x2xf32>
    %cst_47 = arith.constant dense<0xFF800000> : vector<17x2xf32>
    %260 = vector.multi_reduction <maximumf>, %259, %cst_47 [2] : vector<17x2x2xf32> to vector<17x2xf32>
    %261 = vector.shape_cast %260 : vector<17x2xf32> to vector<17x2x1xf32>
    %262 = vector.broadcast %261 : vector<17x2x1xf32> to vector<17x2x2xf32>
    %263 = arith.subf %259, %262 : vector<17x2x2xf32>
    %264 = math.exp %263 : vector<17x2x2xf32>
    %cst_48 = arith.constant dense<0.000000e+00> : vector<17x2xf32>
    %265 = vector.multi_reduction <add>, %264, %cst_48 [2] : vector<17x2x2xf32> to vector<17x2xf32>
    %266 = vector.shape_cast %265 : vector<17x2xf32> to vector<17x2x1xf32>
    %267 = vector.broadcast %266 : vector<17x2x1xf32> to vector<17x2x2xf32>
    %268 = arith.divf %264, %267 : vector<17x2x2xf32>
    %269 = vector.extract_strided_slice %268 {offsets = [0, 0, 0], sizes = [17, 2, 1], strides = [1, 1, 1]} : vector<17x2x2xf32> to vector<17x2x1xf32>
    %270 = vector.extract_strided_slice %248 {offsets = [0, 0, 0], sizes = [17, 1, 4], strides = [1, 1, 1]} : vector<17x2x4xf32> to vector<17x1x4xf32>
    %271 = vector.broadcast %269 : vector<17x2x1xf32> to vector<17x2x4xf32>
    %272 = vector.broadcast %270 : vector<17x1x4xf32> to vector<17x2x4xf32>
    %273 = arith.mulf %271, %272 : vector<17x2x4xf32>
    %274 = vector.extract_strided_slice %268 {offsets = [0, 0, 1], sizes = [17, 2, 1], strides = [1, 1, 1]} : vector<17x2x2xf32> to vector<17x2x1xf32>
    %275 = vector.extract_strided_slice %248 {offsets = [0, 1, 0], sizes = [17, 1, 4], strides = [1, 1, 1]} : vector<17x2x4xf32> to vector<17x1x4xf32>
    %276 = vector.broadcast %274 : vector<17x2x1xf32> to vector<17x2x4xf32>
    %277 = vector.broadcast %275 : vector<17x1x4xf32> to vector<17x2x4xf32>
    %278 = arith.mulf %276, %277 : vector<17x2x4xf32>
    %cst_49 = arith.constant 0.000000e+00 : f32
    %279 = vector.broadcast %cst_49 : f32 to vector<17x2x4xf32>
    %280 = arith.addf %279, %273 : vector<17x2x4xf32>
    %281 = arith.addf %280, %278 : vector<17x2x4xf32>
    %282 = vector.shape_cast %281 : vector<17x2x4xf32> to vector<34x4xf32>
    %283 = vector.extract_strided_slice %40 {offsets = [0, 24], sizes = [34, 4], strides = [1, 1]} : vector<34x32xf32> to vector<34x4xf32>
    %284 = vector.shape_cast %283 : vector<34x4xf32> to vector<17x2x4xf32>
    %285 = vector.extract_strided_slice %41 {offsets = [0, 24], sizes = [34, 4], strides = [1, 1]} : vector<34x32xf32> to vector<34x4xf32>
    %286 = vector.shape_cast %285 : vector<34x4xf32> to vector<17x2x4xf32>
    %287 = vector.extract_strided_slice %42 {offsets = [0, 24], sizes = [34, 4], strides = [1, 1]} : vector<34x32xf32> to vector<34x4xf32>
    %288 = vector.shape_cast %287 : vector<34x4xf32> to vector<17x2x4xf32>
    %289 = vector.extract_strided_slice %286 {offsets = [0, 0, 0], sizes = [17, 1, 4], strides = [1, 1, 1]} : vector<17x2x4xf32> to vector<17x1x4xf32>
    %290 = vector.broadcast %289 : vector<17x1x4xf32> to vector<17x2x4xf32>
    %291 = arith.mulf %284, %290 : vector<17x2x4xf32>
    %cst_50 = arith.constant dense<0.000000e+00> : vector<17x2xf32>
    %292 = vector.multi_reduction <add>, %291, %cst_50 [2] : vector<17x2x4xf32> to vector<17x2xf32>
    %293 = vector.shape_cast %292 : vector<17x2xf32> to vector<17x2x1xf32>
    %294 = vector.extract_strided_slice %286 {offsets = [0, 1, 0], sizes = [17, 1, 4], strides = [1, 1, 1]} : vector<17x2x4xf32> to vector<17x1x4xf32>
    %295 = vector.broadcast %294 : vector<17x1x4xf32> to vector<17x2x4xf32>
    %296 = arith.mulf %284, %295 : vector<17x2x4xf32>
    %cst_51 = arith.constant dense<0.000000e+00> : vector<17x2xf32>
    %297 = vector.multi_reduction <add>, %296, %cst_51 [2] : vector<17x2x4xf32> to vector<17x2xf32>
    %298 = vector.shape_cast %297 : vector<17x2xf32> to vector<17x2x1xf32>
    %299 = tpu.concatenate %293, %298 in 2 : vector<17x2x1xf32>, vector<17x2x1xf32> -> vector<17x2x2xf32>
    %cst_52 = arith.constant dense<0xFF800000> : vector<17x2xf32>
    %300 = vector.multi_reduction <maximumf>, %299, %cst_52 [2] : vector<17x2x2xf32> to vector<17x2xf32>
    %301 = vector.shape_cast %300 : vector<17x2xf32> to vector<17x2x1xf32>
    %302 = vector.broadcast %301 : vector<17x2x1xf32> to vector<17x2x2xf32>
    %303 = arith.subf %299, %302 : vector<17x2x2xf32>
    %304 = math.exp %303 : vector<17x2x2xf32>
    %cst_53 = arith.constant dense<0.000000e+00> : vector<17x2xf32>
    %305 = vector.multi_reduction <add>, %304, %cst_53 [2] : vector<17x2x2xf32> to vector<17x2xf32>
    %306 = vector.shape_cast %305 : vector<17x2xf32> to vector<17x2x1xf32>
    %307 = vector.broadcast %306 : vector<17x2x1xf32> to vector<17x2x2xf32>
    %308 = arith.divf %304, %307 : vector<17x2x2xf32>
    %309 = vector.extract_strided_slice %308 {offsets = [0, 0, 0], sizes = [17, 2, 1], strides = [1, 1, 1]} : vector<17x2x2xf32> to vector<17x2x1xf32>
    %310 = vector.extract_strided_slice %288 {offsets = [0, 0, 0], sizes = [17, 1, 4], strides = [1, 1, 1]} : vector<17x2x4xf32> to vector<17x1x4xf32>
    %311 = vector.broadcast %309 : vector<17x2x1xf32> to vector<17x2x4xf32>
    %312 = vector.broadcast %310 : vector<17x1x4xf32> to vector<17x2x4xf32>
    %313 = arith.mulf %311, %312 : vector<17x2x4xf32>
    %314 = vector.extract_strided_slice %308 {offsets = [0, 0, 1], sizes = [17, 2, 1], strides = [1, 1, 1]} : vector<17x2x2xf32> to vector<17x2x1xf32>
    %315 = vector.extract_strided_slice %288 {offsets = [0, 1, 0], sizes = [17, 1, 4], strides = [1, 1, 1]} : vector<17x2x4xf32> to vector<17x1x4xf32>
    %316 = vector.broadcast %314 : vector<17x2x1xf32> to vector<17x2x4xf32>
    %317 = vector.broadcast %315 : vector<17x1x4xf32> to vector<17x2x4xf32>
    %318 = arith.mulf %316, %317 : vector<17x2x4xf32>
    %cst_54 = arith.constant 0.000000e+00 : f32
    %319 = vector.broadcast %cst_54 : f32 to vector<17x2x4xf32>
    %320 = arith.addf %319, %313 : vector<17x2x4xf32>
    %321 = arith.addf %320, %318 : vector<17x2x4xf32>
    %322 = vector.shape_cast %321 : vector<17x2x4xf32> to vector<34x4xf32>
    %323 = vector.extract_strided_slice %40 {offsets = [0, 28], sizes = [34, 4], strides = [1, 1]} : vector<34x32xf32> to vector<34x4xf32>
    %324 = vector.shape_cast %323 : vector<34x4xf32> to vector<17x2x4xf32>
    %325 = vector.extract_strided_slice %41 {offsets = [0, 28], sizes = [34, 4], strides = [1, 1]} : vector<34x32xf32> to vector<34x4xf32>
    %326 = vector.shape_cast %325 : vector<34x4xf32> to vector<17x2x4xf32>
    %327 = vector.extract_strided_slice %42 {offsets = [0, 28], sizes = [34, 4], strides = [1, 1]} : vector<34x32xf32> to vector<34x4xf32>
    %328 = vector.shape_cast %327 : vector<34x4xf32> to vector<17x2x4xf32>
    %329 = vector.extract_strided_slice %326 {offsets = [0, 0, 0], sizes = [17, 1, 4], strides = [1, 1, 1]} : vector<17x2x4xf32> to vector<17x1x4xf32>
    %330 = vector.broadcast %329 : vector<17x1x4xf32> to vector<17x2x4xf32>
    %331 = arith.mulf %324, %330 : vector<17x2x4xf32>
    %cst_55 = arith.constant dense<0.000000e+00> : vector<17x2xf32>
    %332 = vector.multi_reduction <add>, %331, %cst_55 [2] : vector<17x2x4xf32> to vector<17x2xf32>
    %333 = vector.shape_cast %332 : vector<17x2xf32> to vector<17x2x1xf32>
    %334 = vector.extract_strided_slice %326 {offsets = [0, 1, 0], sizes = [17, 1, 4], strides = [1, 1, 1]} : vector<17x2x4xf32> to vector<17x1x4xf32>
    %335 = vector.broadcast %334 : vector<17x1x4xf32> to vector<17x2x4xf32>
    %336 = arith.mulf %324, %335 : vector<17x2x4xf32>
    %cst_56 = arith.constant dense<0.000000e+00> : vector<17x2xf32>
    %337 = vector.multi_reduction <add>, %336, %cst_56 [2] : vector<17x2x4xf32> to vector<17x2xf32>
    %338 = vector.shape_cast %337 : vector<17x2xf32> to vector<17x2x1xf32>
    %339 = tpu.concatenate %333, %338 in 2 : vector<17x2x1xf32>, vector<17x2x1xf32> -> vector<17x2x2xf32>
    %cst_57 = arith.constant dense<0xFF800000> : vector<17x2xf32>
    %340 = vector.multi_reduction <maximumf>, %339, %cst_57 [2] : vector<17x2x2xf32> to vector<17x2xf32>
    %341 = vector.shape_cast %340 : vector<17x2xf32> to vector<17x2x1xf32>
    %342 = vector.broadcast %341 : vector<17x2x1xf32> to vector<17x2x2xf32>
    %343 = arith.subf %339, %342 : vector<17x2x2xf32>
    %344 = math.exp %343 : vector<17x2x2xf32>
    %cst_58 = arith.constant dense<0.000000e+00> : vector<17x2xf32>
    %345 = vector.multi_reduction <add>, %344, %cst_58 [2] : vector<17x2x2xf32> to vector<17x2xf32>
    %346 = vector.shape_cast %345 : vector<17x2xf32> to vector<17x2x1xf32>
    %347 = vector.broadcast %346 : vector<17x2x1xf32> to vector<17x2x2xf32>
    %348 = arith.divf %344, %347 : vector<17x2x2xf32>
    %349 = vector.extract_strided_slice %348 {offsets = [0, 0, 0], sizes = [17, 2, 1], strides = [1, 1, 1]} : vector<17x2x2xf32> to vector<17x2x1xf32>
    %350 = vector.extract_strided_slice %328 {offsets = [0, 0, 0], sizes = [17, 1, 4], strides = [1, 1, 1]} : vector<17x2x4xf32> to vector<17x1x4xf32>
    %351 = vector.broadcast %349 : vector<17x2x1xf32> to vector<17x2x4xf32>
    %352 = vector.broadcast %350 : vector<17x1x4xf32> to vector<17x2x4xf32>
    %353 = arith.mulf %351, %352 : vector<17x2x4xf32>
    %354 = vector.extract_strided_slice %348 {offsets = [0, 0, 1], sizes = [17, 2, 1], strides = [1, 1, 1]} : vector<17x2x2xf32> to vector<17x2x1xf32>
    %355 = vector.extract_strided_slice %328 {offsets = [0, 1, 0], sizes = [17, 1, 4], strides = [1, 1, 1]} : vector<17x2x4xf32> to vector<17x1x4xf32>
    %356 = vector.broadcast %354 : vector<17x2x1xf32> to vector<17x2x4xf32>
    %357 = vector.broadcast %355 : vector<17x1x4xf32> to vector<17x2x4xf32>
    %358 = arith.mulf %356, %357 : vector<17x2x4xf32>
    %cst_59 = arith.constant 0.000000e+00 : f32
    %359 = vector.broadcast %cst_59 : f32 to vector<17x2x4xf32>
    %360 = arith.addf %359, %353 : vector<17x2x4xf32>
    %361 = arith.addf %360, %358 : vector<17x2x4xf32>
    %362 = vector.shape_cast %361 : vector<17x2x4xf32> to vector<34x4xf32>
    %363 = tpu.concatenate %82, %122, %162, %202, %242, %282, %322, %362 in 1 : vector<34x4xf32>, vector<34x4xf32>, vector<34x4xf32>, vector<34x4xf32>, vector<34x4xf32>, vector<34x4xf32>, vector<34x4xf32>, vector<34x4xf32> -> vector<34x32xf32>
    %364 = arith.truncf %363 : vector<34x32xf32> to vector<34x32xbf16>
    %c0_60 = arith.constant 0 : index
    %c0_61 = arith.constant 0 : index
    %c0_62 = arith.constant 0 : index
    %365 = vector.load %arg5[%c0_60, %c0_61, %c0_62] : memref<1x32x32xbf16, #tpu.memory_space<vmem>>, vector<1x32x32xbf16>
    %366 = vector.shape_cast %365 : vector<1x32x32xbf16> to vector<32x32xbf16>
    %cst_63 = arith.constant dense<0.000000e+00> : vector<34x32xf32>
    %367 = tpu.matmul %364, %366, %cst_63 {dimension_numbers = #tpu.dot_dimension_numbers<[1], [0], [0], [1], [0, 0, 1, 1], [], []>} : vector<34x32xbf16>, vector<32x32xbf16>, vector<34x32xf32> -> vector<34x32xf32>
    %c0_64 = arith.constant 0 : index
    %c0_65 = arith.constant 0 : index
    %c0_66 = arith.constant 0 : index
    %368 = vector.load %arg6[%c0_64, %c0_65, %c0_66] : memref<1x1x32xf32, #tpu.memory_space<vmem>>, vector<1x1x32xf32>
    %369 = vector.shape_cast %368 : vector<1x1x32xf32> to vector<1x32xf32>
    %370 = vector.broadcast %369 : vector<1x32xf32> to vector<34x32xf32>
    %371 = arith.addf %367, %370 : vector<34x32xf32>
    %372 = arith.addf %3, %371 : vector<34x32xf32>
    %c0_67 = arith.constant 0 : index
    %c0_68 = arith.constant 0 : index
    %c0_69 = arith.constant 0 : index
    %373 = vector.load %arg9[%c0_67, %c0_68, %c0_69] : memref<1x1x32xf32, #tpu.memory_space<vmem>>, vector<1x1x32xf32>
    %374 = vector.shape_cast %373 : vector<1x1x32xf32> to vector<1x32xf32>
    %c0_70 = arith.constant 0 : index
    %c0_71 = arith.constant 0 : index
    %c0_72 = arith.constant 0 : index
    %375 = vector.load %arg10[%c0_70, %c0_71, %c0_72] : memref<1x1x32xf32, #tpu.memory_space<vmem>>, vector<1x1x32xf32>
    %376 = vector.shape_cast %375 : vector<1x1x32xf32> to vector<1x32xf32>
    %cst_73 = arith.constant dense<0.000000e+00> : vector<34xf32>
    %377 = vector.multi_reduction <add>, %372, %cst_73 [1] : vector<34x32xf32> to vector<34xf32>
    %378 = vector.shape_cast %377 : vector<34xf32> to vector<34x1xf32>
    %cst_74 = arith.constant 3.200000e+01 : f32
    %379 = vector.broadcast %cst_74 : f32 to vector<34x1xf32>
    %380 = arith.divf %378, %379 : vector<34x1xf32>
    %381 = vector.broadcast %380 : vector<34x1xf32> to vector<34x32xf32>
    %382 = arith.subf %372, %381 : vector<34x32xf32>
    %383 = arith.mulf %382, %382 : vector<34x32xf32>
    %cst_75 = arith.constant dense<0.000000e+00> : vector<34xf32>
    %384 = vector.multi_reduction <add>, %383, %cst_75 [1] : vector<34x32xf32> to vector<34xf32>
    %385 = vector.shape_cast %384 : vector<34xf32> to vector<34x1xf32>
    %cst_76 = arith.constant 3.200000e+01 : f32
    %386 = vector.broadcast %cst_76 : f32 to vector<34x1xf32>
    %387 = arith.divf %385, %386 : vector<34x1xf32>
    %388 = vector.broadcast %380 : vector<34x1xf32> to vector<34x32xf32>
    %389 = arith.subf %372, %388 : vector<34x32xf32>
    %cst_77 = arith.constant 9.99999974E-6 : f32
    %390 = vector.broadcast %cst_77 : f32 to vector<34x1xf32>
    %391 = arith.addf %387, %390 : vector<34x1xf32>
    %392 = math.rsqrt %391 : vector<34x1xf32>
    %393 = vector.broadcast %392 : vector<34x1xf32> to vector<34x32xf32>
    %394 = arith.mulf %389, %393 : vector<34x32xf32>
    %395 = vector.broadcast %374 : vector<1x32xf32> to vector<34x32xf32>
    %396 = arith.mulf %394, %395 : vector<34x32xf32>
    %397 = vector.broadcast %376 : vector<1x32xf32> to vector<34x32xf32>
    %398 = arith.addf %396, %397 : vector<34x32xf32>
    %399 = arith.truncf %398 : vector<34x32xf32> to vector<34x32xbf16>
    %c0_78 = arith.constant 0 : index
    %c0_79 = arith.constant 0 : index
    %c0_80 = arith.constant 0 : index
    %400 = vector.load %arg11[%c0_78, %c0_79, %c0_80] : memref<1x32x2048xbf16, #tpu.memory_space<vmem>>, vector<1x32x2048xbf16>
    %401 = vector.shape_cast %400 : vector<1x32x2048xbf16> to vector<32x2048xbf16>
    %cst_81 = arith.constant dense<0.000000e+00> : vector<34x2048xf32>
    %402 = tpu.matmul %399, %401, %cst_81 {dimension_numbers = #tpu.dot_dimension_numbers<[1], [0], [0], [1], [0, 0, 1, 1], [], []>} : vector<34x32xbf16>, vector<32x2048xbf16>, vector<34x2048xf32> -> vector<34x2048xf32>
    %c0_82 = arith.constant 0 : index
    %c0_83 = arith.constant 0 : index
    %c0_84 = arith.constant 0 : index
    %403 = vector.load %arg12[%c0_82, %c0_83, %c0_84] : memref<1x1x2048xf32, #tpu.memory_space<vmem>>, vector<1x1x2048xf32>
    %404 = vector.shape_cast %403 : vector<1x1x2048xf32> to vector<1x2048xf32>
    %405 = vector.broadcast %404 : vector<1x2048xf32> to vector<34x2048xf32>
    %406 = arith.addf %402, %405 : vector<34x2048xf32>
    %cst_85 = arith.constant 0.000000e+00 : f32
    %407 = vector.broadcast %cst_85 : f32 to vector<34x2048xf32>
    %408 = arith.maximumf %406, %407 : vector<34x2048xf32>
    %409 = arith.truncf %408 : vector<34x2048xf32> to vector<34x2048xbf16>
    %c0_86 = arith.constant 0 : index
    %c0_87 = arith.constant 0 : index
    %c0_88 = arith.constant 0 : index
    %410 = vector.load %arg13[%c0_86, %c0_87, %c0_88] : memref<1x2048x32xbf16, #tpu.memory_space<vmem>>, vector<1x2048x32xbf16>
    %411 = vector.shape_cast %410 : vector<1x2048x32xbf16> to vector<2048x32xbf16>
    %cst_89 = arith.constant dense<0.000000e+00> : vector<34x32xf32>
    %412 = tpu.matmul %409, %411, %cst_89 {dimension_numbers = #tpu.dot_dimension_numbers<[1], [0], [0], [1], [0, 0, 1, 1], [], []>} : vector<34x2048xbf16>, vector<2048x32xbf16>, vector<34x32xf32> -> vector<34x32xf32>
    %c0_90 = arith.constant 0 : index
    %c0_91 = arith.constant 0 : index
    %c0_92 = arith.constant 0 : index
    %413 = vector.load %arg14[%c0_90, %c0_91, %c0_92] : memref<1x1x32xf32, #tpu.memory_space<vmem>>, vector<1x1x32xf32>
    %414 = vector.shape_cast %413 : vector<1x1x32xf32> to vector<1x32xf32>
    %415 = vector.broadcast %414 : vector<1x32xf32> to vector<34x32xf32>
    %416 = arith.addf %412, %415 : vector<34x32xf32>
    %417 = arith.addf %372, %416 : vector<34x32xf32>
    %c0_93 = arith.constant 0 : index
    %c0_94 = arith.constant 0 : index
    %418 = vector.load %arg16[%c0_93, %c0_94] : memref<34x32xf32, #tpu.memory_space<vmem>>, vector<34x32xf32>
    tpu.vector_store %arg16[%c0_93, %c0_94], %417 {strides = array<i32>} : memref<34x32xf32, #tpu.memory_space<vmem>>, vector<34x32xf32>,
    %c3_i32 = arith.constant 3 : i32
    %419 = arith.cmpi eq, %arg1, %c3_i32 : i32
    %420 = arith.extui %419 : i1 to i32
    %c0_i32_95 = arith.constant 0 : i32
    %421 = arith.cmpi ne, %420, %c0_i32_95 : i32
    scf.if %421 {
      %c0_96 = arith.constant 0 : index
      %c0_97 = arith.constant 0 : index
      %422 = vector.load %arg15[%c0_96, %c0_97] : memref<34x32xf32, #tpu.memory_space<vmem>>, vector<34x32xf32>
      tpu.vector_store %arg15[%c0_96, %c0_97], %417 {strides = array<i32>} : memref<34x32xf32, #tpu.memory_space<vmem>>, vector<34x32xf32>,
    } else {
    }
    return
  }
  func.func @transform_0(%arg0: i32, %arg1: i32) -> (i32, i32) {
    %c0_i32 = arith.constant 0 : i32
    %c0_i32_0 = arith.constant 0 : i32
    return %arg0, %c0_i32 : i32, i32
  }
  func.func @transform_1(%arg0: i32, %arg1: i32) -> (i32, i32, i32) {
    %c0_i32 = arith.constant 0 : i32
    %c0_i32_0 = arith.constant 0 : i32
    %c0_i32_1 = arith.constant 0 : i32
    return %arg1, %c0_i32, %c0_i32_0 : i32, i32, i32
  }
  func.func @transform_2(%arg0: i32, %arg1: i32) -> (i32, i32, i32) {
    %c0_i32 = arith.constant 0 : i32
    %c0_i32_0 = arith.constant 0 : i32
    %c0_i32_1 = arith.constant 0 : i32
    return %arg1, %c0_i32, %c0_i32_0 : i32, i32, i32
  }
  func.func @transform_3(%arg0: i32, %arg1: i32) -> (i32, i32, i32) {
    %c0_i32 = arith.constant 0 : i32
    %c0_i32_0 = arith.constant 0 : i32
    %c0_i32_1 = arith.constant 0 : i32
    return %arg1, %c0_i32, %c0_i32_0 : i32, i32, i32
  }
  func.func @transform_4(%arg0: i32, %arg1: i32) -> (i32, i32, i32) {
    %c0_i32 = arith.constant 0 : i32
    %c0_i32_0 = arith.constant 0 : i32
    %c0_i32_1 = arith.constant 0 : i32
    return %arg1, %c0_i32, %c0_i32_0 : i32, i32, i32
  }
  func.func @transform_5(%arg0: i32, %arg1: i32) -> (i32, i32, i32) {
    %c0_i32 = arith.constant 0 : i32
    %c0_i32_0 = arith.constant 0 : i32
    %c0_i32_1 = arith.constant 0 : i32
    return %arg1, %c0_i32, %c0_i32_0 : i32, i32, i32
  }
  func.func @transform_6(%arg0: i32, %arg1: i32) -> (i32, i32, i32) {
    %c0_i32 = arith.constant 0 : i32
    %c0_i32_0 = arith.constant 0 : i32
    %c0_i32_1 = arith.constant 0 : i32
    return %arg1, %c0_i32, %c0_i32_0 : i32, i32, i32
  }
  func.func @transform_7(%arg0: i32, %arg1: i32) -> (i32, i32, i32) {
    %c0_i32 = arith.constant 0 : i32
    %c0_i32_0 = arith.constant 0 : i32
    %c0_i32_1 = arith.constant 0 : i32
    return %arg1, %c0_i32, %c0_i32_0 : i32, i32, i32
  }
  func.func @transform_8(%arg0: i32, %arg1: i32) -> (i32, i32, i32) {
    %c0_i32 = arith.constant 0 : i32
    %c0_i32_0 = arith.constant 0 : i32
    %c0_i32_1 = arith.constant 0 : i32
    return %arg1, %c0_i32, %c0_i32_0 : i32, i32, i32
  }
  func.func @transform_9(%arg0: i32, %arg1: i32) -> (i32, i32, i32) {
    %c0_i32 = arith.constant 0 : i32
    %c0_i32_0 = arith.constant 0 : i32
    %c0_i32_1 = arith.constant 0 : i32
    return %arg1, %c0_i32, %c0_i32_0 : i32, i32, i32
  }
  func.func @transform_10(%arg0: i32, %arg1: i32) -> (i32, i32, i32) {
    %c0_i32 = arith.constant 0 : i32
    %c0_i32_0 = arith.constant 0 : i32
    %c0_i32_1 = arith.constant 0 : i32
    return %arg1, %c0_i32, %c0_i32_0 : i32, i32, i32
  }
  func.func @transform_11(%arg0: i32, %arg1: i32) -> (i32, i32, i32) {
    %c0_i32 = arith.constant 0 : i32
    %c0_i32_0 = arith.constant 0 : i32
    %c0_i32_1 = arith.constant 0 : i32
    return %arg1, %c0_i32, %c0_i32_0 : i32, i32, i32
  }
  func.func @transform_12(%arg0: i32, %arg1: i32) -> (i32, i32, i32) {
    %c0_i32 = arith.constant 0 : i32
    %c0_i32_0 = arith.constant 0 : i32
    %c0_i32_1 = arith.constant 0 : i32
    return %arg1, %c0_i32, %c0_i32_0 : i32, i32, i32
  }
  func.func @transform_13(%arg0: i32, %arg1: i32) -> (i32, i32) {
    %c0_i32 = arith.constant 0 : i32
    %c0_i32_0 = arith.constant 0 : i32
    return %arg0, %c0_i32 : i32, i32
  }
}

</mosaic_0001>

<llo_original>
// kernel: image_transformer_forward.2
$region0: #{image_transformer_forward.2}
  #allocation0 [shape = 'u32[]', space=smem, size = 0x4, offset = 0x4, fixed_abs, tag = 'smem constant byte address 0x4 - core index']
  #allocation1 [shape = 'u32[144,128]{1,0:T(1,128)}', space=vmem, size = 0x12000, scoped, tag = 'internal scratch']
  #allocation2 [shape = 'f32[32,32]{1,0:T(8,128)}', space=vmem, size = 0x4000, scoped, tag = 'scratch operand']
  %s0 = inlined_call_operand.vmem [shape: bf16[32,64], index: 0, kind: input, shape index: {}]
  %s1 = inlined_call_operand.vmem [shape: bf16[64,32], index: 1, kind: input, shape index: {}]
  %s2 = inlined_call_operand.hbm [shape: f32[1,32], index: 2, kind: input, shape index: {}]
  %s3 = inlined_call_operand.vmem [shape: f32[32,32], index: 3, kind: output, shape index: {}]
  %s4 = sld [smem:[#allocation0]]
  $region34: #{image_transformer_forward.2} parent=0
    _
  %s6 = ssub.s32 1, %s4
  %s7 = scalar_select 0, %s6, %s4
  $region1: #{image_transformer_forward.2} parent=0
    #allocation3 [shape = 'u8[512]{0}', space=vmem, size = 0x400, scoped, tag = 'input window, operand 2, single buffered']
    #allocation4 [shape = 's32[1]{0}', space=sflag, size = 0x4, scoped, tag = 'scoped memory for image_transformer_forward.2']
    %8 = vsyncpa [#allocation4], 0
    // Predicated region
    $region2: #{image_transformer_forward.2} parent=1 // pred_check
      _
    $region3: #{image_transformer_forward.2} parent=1 // pred_check_branch
      %10 = sbr.rel (0) target = $region5
    $region4: #{image_transformer_forward.2} parent=1 // pred_region
      _
    $region5: #{image_transformer_forward.2} parent=1 // pred_fallthru
      _
    // Predicated region
    $region6: #{image_transformer_forward.2} parent=1 // pred_check
      _
    $region7: #{image_transformer_forward.2} parent=1 // pred_check_branch
      %12 = sbr.rel (0) target = $region9
    $region8: #{image_transformer_forward.2} parent=1 // pred_region
      _
    $region9: #{image_transformer_forward.2} parent=1 // pred_fallthru
      _
    // Predicated region
    $region10: #{image_transformer_forward.2} parent=1 // pred_check
      _
    $region11: #{image_transformer_forward.2} parent=1 // pred_check_branch
      %14 = sbr.rel (0) target = $region13
    $region12: #{image_transformer_forward.2} parent=1 // pred_region
      %s16 = ssub.s32 16, 16
      %17 = vsyncadd [#allocation4], %s16
      %s19 = sshll.u32 [#allocation3], 4
      %s20 = int_to_ptr.vmem [resolvable:$true] %s19
      %22 = dma.hbm_to_vmem [thread:$0]  %s2, 16, %s20, [#allocation4]
    $region13: #{image_transformer_forward.2} parent=1 // pred_fallthru
      _
    // Predicated region
    $region14: #{image_transformer_forward.2} parent=1 // pred_check
      _
    $region15: #{image_transformer_forward.2} parent=1 // pred_check_branch
      %24 = sbr.rel (0) target = $region17
    $region16: #{image_transformer_forward.2} parent=1 // pred_region
      %25 = dma.done [#allocation4], 16
    $region17: #{image_transformer_forward.2} parent=1 // pred_fallthru
      _
    %p27 = scmp.eq.s32.totalorder 0, 0
    // Predicated region
    $region18: #{image_transformer_forward.2} parent=1 // pred_check
      %p28 = pneg %p27
    $region19: #{image_transformer_forward.2} parent=1 // pred_check_branch
      %30 = sbr.rel (%p28) target = $region21
    $region20: #{image_transformer_forward.2} parent=1 // pred_region
      %vm31 = vcmask 261120
      %32 = vst.msk [vmem:[#allocation2] sm:$0xff] %vm31, 0.0
      %33 = vst.msk [vmem:[#allocation2 + $0x8] sm:$0xff] %vm31, 0.0
      %34 = vst.msk [vmem:[#allocation2 + $0x10] sm:$0xff] %vm31, 0.0
      %35 = vst.msk [vmem:[#allocation2 + $0x18] sm:$0xff] %vm31, 0.0
    $region21: #{image_transformer_forward.2} parent=1 // pred_fallthru
      _
    %v36 = vld [vmem:[#allocation2] sm:$0xff]
    %v37 = vld [vmem:[#allocation2 + $0x8] sm:$0xff]
    %v38 = vld [vmem:[#allocation2 + $0x10] sm:$0xff]
    %v39 = vld [vmem:[#allocation2 + $0x18] sm:$0xff]
    %v40 = vld [vmem:[%s0] sm:$0xf]
    %v41 = vld [vmem:[%s0 + $0x4] sm:$0xf]
    %v42 = vld [vmem:[%s0 + $0x8] sm:$0xf]
    %v43 = vld [vmem:[%s0 + $0xc] sm:$0xf]
    %v44 = vld [vmem:[%s1] sm:$0xf]
    %v45 = vld [vmem:[%s1 + $0x4] sm:$0xf]
    %v46 = vld [vmem:[%s1 + $0x8] sm:$0xf]
    %v47 = vld [vmem:[%s1 + $0xc] sm:$0xf]
    %v48 = vld [vmem:[%s1 + $0x10] sm:$0xf]
    %v49 = vld [vmem:[%s1 + $0x14] sm:$0xf]
    %v50 = vld [vmem:[%s1 + $0x18] sm:$0xf]
    %v51 = vld [vmem:[%s1 + $0x1c] sm:$0xf]
    %v56 = vunpack.c.l.b16 %v40
    %v57 = vunpack.c.l.b16 %v41
    %v58 = vunpack.c.l.b16 %v42
    %v59 = vunpack.c.l.b16 %v43
    %v60 = vpack.c.b16 %v57, %v56
    %v61 = vpack.c.b16 %v59, %v58
    %v70 = vunpack.c.l.b16 %v44
    %v71 = vunpack.c.l.b16 %v45
    %v72 = vunpack.c.l.b16 %v46
    %v73 = vunpack.c.l.b16 %v47
    %v74 = vunpack.c.l.b16 %v48
    %v75 = vunpack.c.l.b16 %v49
    %v76 = vunpack.c.l.b16 %v50
    %v77 = vunpack.c.l.b16 %v51
    %v78 = vpack.c.b16 %v71, %v70
    %v79 = vpack.c.b16 %v73, %v72
    %v80 = vpack.c.b16 %v75, %v74
    %v81 = vpack.c.b16 %v77, %v76
    %vm86 = vcmask 523264
    %v88 = vsel %vm86, %v60, 0
    %v91 = vsel %vm86, %v61, 0
    %93 = vmatprep.subr.bf16.mxu0 0
    %94 = vmatpush1.bf16.msra.mxu0 0
    %95 = vmatprep.subr.bf16.mxu0 0
    %96 = vmatpush1.bf16.msra.mxu0 0
    %97 = vmatprep.subr.bf16.mxu0 0
    %98 = vmatpush1.bf16.msra.mxu0 0
    %99 = vmatprep.subr.bf16.mxu0 0
    %100 = vmatpush1.bf16.msra.mxu0 0
    %101 = vmatprep.subr.bf16.mxu0 0
    %102 = vmatpush1.bf16.msra.mxu0 %v81
    %103 = vmatprep.subr.bf16.mxu0 0
    %104 = vmatpush1.bf16.msra.mxu0 %v80
    %105 = vmatprep.subr.bf16.mxu0 0
    %106 = vmatpush1.bf16.msra.mxu0 %v79
    %107 = vmatprep.subr.bf16.mxu0 0
    %108 = vmatpush1.bf16.msra.mxu0 %v78
    %109 = vmatprep.subr.bf16.mxu0 0
    %110 = vmatpush2.bf16.msra.mxu0 0
    %111 = vmatprep.subr.bf16.mxu0 0
    %112 = vmatpush2.bf16.msra.mxu0 0
    %113 = vmatprep.subr.bf16.mxu0 0
    %114 = vmatpush2.bf16.msra.mxu0 0
    %115 = vmatprep.subr.bf16.mxu0 0
    %116 = vmatpush2.bf16.msra.mxu0 0
    %117 = vmatprep.subr.bf16.mxu0 0
    %118 = vmatpush2.bf16.msra.mxu0 0
    %119 = vmatprep.subr.bf16.mxu0 0
    %120 = vmatpush2.bf16.msra.mxu0 0
    %121 = vmatprep.subr.bf16.mxu0 0
    %122 = vmatpush2.bf16.msra.mxu0 0
    %123 = vmatprep.subr.bf16.mxu0 0
    %124 = vmatpush2.bf16.msra.mxu0 0
    %125 = vmatprep.mubr.bf16.mxu0 0
    %126 = vmatmul.mubr.bf16.gmra.mxu0 %v88
    %v127 = vpop.f32.mrf.mxu0
    %v128 = vadd.f32 0.0, %v127
    %v129 = vpop.f32.mrf.mxu0
    %v130 = vpop.f32.mrf.mxu0
    %v131 = vadd.f32 0.0, %v130
    %v132 = vpop.f32.mrf.mxu0
    %133 = vmatprep.mubr.bf16.mxu0 0
    %134 = vmatmul.mubr.bf16.gmra.mxu0 %v91
    %v135 = vpop.f32.mrf.mxu0
    %v136 = vadd.f32 0.0, %v135
    %v137 = vpop.f32.mrf.mxu0
    %v138 = vpop.f32.mrf.mxu0
    %v139 = vadd.f32 0.0, %v138
    %v140 = vpop.f32.mrf.mxu0
    %141 = vdwg.mxu0
    %v142 = vadd.f32 %v36, %v128
    %v143 = vadd.f32 %v37, %v131
    %v144 = vadd.f32 %v38, %v136
    %v145 = vadd.f32 %v39, %v139
    %vm146 = vcmask 261120
    %147 = vst.msk [vmem:[#allocation2] sm:$0xff] %vm146, %v142
    %148 = vst.msk [vmem:[#allocation2 + $0x8] sm:$0xff] %vm146, %v143
    %149 = vst.msk [vmem:[#allocation2 + $0x10] sm:$0xff] %vm146, %v144
    %150 = vst.msk [vmem:[#allocation2 + $0x18] sm:$0xff] %vm146, %v145
    // Predicated region
    $region22: #{image_transformer_forward.2} parent=1 // pred_check
      %p151 = pneg %p27
    $region23: #{image_transformer_forward.2} parent=1 // pred_check_branch
      %153 = sbr.rel (%p151) target = $region25
    $region24: #{image_transformer_forward.2} parent=1 // pred_region
      %v154 = vld [vmem:[#allocation2] sm:$0xff]
      %v155 = vld [vmem:[#allocation2 + $0x8] sm:$0xff]
      %v156 = vld [vmem:[#allocation2 + $0x10] sm:$0xff]
      %v157 = vld [vmem:[#allocation2 + $0x18] sm:$0xff]
      %v158 = vld [vmem:[#allocation3] sm:$0x1]
      %v160 = vlaneseq
      %v161 = vshrl.u32 %v160, 7
      %v162 = vsub.s32 0, %v161
      %v163 = vrot.slane %v158, %v162
      %v165 = vadd.f32 %v154, %v163
      %v166 = vadd.f32 %v155, %v163
      %v167 = vadd.f32 %v156, %v163
      %v168 = vadd.f32 %v157, %v163
      %169 = vst.msk [vmem:[%s3] sm:$0xff] %vm146, %v165
      %170 = vst.msk [vmem:[%s3 + $0x8] sm:$0xff] %vm146, %v166
      %171 = vst.msk [vmem:[%s3 + $0x10] sm:$0xff] %vm146, %v167
      %172 = vst.msk [vmem:[%s3 + $0x18] sm:$0xff] %vm146, %v168
    $region25: #{image_transformer_forward.2} parent=1 // pred_fallthru
      _
    // Predicated region
    $region26: #{image_transformer_forward.2} parent=1 // pred_check
      _
    $region27: #{image_transformer_forward.2} parent=1 // pred_check_branch
      %174 = sbr.rel (0) target = $region29
    $region28: #{image_transformer_forward.2} parent=1 // pred_region
      _
    $region29: #{image_transformer_forward.2} parent=1 // pred_fallthru
      _
    // Predicated region
    $region30: #{image_transformer_forward.2} parent=1 // pred_check
      _
    $region31: #{image_transformer_forward.2} parent=1 // pred_check_branch
      %176 = sbr.rel (0) target = $region33
    $region32: #{image_transformer_forward.2} parent=1 // pred_region
      _
    $region33: #{image_transformer_forward.2} parent=1 // pred_fallthru
      _
    %177 = vsyncpa [#allocation4], 1

// kernel: image_transformer_forward.3
$region0: #{image_transformer_forward.3}
  #allocation0 [shape = 'u32[]', space=smem, size = 0x4, offset = 0x4, fixed_abs, tag = 'smem constant byte address 0x4 - core index']
  #allocation1 [shape = 'u32[144,128]{1,0:T(1,128)}', space=vmem, size = 0x12000, scoped, tag = 'internal scratch']
  #allocation2 [shape = 'f32[34,32]{1,0:T(8,128)}', space=vmem, size = 0x5000, scoped, tag = 'scratch operand']
  %s0 = inlined_call_operand.vmem [shape: f32[34,32], index: 0, kind: input, shape index: {}]
  %s1 = inlined_call_operand.vmem [shape: bf16[4,32,96], index: 1, kind: input, shape index: {}]
  %s2 = inlined_call_operand.vmem [shape: f32[4,1,96], index: 2, kind: input, shape index: {}]
  %s3 = inlined_call_operand.vmem [shape: bf16[4,32,32], index: 3, kind: input, shape index: {}]
  %s4 = inlined_call_operand.vmem [shape: f32[4,1,32], index: 4, kind: input, shape index: {}]
  %s5 = inlined_call_operand.vmem [shape: f32[4,1,32], index: 5, kind: input, shape index: {}]
  %s6 = inlined_call_operand.vmem [shape: f32[4,1,32], index: 6, kind: input, shape index: {}]
  %s7 = inlined_call_operand.vmem [shape: f32[4,1,32], index: 7, kind: input, shape index: {}]
  %s8 = inlined_call_operand.vmem [shape: f32[4,1,32], index: 8, kind: input, shape index: {}]
  %s9 = inlined_call_operand.vmem [shape: bf16[4,32,2048], index: 9, kind: input, shape index: {}]
  %s10 = inlined_call_operand.vmem [shape: f32[4,1,2048], index: 10, kind: input, shape index: {}]
  %s11 = inlined_call_operand.vmem [shape: bf16[4,2048,32], index: 11, kind: input, shape index: {}]
  %s12 = inlined_call_operand.vmem [shape: f32[4,1,32], index: 12, kind: input, shape index: {}]
  %s13 = inlined_call_operand.vmem [shape: f32[34,32], index: 13, kind: output, shape index: {}]
  %s14 = sld [smem:[#allocation0]]
  $region93: #{image_transformer_forward.3} parent=0
    _
  %s16 = ssub.s32 1, %s14
  %s17 = scalar_select 0, %s16, %s14
  loop: start=0, step=1, limit=6
  $region2: #{image_transformer_forward.3} parent=0 // loop_pre_header
    _
  $region3: #{image_transformer_forward.3} parent=0 // loop_header
    %s19 = sphi 0, %s23
    %p20 = scmp.ge.s32.totalorder %s19, 6
    %s26 = sphi 0, %s38
    %s27 = sphi 0, %s34
    %s28 = sphi 0, %s26
    %s29 = sphi 0, %s27
    %s30 = sphi 0, %s28
    %s31 = sphi 0, %s29
    %s41 = sphi 0, %s43
    %s44 = sphi 0, %s41
    %s45 = sphi 0, %s44
    %s61 = sphi 0, %s45
    %s67 = sphi 0, %s69
    %s70 = sphi 0, %s67
    %s71 = sphi 0, %s70
    %s87 = sphi 0, %s71
    %s93 = sphi 0, %s95
    %s96 = sphi 0, %s93
    %s97 = sphi 0, %s96
    %s113 = sphi 0, %s97
    %s119 = sphi 0, %s121
    %s122 = sphi 0, %s119
    %s123 = sphi 0, %s122
    %s139 = sphi 0, %s123
    %s145 = sphi 0, %s147
    %s148 = sphi 0, %s145
    %s149 = sphi 0, %s148
    %s165 = sphi 0, %s149
    %s171 = sphi 0, %s173
    %s174 = sphi 0, %s171
    %s175 = sphi 0, %s174
    %s191 = sphi 0, %s175
    %s197 = sphi 0, %s199
    %s200 = sphi 0, %s197
    %s201 = sphi 0, %s200
    %s217 = sphi 0, %s201
    %s223 = sphi 0, %s225
    %s226 = sphi 0, %s223
    %s227 = sphi 0, %s226
    %s243 = sphi 0, %s227
    %s249 = sphi 0, %s251
    %s252 = sphi 0, %s249
    %s253 = sphi 0, %s252
    %s269 = sphi 0, %s253
    %s275 = sphi 0, %s277
    %s278 = sphi 0, %s275
    %s279 = sphi 0, %s278
    %s295 = sphi 0, %s279
    %s301 = sphi 0, %s303
    %s304 = sphi 0, %s301
    %s305 = sphi 0, %s304
    %s321 = sphi 0, %s305
    %s327 = sphi 0, %s329
    %s330 = sphi 0, %s327
    %s331 = sphi 0, %s330
    %s347 = sphi 0, %s331
    %s353 = sphi 0, %s355
    %s356 = sphi 0, %s353
    %s357 = sphi 0, %s356
    %s373 = sphi 0, %s357
    %s379 = sphi 0, %s381
    %s382 = sphi 0, %s379
    %s383 = sphi 0, %s382
    %s399 = sphi 0, %s383
  $region4: #{image_transformer_forward.3} parent=0 // loop_header_branch
    %22 = sbr.rel (%p20) target = $region8
  $region5: #{image_transformer_forward.3} parent=0 // loop_body
    %s24 = ssub.s32 %s19, 1
    %s25 = ssub.s32 %s19, 2
    %s32 = sadd.s32 1, %s27
    %p33 = scmp.ge.s32.totalorder %s32, 4
    %s34 = scalar_select %p33, 0, %s32
    %s35 = sadd.s32 1, %s26
    %s36 = scalar_select %p33, %s35, %s26
    %p37 = scmp.ge.s32.totalorder %s36, 1
    %s38 = scalar_select %p37, 0, %s36
    %s39 = ssub.s32 %s26, %s38
    %p40 = scmp.eq.s32.totalorder %s39, 0
    %s42 = sadd.s32 %s41, 1
    %s43 = scalar_select %p40, %s41, %s42
    %p46 = pneg %p40
    %p47 = scmp.eq.s32.totalorder %s19, 3
    %p48 = por %p46, %p47
    %p49 = scmp.ne.s32.totalorder %s41, %s44
    %p50 = scmp.eq.s32.totalorder %s19, 0
    %p51 = por %p49, %p50
    %p52 = scmp.ne.s32.totalorder %s41, %s44
    %p53 = scmp.eq.s32.totalorder %s24, 3
    %p54 = por %p52, %p53
    %p55 = scmp.ne.s32.totalorder %s44, %s45
    %p56 = scmp.eq.s32.totalorder %s24, 0
    %p57 = por %p55, %p56
    %p58 = scmp.ne.s32.totalorder %s44, %s45
    %p59 = scmp.eq.s32.totalorder %s25, 3
    %p60 = por %p58, %p59
    %p62 = scmp.ne.s32.totalorder %s45, %s61
    %p63 = scmp.eq.s32.totalorder %s25, 0
    %p64 = por %p62, %p63
    %s65 = ssub.s32 %s27, %s34
    %p66 = scmp.eq.s32.totalorder %s65, 0
    %s68 = sadd.s32 %s67, 1
    %s69 = scalar_select %p66, %s67, %s68
    %p72 = pneg %p66
    %p73 = scmp.eq.s32.totalorder %s19, 3
    %p74 = por %p72, %p73
    %p75 = scmp.ne.s32.totalorder %s67, %s70
    %p76 = scmp.eq.s32.totalorder %s19, 0
    %p77 = por %p75, %p76
    %p78 = scmp.ne.s32.totalorder %s67, %s70
    %p79 = scmp.eq.s32.totalorder %s24, 3
    %p80 = por %p78, %p79
    %p81 = scmp.ne.s32.totalorder %s70, %s71
    %p82 = scmp.eq.s32.totalorder %s24, 0
    %p83 = por %p81, %p82
    %p84 = scmp.ne.s32.totalorder %s70, %s71
    %p85 = scmp.eq.s32.totalorder %s25, 3
    %p86 = por %p84, %p85
    %p88 = scmp.ne.s32.totalorder %s71, %s87
    %p89 = scmp.eq.s32.totalorder %s25, 0
    %p90 = por %p88, %p89
    %s91 = ssub.s32 %s27, %s34
    %p92 = scmp.eq.s32.totalorder %s91, 0
    %s94 = sadd.s32 %s93, 1
    %s95 = scalar_select %p92, %s93, %s94
    %p98 = pneg %p92
    %p99 = scmp.eq.s32.totalorder %s19, 3
    %p100 = por %p98, %p99
    %p101 = scmp.ne.s32.totalorder %s93, %s96
    %p102 = scmp.eq.s32.totalorder %s19, 0
    %p103 = por %p101, %p102
    %p104 = scmp.ne.s32.totalorder %s93, %s96
    %p105 = scmp.eq.s32.totalorder %s24, 3
    %p106 = por %p104, %p105
    %p107 = scmp.ne.s32.totalorder %s96, %s97
    %p108 = scmp.eq.s32.totalorder %s24, 0
    %p109 = por %p107, %p108
    %p110 = scmp.ne.s32.totalorder %s96, %s97
    %p111 = scmp.eq.s32.totalorder %s25, 3
    %p112 = por %p110, %p111
    %p114 = scmp.ne.s32.totalorder %s97, %s113
    %p115 = scmp.eq.s32.totalorder %s25, 0
    %p116 = por %p114, %p115
    %s117 = ssub.s32 %s27, %s34
    %p118 = scmp.eq.s32.totalorder %s117, 0
    %s120 = sadd.s32 %s119, 1
    %s121 = scalar_select %p118, %s119, %s120
    %p124 = pneg %p118
    %p125 = scmp.eq.s32.totalorder %s19, 3
    %p126 = por %p124, %p125
    %p127 = scmp.ne.s32.totalorder %s119, %s122
    %p128 = scmp.eq.s32.totalorder %s19, 0
    %p129 = por %p127, %p128
    %p130 = scmp.ne.s32.totalorder %s119, %s122
    %p131 = scmp.eq.s32.totalorder %s24, 3
    %p132 = por %p130, %p131
    %p133 = scmp.ne.s32.totalorder %s122, %s123
    %p134 = scmp.eq.s32.totalorder %s24, 0
    %p135 = por %p133, %p134
    %p136 = scmp.ne.s32.totalorder %s122, %s123
    %p137 = scmp.eq.s32.totalorder %s25, 3
    %p138 = por %p136, %p137
    %p140 = scmp.ne.s32.totalorder %s123, %s139
    %p141 = scmp.eq.s32.totalorder %s25, 0
    %p142 = por %p140, %p141
    %s143 = ssub.s32 %s27, %s34
    %p144 = scmp.eq.s32.totalorder %s143, 0
    %s146 = sadd.s32 %s145, 1
    %s147 = scalar_select %p144, %s145, %s146
    %p150 = pneg %p144
    %p151 = scmp.eq.s32.totalorder %s19, 3
    %p152 = por %p150, %p151
    %p153 = scmp.ne.s32.totalorder %s145, %s148
    %p154 = scmp.eq.s32.totalorder %s19, 0
    %p155 = por %p153, %p154
    %p156 = scmp.ne.s32.totalorder %s145, %s148
    %p157 = scmp.eq.s32.totalorder %s24, 3
    %p158 = por %p156, %p157
    %p159 = scmp.ne.s32.totalorder %s148, %s149
    %p160 = scmp.eq.s32.totalorder %s24, 0
    %p161 = por %p159, %p160
    %p162 = scmp.ne.s32.totalorder %s148, %s149
    %p163 = scmp.eq.s32.totalorder %s25, 3
    %p164 = por %p162, %p163
    %p166 = scmp.ne.s32.totalorder %s149, %s165
    %p167 = scmp.eq.s32.totalorder %s25, 0
    %p168 = por %p166, %p167
    %s169 = ssub.s32 %s27, %s34
    %p170 = scmp.eq.s32.totalorder %s169, 0
    %s172 = sadd.s32 %s171, 1
    %s173 = scalar_select %p170, %s171, %s172
    %p176 = pneg %p170
    %p177 = scmp.eq.s32.totalorder %s19, 3
    %p178 = por %p176, %p177
    %p179 = scmp.ne.s32.totalorder %s171, %s174
    %p180 = scmp.eq.s32.totalorder %s19, 0
    %p181 = por %p179, %p180
    %p182 = scmp.ne.s32.totalorder %s171, %s174
    %p183 = scmp.eq.s32.totalorder %s24, 3
    %p184 = por %p182, %p183
    %p185 = scmp.ne.s32.totalorder %s174, %s175
    %p186 = scmp.eq.s32.totalorder %s24, 0
    %p187 = por %p185, %p186
    %p188 = scmp.ne.s32.totalorder %s174, %s175
    %p189 = scmp.eq.s32.totalorder %s25, 3
    %p190 = por %p188, %p189
    %p192 = scmp.ne.s32.totalorder %s175, %s191
    %p193 = scmp.eq.s32.totalorder %s25, 0
    %p194 = por %p192, %p193
    %s195 = ssub.s32 %s27, %s34
    %p196 = scmp.eq.s32.totalorder %s195, 0
    %s198 = sadd.s32 %s197, 1
    %s199 = scalar_select %p196, %s197, %s198
    %p202 = pneg %p196
    %p203 = scmp.eq.s32.totalorder %s19, 3
    %p204 = por %p202, %p203
    %p205 = scmp.ne.s32.totalorder %s197, %s200
    %p206 = scmp.eq.s32.totalorder %s19, 0
    %p207 = por %p205, %p206
    %p208 = scmp.ne.s32.totalorder %s197, %s200
    %p209 = scmp.eq.s32.totalorder %s24, 3
    %p210 = por %p208, %p209
    %p211 = scmp.ne.s32.totalorder %s200, %s201
    %p212 = scmp.eq.s32.totalorder %s24, 0
    %p213 = por %p211, %p212
    %p214 = scmp.ne.s32.totalorder %s200, %s201
    %p215 = scmp.eq.s32.totalorder %s25, 3
    %p216 = por %p214, %p215
    %p218 = scmp.ne.s32.totalorder %s201, %s217
    %p219 = scmp.eq.s32.totalorder %s25, 0
    %p220 = por %p218, %p219
    %s221 = ssub.s32 %s27, %s34
    %p222 = scmp.eq.s32.totalorder %s221, 0
    %s224 = sadd.s32 %s223, 1
    %s225 = scalar_select %p222, %s223, %s224
    %p228 = pneg %p222
    %p229 = scmp.eq.s32.totalorder %s19, 3
    %p230 = por %p228, %p229
    %p231 = scmp.ne.s32.totalorder %s223, %s226
    %p232 = scmp.eq.s32.totalorder %s19, 0
    %p233 = por %p231, %p232
    %p234 = scmp.ne.s32.totalorder %s223, %s226
    %p235 = scmp.eq.s32.totalorder %s24, 3
    %p236 = por %p234, %p235
    %p237 = scmp.ne.s32.totalorder %s226, %s227
    %p238 = scmp.eq.s32.totalorder %s24, 0
    %p239 = por %p237, %p238
    %p240 = scmp.ne.s32.totalorder %s226, %s227
    %p241 = scmp.eq.s32.totalorder %s25, 3
    %p242 = por %p240, %p241
    %p244 = scmp.ne.s32.totalorder %s227, %s243
    %p245 = scmp.eq.s32.totalorder %s25, 0
    %p246 = por %p244, %p245
    %s247 = ssub.s32 %s27, %s34
    %p248 = scmp.eq.s32.totalorder %s247, 0
    %s250 = sadd.s32 %s249, 1
    %s251 = scalar_select %p248, %s249, %s250
    %p254 = pneg %p248
    %p255 = scmp.eq.s32.totalorder %s19, 3
    %p256 = por %p254, %p255
    %p257 = scmp.ne.s32.totalorder %s249, %s252
    %p258 = scmp.eq.s32.totalorder %s19, 0
    %p259 = por %p257, %p258
    %p260 = scmp.ne.s32.totalorder %s249, %s252
    %p261 = scmp.eq.s32.totalorder %s24, 3
    %p262 = por %p260, %p261
    %p263 = scmp.ne.s32.totalorder %s252, %s253
    %p264 = scmp.eq.s32.totalorder %s24, 0
    %p265 = por %p263, %p264
    %p266 = scmp.ne.s32.totalorder %s252, %s253
    %p267 = scmp.eq.s32.totalorder %s25, 3
    %p268 = por %p266, %p267
    %p270 = scmp.ne.s32.totalorder %s253, %s269
    %p271 = scmp.eq.s32.totalorder %s25, 0
    %p272 = por %p270, %p271
    %s273 = ssub.s32 %s27, %s34
    %p274 = scmp.eq.s32.totalorder %s273, 0
    %s276 = sadd.s32 %s275, 1
    %s277 = scalar_select %p274, %s275, %s276
    %p280 = pneg %p274
    %p281 = scmp.eq.s32.totalorder %s19, 3
    %p282 = por %p280, %p281
    %p283 = scmp.ne.s32.totalorder %s275, %s278
    %p284 = scmp.eq.s32.totalorder %s19, 0
    %p285 = por %p283, %p284
    %p286 = scmp.ne.s32.totalorder %s275, %s278
    %p287 = scmp.eq.s32.totalorder %s24, 3
    %p288 = por %p286, %p287
    %p289 = scmp.ne.s32.totalorder %s278, %s279
    %p290 = scmp.eq.s32.totalorder %s24, 0
    %p291 = por %p289, %p290
    %p292 = scmp.ne.s32.totalorder %s278, %s279
    %p293 = scmp.eq.s32.totalorder %s25, 3
    %p294 = por %p292, %p293
    %p296 = scmp.ne.s32.totalorder %s279, %s295
    %p297 = scmp.eq.s32.totalorder %s25, 0
    %p298 = por %p296, %p297
    %s299 = ssub.s32 %s27, %s34
    %p300 = scmp.eq.s32.totalorder %s299, 0
    %s302 = sadd.s32 %s301, 1
    %s303 = scalar_select %p300, %s301, %s302
    %p306 = pneg %p300
    %p307 = scmp.eq.s32.totalorder %s19, 3
    %p308 = por %p306, %p307
    %p309 = scmp.ne.s32.totalorder %s301, %s304
    %p310 = scmp.eq.s32.totalorder %s19, 0
    %p311 = por %p309, %p310
    %p312 = scmp.ne.s32.totalorder %s301, %s304
    %p313 = scmp.eq.s32.totalorder %s24, 3
    %p314 = por %p312, %p313
    %p315 = scmp.ne.s32.totalorder %s304, %s305
    %p316 = scmp.eq.s32.totalorder %s24, 0
    %p317 = por %p315, %p316
    %p318 = scmp.ne.s32.totalorder %s304, %s305
    %p319 = scmp.eq.s32.totalorder %s25, 3
    %p320 = por %p318, %p319
    %p322 = scmp.ne.s32.totalorder %s305, %s321
    %p323 = scmp.eq.s32.totalorder %s25, 0
    %p324 = por %p322, %p323
    %s325 = ssub.s32 %s27, %s34
    %p326 = scmp.eq.s32.totalorder %s325, 0
    %s328 = sadd.s32 %s327, 1
    %s329 = scalar_select %p326, %s327, %s328
    %p332 = pneg %p326
    %p333 = scmp.eq.s32.totalorder %s19, 3
    %p334 = por %p332, %p333
    %p335 = scmp.ne.s32.totalorder %s327, %s330
    %p336 = scmp.eq.s32.totalorder %s19, 0
    %p337 = por %p335, %p336
    %p338 = scmp.ne.s32.totalorder %s327, %s330
    %p339 = scmp.eq.s32.totalorder %s24, 3
    %p340 = por %p338, %p339
    %p341 = scmp.ne.s32.totalorder %s330, %s331
    %p342 = scmp.eq.s32.totalorder %s24, 0
    %p343 = por %p341, %p342
    %p344 = scmp.ne.s32.totalorder %s330, %s331
    %p345 = scmp.eq.s32.totalorder %s25, 3
    %p346 = por %p344, %p345
    %p348 = scmp.ne.s32.totalorder %s331, %s347
    %p349 = scmp.eq.s32.totalorder %s25, 0
    %p350 = por %p348, %p349
    %s351 = ssub.s32 %s27, %s34
    %p352 = scmp.eq.s32.totalorder %s351, 0
    %s354 = sadd.s32 %s353, 1
    %s355 = scalar_select %p352, %s353, %s354
    %p358 = pneg %p352
    %p359 = scmp.eq.s32.totalorder %s19, 3
    %p360 = por %p358, %p359
    %p361 = scmp.ne.s32.totalorder %s353, %s356
    %p362 = scmp.eq.s32.totalorder %s19, 0
    %p363 = por %p361, %p362
    %p364 = scmp.ne.s32.totalorder %s353, %s356
    %p365 = scmp.eq.s32.totalorder %s24, 3
    %p366 = por %p364, %p365
    %p367 = scmp.ne.s32.totalorder %s356, %s357
    %p368 = scmp.eq.s32.totalorder %s24, 0
    %p369 = por %p367, %p368
    %p370 = scmp.ne.s32.totalorder %s356, %s357
    %p371 = scmp.eq.s32.totalorder %s25, 3
    %p372 = por %p370, %p371
    %p374 = scmp.ne.s32.totalorder %s357, %s373
    %p375 = scmp.eq.s32.totalorder %s25, 0
    %p376 = por %p374, %p375
    %s377 = ssub.s32 %s26, %s38
    %p378 = scmp.eq.s32.totalorder %s377, 0
    %s380 = sadd.s32 %s379, 1
    %s381 = scalar_select %p378, %s379, %s380
    %p384 = pneg %p378
    %p385 = scmp.eq.s32.totalorder %s19, 3
    %p386 = por %p384, %p385
    %p387 = scmp.ne.s32.totalorder %s379, %s382
    %p388 = scmp.eq.s32.totalorder %s19, 0
    %p389 = por %p387, %p388
    %p390 = scmp.ne.s32.totalorder %s379, %s382
    %p391 = scmp.eq.s32.totalorder %s24, 3
    %p392 = por %p390, %p391
    %p393 = scmp.ne.s32.totalorder %s382, %s383
    %p394 = scmp.eq.s32.totalorder %s24, 0
    %p395 = por %p393, %p394
    %p396 = scmp.ne.s32.totalorder %s382, %s383
    %p397 = scmp.eq.s32.totalorder %s25, 3
    %p398 = por %p396, %p397
    %p400 = scmp.ne.s32.totalorder %s383, %s399
    %p401 = scmp.eq.s32.totalorder %s25, 0
    %p402 = por %p400, %p401
    %p403 = scmp.le.s32.totalorder 1, %s19
    %p404 = scmp.lt.s32.totalorder %s19, 5
    %p405 = pnand %p403, %p404
    %p406 = pneg %p405
    // Predicated region
    $region9: #{image_transformer_forward.3} parent=5 // pred_check
      _
    $region10: #{image_transformer_forward.3} parent=5 // pred_check_branch
      %408 = sbr.rel (%p405) target = $region12
    $region11: #{image_transformer_forward.3} parent=5 // pred_region
      %s409 = ssub.s32 %s19, 1
      // Predicated region
      $region13: #{image_transformer_forward.3} parent=11 // pred_check
        %p410 = pneg %p57
      $region14: #{image_transformer_forward.3} parent=11 // pred_check_branch
        %412 = sbr.rel (%p410) target = $region16
      $region15: #{image_transformer_forward.3} parent=11 // pred_region
        %s413 = smul.u32 5, %s28
        %p414 = scmp.lt.s32.totalorder %s413, 4
        %s415 = scalar_select %p414, %s413, 4
        %s416 = smul.addr %s415, 8
        %s417 = scalar_lea.vmem %s0, %s416
        %s418 = smul.u32 5, %s28
      $region16: #{image_transformer_forward.3} parent=11 // pred_fallthru
        _
    $region12: #{image_transformer_forward.3} parent=5 // pred_fallthru
      _
    %p419 = scmp.lt.s32.totalorder %s19, 4
    // Predicated region
    $region17: #{image_transformer_forward.3} parent=5 // pred_check
      %p420 = pneg %p419
    $region18: #{image_transformer_forward.3} parent=5 // pred_check_branch
      %422 = sbr.rel (%p420) target = $region20
    $region19: #{image_transformer_forward.3} parent=5 // pred_region
      // Predicated region
      $region21: #{image_transformer_forward.3} parent=19 // pred_check
        %p423 = pneg %p77
      $region22: #{image_transformer_forward.3} parent=19 // pred_check_branch
        %425 = sbr.rel (%p423) target = $region24
      $region23: #{image_transformer_forward.3} parent=19 // pred_region
        %p426 = scmp.lt.s32.totalorder %s27, 3
        %s427 = scalar_select %p426, %s27, 3
        %s428 = smul.addr %s427, 4
        %s429 = smul.addr %s428, 4
        %s430 = scalar_lea.vmem %s1, %s429
      $region24: #{image_transformer_forward.3} parent=19 // pred_fallthru
        _
      // Predicated region
      $region25: #{image_transformer_forward.3} parent=19 // pred_check
        %p431 = pneg %p103
      $region26: #{image_transformer_forward.3} parent=19 // pred_check_branch
        %433 = sbr.rel (%p431) target = $region28
      $region27: #{image_transformer_forward.3} parent=19 // pred_region
        %p434 = scmp.lt.s32.totalorder %s27, 3
        %s435 = scalar_select %p434, %s27, 3
        %s436 = scalar_lea.vmem %s2, %s435
      $region28: #{image_transformer_forward.3} parent=19 // pred_fallthru
        _
      // Predicated region
      $region29: #{image_transformer_forward.3} parent=19 // pred_check
        %p437 = pneg %p129
      $region30: #{image_transformer_forward.3} parent=19 // pred_check_branch
        %439 = sbr.rel (%p437) target = $region32
      $region31: #{image_transformer_forward.3} parent=19 // pred_region
        %p440 = scmp.lt.s32.totalorder %s27, 3
        %s441 = scalar_select %p440, %s27, 3
        %s442 = smul.addr %s441, 4
        %s443 = smul.addr %s442, 4
        %s444 = scalar_lea.vmem %s3, %s443
      $region32: #{image_transformer_forward.3} parent=19 // pred_fallthru
        _
      // Predicated region
      $region33: #{image_transformer_forward.3} parent=19 // pred_check
        %p445 = pneg %p155
      $region34: #{image_transformer_forward.3} parent=19 // pred_check_branch
        %447 = sbr.rel (%p445) target = $region36
      $region35: #{image_transformer_forward.3} parent=19 // pred_region
        %p448 = scmp.lt.s32.totalorder %s27, 3
        %s449 = scalar_select %p448, %s27, 3
        %s450 = scalar_lea.vmem %s4, %s449
      $region36: #{image_transformer_forward.3} parent=19 // pred_fallthru
        _
      // Predicated region
      $region37: #{image_transformer_forward.3} parent=19 // pred_check
        %p451 = pneg %p181
      $region38: #{image_transformer_forward.3} parent=19 // pred_check_branch
        %453 = sbr.rel (%p451) target = $region40
      $region39: #{image_transformer_forward.3} parent=19 // pred_region
        %p454 = scmp.lt.s32.totalorder %s27, 3
        %s455 = scalar_select %p454, %s27, 3
        %s456 = scalar_lea.vmem %s5, %s455
      $region40: #{image_transformer_forward.3} parent=19 // pred_fallthru
        _
      // Predicated region
      $region41: #{image_transformer_forward.3} parent=19 // pred_check
        %p457 = pneg %p207
      $region42: #{image_transformer_forward.3} parent=19 // pred_check_branch
        %459 = sbr.rel (%p457) target = $region44
      $region43: #{image_transformer_forward.3} parent=19 // pred_region
        %p460 = scmp.lt.s32.totalorder %s27, 3
        %s461 = scalar_select %p460, %s27, 3
        %s462 = scalar_lea.vmem %s6, %s461
      $region44: #{image_transformer_forward.3} parent=19 // pred_fallthru
        _
      // Predicated region
      $region45: #{image_transformer_forward.3} parent=19 // pred_check
        %p463 = pneg %p233
      $region46: #{image_transformer_forward.3} parent=19 // pred_check_branch
        %465 = sbr.rel (%p463) target = $region48
      $region47: #{image_transformer_forward.3} parent=19 // pred_region
        %p466 = scmp.lt.s32.totalorder %s27, 3
        %s467 = scalar_select %p466, %s27, 3
        %s468 = scalar_lea.vmem %s7, %s467
      $region48: #{image_transformer_forward.3} parent=19 // pred_fallthru
        _
      // Predicated region
      $region49: #{image_transformer_forward.3} parent=19 // pred_check
        %p469 = pneg %p259
      $region50: #{image_transformer_forward.3} parent=19 // pred_check_branch
        %471 = sbr.rel (%p469) target = $region52
      $region51: #{image_transformer_forward.3} parent=19 // pred_region
        %p472 = scmp.lt.s32.totalorder %s27, 3
        %s473 = scalar_select %p472, %s27, 3
        %s474 = scalar_lea.vmem %s8, %s473
      $region52: #{image_transformer_forward.3} parent=19 // pred_fallthru
        _
      // Predicated region
      $region53: #{image_transformer_forward.3} parent=19 // pred_check
        %p475 = pneg %p285
      $region54: #{image_transformer_forward.3} parent=19 // pred_check_branch
        %477 = sbr.rel (%p475) target = $region56
      $region55: #{image_transformer_forward.3} parent=19 // pred_region
        %p478 = scmp.lt.s32.totalorder %s27, 3
        %s479 = scalar_select %p478, %s27, 3
        %s480 = smul.addr %s479, 64
        %s481 = smul.addr %s480, 4
        %s482 = scalar_lea.vmem %s9, %s481
      $region56: #{image_transformer_forward.3} parent=19 // pred_fallthru
        _
      // Predicated region
      $region57: #{image_transformer_forward.3} parent=19 // pred_check
        %p483 = pneg %p311
      $region58: #{image_transformer_forward.3} parent=19 // pred_check_branch
        %485 = sbr.rel (%p483) target = $region60
      $region59: #{image_transformer_forward.3} parent=19 // pred_region
        %p486 = scmp.lt.s32.totalorder %s27, 3
        %s487 = scalar_select %p486, %s27, 3
        %s488 = smul.addr %s487, 16
        %s489 = scalar_lea.vmem %s10, %s488
      $region60: #{image_transformer_forward.3} parent=19 // pred_fallthru
        _
      // Predicated region
      $region61: #{image_transformer_forward.3} parent=19 // pred_check
        %p490 = pneg %p337
      $region62: #{image_transformer_forward.3} parent=19 // pred_check_branch
        %492 = sbr.rel (%p490) target = $region64
      $region63: #{image_transformer_forward.3} parent=19 // pred_region
        %p493 = scmp.lt.s32.totalorder %s27, 3
        %s494 = scalar_select %p493, %s27, 3
        %s495 = smul.addr %s494, 256
        %s496 = smul.addr %s495, 4
        %s497 = scalar_lea.vmem %s11, %s496
      $region64: #{image_transformer_forward.3} parent=19 // pred_fallthru
        _
      // Predicated region
      $region65: #{image_transformer_forward.3} parent=19 // pred_check
        %p498 = pneg %p363
      $region66: #{image_transformer_forward.3} parent=19 // pred_check_branch
        %500 = sbr.rel (%p498) target = $region68
      $region67: #{image_transformer_forward.3} parent=19 // pred_region
        %p501 = scmp.lt.s32.totalorder %s27, 3
        %s502 = scalar_select %p501, %s27, 3
        %s503 = scalar_lea.vmem %s12, %s502
      $region68: #{image_transformer_forward.3} parent=19 // pred_fallthru
        _
    $region20: #{image_transformer_forward.3} parent=5 // pred_fallthru
      _
    %p504 = scmp.le.s32.totalorder 1, %s19
    %p505 = scmp.lt.s32.totalorder %s19, 5
    %p506 = pnand %p504, %p505
    %p507 = pneg %p506
    // Predicated region
    $region69: #{image_transformer_forward.3} parent=5 // pred_check
      _
    $region70: #{image_transformer_forward.3} parent=5 // pred_check_branch
      %509 = sbr.rel (%p506) target = $region72
    $region71: #{image_transformer_forward.3} parent=5 // pred_region
      %s510 = ssub.s32 %s19, 1
      %s511 = smul.u32 5, %s28
      %p512 = scmp.lt.s32.totalorder %s511, 4
      %s513 = scalar_select %p512, %s511, 4
      %s514 = smul.addr %s513, 8
      %s515 = scalar_lea.vmem %s0, %s514
      %p516 = pneg %p57
      %p517 = pneg %p54
      %p518 = scmp.lt.s32.totalorder %s29, 3
      %s519 = scalar_select %p518, %s29, 3
      %s520 = smul.addr %s519, 4
      %s521 = smul.addr %s520, 4
      %s522 = scalar_lea.vmem %s1, %s521
      %p523 = pneg %p83
      %p524 = pneg %p80
      %p525 = scmp.lt.s32.totalorder %s29, 3
      %s526 = scalar_select %p525, %s29, 3
      %s527 = scalar_lea.vmem %s2, %s526
      %p528 = pneg %p109
      %p529 = pneg %p106
      %p530 = scmp.lt.s32.totalorder %s29, 3
      %s531 = scalar_select %p530, %s29, 3
      %s532 = smul.addr %s531, 4
      %s533 = smul.addr %s532, 4
      %s534 = scalar_lea.vmem %s3, %s533
      %p535 = pneg %p135
      %p536 = pneg %p132
      %p537 = scmp.lt.s32.totalorder %s29, 3
      %s538 = scalar_select %p537, %s29, 3
      %s539 = scalar_lea.vmem %s4, %s538
      %p540 = pneg %p161
      %p541 = pneg %p158
      %p542 = scmp.lt.s32.totalorder %s29, 3
      %s543 = scalar_select %p542, %s29, 3
      %s544 = scalar_lea.vmem %s5, %s543
      %p545 = pneg %p187
      %p546 = pneg %p184
      %p547 = scmp.lt.s32.totalorder %s29, 3
      %s548 = scalar_select %p547, %s29, 3
      %s549 = scalar_lea.vmem %s6, %s548
      %p550 = pneg %p213
      %p551 = pneg %p210
      %p552 = scmp.lt.s32.totalorder %s29, 3
      %s553 = scalar_select %p552, %s29, 3
      %s554 = scalar_lea.vmem %s7, %s553
      %p555 = pneg %p239
      %p556 = pneg %p236
      %p557 = scmp.lt.s32.totalorder %s29, 3
      %s558 = scalar_select %p557, %s29, 3
      %s559 = scalar_lea.vmem %s8, %s558
      %p560 = pneg %p265
      %p561 = pneg %p262
      %p562 = scmp.lt.s32.totalorder %s29, 3
      %s563 = scalar_select %p562, %s29, 3
      %s564 = smul.addr %s563, 64
      %s565 = smul.addr %s564, 4
      %s566 = scalar_lea.vmem %s9, %s565
      %p567 = pneg %p291
      %p568 = pneg %p288
      %p569 = scmp.lt.s32.totalorder %s29, 3
      %s570 = scalar_select %p569, %s29, 3
      %s571 = smul.addr %s570, 16
      %s572 = scalar_lea.vmem %s10, %s571
      %p573 = pneg %p317
      %p574 = pneg %p314
      %p575 = scmp.lt.s32.totalorder %s29, 3
      %s576 = scalar_select %p575, %s29, 3
      %s577 = smul.addr %s576, 256
      %s578 = smul.addr %s577, 4
      %s579 = scalar_lea.vmem %s11, %s578
      %p580 = pneg %p343
      %p581 = pneg %p340
      %p582 = scmp.lt.s32.totalorder %s29, 3
      %s583 = scalar_select %p582, %s29, 3
      %s584 = scalar_lea.vmem %s12, %s583
      %p585 = pneg %p369
      %p586 = pneg %p366
      %p587 = pneg %p395
      %p588 = pneg %p392
      %s589 = smul.u32 5, %s28
      %p590 = scmp.lt.s32.totalorder %s589, 4
      %s591 = scalar_select %p590, %s589, 4
      %s592 = smul.addr %s591, 8
      %s593 = scalar_lea.vmem %s13, %s592
      %s594 = smul.u32 5, %s28
      %p595 = scmp.lt.s32.totalorder %s594, 4
      %s596 = scalar_select %p595, %s594, 4
      %s597 = smul.addr %s596, 8
      %s598 = scalar_lea.vmem %s0, %s597
      %s599 = smul.u32 5, %s28
      %p600 = scmp.lt.s32.totalorder %s29, 3
      %s601 = scalar_select %p600, %s29, 3
      %s602 = smul.addr %s601, 4
      %s603 = smul.addr %s602, 4
      %s604 = scalar_lea.vmem %s1, %s603
      %p605 = scmp.lt.s32.totalorder %s29, 3
      %s606 = scalar_select %p605, %s29, 3
      %s607 = scalar_lea.vmem %s2, %s606
      %p608 = scmp.lt.s32.totalorder %s29, 3
      %s609 = scalar_select %p608, %s29, 3
      %s610 = smul.addr %s609, 4
      %s611 = smul.addr %s610, 4
      %s612 = scalar_lea.vmem %s3, %s611
      %p613 = scmp.lt.s32.totalorder %s29, 3
      %s614 = scalar_select %p613, %s29, 3
      %s615 = scalar_lea.vmem %s4, %s614
      %p616 = scmp.lt.s32.totalorder %s29, 3
      %s617 = scalar_select %p616, %s29, 3
      %s618 = scalar_lea.vmem %s5, %s617
      %p619 = scmp.lt.s32.totalorder %s29, 3
      %s620 = scalar_select %p619, %s29, 3
      %s621 = scalar_lea.vmem %s6, %s620
      %p622 = scmp.lt.s32.totalorder %s29, 3
      %s623 = scalar_select %p622, %s29, 3
      %s624 = scalar_lea.vmem %s7, %s623
      %p625 = scmp.lt.s32.totalorder %s29, 3
      %s626 = scalar_select %p625, %s29, 3
      %s627 = scalar_lea.vmem %s8, %s626
      %p628 = scmp.lt.s32.totalorder %s29, 3
      %s629 = scalar_select %p628, %s29, 3
      %s630 = smul.addr %s629, 64
      %s631 = smul.addr %s630, 4
      %s632 = scalar_lea.vmem %s9, %s631
      %p633 = scmp.lt.s32.totalorder %s29, 3
      %s634 = scalar_select %p633, %s29, 3
      %s635 = smul.addr %s634, 16
      %s636 = scalar_lea.vmem %s10, %s635
      %p637 = scmp.lt.s32.totalorder %s29, 3
      %s638 = scalar_select %p637, %s29, 3
      %s639 = smul.addr %s638, 256
      %s640 = smul.addr %s639, 4
      %s641 = scalar_lea.vmem %s11, %s640
      %p642 = scmp.lt.s32.totalorder %s29, 3
      %s643 = scalar_select %p642, %s29, 3
      %s644 = scalar_lea.vmem %s12, %s643
      %s645 = smul.u32 5, %s28
      %p646 = scmp.lt.s32.totalorder %s645, 4
      %s647 = scalar_select %p646, %s645, 4
      %s648 = smul.addr %s647, 8
      %s649 = scalar_lea.vmem %s13, %s648
      %s650 = smul.u32 5, %s28
      %p652 = scmp.eq.s32.totalorder %s29, 0
      // Predicated region
      $region73: #{image_transformer_forward.3} parent=71 // pred_check
        %p653 = pneg %p652
      $region74: #{image_transformer_forward.3} parent=71 // pred_check_branch
        %655 = sbr.rel (%p653) target = $region76
      $region75: #{image_transformer_forward.3} parent=71 // pred_region
        %v656 = vld [vmem:[%s598] sm:$0xff]
        %v657 = vld [vmem:[%s598 + $0x8] sm:$0xff]
        %v658 = vld [vmem:[%s598 + $0x10] sm:$0xff]
        %v659 = vld [vmem:[%s598 + $0x18] sm:$0xff]
        %v660 = vld [vmem:[%s598 + $0x20] sm:$0x3]
        %vm661 = vcmask 261120
        %662 = vst.msk [vmem:[#allocation2] sm:$0xff] %vm661, %v656
        %663 = vst.msk [vmem:[#allocation2 + $0x8] sm:$0xff] %vm661, %v657
        %664 = vst.msk [vmem:[#allocation2 + $0x10] sm:$0xff] %vm661, %v658
        %665 = vst.msk [vmem:[#allocation2 + $0x18] sm:$0xff] %vm661, %v659
        %vm666 = vcmask 254976
        %667 = vst.msk [vmem:[#allocation2 + $0x20] sm:$0x3] %vm666, %v660
      $region76: #{image_transformer_forward.3} parent=71 // pred_fallthru
        _
      %v668 = vld [vmem:[#allocation2] sm:$0xff]
      %v669 = vld [vmem:[#allocation2 + $0x8] sm:$0xff]
      %v670 = vld [vmem:[#allocation2 + $0x10] sm:$0xff]
      %v671 = vld [vmem:[#allocation2 + $0x18] sm:$0xff]
      %v672 = vld [vmem:[#allocation2 + $0x20] sm:$0x3]
      %v673 = vld [vmem:[%s618] sm:$0x1]
      %v674 = vld [vmem:[%s621] sm:$0x1]
      %vm675 = vcmask 261120
      %v676 = vsel %vm675, %v668, 0.0
      %677 = vadd.xlane.f32.xlu0 %v676
      %v678 = vpop.xlane.xlu0 %677
      %v679 = vsel %vm675, %v669, 0.0
      %680 = vadd.xlane.f32.xlu0 %v679
      %v681 = vpop.xlane.xlu0 %680
      %v682 = vsel %vm675, %v670, 0.0
      %683 = vadd.xlane.f32.xlu0 %v682
      %v684 = vpop.xlane.xlu0 %683
      %v685 = vsel %vm675, %v671, 0.0
      %686 = vadd.xlane.f32.xlu0 %v685
      %v687 = vpop.xlane.xlu0 %686
      %vm688 = vcmask 254976
      %v689 = vsel %vm688, %v672, 0.0
      %690 = vadd.xlane.f32.xlu0 %v689
      %v691 = vpop.xlane.xlu0 %690
      %v692 = vrcp.pop 32.0
      %v693 = vmul.f32 %v678, %v692
      %v694 = vmul.f32 %v681, %v692
      %v695 = vmul.f32 %v684, %v692
      %v696 = vmul.f32 %v687, %v692
      %v697 = vmul.f32 %v691, %v692
      %v698 = vsub.f32 %v668, %v693
      %v699 = vsub.f32 %v669, %v694
      %v700 = vsub.f32 %v670, %v695
      %v701 = vsub.f32 %v671, %v696
      %v702 = vsub.f32 %v672, %v697
      %v703 = vmul.f32 %v698, %v698
      %v704 = vmul.f32 %v699, %v699
      %v705 = vmul.f32 %v700, %v700
      %v706 = vmul.f32 %v701, %v701
      %v707 = vmul.f32 %v702, %v702
      %v708 = vsel %vm675, %v703, 0.0
      %709 = vadd.xlane.f32.xlu0 %v708
      %v710 = vpop.xlane.xlu0 %709
      %v711 = vsel %vm675, %v704, 0.0
      %712 = vadd.xlane.f32.xlu0 %v711
      %v713 = vpop.xlane.xlu0 %712
      %v714 = vsel %vm675, %v705, 0.0
      %715 = vadd.xlane.f32.xlu0 %v714
      %v716 = vpop.xlane.xlu0 %715
      %v717 = vsel %vm675, %v706, 0.0
      %718 = vadd.xlane.f32.xlu0 %v717
      %v719 = vpop.xlane.xlu0 %718
      %v720 = vsel %vm688, %v707, 0.0
      %721 = vadd.xlane.f32.xlu0 %v720
      %v722 = vpop.xlane.xlu0 %721
      %v723 = vmul.f32 %v710, %v692
      %v724 = vmul.f32 %v713, %v692
      %v725 = vmul.f32 %v716, %v692
      %v726 = vmul.f32 %v719, %v692
      %v727 = vmul.f32 %v722, %v692
      %v728 = vadd.f32 %v723, 1e-05
      %v729 = vadd.f32 %v724, 1e-05
      %v730 = vadd.f32 %v725, 1e-05
      %v731 = vadd.f32 %v726, 1e-05
      %v732 = vadd.f32 %v727, 1e-05
      %v733 = vrsqrt.pop %v728
      %v734 = vrsqrt.pop %v729
      %v735 = vrsqrt.pop %v730
      %v736 = vrsqrt.pop %v731
      %v737 = vrsqrt.pop %v732
      %v738 = vmul.f32 %v698, %v733
      %v739 = vmul.f32 %v699, %v734
      %v740 = vmul.f32 %v700, %v735
      %v741 = vmul.f32 %v701, %v736
      %v742 = vmul.f32 %v702, %v737
      %v744 = vlaneseq
      %v745 = vshrl.u32 %v744, 7
      %v746 = vsub.s32 0, %v745
      %v747 = vrot.slane %v673, %v746
      %v749 = vmul.f32 %v738, %v747
      %v750 = vmul.f32 %v739, %v747
      %v751 = vmul.f32 %v740, %v747
      %v752 = vmul.f32 %v741, %v747
      %v753 = vmul.f32 %v742, %v747
      %v755 = vlaneseq
      %v756 = vshrl.u32 %v755, 7
      %v757 = vsub.s32 0, %v756
      %v758 = vrot.slane %v674, %v757
      %v760 = vadd.f32 %v749, %v758
      %v761 = vadd.f32 %v750, %v758
      %v762 = vadd.f32 %v751, %v758
      %v763 = vadd.f32 %v752, %v758
      %v764 = vadd.f32 %v753, %v758
      %v765 = vpack.c.bf16 %v761, %v760
      %v766 = vpack.c.bf16 %v763, %v762
      %v767 = vpack.c.bf16 %v764, %v764
      %v768 = vld [vmem:[%s604] sm:$0xf]
      %v769 = vld [vmem:[%s604 + $0x4] sm:$0xf]
      %v770 = vld [vmem:[%s604 + $0x8] sm:$0xf]
      %v771 = vld [vmem:[%s604 + $0xc] sm:$0xf]
      %v772 = vld [vmem:[%s607] sm:$0x1]
      %v774 = vlaneseq
      %v775 = vshrl.u32 %v774, 7
      %v776 = vsub.s32 0, %v775
      %v777 = vrot.slane %v772, %v776
      %v783 = vunpack.c.l.b16 %v768
      %v784 = vunpack.c.l.b16 %v769
      %v785 = vunpack.c.l.b16 %v770
      %v786 = vunpack.c.l.b16 %v771
      %v787 = vpack.c.b16 %v784, %v783
      %v788 = vpack.c.b16 %v786, %v785
      %v792 = vsel %vm675, %v765, 0
      %v795 = vsel %vm675, %v766, 0
      %v798 = vsel %vm675, %v767, 0
      %800 = vmatprep.subr.bf16.mxu0 0
      %801 = vmatpush1.bf16.msra.mxu0 0
      %802 = vmatprep.subr.bf16.mxu0 0
      %803 = vmatpush1.bf16.msra.mxu0 0
      %804 = vmatprep.subr.bf16.mxu0 0
      %805 = vmatpush1.bf16.msra.mxu0 0
      %806 = vmatprep.subr.bf16.mxu0 0
      %807 = vmatpush1.bf16.msra.mxu0 0
      %808 = vmatprep.subr.bf16.mxu0 0
      %809 = vmatpush1.bf16.msra.mxu0 0
      %810 = vmatprep.subr.bf16.mxu0 0
      %811 = vmatpush1.bf16.msra.mxu0 0
      %812 = vmatprep.subr.bf16.mxu0 0
      %813 = vmatpush1.bf16.msra.mxu0 %v788
      %814 = vmatprep.subr.bf16.mxu0 0
      %815 = vmatpush1.bf16.msra.mxu0 %v787
      %816 = vmatprep.subr.bf16.mxu0 0
      %817 = vmatpush2.bf16.msra.mxu0 0
      %818 = vmatprep.subr.bf16.mxu0 0
      %819 = vmatpush2.bf16.msra.mxu0 0
      %820 = vmatprep.subr.bf16.mxu0 0
      %821 = vmatpush2.bf16.msra.mxu0 0
      %822 = vmatprep.subr.bf16.mxu0 0
      %823 = vmatpush2.bf16.msra.mxu0 0
      %824 = vmatprep.subr.bf16.mxu0 0
      %825 = vmatpush2.bf16.msra.mxu0 0
      %826 = vmatprep.subr.bf16.mxu0 0
      %827 = vmatpush2.bf16.msra.mxu0 0
      %828 = vmatprep.subr.bf16.mxu0 0
      %829 = vmatpush2.bf16.msra.mxu0 0
      %830 = vmatprep.subr.bf16.mxu0 0
      %831 = vmatpush2.bf16.msra.mxu0 0
      %832 = vmatprep.mubr.bf16.mxu0 0
      %833 = vmatmul.mubr.bf16.gmra.mxu0 %v792
      %v834 = vpop.f32.mrf.mxu0
      %v835 = vadd.f32 %v777, %v834
      %v836 = vpop.f32.mrf.mxu0
      %v837 = vpop.f32.mrf.mxu0
      %v838 = vadd.f32 %v777, %v837
      %v839 = vpop.f32.mrf.mxu0
      %840 = vmatprep.mubr.bf16.mxu0 0
      %841 = vmatmul.mubr.bf16.gmra.mxu0 %v795
      %v842 = vpop.f32.mrf.mxu0
      %v843 = vadd.f32 %v777, %v842
      %v844 = vpop.f32.mrf.mxu0
      %v845 = vpop.f32.mrf.mxu0
      %v846 = vadd.f32 %v777, %v845
      %v847 = vpop.f32.mrf.mxu0
      %848 = vmatprep.mubr.bf16.mxu0 0
      %849 = vmatmul.mubr.bf16.gmra.mxu0 %v798
      %v850 = vpop.f32.mrf.mxu0
      %v851 = vadd.f32 %v777, %v850
      %v852 = vpop.f32.mrf.mxu0
      %v853 = vpop.f32.mrf.mxu0
      %v854 = vpop.f32.mrf.mxu0
      %855 = vdwg.mxu0
      %v856 = vmul.f32 %v835, 0.5
      %v857 = vmul.f32 %v838, 0.5
      %v858 = vmul.f32 %v843, 0.5
      %v859 = vmul.f32 %v846, 0.5
      %v860 = vmul.f32 %v851, 0.5
      %v866 = vcombine.high %v856, %v856
      %v868 = vunpack.c.l.s4 1983009808
      %v869 = vunpack.c.0.s8 %v868
      %v870 = vlaneseq
      %v871 = vshrl.u32 %v870, 7
      %v872 = vsub.s32 %v869, %v871
      %v873 = vrot.slane %v856, %v872
      %v875 = vunpack.c.l.s4 1983009808
      %v876 = vunpack.c.0.s8 %v875
      %v877 = vlaneseq
      %v878 = vshrl.u32 %v877, 7
      %v879 = vsub.s32 %v876, %v878
      %v880 = vrot.slane %v866, %v879
      %v881 = vcombine.high %v873, %v873
      %v882 = vcombine.high %v880, %v880
      %v883 = vcombine.high %v857, %v857
      %v885 = vunpack.c.l.s4 1983009808
      %v886 = vunpack.c.0.s8 %v885
      %v887 = vlaneseq
      %v888 = vshrl.u32 %v887, 7
      %v889 = vsub.s32 %v886, %v888
      %v890 = vrot.slane %v857, %v889
      %v892 = vunpack.c.l.s4 1983009808
      %v893 = vunpack.c.0.s8 %v892
      %v894 = vlaneseq
      %v895 = vshrl.u32 %v894, 7
      %v896 = vsub.s32 %v893, %v895
      %v897 = vrot.slane %v883, %v896
      %v898 = vcombine.high %v890, %v890
      %v899 = vcombine.high %v897, %v897
      %v900 = vcombine.high %v858, %v858
      %v902 = vunpack.c.l.s4 1983009808
      %v903 = vunpack.c.0.s8 %v902
      %v904 = vlaneseq
      %v905 = vshrl.u32 %v904, 7
      %v906 = vsub.s32 %v903, %v905
      %v907 = vrot.slane %v858, %v906
      %v909 = vunpack.c.l.s4 1983009808
      %v910 = vunpack.c.0.s8 %v909
      %v911 = vlaneseq
      %v912 = vshrl.u32 %v911, 7
      %v913 = vsub.s32 %v910, %v912
      %v914 = vrot.slane %v900, %v913
      %v915 = vcombine.high %v907, %v907
      %v916 = vcombine.high %v914, %v914
      %v917 = vcombine.high %v859, %v859
      %v919 = vunpack.c.l.s4 1983009808
      %v920 = vunpack.c.0.s8 %v919
      %v921 = vlaneseq
      %v922 = vshrl.u32 %v921, 7
      %v923 = vsub.s32 %v920, %v922
      %v924 = vrot.slane %v859, %v923
      %v926 = vunpack.c.l.s4 1983009808
      %v927 = vunpack.c.0.s8 %v926
      %v928 = vlaneseq
      %v929 = vshrl.u32 %v928, 7
      %v930 = vsub.s32 %v927, %v929
      %v931 = vrot.slane %v917, %v930
      %v932 = vcombine.high %v924, %v924
      %v933 = vcombine.high %v931, %v931
      %v935 = vunpack.c.l.s4 1983009808
      %v936 = vunpack.c.0.s8 %v935
      %v937 = vlaneseq
      %v938 = vshrl.u32 %v937, 7
      %v939 = vsub.s32 %v936, %v938
      %v940 = vrot.slane %v860, %v939
      %v963 = vcombine.high %v835, %v835
      %v965 = vunpack.c.l.s4 1983009808
      %v966 = vunpack.c.0.s8 %v965
      %v967 = vlaneseq
      %v968 = vshrl.u32 %v967, 7
      %v969 = vsub.s32 %v966, %v968
      %v970 = vrot.slane %v835, %v969
      %v972 = vunpack.c.l.s4 1983009808
      %v973 = vunpack.c.0.s8 %v972
      %v974 = vlaneseq
      %v975 = vshrl.u32 %v974, 7
      %v976 = vsub.s32 %v973, %v975
      %v977 = vrot.slane %v963, %v976
      %v978 = vcombine.high %v970, %v970
      %v979 = vcombine.high %v977, %v977
      %v980 = vcombine.high %v838, %v838
      %v982 = vunpack.c.l.s4 1983009808
      %v983 = vunpack.c.0.s8 %v982
      %v984 = vlaneseq
      %v985 = vshrl.u32 %v984, 7
      %v986 = vsub.s32 %v983, %v985
      %v987 = vrot.slane %v838, %v986
      %v989 = vunpack.c.l.s4 1983009808
      %v990 = vunpack.c.0.s8 %v989
      %v991 = vlaneseq
      %v992 = vshrl.u32 %v991, 7
      %v993 = vsub.s32 %v990, %v992
      %v994 = vrot.slane %v980, %v993
      %v995 = vcombine.high %v987, %v987
      %v996 = vcombine.high %v994, %v994
      %v997 = vcombine.high %v843, %v843
      %v999 = vunpack.c.l.s4 1983009808
      %v1000 = vunpack.c.0.s8 %v999
      %v1001 = vlaneseq
      %v1002 = vshrl.u32 %v1001, 7
      %v1003 = vsub.s32 %v1000, %v1002
      %v1004 = vrot.slane %v843, %v1003
      %v1006 = vunpack.c.l.s4 1983009808
      %v1007 = vunpack.c.0.s8 %v1006
      %v1008 = vlaneseq
      %v1009 = vshrl.u32 %v1008, 7
      %v1010 = vsub.s32 %v1007, %v1009
      %v1011 = vrot.slane %v997, %v1010
      %v1012 = vcombine.high %v1004, %v1004
      %v1013 = vcombine.high %v1011, %v1011
      %v1014 = vcombine.high %v846, %v846
      %v1016 = vunpack.c.l.s4 1983009808
      %v1017 = vunpack.c.0.s8 %v1016
      %v1018 = vlaneseq
      %v1019 = vshrl.u32 %v1018, 7
      %v1020 = vsub.s32 %v1017, %v1019
      %v1021 = vrot.slane %v846, %v1020
      %v1023 = vunpack.c.l.s4 1983009808
      %v1024 = vunpack.c.0.s8 %v1023
      %v1025 = vlaneseq
      %v1026 = vshrl.u32 %v1025, 7
      %v1027 = vsub.s32 %v1024, %v1026
      %v1028 = vrot.slane %v1014, %v1027
      %v1029 = vcombine.high %v1021, %v1021
      %v1030 = vcombine.high %v1028, %v1028
      %v1032 = vunpack.c.l.s4 1983009808
      %v1033 = vunpack.c.0.s8 %v1032
      %v1034 = vlaneseq
      %v1035 = vshrl.u32 %v1034, 7
      %v1036 = vsub.s32 %v1033, %v1035
      %v1037 = vrot.slane %v851, %v1036
      %v1055 = vlaneseq
      %v1056 = vshrl.u32 %v1055, 7
      %v1057 = vsub.s32 0, %v1056
      %v1058 = vrot.slane %v970, %v1057
      %v1059 = vlaneseq
      %v1060 = vshrl.u32 %v1059, 7
      %v1061 = vsub.s32 0, %v1060
      %v1062 = vrot.slane %v978, %v1061
      %v1063 = vlaneseq
      %v1064 = vshrl.u32 %v1063, 7
      %v1065 = vsub.s32 0, %v1064
      %v1066 = vrot.slane %v977, %v1065
      %v1067 = vlaneseq
      %v1068 = vshrl.u32 %v1067, 7
      %v1069 = vsub.s32 0, %v1068
      %v1070 = vrot.slane %v979, %v1069
      %v1071 = vlaneseq
      %v1072 = vshrl.u32 %v1071, 7
      %v1073 = vsub.s32 0, %v1072
      %v1074 = vrot.slane %v987, %v1073
      %v1075 = vlaneseq
      %v1076 = vshrl.u32 %v1075, 7
      %v1077 = vsub.s32 0, %v1076
      %v1078 = vrot.slane %v995, %v1077
      %v1079 = vlaneseq
      %v1080 = vshrl.u32 %v1079, 7
      %v1081 = vsub.s32 0, %v1080
      %v1082 = vrot.slane %v994, %v1081
      %v1083 = vlaneseq
      %v1084 = vshrl.u32 %v1083, 7
      %v1085 = vsub.s32 0, %v1084
      %v1086 = vrot.slane %v996, %v1085
      %v1087 = vlaneseq
      %v1088 = vshrl.u32 %v1087, 7
      %v1089 = vsub.s32 0, %v1088
      %v1090 = vrot.slane %v1004, %v1089
      %v1091 = vlaneseq
      %v1092 = vshrl.u32 %v1091, 7
      %v1093 = vsub.s32 0, %v1092
      %v1094 = vrot.slane %v1012, %v1093
      %v1095 = vlaneseq
      %v1096 = vshrl.u32 %v1095, 7
      %v1097 = vsub.s32 0, %v1096
      %v1098 = vrot.slane %v1011, %v1097
      %v1099 = vlaneseq
      %v1100 = vshrl.u32 %v1099, 7
      %v1101 = vsub.s32 0, %v1100
      %v1102 = vrot.slane %v1013, %v1101
      %v1103 = vlaneseq
      %v1104 = vshrl.u32 %v1103, 7
      %v1105 = vsub.s32 0, %v1104
      %v1106 = vrot.slane %v1021, %v1105
      %v1107 = vlaneseq
      %v1108 = vshrl.u32 %v1107, 7
      %v1109 = vsub.s32 0, %v1108
      %v1110 = vrot.slane %v1029, %v1109
      %v1111 = vlaneseq
      %v1112 = vshrl.u32 %v1111, 7
      %v1113 = vsub.s32 0, %v1112
      %v1114 = vrot.slane %v1028, %v1113
      %v1115 = vlaneseq
      %v1116 = vshrl.u32 %v1115, 7
      %v1117 = vsub.s32 0, %v1116
      %v1118 = vrot.slane %v1030, %v1117
      %v1119 = vlaneseq
      %v1120 = vshrl.u32 %v1119, 7
      %v1121 = vsub.s32 0, %v1120
      %v1122 = vrot.slane %v1037, %v1121
      %v1141 = vunpack.c.l.s4 1983009808
      %v1142 = vunpack.c.0.s8 %v1141
      %v1143 = vlaneseq
      %v1144 = vshrl.u32 %v1143, 7
      %v1145 = vsub.s32 %v1142, %v1144
      %v1146 = vrot.slane %v1058, %v1145
      %v1148 = vunpack.c.l.s4 1983009808
      %v1149 = vunpack.c.0.s8 %v1148
      %v1150 = vlaneseq
      %v1151 = vshrl.u32 %v1150, 7
      %v1152 = vsub.s32 %v1149, %v1151
      %v1153 = vrot.slane %v1062, %v1152
      %v1155 = vunpack.c.l.s4 1983009808
      %v1156 = vunpack.c.0.s8 %v1155
      %v1157 = vlaneseq
      %v1158 = vshrl.u32 %v1157, 7
      %v1159 = vsub.s32 %v1156, %v1158
      %v1160 = vrot.slane %v1066, %v1159
      %v1162 = vunpack.c.l.s4 1983009808
      %v1163 = vunpack.c.0.s8 %v1162
      %v1164 = vlaneseq
      %v1165 = vshrl.u32 %v1164, 7
      %v1166 = vsub.s32 %v1163, %v1165
      %v1167 = vrot.slane %v1070, %v1166
      %v1169 = vunpack.c.l.s4 1983009808
      %v1170 = vunpack.c.0.s8 %v1169
      %v1171 = vlaneseq
      %v1172 = vshrl.u32 %v1171, 7
      %v1173 = vsub.s32 %v1170, %v1172
      %v1174 = vrot.slane %v1074, %v1173
      %v1176 = vunpack.c.l.s4 1983009808
      %v1177 = vunpack.c.0.s8 %v1176
      %v1178 = vlaneseq
      %v1179 = vshrl.u32 %v1178, 7
      %v1180 = vsub.s32 %v1177, %v1179
      %v1181 = vrot.slane %v1078, %v1180
      %v1183 = vunpack.c.l.s4 1983009808
      %v1184 = vunpack.c.0.s8 %v1183
      %v1185 = vlaneseq
      %v1186 = vshrl.u32 %v1185, 7
      %v1187 = vsub.s32 %v1184, %v1186
      %v1188 = vrot.slane %v1082, %v1187
      %v1190 = vunpack.c.l.s4 1983009808
      %v1191 = vunpack.c.0.s8 %v1190
      %v1192 = vlaneseq
      %v1193 = vshrl.u32 %v1192, 7
      %v1194 = vsub.s32 %v1191, %v1193
      %v1195 = vrot.slane %v1086, %v1194
      %v1197 = vunpack.c.l.s4 1983009808
      %v1198 = vunpack.c.0.s8 %v1197
      %v1199 = vlaneseq
      %v1200 = vshrl.u32 %v1199, 7
      %v1201 = vsub.s32 %v1198, %v1200
      %v1202 = vrot.slane %v1090, %v1201
      %v1204 = vunpack.c.l.s4 1983009808
      %v1205 = vunpack.c.0.s8 %v1204
      %v1206 = vlaneseq
      %v1207 = vshrl.u32 %v1206, 7
      %v1208 = vsub.s32 %v1205, %v1207
      %v1209 = vrot.slane %v1094, %v1208
      %v1211 = vunpack.c.l.s4 1983009808
      %v1212 = vunpack.c.0.s8 %v1211
      %v1213 = vlaneseq
      %v1214 = vshrl.u32 %v1213, 7
      %v1215 = vsub.s32 %v1212, %v1214
      %v1216 = vrot.slane %v1098, %v1215
      %v1218 = vunpack.c.l.s4 1983009808
      %v1219 = vunpack.c.0.s8 %v1218
      %v1220 = vlaneseq
      %v1221 = vshrl.u32 %v1220, 7
      %v1222 = vsub.s32 %v1219, %v1221
      %v1223 = vrot.slane %v1102, %v1222
      %v1225 = vunpack.c.l.s4 1983009808
      %v1226 = vunpack.c.0.s8 %v1225
      %v1227 = vlaneseq
      %v1228 = vshrl.u32 %v1227, 7
      %v1229 = vsub.s32 %v1226, %v1228
      %v1230 = vrot.slane %v1106, %v1229
      %v1232 = vunpack.c.l.s4 1983009808
      %v1233 = vunpack.c.0.s8 %v1232
      %v1234 = vlaneseq
      %v1235 = vshrl.u32 %v1234, 7
      %v1236 = vsub.s32 %v1233, %v1235
      %v1237 = vrot.slane %v1110, %v1236
      %v1239 = vunpack.c.l.s4 1983009808
      %v1240 = vunpack.c.0.s8 %v1239
      %v1241 = vlaneseq
      %v1242 = vshrl.u32 %v1241, 7
      %v1243 = vsub.s32 %v1240, %v1242
      %v1244 = vrot.slane %v1114, %v1243
      %v1246 = vunpack.c.l.s4 1983009808
      %v1247 = vunpack.c.0.s8 %v1246
      %v1248 = vlaneseq
      %v1249 = vshrl.u32 %v1248, 7
      %v1250 = vsub.s32 %v1247, %v1249
      %v1251 = vrot.slane %v1118, %v1250
      %v1253 = vunpack.c.l.s4 1983009808
      %v1254 = vunpack.c.0.s8 %v1253
      %v1255 = vlaneseq
      %v1256 = vshrl.u32 %v1255, 7
      %v1257 = vsub.s32 %v1254, %v1256
      %v1258 = vrot.slane %v1122, %v1257
      %1259 = vrot.lane.b32.xlu0 %v1146, 96
      %v1260 = vpop.permute.xlu0 %1259
      %1261 = vrot.lane.b32.xlu0 %v1153, 96
      %v1262 = vpop.permute.xlu0 %1261
      %1263 = vrot.lane.b32.xlu0 %v1160, 96
      %v1264 = vpop.permute.xlu0 %1263
      %1265 = vrot.lane.b32.xlu0 %v1167, 96
      %v1266 = vpop.permute.xlu0 %1265
      %1267 = vrot.lane.b32.xlu0 %v1174, 96
      %v1268 = vpop.permute.xlu0 %1267
      %1269 = vrot.lane.b32.xlu0 %v1181, 96
      %v1270 = vpop.permute.xlu0 %1269
      %1271 = vrot.lane.b32.xlu0 %v1188, 96
      %v1272 = vpop.permute.xlu0 %1271
      %1273 = vrot.lane.b32.xlu0 %v1195, 96
      %v1274 = vpop.permute.xlu0 %1273
      %1275 = vrot.lane.b32.xlu0 %v1202, 96
      %v1276 = vpop.permute.xlu0 %1275
      %1277 = vrot.lane.b32.xlu0 %v1209, 96
      %v1278 = vpop.permute.xlu0 %1277
      %1279 = vrot.lane.b32.xlu0 %v1216, 96
      %v1280 = vpop.permute.xlu0 %1279
      %1281 = vrot.lane.b32.xlu0 %v1223, 96
      %v1282 = vpop.permute.xlu0 %1281
      %1283 = vrot.lane.b32.xlu0 %v1230, 96
      %v1284 = vpop.permute.xlu0 %1283
      %1285 = vrot.lane.b32.xlu0 %v1237, 96
      %v1286 = vpop.permute.xlu0 %1285
      %1287 = vrot.lane.b32.xlu0 %v1244, 96
      %v1288 = vpop.permute.xlu0 %1287
      %1289 = vrot.lane.b32.xlu0 %v1251, 96
      %v1290 = vpop.permute.xlu0 %1289
      %1291 = vrot.lane.b32.xlu0 %v1258, 96
      %v1292 = vpop.permute.xlu0 %1291
      %v1310 = vmul.f32 %v873, %v1260
      %v1311 = vmul.f32 %v881, %v1262
      %v1312 = vmul.f32 %v880, %v1264
      %v1313 = vmul.f32 %v882, %v1266
      %v1314 = vmul.f32 %v890, %v1268
      %v1315 = vmul.f32 %v898, %v1270
      %v1316 = vmul.f32 %v897, %v1272
      %v1317 = vmul.f32 %v899, %v1274
      %v1318 = vmul.f32 %v907, %v1276
      %v1319 = vmul.f32 %v915, %v1278
      %v1320 = vmul.f32 %v914, %v1280
      %v1321 = vmul.f32 %v916, %v1282
      %v1322 = vmul.f32 %v924, %v1284
      %v1323 = vmul.f32 %v932, %v1286
      %v1324 = vmul.f32 %v931, %v1288
      %v1325 = vmul.f32 %v933, %v1290
      %v1326 = vmul.f32 %v940, %v1292
      %vm1327 = vcmask 25600
      %v1328 = vsel %vm1327, %v1310, 0.0
      %1329 = vadd.xlane.f32.xlu0 %v1328
      %v1330 = vpop.xlane.xlu0 %1329
      %v1331 = vsel %vm1327, %v1311, 0.0
      %1332 = vadd.xlane.f32.xlu0 %v1331
      %v1333 = vpop.xlane.xlu0 %1332
      %v1334 = vsel %vm1327, %v1312, 0.0
      %1335 = vadd.xlane.f32.xlu0 %v1334
      %v1336 = vpop.xlane.xlu0 %1335
      %v1337 = vsel %vm1327, %v1313, 0.0
      %1338 = vadd.xlane.f32.xlu0 %v1337
      %v1339 = vpop.xlane.xlu0 %1338
      %v1340 = vsel %vm1327, %v1314, 0.0
      %1341 = vadd.xlane.f32.xlu0 %v1340
      %v1342 = vpop.xlane.xlu0 %1341
      %v1343 = vsel %vm1327, %v1315, 0.0
      %1344 = vadd.xlane.f32.xlu0 %v1343
      %v1345 = vpop.xlane.xlu0 %1344
      %v1346 = vsel %vm1327, %v1316, 0.0
      %1347 = vadd.xlane.f32.xlu0 %v1346
      %v1348 = vpop.xlane.xlu0 %1347
      %v1349 = vsel %vm1327, %v1317, 0.0
      %1350 = vadd.xlane.f32.xlu0 %v1349
      %v1351 = vpop.xlane.xlu0 %1350
      %v1352 = vsel %vm1327, %v1318, 0.0
      %1353 = vadd.xlane.f32.xlu0 %v1352
      %v1354 = vpop.xlane.xlu0 %1353
      %v1355 = vsel %vm1327, %v1319, 0.0
      %1356 = vadd.xlane.f32.xlu0 %v1355
      %v1357 = vpop.xlane.xlu0 %1356
      %v1358 = vsel %vm1327, %v1320, 0.0
      %1359 = vadd.xlane.f32.xlu0 %v1358
      %v1360 = vpop.xlane.xlu0 %1359
      %v1361 = vsel %vm1327, %v1321, 0.0
      %1362 = vadd.xlane.f32.xlu0 %v1361
      %v1363 = vpop.xlane.xlu0 %1362
      %v1364 = vsel %vm1327, %v1322, 0.0
      %1365 = vadd.xlane.f32.xlu0 %v1364
      %v1366 = vpop.xlane.xlu0 %1365
      %v1367 = vsel %vm1327, %v1323, 0.0
      %1368 = vadd.xlane.f32.xlu0 %v1367
      %v1369 = vpop.xlane.xlu0 %1368
      %v1370 = vsel %vm1327, %v1324, 0.0
      %1371 = vadd.xlane.f32.xlu0 %v1370
      %v1372 = vpop.xlane.xlu0 %1371
      %v1373 = vsel %vm1327, %v1325, 0.0
      %1374 = vadd.xlane.f32.xlu0 %v1373
      %v1375 = vpop.xlane.xlu0 %1374
      %v1376 = vsel %vm1327, %v1326, 0.0
      %1377 = vadd.xlane.f32.xlu0 %v1376
      %v1378 = vpop.xlane.xlu0 %1377
      %v1379 = vlaneseq
      %v1380 = vshrl.u32 %v1379, 7
      %v1381 = vsub.s32 1, %v1380
      %v1382 = vrot.slane %v970, %v1381
      %v1383 = vlaneseq
      %v1384 = vshrl.u32 %v1383, 7
      %v1385 = vsub.s32 1, %v1384
      %v1386 = vrot.slane %v978, %v1385
      %v1387 = vlaneseq
      %v1388 = vshrl.u32 %v1387, 7
      %v1389 = vsub.s32 1, %v1388
      %v1390 = vrot.slane %v977, %v1389
      %v1391 = vlaneseq
      %v1392 = vshrl.u32 %v1391, 7
      %v1393 = vsub.s32 1, %v1392
      %v1394 = vrot.slane %v979, %v1393
      %v1395 = vlaneseq
      %v1396 = vshrl.u32 %v1395, 7
      %v1397 = vsub.s32 1, %v1396
      %v1398 = vrot.slane %v987, %v1397
      %v1399 = vlaneseq
      %v1400 = vshrl.u32 %v1399, 7
      %v1401 = vsub.s32 1, %v1400
      %v1402 = vrot.slane %v995, %v1401
      %v1403 = vlaneseq
      %v1404 = vshrl.u32 %v1403, 7
      %v1405 = vsub.s32 1, %v1404
      %v1406 = vrot.slane %v994, %v1405
      %v1407 = vlaneseq
      %v1408 = vshrl.u32 %v1407, 7
      %v1409 = vsub.s32 1, %v1408
      %v1410 = vrot.slane %v996, %v1409
      %v1411 = vlaneseq
      %v1412 = vshrl.u32 %v1411, 7
      %v1413 = vsub.s32 1, %v1412
      %v1414 = vrot.slane %v1004, %v1413
      %v1415 = vlaneseq
      %v1416 = vshrl.u32 %v1415, 7
      %v1417 = vsub.s32 1, %v1416
      %v1418 = vrot.slane %v1012, %v1417
      %v1419 = vlaneseq
      %v1420 = vshrl.u32 %v1419, 7
      %v1421 = vsub.s32 1, %v1420
      %v1422 = vrot.slane %v1011, %v1421
      %v1423 = vlaneseq
      %v1424 = vshrl.u32 %v1423, 7
      %v1425 = vsub.s32 1, %v1424
      %v1426 = vrot.slane %v1013, %v1425
      %v1427 = vlaneseq
      %v1428 = vshrl.u32 %v1427, 7
      %v1429 = vsub.s32 1, %v1428
      %v1430 = vrot.slane %v1021, %v1429
      %v1431 = vlaneseq
      %v1432 = vshrl.u32 %v1431, 7
      %v1433 = vsub.s32 1, %v1432
      %v1434 = vrot.slane %v1029, %v1433
      %v1435 = vlaneseq
      %v1436 = vshrl.u32 %v1435, 7
      %v1437 = vsub.s32 1, %v1436
      %v1438 = vrot.slane %v1028, %v1437
      %v1439 = vlaneseq
      %v1440 = vshrl.u32 %v1439, 7
      %v1441 = vsub.s32 1, %v1440
      %v1442 = vrot.slane %v1030, %v1441
      %v1443 = vlaneseq
      %v1444 = vshrl.u32 %v1443, 7
      %v1445 = vsub.s32 1, %v1444
      %v1446 = vrot.slane %v1037, %v1445
      %v1465 = vunpack.c.l.s4 1983009808
      %v1466 = vunpack.c.0.s8 %v1465
      %v1467 = vlaneseq
      %v1468 = vshrl.u32 %v1467, 7
      %v1469 = vsub.s32 %v1466, %v1468
      %v1470 = vrot.slane %v1382, %v1469
      %v1472 = vunpack.c.l.s4 1983009808
      %v1473 = vunpack.c.0.s8 %v1472
      %v1474 = vlaneseq
      %v1475 = vshrl.u32 %v1474, 7
      %v1476 = vsub.s32 %v1473, %v1475
      %v1477 = vrot.slane %v1386, %v1476
      %v1479 = vunpack.c.l.s4 1983009808
      %v1480 = vunpack.c.0.s8 %v1479
      %v1481 = vlaneseq
      %v1482 = vshrl.u32 %v1481, 7
      %v1483 = vsub.s32 %v1480, %v1482
      %v1484 = vrot.slane %v1390, %v1483
      %v1486 = vunpack.c.l.s4 1983009808
      %v1487 = vunpack.c.0.s8 %v1486
      %v1488 = vlaneseq
      %v1489 = vshrl.u32 %v1488, 7
      %v1490 = vsub.s32 %v1487, %v1489
      %v1491 = vrot.slane %v1394, %v1490
      %v1493 = vunpack.c.l.s4 1983009808
      %v1494 = vunpack.c.0.s8 %v1493
      %v1495 = vlaneseq
      %v1496 = vshrl.u32 %v1495, 7
      %v1497 = vsub.s32 %v1494, %v1496
      %v1498 = vrot.slane %v1398, %v1497
      %v1500 = vunpack.c.l.s4 1983009808
      %v1501 = vunpack.c.0.s8 %v1500
      %v1502 = vlaneseq
      %v1503 = vshrl.u32 %v1502, 7
      %v1504 = vsub.s32 %v1501, %v1503
      %v1505 = vrot.slane %v1402, %v1504
      %v1507 = vunpack.c.l.s4 1983009808
      %v1508 = vunpack.c.0.s8 %v1507
      %v1509 = vlaneseq
      %v1510 = vshrl.u32 %v1509, 7
      %v1511 = vsub.s32 %v1508, %v1510
      %v1512 = vrot.slane %v1406, %v1511
      %v1514 = vunpack.c.l.s4 1983009808
      %v1515 = vunpack.c.0.s8 %v1514
      %v1516 = vlaneseq
      %v1517 = vshrl.u32 %v1516, 7
      %v1518 = vsub.s32 %v1515, %v1517
      %v1519 = vrot.slane %v1410, %v1518
      %v1521 = vunpack.c.l.s4 1983009808
      %v1522 = vunpack.c.0.s8 %v1521
      %v1523 = vlaneseq
      %v1524 = vshrl.u32 %v1523, 7
      %v1525 = vsub.s32 %v1522, %v1524
      %v1526 = vrot.slane %v1414, %v1525
      %v1528 = vunpack.c.l.s4 1983009808
      %v1529 = vunpack.c.0.s8 %v1528
      %v1530 = vlaneseq
      %v1531 = vshrl.u32 %v1530, 7
      %v1532 = vsub.s32 %v1529, %v1531
      %v1533 = vrot.slane %v1418, %v1532
      %v1535 = vunpack.c.l.s4 1983009808
      %v1536 = vunpack.c.0.s8 %v1535
      %v1537 = vlaneseq
      %v1538 = vshrl.u32 %v1537, 7
      %v1539 = vsub.s32 %v1536, %v1538
      %v1540 = vrot.slane %v1422, %v1539
      %v1542 = vunpack.c.l.s4 1983009808
      %v1543 = vunpack.c.0.s8 %v1542
      %v1544 = vlaneseq
      %v1545 = vshrl.u32 %v1544, 7
      %v1546 = vsub.s32 %v1543, %v1545
      %v1547 = vrot.slane %v1426, %v1546
      %v1549 = vunpack.c.l.s4 1983009808
      %v1550 = vunpack.c.0.s8 %v1549
      %v1551 = vlaneseq
      %v1552 = vshrl.u32 %v1551, 7
      %v1553 = vsub.s32 %v1550, %v1552
      %v1554 = vrot.slane %v1430, %v1553
      %v1556 = vunpack.c.l.s4 1983009808
      %v1557 = vunpack.c.0.s8 %v1556
      %v1558 = vlaneseq
      %v1559 = vshrl.u32 %v1558, 7
      %v1560 = vsub.s32 %v1557, %v1559
      %v1561 = vrot.slane %v1434, %v1560
      %v1563 = vunpack.c.l.s4 1983009808
      %v1564 = vunpack.c.0.s8 %v1563
      %v1565 = vlaneseq
      %v1566 = vshrl.u32 %v1565, 7
      %v1567 = vsub.s32 %v1564, %v1566
      %v1568 = vrot.slane %v1438, %v1567
      %v1570 = vunpack.c.l.s4 1983009808
      %v1571 = vunpack.c.0.s8 %v1570
      %v1572 = vlaneseq
      %v1573 = vshrl.u32 %v1572, 7
      %v1574 = vsub.s32 %v1571, %v1573
      %v1575 = vrot.slane %v1442, %v1574
      %v1577 = vunpack.c.l.s4 1983009808
      %v1578 = vunpack.c.0.s8 %v1577
      %v1579 = vlaneseq
      %v1580 = vshrl.u32 %v1579, 7
      %v1581 = vsub.s32 %v1578, %v1580
      %v1582 = vrot.slane %v1446, %v1581
      %1583 = vrot.lane.b32.xlu0 %v1470, 96
      %v1584 = vpop.permute.xlu0 %1583
      %1585 = vrot.lane.b32.xlu0 %v1477, 96
      %v1586 = vpop.permute.xlu0 %1585
      %1587 = vrot.lane.b32.xlu0 %v1484, 96
      %v1588 = vpop.permute.xlu0 %1587
      %1589 = vrot.lane.b32.xlu0 %v1491, 96
      %v1590 = vpop.permute.xlu0 %1589
      %1591 = vrot.lane.b32.xlu0 %v1498, 96
      %v1592 = vpop.permute.xlu0 %1591
      %1593 = vrot.lane.b32.xlu0 %v1505, 96
      %v1594 = vpop.permute.xlu0 %1593
      %1595 = vrot.lane.b32.xlu0 %v1512, 96
      %v1596 = vpop.permute.xlu0 %1595
      %1597 = vrot.lane.b32.xlu0 %v1519, 96
      %v1598 = vpop.permute.xlu0 %1597
      %1599 = vrot.lane.b32.xlu0 %v1526, 96
      %v1600 = vpop.permute.xlu0 %1599
      %1601 = vrot.lane.b32.xlu0 %v1533, 96
      %v1602 = vpop.permute.xlu0 %1601
      %1603 = vrot.lane.b32.xlu0 %v1540, 96
      %v1604 = vpop.permute.xlu0 %1603
      %1605 = vrot.lane.b32.xlu0 %v1547, 96
      %v1606 = vpop.permute.xlu0 %1605
      %1607 = vrot.lane.b32.xlu0 %v1554, 96
      %v1608 = vpop.permute.xlu0 %1607
      %1609 = vrot.lane.b32.xlu0 %v1561, 96
      %v1610 = vpop.permute.xlu0 %1609
      %1611 = vrot.lane.b32.xlu0 %v1568, 96
      %v1612 = vpop.permute.xlu0 %1611
      %1613 = vrot.lane.b32.xlu0 %v1575, 96
      %v1614 = vpop.permute.xlu0 %1613
      %1615 = vrot.lane.b32.xlu0 %v1582, 96
      %v1616 = vpop.permute.xlu0 %1615
      %v1634 = vmul.f32 %v873, %v1584
      %v1635 = vmul.f32 %v881, %v1586
      %v1636 = vmul.f32 %v880, %v1588
      %v1637 = vmul.f32 %v882, %v1590
      %v1638 = vmul.f32 %v890, %v1592
      %v1639 = vmul.f32 %v898, %v1594
      %v1640 = vmul.f32 %v897, %v1596
      %v1641 = vmul.f32 %v899, %v1598
      %v1642 = vmul.f32 %v907, %v1600
      %v1643 = vmul.f32 %v915, %v1602
      %v1644 = vmul.f32 %v914, %v1604
      %v1645 = vmul.f32 %v916, %v1606
      %v1646 = vmul.f32 %v924, %v1608
      %v1647 = vmul.f32 %v932, %v1610
      %v1648 = vmul.f32 %v931, %v1612
      %v1649 = vmul.f32 %v933, %v1614
      %v1650 = vmul.f32 %v940, %v1616
      %v1651 = vsel %vm1327, %v1634, 0.0
      %1652 = vadd.xlane.f32.xlu0 %v1651
      %v1653 = vpop.xlane.xlu0 %1652
      %v1654 = vsel %vm1327, %v1635, 0.0
      %1655 = vadd.xlane.f32.xlu0 %v1654
      %v1656 = vpop.xlane.xlu0 %1655
      %v1657 = vsel %vm1327, %v1636, 0.0
      %1658 = vadd.xlane.f32.xlu0 %v1657
      %v1659 = vpop.xlane.xlu0 %1658
      %v1660 = vsel %vm1327, %v1637, 0.0
      %1661 = vadd.xlane.f32.xlu0 %v1660
      %v1662 = vpop.xlane.xlu0 %1661
      %v1663 = vsel %vm1327, %v1638, 0.0
      %1664 = vadd.xlane.f32.xlu0 %v1663
      %v1665 = vpop.xlane.xlu0 %1664
      %v1666 = vsel %vm1327, %v1639, 0.0
      %1667 = vadd.xlane.f32.xlu0 %v1666
      %v1668 = vpop.xlane.xlu0 %1667
      %v1669 = vsel %vm1327, %v1640, 0.0
      %1670 = vadd.xlane.f32.xlu0 %v1669
      %v1671 = vpop.xlane.xlu0 %1670
      %v1672 = vsel %vm1327, %v1641, 0.0
      %1673 = vadd.xlane.f32.xlu0 %v1672
      %v1674 = vpop.xlane.xlu0 %1673
      %v1675 = vsel %vm1327, %v1642, 0.0
      %1676 = vadd.xlane.f32.xlu0 %v1675
      %v1677 = vpop.xlane.xlu0 %1676
      %v1678 = vsel %vm1327, %v1643, 0.0
      %1679 = vadd.xlane.f32.xlu0 %v1678
      %v1680 = vpop.xlane.xlu0 %1679
      %v1681 = vsel %vm1327, %v1644, 0.0
      %1682 = vadd.xlane.f32.xlu0 %v1681
      %v1683 = vpop.xlane.xlu0 %1682
      %v1684 = vsel %vm1327, %v1645, 0.0
      %1685 = vadd.xlane.f32.xlu0 %v1684
      %v1686 = vpop.xlane.xlu0 %1685
      %v1687 = vsel %vm1327, %v1646, 0.0
      %1688 = vadd.xlane.f32.xlu0 %v1687
      %v1689 = vpop.xlane.xlu0 %1688
      %v1690 = vsel %vm1327, %v1647, 0.0
      %1691 = vadd.xlane.f32.xlu0 %v1690
      %v1692 = vpop.xlane.xlu0 %1691
      %v1693 = vsel %vm1327, %v1648, 0.0
      %1694 = vadd.xlane.f32.xlu0 %v1693
      %v1695 = vpop.xlane.xlu0 %1694
      %v1696 = vsel %vm1327, %v1649, 0.0
      %1697 = vadd.xlane.f32.xlu0 %v1696
      %v1698 = vpop.xlane.xlu0 %1697
      %v1699 = vsel %vm1327, %v1650, 0.0
      %1700 = vadd.xlane.f32.xlu0 %v1699
      %v1701 = vpop.xlane.xlu0 %1700
      %vm1702 = vcmask 7168
      %v1703 = vsel %vm1702, %v1330, %v1653
      %v1704 = vsel %vm1702, %v1333, %v1656
      %v1705 = vsel %vm1702, %v1336, %v1659
      %v1706 = vsel %vm1702, %v1339, %v1662
      %v1707 = vsel %vm1702, %v1342, %v1665
      %v1708 = vsel %vm1702, %v1345, %v1668
      %v1709 = vsel %vm1702, %v1348, %v1671
      %v1710 = vsel %vm1702, %v1351, %v1674
      %v1711 = vsel %vm1702, %v1354, %v1677
      %v1712 = vsel %vm1702, %v1357, %v1680
      %v1713 = vsel %vm1702, %v1360, %v1683
      %v1714 = vsel %vm1702, %v1363, %v1686
      %v1715 = vsel %vm1702, %v1366, %v1689
      %v1716 = vsel %vm1702, %v1369, %v1692
      %v1717 = vsel %vm1702, %v1372, %v1695
      %v1718 = vsel %vm1702, %v1375, %v1698
      %v1719 = vsel %vm1702, %v1378, %v1701
      %vm1720 = vcmask 9216
      %v1721 = vsel %vm1720, %v1703, -inf
      %1722 = vmax.xlane.f32.xlu0 %v1721
      %v1723 = vpop.xlane.xlu0 %1722
      %v1724 = vsel %vm1720, %v1704, -inf
      %1725 = vmax.xlane.f32.xlu0 %v1724
      %v1726 = vpop.xlane.xlu0 %1725
      %v1727 = vsel %vm1720, %v1705, -inf
      %1728 = vmax.xlane.f32.xlu0 %v1727
      %v1729 = vpop.xlane.xlu0 %1728
      %v1730 = vsel %vm1720, %v1706, -inf
      %1731 = vmax.xlane.f32.xlu0 %v1730
      %v1732 = vpop.xlane.xlu0 %1731
      %v1733 = vsel %vm1720, %v1707, -inf
      %1734 = vmax.xlane.f32.xlu0 %v1733
      %v1735 = vpop.xlane.xlu0 %1734
      %v1736 = vsel %vm1720, %v1708, -inf
      %1737 = vmax.xlane.f32.xlu0 %v1736
      %v1738 = vpop.xlane.xlu0 %1737
      %v1739 = vsel %vm1720, %v1709, -inf
      %1740 = vmax.xlane.f32.xlu0 %v1739
      %v1741 = vpop.xlane.xlu0 %1740
      %v1742 = vsel %vm1720, %v1710, -inf
      %1743 = vmax.xlane.f32.xlu0 %v1742
      %v1744 = vpop.xlane.xlu0 %1743
      %v1745 = vsel %vm1720, %v1711, -inf
      %1746 = vmax.xlane.f32.xlu0 %v1745
      %v1747 = vpop.xlane.xlu0 %1746
      %v1748 = vsel %vm1720, %v1712, -inf
      %1749 = vmax.xlane.f32.xlu0 %v1748
      %v1750 = vpop.xlane.xlu0 %1749
      %v1751 = vsel %vm1720, %v1713, -inf
      %1752 = vmax.xlane.f32.xlu0 %v1751
      %v1753 = vpop.xlane.xlu0 %1752
      %v1754 = vsel %vm1720, %v1714, -inf
      %1755 = vmax.xlane.f32.xlu0 %v1754
      %v1756 = vpop.xlane.xlu0 %1755
      %v1757 = vsel %vm1720, %v1715, -inf
      %1758 = vmax.xlane.f32.xlu0 %v1757
      %v1759 = vpop.xlane.xlu0 %1758
      %v1760 = vsel %vm1720, %v1716, -inf
      %1761 = vmax.xlane.f32.xlu0 %v1760
      %v1762 = vpop.xlane.xlu0 %1761
      %v1763 = vsel %vm1720, %v1717, -inf
      %1764 = vmax.xlane.f32.xlu0 %v1763
      %v1765 = vpop.xlane.xlu0 %1764
      %v1766 = vsel %vm1720, %v1718, -inf
      %1767 = vmax.xlane.f32.xlu0 %v1766
      %v1768 = vpop.xlane.xlu0 %1767
      %v1769 = vsel %vm1720, %v1719, -inf
      %1770 = vmax.xlane.f32.xlu0 %v1769
      %v1771 = vpop.xlane.xlu0 %1770
      %v1772 = vsub.f32 %v1703, %v1723
      %v1773 = vsub.f32 %v1704, %v1726
      %v1774 = vsub.f32 %v1705, %v1729
      %v1775 = vsub.f32 %v1706, %v1732
      %v1776 = vsub.f32 %v1707, %v1735
      %v1777 = vsub.f32 %v1708, %v1738
      %v1778 = vsub.f32 %v1709, %v1741
      %v1779 = vsub.f32 %v1710, %v1744
      %v1780 = vsub.f32 %v1711, %v1747
      %v1781 = vsub.f32 %v1712, %v1750
      %v1782 = vsub.f32 %v1713, %v1753
      %v1783 = vsub.f32 %v1714, %v1756
      %v1784 = vsub.f32 %v1715, %v1759
      %v1785 = vsub.f32 %v1716, %v1762
      %v1786 = vsub.f32 %v1717, %v1765
      %v1787 = vsub.f32 %v1718, %v1768
      %v1788 = vsub.f32 %v1719, %v1771
      %v1789 = vmul.f32 %v1772, 1.442695
      %v1790 = vpow.pop %v1789
      %v1791 = vmul.f32 %v1773, 1.442695
      %v1792 = vpow.pop %v1791
      %v1793 = vmul.f32 %v1774, 1.442695
      %v1794 = vpow.pop %v1793
      %v1795 = vmul.f32 %v1775, 1.442695
      %v1796 = vpow.pop %v1795
      %v1797 = vmul.f32 %v1776, 1.442695
      %v1798 = vpow.pop %v1797
      %v1799 = vmul.f32 %v1777, 1.442695
      %v1800 = vpow.pop %v1799
      %v1801 = vmul.f32 %v1778, 1.442695
      %v1802 = vpow.pop %v1801
      %v1803 = vmul.f32 %v1779, 1.442695
      %v1804 = vpow.pop %v1803
      %v1805 = vmul.f32 %v1780, 1.442695
      %v1806 = vpow.pop %v1805
      %v1807 = vmul.f32 %v1781, 1.442695
      %v1808 = vpow.pop %v1807
      %v1809 = vmul.f32 %v1782, 1.442695
      %v1810 = vpow.pop %v1809
      %v1811 = vmul.f32 %v1783, 1.442695
      %v1812 = vpow.pop %v1811
      %v1813 = vmul.f32 %v1784, 1.442695
      %v1814 = vpow.pop %v1813
      %v1815 = vmul.f32 %v1785, 1.442695
      %v1816 = vpow.pop %v1815
      %v1817 = vmul.f32 %v1786, 1.442695
      %v1818 = vpow.pop %v1817
      %v1819 = vmul.f32 %v1787, 1.442695
      %v1820 = vpow.pop %v1819
      %v1821 = vmul.f32 %v1788, 1.442695
      %v1822 = vpow.pop %v1821
      %v1823 = vsel %vm1720, %v1790, 0.0
      %1824 = vadd.xlane.f32.xlu0 %v1823
      %v1825 = vpop.xlane.xlu0 %1824
      %v1826 = vsel %vm1720, %v1792, 0.0
      %1827 = vadd.xlane.f32.xlu0 %v1826
      %v1828 = vpop.xlane.xlu0 %1827
      %v1829 = vsel %vm1720, %v1794, 0.0
      %1830 = vadd.xlane.f32.xlu0 %v1829
      %v1831 = vpop.xlane.xlu0 %1830
      %v1832 = vsel %vm1720, %v1796, 0.0
      %1833 = vadd.xlane.f32.xlu0 %v1832
      %v1834 = vpop.xlane.xlu0 %1833
      %v1835 = vsel %vm1720, %v1798, 0.0
      %1836 = vadd.xlane.f32.xlu0 %v1835
      %v1837 = vpop.xlane.xlu0 %1836
      %v1838 = vsel %vm1720, %v1800, 0.0
      %1839 = vadd.xlane.f32.xlu0 %v1838
      %v1840 = vpop.xlane.xlu0 %1839
      %v1841 = vsel %vm1720, %v1802, 0.0
      %1842 = vadd.xlane.f32.xlu0 %v1841
      %v1843 = vpop.xlane.xlu0 %1842
      %v1844 = vsel %vm1720, %v1804, 0.0
      %1845 = vadd.xlane.f32.xlu0 %v1844
      %v1846 = vpop.xlane.xlu0 %1845
      %v1847 = vsel %vm1720, %v1806, 0.0
      %1848 = vadd.xlane.f32.xlu0 %v1847
      %v1849 = vpop.xlane.xlu0 %1848
      %v1850 = vsel %vm1720, %v1808, 0.0
      %1851 = vadd.xlane.f32.xlu0 %v1850
      %v1852 = vpop.xlane.xlu0 %1851
      %v1853 = vsel %vm1720, %v1810, 0.0
      %1854 = vadd.xlane.f32.xlu0 %v1853
      %v1855 = vpop.xlane.xlu0 %1854
      %v1856 = vsel %vm1720, %v1812, 0.0
      %1857 = vadd.xlane.f32.xlu0 %v1856
      %v1858 = vpop.xlane.xlu0 %1857
      %v1859 = vsel %vm1720, %v1814, 0.0
      %1860 = vadd.xlane.f32.xlu0 %v1859
      %v1861 = vpop.xlane.xlu0 %1860
      %v1862 = vsel %vm1720, %v1816, 0.0
      %1863 = vadd.xlane.f32.xlu0 %v1862
      %v1864 = vpop.xlane.xlu0 %1863
      %v1865 = vsel %vm1720, %v1818, 0.0
      %1866 = vadd.xlane.f32.xlu0 %v1865
      %v1867 = vpop.xlane.xlu0 %1866
      %v1868 = vsel %vm1720, %v1820, 0.0
      %1869 = vadd.xlane.f32.xlu0 %v1868
      %v1870 = vpop.xlane.xlu0 %1869
      %v1871 = vsel %vm1720, %v1822, 0.0
      %1872 = vadd.xlane.f32.xlu0 %v1871
      %v1873 = vpop.xlane.xlu0 %1872
      %v1874 = vrcp.pop %v1825
      %v1875 = vmul.f32 %v1790, %v1874
      %v1876 = vrcp.pop %v1828
      %v1877 = vmul.f32 %v1792, %v1876
      %v1878 = vrcp.pop %v1831
      %v1879 = vmul.f32 %v1794, %v1878
      %v1880 = vrcp.pop %v1834
      %v1881 = vmul.f32 %v1796, %v1880
      %v1882 = vrcp.pop %v1837
      %v1883 = vmul.f32 %v1798, %v1882
      %v1884 = vrcp.pop %v1840
      %v1885 = vmul.f32 %v1800, %v1884
      %v1886 = vrcp.pop %v1843
      %v1887 = vmul.f32 %v1802, %v1886
      %v1888 = vrcp.pop %v1846
      %v1889 = vmul.f32 %v1804, %v1888
      %v1890 = vrcp.pop %v1849
      %v1891 = vmul.f32 %v1806, %v1890
      %v1892 = vrcp.pop %v1852
      %v1893 = vmul.f32 %v1808, %v1892
      %v1894 = vrcp.pop %v1855
      %v1895 = vmul.f32 %v1810, %v1894
      %v1896 = vrcp.pop %v1858
      %v1897 = vmul.f32 %v1812, %v1896
      %v1898 = vrcp.pop %v1861
      %v1899 = vmul.f32 %v1814, %v1898
      %v1900 = vrcp.pop %v1864
      %v1901 = vmul.f32 %v1816, %v1900
      %v1902 = vrcp.pop %v1867
      %v1903 = vmul.f32 %v1818, %v1902
      %v1904 = vrcp.pop %v1870
      %v1905 = vmul.f32 %v1820, %v1904
      %v1906 = vrcp.pop %v1873
      %v1907 = vmul.f32 %v1822, %v1906
      %1909 = vset.pattern.permute.xlu0 0
      %1910 = vperm.xlu0 %1909, %v1875
      %v1911 = vpop.permute.xlu0 %1910
      %1914 = vset.pattern.permute.xlu0 0
      %1915 = vperm.xlu0 %1914, %v1877
      %v1916 = vpop.permute.xlu0 %1915
      %1919 = vset.pattern.permute.xlu0 0
      %1920 = vperm.xlu0 %1919, %v1879
      %v1921 = vpop.permute.xlu0 %1920
      %1924 = vset.pattern.permute.xlu0 0
      %1925 = vperm.xlu0 %1924, %v1881
      %v1926 = vpop.permute.xlu0 %1925
      %1929 = vset.pattern.permute.xlu0 0
      %1930 = vperm.xlu0 %1929, %v1883
      %v1931 = vpop.permute.xlu0 %1930
      %1934 = vset.pattern.permute.xlu0 0
      %1935 = vperm.xlu0 %1934, %v1885
      %v1936 = vpop.permute.xlu0 %1935
      %1939 = vset.pattern.permute.xlu0 0
      %1940 = vperm.xlu0 %1939, %v1887
      %v1941 = vpop.permute.xlu0 %1940
      %1944 = vset.pattern.permute.xlu0 0
      %1945 = vperm.xlu0 %1944, %v1889
      %v1946 = vpop.permute.xlu0 %1945
      %1949 = vset.pattern.permute.xlu0 0
      %1950 = vperm.xlu0 %1949, %v1891
      %v1951 = vpop.permute.xlu0 %1950
      %1954 = vset.pattern.permute.xlu0 0
      %1955 = vperm.xlu0 %1954, %v1893
      %v1956 = vpop.permute.xlu0 %1955
      %1959 = vset.pattern.permute.xlu0 0
      %1960 = vperm.xlu0 %1959, %v1895
      %v1961 = vpop.permute.xlu0 %1960
      %1964 = vset.pattern.permute.xlu0 0
      %1965 = vperm.xlu0 %1964, %v1897
      %v1966 = vpop.permute.xlu0 %1965
      %1969 = vset.pattern.permute.xlu0 0
      %1970 = vperm.xlu0 %1969, %v1899
      %v1971 = vpop.permute.xlu0 %1970
      %1974 = vset.pattern.permute.xlu0 0
      %1975 = vperm.xlu0 %1974, %v1901
      %v1976 = vpop.permute.xlu0 %1975
      %1979 = vset.pattern.permute.xlu0 0
      %1980 = vperm.xlu0 %1979, %v1903
      %v1981 = vpop.permute.xlu0 %1980
      %1984 = vset.pattern.permute.xlu0 0
      %1985 = vperm.xlu0 %1984, %v1905
      %v1986 = vpop.permute.xlu0 %1985
      %1989 = vset.pattern.permute.xlu0 0
      %1990 = vperm.xlu0 %1989, %v1907
      %v1991 = vpop.permute.xlu0 %1990
      %v1993 = vmul.f32 %v1911, %v1058
      %v1994 = vmul.f32 %v1916, %v1062
      %v1995 = vmul.f32 %v1921, %v1066
      %v1996 = vmul.f32 %v1926, %v1070
      %v1997 = vmul.f32 %v1931, %v1074
      %v1998 = vmul.f32 %v1936, %v1078
      %v1999 = vmul.f32 %v1941, %v1082
      %v2000 = vmul.f32 %v1946, %v1086
      %v2001 = vmul.f32 %v1951, %v1090
      %v2002 = vmul.f32 %v1956, %v1094
      %v2003 = vmul.f32 %v1961, %v1098
      %v2004 = vmul.f32 %v1966, %v1102
      %v2005 = vmul.f32 %v1971, %v1106
      %v2006 = vmul.f32 %v1976, %v1110
      %v2007 = vmul.f32 %v1981, %v1114
      %v2008 = vmul.f32 %v1986, %v1118
      %v2009 = vmul.f32 %v1991, %v1122
      %2010 = vset.pattern.permute.xlu0 1
      %2011 = vperm.xlu0 %2010, %v1875
      %v2012 = vpop.permute.xlu0 %2011
      %2014 = vset.pattern.permute.xlu0 1
      %2015 = vperm.xlu0 %2014, %v1877
      %v2016 = vpop.permute.xlu0 %2015
      %2018 = vset.pattern.permute.xlu0 1
      %2019 = vperm.xlu0 %2018, %v1879
      %v2020 = vpop.permute.xlu0 %2019
      %2022 = vset.pattern.permute.xlu0 1
      %2023 = vperm.xlu0 %2022, %v1881
      %v2024 = vpop.permute.xlu0 %2023
      %2026 = vset.pattern.permute.xlu0 1
      %2027 = vperm.xlu0 %2026, %v1883
      %v2028 = vpop.permute.xlu0 %2027
      %2030 = vset.pattern.permute.xlu0 1
      %2031 = vperm.xlu0 %2030, %v1885
      %v2032 = vpop.permute.xlu0 %2031
      %2034 = vset.pattern.permute.xlu0 1
      %2035 = vperm.xlu0 %2034, %v1887
      %v2036 = vpop.permute.xlu0 %2035
      %2038 = vset.pattern.permute.xlu0 1
      %2039 = vperm.xlu0 %2038, %v1889
      %v2040 = vpop.permute.xlu0 %2039
      %2042 = vset.pattern.permute.xlu0 1
      %2043 = vperm.xlu0 %2042, %v1891
      %v2044 = vpop.permute.xlu0 %2043
      %2046 = vset.pattern.permute.xlu0 1
      %2047 = vperm.xlu0 %2046, %v1893
      %v2048 = vpop.permute.xlu0 %2047
      %2050 = vset.pattern.permute.xlu0 1
      %2051 = vperm.xlu0 %2050, %v1895
      %v2052 = vpop.permute.xlu0 %2051
      %2054 = vset.pattern.permute.xlu0 1
      %2055 = vperm.xlu0 %2054, %v1897
      %v2056 = vpop.permute.xlu0 %2055
      %2058 = vset.pattern.permute.xlu0 1
      %2059 = vperm.xlu0 %2058, %v1899
      %v2060 = vpop.permute.xlu0 %2059
      %2062 = vset.pattern.permute.xlu0 1
      %2063 = vperm.xlu0 %2062, %v1901
      %v2064 = vpop.permute.xlu0 %2063
      %2066 = vset.pattern.permute.xlu0 1
      %2067 = vperm.xlu0 %2066, %v1903
      %v2068 = vpop.permute.xlu0 %2067
      %2070 = vset.pattern.permute.xlu0 1
      %2071 = vperm.xlu0 %2070, %v1905
      %v2072 = vpop.permute.xlu0 %2071
      %2074 = vset.pattern.permute.xlu0 1
      %2075 = vperm.xlu0 %2074, %v1907
      %v2076 = vpop.permute.xlu0 %2075
      %v2078 = vmul.f32 %v2012, %v1382
      %v2079 = vmul.f32 %v2016, %v1386
      %v2080 = vmul.f32 %v2020, %v1390
      %v2081 = vmul.f32 %v2024, %v1394
      %v2082 = vmul.f32 %v2028, %v1398
      %v2083 = vmul.f32 %v2032, %v1402
      %v2084 = vmul.f32 %v2036, %v1406
      %v2085 = vmul.f32 %v2040, %v1410
      %v2086 = vmul.f32 %v2044, %v1414
      %v2087 = vmul.f32 %v2048, %v1418
      %v2088 = vmul.f32 %v2052, %v1422
      %v2089 = vmul.f32 %v2056, %v1426
      %v2090 = vmul.f32 %v2060, %v1430
      %v2091 = vmul.f32 %v2064, %v1434
      %v2092 = vmul.f32 %v2068, %v1438
      %v2093 = vmul.f32 %v2072, %v1442
      %v2094 = vmul.f32 %v2076, %v1446
      %v2095 = vadd.f32 %v1993, 0.0
      %v2096 = vadd.f32 %v1994, 0.0
      %v2097 = vadd.f32 %v1995, 0.0
      %v2098 = vadd.f32 %v1996, 0.0
      %v2099 = vadd.f32 %v1997, 0.0
      %v2100 = vadd.f32 %v1998, 0.0
      %v2101 = vadd.f32 %v1999, 0.0
      %v2102 = vadd.f32 %v2000, 0.0
      %v2103 = vadd.f32 %v2001, 0.0
      %v2104 = vadd.f32 %v2002, 0.0
      %v2105 = vadd.f32 %v2003, 0.0
      %v2106 = vadd.f32 %v2004, 0.0
      %v2107 = vadd.f32 %v2005, 0.0
      %v2108 = vadd.f32 %v2006, 0.0
      %v2109 = vadd.f32 %v2007, 0.0
      %v2110 = vadd.f32 %v2008, 0.0
      %v2111 = vadd.f32 %v2009, 0.0
      %v2112 = vadd.f32 %v2095, %v2078
      %v2113 = vadd.f32 %v2096, %v2079
      %v2114 = vadd.f32 %v2097, %v2080
      %v2115 = vadd.f32 %v2098, %v2081
      %v2116 = vadd.f32 %v2099, %v2082
      %v2117 = vadd.f32 %v2100, %v2083
      %v2118 = vadd.f32 %v2101, %v2084
      %v2119 = vadd.f32 %v2102, %v2085
      %v2120 = vadd.f32 %v2103, %v2086
      %v2121 = vadd.f32 %v2104, %v2087
      %v2122 = vadd.f32 %v2105, %v2088
      %v2123 = vadd.f32 %v2106, %v2089
      %v2124 = vadd.f32 %v2107, %v2090
      %v2125 = vadd.f32 %v2108, %v2091
      %v2126 = vadd.f32 %v2109, %v2092
      %v2127 = vadd.f32 %v2110, %v2093
      %v2128 = vadd.f32 %v2111, %v2094
      %v2147 = vunpack.c.l.s4 1983009808
      %v2148 = vunpack.c.0.s8 %v2147
      %v2149 = vlaneseq
      %v2150 = vshrl.u32 %v2149, 7
      %v2151 = vsub.s32 %v2148, %v2150
      %v2152 = vrot.slane %v1310, %v2151
      %v2154 = vunpack.c.l.s4 1983009808
      %v2155 = vunpack.c.0.s8 %v2154
      %v2156 = vlaneseq
      %v2157 = vshrl.u32 %v2156, 7
      %v2158 = vsub.s32 %v2155, %v2157
      %v2159 = vrot.slane %v1311, %v2158
      %v2161 = vunpack.c.l.s4 1983009808
      %v2162 = vunpack.c.0.s8 %v2161
      %v2163 = vlaneseq
      %v2164 = vshrl.u32 %v2163, 7
      %v2165 = vsub.s32 %v2162, %v2164
      %v2166 = vrot.slane %v1312, %v2165
      %v2168 = vunpack.c.l.s4 1983009808
      %v2169 = vunpack.c.0.s8 %v2168
      %v2170 = vlaneseq
      %v2171 = vshrl.u32 %v2170, 7
      %v2172 = vsub.s32 %v2169, %v2171
      %v2173 = vrot.slane %v1313, %v2172
      %v2175 = vunpack.c.l.s4 1983009808
      %v2176 = vunpack.c.0.s8 %v2175
      %v2177 = vlaneseq
      %v2178 = vshrl.u32 %v2177, 7
      %v2179 = vsub.s32 %v2176, %v2178
      %v2180 = vrot.slane %v1314, %v2179
      %v2182 = vunpack.c.l.s4 1983009808
      %v2183 = vunpack.c.0.s8 %v2182
      %v2184 = vlaneseq
      %v2185 = vshrl.u32 %v2184, 7
      %v2186 = vsub.s32 %v2183, %v2185
      %v2187 = vrot.slane %v1315, %v2186
      %v2189 = vunpack.c.l.s4 1983009808
      %v2190 = vunpack.c.0.s8 %v2189
      %v2191 = vlaneseq
      %v2192 = vshrl.u32 %v2191, 7
      %v2193 = vsub.s32 %v2190, %v2192
      %v2194 = vrot.slane %v1316, %v2193
      %v2196 = vunpack.c.l.s4 1983009808
      %v2197 = vunpack.c.0.s8 %v2196
      %v2198 = vlaneseq
      %v2199 = vshrl.u32 %v2198, 7
      %v2200 = vsub.s32 %v2197, %v2199
      %v2201 = vrot.slane %v1317, %v2200
      %v2203 = vunpack.c.l.s4 1983009808
      %v2204 = vunpack.c.0.s8 %v2203
      %v2205 = vlaneseq
      %v2206 = vshrl.u32 %v2205, 7
      %v2207 = vsub.s32 %v2204, %v2206
      %v2208 = vrot.slane %v1318, %v2207
      %v2210 = vunpack.c.l.s4 1983009808
      %v2211 = vunpack.c.0.s8 %v2210
      %v2212 = vlaneseq
      %v2213 = vshrl.u32 %v2212, 7
      %v2214 = vsub.s32 %v2211, %v2213
      %v2215 = vrot.slane %v1319, %v2214
      %v2217 = vunpack.c.l.s4 1983009808
      %v2218 = vunpack.c.0.s8 %v2217
      %v2219 = vlaneseq
      %v2220 = vshrl.u32 %v2219, 7
      %v2221 = vsub.s32 %v2218, %v2220
      %v2222 = vrot.slane %v1320, %v2221
      %v2224 = vunpack.c.l.s4 1983009808
      %v2225 = vunpack.c.0.s8 %v2224
      %v2226 = vlaneseq
      %v2227 = vshrl.u32 %v2226, 7
      %v2228 = vsub.s32 %v2225, %v2227
      %v2229 = vrot.slane %v1321, %v2228
      %v2231 = vunpack.c.l.s4 1983009808
      %v2232 = vunpack.c.0.s8 %v2231
      %v2233 = vlaneseq
      %v2234 = vshrl.u32 %v2233, 7
      %v2235 = vsub.s32 %v2232, %v2234
      %v2236 = vrot.slane %v1322, %v2235
      %v2238 = vunpack.c.l.s4 1983009808
      %v2239 = vunpack.c.0.s8 %v2238
      %v2240 = vlaneseq
      %v2241 = vshrl.u32 %v2240, 7
      %v2242 = vsub.s32 %v2239, %v2241
      %v2243 = vrot.slane %v1323, %v2242
      %v2245 = vunpack.c.l.s4 1983009808
      %v2246 = vunpack.c.0.s8 %v2245
      %v2247 = vlaneseq
      %v2248 = vshrl.u32 %v2247, 7
      %v2249 = vsub.s32 %v2246, %v2248
      %v2250 = vrot.slane %v1324, %v2249
      %v2252 = vunpack.c.l.s4 1983009808
      %v2253 = vunpack.c.0.s8 %v2252
      %v2254 = vlaneseq
      %v2255 = vshrl.u32 %v2254, 7
      %v2256 = vsub.s32 %v2253, %v2255
      %v2257 = vrot.slane %v1325, %v2256
      %v2259 = vunpack.c.l.s4 1983009808
      %v2260 = vunpack.c.0.s8 %v2259
      %v2261 = vlaneseq
      %v2262 = vshrl.u32 %v2261, 7
      %v2263 = vsub.s32 %v2260, %v2262
      %v2264 = vrot.slane %v1326, %v2263
      %2265 = vrot.lane.b32.xlu0 %v2152, 124
      %v2266 = vpop.permute.xlu0 %2265
      %2267 = vrot.lane.b32.xlu0 %v2159, 124
      %v2268 = vpop.permute.xlu0 %2267
      %2269 = vrot.lane.b32.xlu0 %v2166, 124
      %v2270 = vpop.permute.xlu0 %2269
      %2271 = vrot.lane.b32.xlu0 %v2173, 124
      %v2272 = vpop.permute.xlu0 %2271
      %2273 = vrot.lane.b32.xlu0 %v2180, 124
      %v2274 = vpop.permute.xlu0 %2273
      %2275 = vrot.lane.b32.xlu0 %v2187, 124
      %v2276 = vpop.permute.xlu0 %2275
      %2277 = vrot.lane.b32.xlu0 %v2194, 124
      %v2278 = vpop.permute.xlu0 %2277
      %2279 = vrot.lane.b32.xlu0 %v2201, 124
      %v2280 = vpop.permute.xlu0 %2279
      %2281 = vrot.lane.b32.xlu0 %v2208, 124
      %v2282 = vpop.permute.xlu0 %2281
      %2283 = vrot.lane.b32.xlu0 %v2215, 124
      %v2284 = vpop.permute.xlu0 %2283
      %2285 = vrot.lane.b32.xlu0 %v2222, 124
      %v2286 = vpop.permute.xlu0 %2285
      %2287 = vrot.lane.b32.xlu0 %v2229, 124
      %v2288 = vpop.permute.xlu0 %2287
      %2289 = vrot.lane.b32.xlu0 %v2236, 124
      %v2290 = vpop.permute.xlu0 %2289
      %2291 = vrot.lane.b32.xlu0 %v2243, 124
      %v2292 = vpop.permute.xlu0 %2291
      %2293 = vrot.lane.b32.xlu0 %v2250, 124
      %v2294 = vpop.permute.xlu0 %2293
      %2295 = vrot.lane.b32.xlu0 %v2257, 124
      %v2296 = vpop.permute.xlu0 %2295
      %2297 = vrot.lane.b32.xlu0 %v2264, 124
      %v2298 = vpop.permute.xlu0 %2297
      %v2316 = vsel %vm1327, %v2266, 0.0
      %2317 = vadd.xlane.f32.xlu0 %v2316
      %v2318 = vpop.xlane.xlu0 %2317
      %v2319 = vsel %vm1327, %v2268, 0.0
      %2320 = vadd.xlane.f32.xlu0 %v2319
      %v2321 = vpop.xlane.xlu0 %2320
      %v2322 = vsel %vm1327, %v2270, 0.0
      %2323 = vadd.xlane.f32.xlu0 %v2322
      %v2324 = vpop.xlane.xlu0 %2323
      %v2325 = vsel %vm1327, %v2272, 0.0
      %2326 = vadd.xlane.f32.xlu0 %v2325
      %v2327 = vpop.xlane.xlu0 %2326
      %v2328 = vsel %vm1327, %v2274, 0.0
      %2329 = vadd.xlane.f32.xlu0 %v2328
      %v2330 = vpop.xlane.xlu0 %2329
      %v2331 = vsel %vm1327, %v2276, 0.0
      %2332 = vadd.xlane.f32.xlu0 %v2331
      %v2333 = vpop.xlane.xlu0 %2332
      %v2334 = vsel %vm1327, %v2278, 0.0
      %2335 = vadd.xlane.f32.xlu0 %v2334
      %v2336 = vpop.xlane.xlu0 %2335
      %v2337 = vsel %vm1327, %v2280, 0.0
      %2338 = vadd.xlane.f32.xlu0 %v2337
      %v2339 = vpop.xlane.xlu0 %2338
      %v2340 = vsel %vm1327, %v2282, 0.0
      %2341 = vadd.xlane.f32.xlu0 %v2340
      %v2342 = vpop.xlane.xlu0 %2341
      %v2343 = vsel %vm1327, %v2284, 0.0
      %2344 = vadd.xlane.f32.xlu0 %v2343
      %v2345 = vpop.xlane.xlu0 %2344
      %v2346 = vsel %vm1327, %v2286, 0.0
      %2347 = vadd.xlane.f32.xlu0 %v2346
      %v2348 = vpop.xlane.xlu0 %2347
      %v2349 = vsel %vm1327, %v2288, 0.0
      %2350 = vadd.xlane.f32.xlu0 %v2349
      %v2351 = vpop.xlane.xlu0 %2350
      %v2352 = vsel %vm1327, %v2290, 0.0
      %2353 = vadd.xlane.f32.xlu0 %v2352
      %v2354 = vpop.xlane.xlu0 %2353
      %v2355 = vsel %vm1327, %v2292, 0.0
      %2356 = vadd.xlane.f32.xlu0 %v2355
      %v2357 = vpop.xlane.xlu0 %2356
      %v2358 = vsel %vm1327, %v2294, 0.0
      %2359 = vadd.xlane.f32.xlu0 %v2358
      %v2360 = vpop.xlane.xlu0 %2359
      %v2361 = vsel %vm1327, %v2296, 0.0
      %2362 = vadd.xlane.f32.xlu0 %v2361
      %v2363 = vpop.xlane.xlu0 %2362
      %v2364 = vsel %vm1327, %v2298, 0.0
      %2365 = vadd.xlane.f32.xlu0 %v2364
      %v2366 = vpop.xlane.xlu0 %2365
      %v2385 = vunpack.c.l.s4 1983009808
      %v2386 = vunpack.c.0.s8 %v2385
      %v2387 = vlaneseq
      %v2388 = vshrl.u32 %v2387, 7
      %v2389 = vsub.s32 %v2386, %v2388
      %v2390 = vrot.slane %v1634, %v2389
      %v2392 = vunpack.c.l.s4 1983009808
      %v2393 = vunpack.c.0.s8 %v2392
      %v2394 = vlaneseq
      %v2395 = vshrl.u32 %v2394, 7
      %v2396 = vsub.s32 %v2393, %v2395
      %v2397 = vrot.slane %v1635, %v2396
      %v2399 = vunpack.c.l.s4 1983009808
      %v2400 = vunpack.c.0.s8 %v2399
      %v2401 = vlaneseq
      %v2402 = vshrl.u32 %v2401, 7
      %v2403 = vsub.s32 %v2400, %v2402
      %v2404 = vrot.slane %v1636, %v2403
      %v2406 = vunpack.c.l.s4 1983009808
      %v2407 = vunpack.c.0.s8 %v2406
      %v2408 = vlaneseq
      %v2409 = vshrl.u32 %v2408, 7
      %v2410 = vsub.s32 %v2407, %v2409
      %v2411 = vrot.slane %v1637, %v2410
      %v2413 = vunpack.c.l.s4 1983009808
      %v2414 = vunpack.c.0.s8 %v2413
      %v2415 = vlaneseq
      %v2416 = vshrl.u32 %v2415, 7
      %v2417 = vsub.s32 %v2414, %v2416
      %v2418 = vrot.slane %v1638, %v2417
      %v2420 = vunpack.c.l.s4 1983009808
      %v2421 = vunpack.c.0.s8 %v2420
      %v2422 = vlaneseq
      %v2423 = vshrl.u32 %v2422, 7
      %v2424 = vsub.s32 %v2421, %v2423
      %v2425 = vrot.slane %v1639, %v2424
      %v2427 = vunpack.c.l.s4 1983009808
      %v2428 = vunpack.c.0.s8 %v2427
      %v2429 = vlaneseq
      %v2430 = vshrl.u32 %v2429, 7
      %v2431 = vsub.s32 %v2428, %v2430
      %v2432 = vrot.slane %v1640, %v2431
      %v2434 = vunpack.c.l.s4 1983009808
      %v2435 = vunpack.c.0.s8 %v2434
      %v2436 = vlaneseq
      %v2437 = vshrl.u32 %v2436, 7
      %v2438 = vsub.s32 %v2435, %v2437
      %v2439 = vrot.slane %v1641, %v2438
      %v2441 = vunpack.c.l.s4 1983009808
      %v2442 = vunpack.c.0.s8 %v2441
      %v2443 = vlaneseq
      %v2444 = vshrl.u32 %v2443, 7
      %v2445 = vsub.s32 %v2442, %v2444
      %v2446 = vrot.slane %v1642, %v2445
      %v2448 = vunpack.c.l.s4 1983009808
      %v2449 = vunpack.c.0.s8 %v2448
      %v2450 = vlaneseq
      %v2451 = vshrl.u32 %v2450, 7
      %v2452 = vsub.s32 %v2449, %v2451
      %v2453 = vrot.slane %v1643, %v2452
      %v2455 = vunpack.c.l.s4 1983009808
      %v2456 = vunpack.c.0.s8 %v2455
      %v2457 = vlaneseq
      %v2458 = vshrl.u32 %v2457, 7
      %v2459 = vsub.s32 %v2456, %v2458
      %v2460 = vrot.slane %v1644, %v2459
      %v2462 = vunpack.c.l.s4 1983009808
      %v2463 = vunpack.c.0.s8 %v2462
      %v2464 = vlaneseq
      %v2465 = vshrl.u32 %v2464, 7
      %v2466 = vsub.s32 %v2463, %v2465
      %v2467 = vrot.slane %v1645, %v2466
      %v2469 = vunpack.c.l.s4 1983009808
      %v2470 = vunpack.c.0.s8 %v2469
      %v2471 = vlaneseq
      %v2472 = vshrl.u32 %v2471, 7
      %v2473 = vsub.s32 %v2470, %v2472
      %v2474 = vrot.slane %v1646, %v2473
      %v2476 = vunpack.c.l.s4 1983009808
      %v2477 = vunpack.c.0.s8 %v2476
      %v2478 = vlaneseq
      %v2479 = vshrl.u32 %v2478, 7
      %v2480 = vsub.s32 %v2477, %v2479
      %v2481 = vrot.slane %v1647, %v2480
      %v2483 = vunpack.c.l.s4 1983009808
      %v2484 = vunpack.c.0.s8 %v2483
      %v2485 = vlaneseq
      %v2486 = vshrl.u32 %v2485, 7
      %v2487 = vsub.s32 %v2484, %v2486
      %v2488 = vrot.slane %v1648, %v2487
      %v2490 = vunpack.c.l.s4 1983009808
      %v2491 = vunpack.c.0.s8 %v2490
      %v2492 = vlaneseq
      %v2493 = vshrl.u32 %v2492, 7
      %v2494 = vsub.s32 %v2491, %v2493
      %v2495 = vrot.slane %v1649, %v2494
      %v2497 = vunpack.c.l.s4 1983009808
      %v2498 = vunpack.c.0.s8 %v2497
      %v2499 = vlaneseq
      %v2500 = vshrl.u32 %v2499, 7
      %v2501 = vsub.s32 %v2498, %v2500
      %v2502 = vrot.slane %v1650, %v2501
      %2503 = vrot.lane.b32.xlu0 %v2390, 124
      %v2504 = vpop.permute.xlu0 %2503
      %2505 = vrot.lane.b32.xlu0 %v2397, 124
      %v2506 = vpop.permute.xlu0 %2505
      %2507 = vrot.lane.b32.xlu0 %v2404, 124
      %v2508 = vpop.permute.xlu0 %2507
      %2509 = vrot.lane.b32.xlu0 %v2411, 124
      %v2510 = vpop.permute.xlu0 %2509
      %2511 = vrot.lane.b32.xlu0 %v2418, 124
      %v2512 = vpop.permute.xlu0 %2511
      %2513 = vrot.lane.b32.xlu0 %v2425, 124
      %v2514 = vpop.permute.xlu0 %2513
      %2515 = vrot.lane.b32.xlu0 %v2432, 124
      %v2516 = vpop.permute.xlu0 %2515
      %2517 = vrot.lane.b32.xlu0 %v2439, 124
      %v2518 = vpop.permute.xlu0 %2517
      %2519 = vrot.lane.b32.xlu0 %v2446, 124
      %v2520 = vpop.permute.xlu0 %2519
      %2521 = vrot.lane.b32.xlu0 %v2453, 124
      %v2522 = vpop.permute.xlu0 %2521
      %2523 = vrot.lane.b32.xlu0 %v2460, 124
      %v2524 = vpop.permute.xlu0 %2523
      %2525 = vrot.lane.b32.xlu0 %v2467, 124
      %v2526 = vpop.permute.xlu0 %2525
      %2527 = vrot.lane.b32.xlu0 %v2474, 124
      %v2528 = vpop.permute.xlu0 %2527
      %2529 = vrot.lane.b32.xlu0 %v2481, 124
      %v2530 = vpop.permute.xlu0 %2529
      %2531 = vrot.lane.b32.xlu0 %v2488, 124
      %v2532 = vpop.permute.xlu0 %2531
      %2533 = vrot.lane.b32.xlu0 %v2495, 124
      %v2534 = vpop.permute.xlu0 %2533
      %2535 = vrot.lane.b32.xlu0 %v2502, 124
      %v2536 = vpop.permute.xlu0 %2535
      %v2554 = vsel %vm1327, %v2504, 0.0
      %2555 = vadd.xlane.f32.xlu0 %v2554
      %v2556 = vpop.xlane.xlu0 %2555
      %v2557 = vsel %vm1327, %v2506, 0.0
      %2558 = vadd.xlane.f32.xlu0 %v2557
      %v2559 = vpop.xlane.xlu0 %2558
      %v2560 = vsel %vm1327, %v2508, 0.0
      %2561 = vadd.xlane.f32.xlu0 %v2560
      %v2562 = vpop.xlane.xlu0 %2561
      %v2563 = vsel %vm1327, %v2510, 0.0
      %2564 = vadd.xlane.f32.xlu0 %v2563
      %v2565 = vpop.xlane.xlu0 %2564
      %v2566 = vsel %vm1327, %v2512, 0.0
      %2567 = vadd.xlane.f32.xlu0 %v2566
      %v2568 = vpop.xlane.xlu0 %2567
      %v2569 = vsel %vm1327, %v2514, 0.0
      %2570 = vadd.xlane.f32.xlu0 %v2569
      %v2571 = vpop.xlane.xlu0 %2570
      %v2572 = vsel %vm1327, %v2516, 0.0
      %2573 = vadd.xlane.f32.xlu0 %v2572
      %v2574 = vpop.xlane.xlu0 %2573
      %v2575 = vsel %vm1327, %v2518, 0.0
      %2576 = vadd.xlane.f32.xlu0 %v2575
      %v2577 = vpop.xlane.xlu0 %2576
      %v2578 = vsel %vm1327, %v2520, 0.0
      %2579 = vadd.xlane.f32.xlu0 %v2578
      %v2580 = vpop.xlane.xlu0 %2579
      %v2581 = vsel %vm1327, %v2522, 0.0
      %2582 = vadd.xlane.f32.xlu0 %v2581
      %v2583 = vpop.xlane.xlu0 %2582
      %v2584 = vsel %vm1327, %v2524, 0.0
      %2585 = vadd.xlane.f32.xlu0 %v2584
      %v2586 = vpop.xlane.xlu0 %2585
      %v2587 = vsel %vm1327, %v2526, 0.0
      %2588 = vadd.xlane.f32.xlu0 %v2587
      %v2589 = vpop.xlane.xlu0 %2588
      %v2590 = vsel %vm1327, %v2528, 0.0
      %2591 = vadd.xlane.f32.xlu0 %v2590
      %v2592 = vpop.xlane.xlu0 %2591
      %v2593 = vsel %vm1327, %v2530, 0.0
      %2594 = vadd.xlane.f32.xlu0 %v2593
      %v2595 = vpop.xlane.xlu0 %2594
      %v2596 = vsel %vm1327, %v2532, 0.0
      %2597 = vadd.xlane.f32.xlu0 %v2596
      %v2598 = vpop.xlane.xlu0 %2597
      %v2599 = vsel %vm1327, %v2534, 0.0
      %2600 = vadd.xlane.f32.xlu0 %v2599
      %v2601 = vpop.xlane.xlu0 %2600
      %v2602 = vsel %vm1327, %v2536, 0.0
      %2603 = vadd.xlane.f32.xlu0 %v2602
      %v2604 = vpop.xlane.xlu0 %2603
      %v2605 = vsel %vm1702, %v2318, %v2556
      %v2606 = vsel %vm1702, %v2321, %v2559
      %v2607 = vsel %vm1702, %v2324, %v2562
      %v2608 = vsel %vm1702, %v2327, %v2565
      %v2609 = vsel %vm1702, %v2330, %v2568
      %v2610 = vsel %vm1702, %v2333, %v2571
      %v2611 = vsel %vm1702, %v2336, %v2574
      %v2612 = vsel %vm1702, %v2339, %v2577
      %v2613 = vsel %vm1702, %v2342, %v2580
      %v2614 = vsel %vm1702, %v2345, %v2583
      %v2615 = vsel %vm1702, %v2348, %v2586
      %v2616 = vsel %vm1702, %v2351, %v2589
      %v2617 = vsel %vm1702, %v2354, %v2592
      %v2618 = vsel %vm1702, %v2357, %v2595
      %v2619 = vsel %vm1702, %v2360, %v2598
      %v2620 = vsel %vm1702, %v2363, %v2601
      %v2621 = vsel %vm1702, %v2366, %v2604
      %v2622 = vsel %vm1720, %v2605, -inf
      %2623 = vmax.xlane.f32.xlu0 %v2622
      %v2624 = vpop.xlane.xlu0 %2623
      %v2625 = vsel %vm1720, %v2606, -inf
      %2626 = vmax.xlane.f32.xlu0 %v2625
      %v2627 = vpop.xlane.xlu0 %2626
      %v2628 = vsel %vm1720, %v2607, -inf
      %2629 = vmax.xlane.f32.xlu0 %v2628
      %v2630 = vpop.xlane.xlu0 %2629
      %v2631 = vsel %vm1720, %v2608, -inf
      %2632 = vmax.xlane.f32.xlu0 %v2631
      %v2633 = vpop.xlane.xlu0 %2632
      %v2634 = vsel %vm1720, %v2609, -inf
      %2635 = vmax.xlane.f32.xlu0 %v2634
      %v2636 = vpop.xlane.xlu0 %2635
      %v2637 = vsel %vm1720, %v2610, -inf
      %2638 = vmax.xlane.f32.xlu0 %v2637
      %v2639 = vpop.xlane.xlu0 %2638
      %v2640 = vsel %vm1720, %v2611, -inf
      %2641 = vmax.xlane.f32.xlu0 %v2640
      %v2642 = vpop.xlane.xlu0 %2641
      %v2643 = vsel %vm1720, %v2612, -inf
      %2644 = vmax.xlane.f32.xlu0 %v2643
      %v2645 = vpop.xlane.xlu0 %2644
      %v2646 = vsel %vm1720, %v2613, -inf
      %2647 = vmax.xlane.f32.xlu0 %v2646
      %v2648 = vpop.xlane.xlu0 %2647
      %v2649 = vsel %vm1720, %v2614, -inf
      %2650 = vmax.xlane.f32.xlu0 %v2649
      %v2651 = vpop.xlane.xlu0 %2650
      %v2652 = vsel %vm1720, %v2615, -inf
      %2653 = vmax.xlane.f32.xlu0 %v2652
      %v2654 = vpop.xlane.xlu0 %2653
      %v2655 = vsel %vm1720, %v2616, -inf
      %2656 = vmax.xlane.f32.xlu0 %v2655
      %v2657 = vpop.xlane.xlu0 %2656
      %v2658 = vsel %vm1720, %v2617, -inf
      %2659 = vmax.xlane.f32.xlu0 %v2658
      %v2660 = vpop.xlane.xlu0 %2659
      %v2661 = vsel %vm1720, %v2618, -inf
      %2662 = vmax.xlane.f32.xlu0 %v2661
      %v2663 = vpop.xlane.xlu0 %2662
      %v2664 = vsel %vm1720, %v2619, -inf
      %2665 = vmax.xlane.f32.xlu0 %v2664
      %v2666 = vpop.xlane.xlu0 %2665
      %v2667 = vsel %vm1720, %v2620, -inf
      %2668 = vmax.xlane.f32.xlu0 %v2667
      %v2669 = vpop.xlane.xlu0 %2668
      %v2670 = vsel %vm1720, %v2621, -inf
      %2671 = vmax.xlane.f32.xlu0 %v2670
      %v2672 = vpop.xlane.xlu0 %2671
      %v2673 = vsub.f32 %v2605, %v2624
      %v2674 = vsub.f32 %v2606, %v2627
      %v2675 = vsub.f32 %v2607, %v2630
      %v2676 = vsub.f32 %v2608, %v2633
      %v2677 = vsub.f32 %v2609, %v2636
      %v2678 = vsub.f32 %v2610, %v2639
      %v2679 = vsub.f32 %v2611, %v2642
      %v2680 = vsub.f32 %v2612, %v2645
      %v2681 = vsub.f32 %v2613, %v2648
      %v2682 = vsub.f32 %v2614, %v2651
      %v2683 = vsub.f32 %v2615, %v2654
      %v2684 = vsub.f32 %v2616, %v2657
      %v2685 = vsub.f32 %v2617, %v2660
      %v2686 = vsub.f32 %v2618, %v2663
      %v2687 = vsub.f32 %v2619, %v2666
      %v2688 = vsub.f32 %v2620, %v2669
      %v2689 = vsub.f32 %v2621, %v2672
      %v2690 = vmul.f32 %v2673, 1.442695
      %v2691 = vpow.pop %v2690
      %v2692 = vmul.f32 %v2674, 1.442695
      %v2693 = vpow.pop %v2692
      %v2694 = vmul.f32 %v2675, 1.442695
      %v2695 = vpow.pop %v2694
      %v2696 = vmul.f32 %v2676, 1.442695
      %v2697 = vpow.pop %v2696
      %v2698 = vmul.f32 %v2677, 1.442695
      %v2699 = vpow.pop %v2698
      %v2700 = vmul.f32 %v2678, 1.442695
      %v2701 = vpow.pop %v2700
      %v2702 = vmul.f32 %v2679, 1.442695
      %v2703 = vpow.pop %v2702
      %v2704 = vmul.f32 %v2680, 1.442695
      %v2705 = vpow.pop %v2704
      %v2706 = vmul.f32 %v2681, 1.442695
      %v2707 = vpow.pop %v2706
      %v2708 = vmul.f32 %v2682, 1.442695
      %v2709 = vpow.pop %v2708
      %v2710 = vmul.f32 %v2683, 1.442695
      %v2711 = vpow.pop %v2710
      %v2712 = vmul.f32 %v2684, 1.442695
      %v2713 = vpow.pop %v2712
      %v2714 = vmul.f32 %v2685, 1.442695
      %v2715 = vpow.pop %v2714
      %v2716 = vmul.f32 %v2686, 1.442695
      %v2717 = vpow.pop %v2716
      %v2718 = vmul.f32 %v2687, 1.442695
      %v2719 = vpow.pop %v2718
      %v2720 = vmul.f32 %v2688, 1.442695
      %v2721 = vpow.pop %v2720
      %v2722 = vmul.f32 %v2689, 1.442695
      %v2723 = vpow.pop %v2722
      %v2724 = vsel %vm1720, %v2691, 0.0
      %2725 = vadd.xlane.f32.xlu0 %v2724
      %v2726 = vpop.xlane.xlu0 %2725
      %v2727 = vsel %vm1720, %v2693, 0.0
      %2728 = vadd.xlane.f32.xlu0 %v2727
      %v2729 = vpop.xlane.xlu0 %2728
      %v2730 = vsel %vm1720, %v2695, 0.0
      %2731 = vadd.xlane.f32.xlu0 %v2730
      %v2732 = vpop.xlane.xlu0 %2731
      %v2733 = vsel %vm1720, %v2697, 0.0
      %2734 = vadd.xlane.f32.xlu0 %v2733
      %v2735 = vpop.xlane.xlu0 %2734
      %v2736 = vsel %vm1720, %v2699, 0.0
      %2737 = vadd.xlane.f32.xlu0 %v2736
      %v2738 = vpop.xlane.xlu0 %2737
      %v2739 = vsel %vm1720, %v2701, 0.0
      %2740 = vadd.xlane.f32.xlu0 %v2739
      %v2741 = vpop.xlane.xlu0 %2740
      %v2742 = vsel %vm1720, %v2703, 0.0
      %2743 = vadd.xlane.f32.xlu0 %v2742
      %v2744 = vpop.xlane.xlu0 %2743
      %v2745 = vsel %vm1720, %v2705, 0.0
      %2746 = vadd.xlane.f32.xlu0 %v2745
      %v2747 = vpop.xlane.xlu0 %2746
      %v2748 = vsel %vm1720, %v2707, 0.0
      %2749 = vadd.xlane.f32.xlu0 %v2748
      %v2750 = vpop.xlane.xlu0 %2749
      %v2751 = vsel %vm1720, %v2709, 0.0
      %2752 = vadd.xlane.f32.xlu0 %v2751
      %v2753 = vpop.xlane.xlu0 %2752
      %v2754 = vsel %vm1720, %v2711, 0.0
      %2755 = vadd.xlane.f32.xlu0 %v2754
      %v2756 = vpop.xlane.xlu0 %2755
      %v2757 = vsel %vm1720, %v2713, 0.0
      %2758 = vadd.xlane.f32.xlu0 %v2757
      %v2759 = vpop.xlane.xlu0 %2758
      %v2760 = vsel %vm1720, %v2715, 0.0
      %2761 = vadd.xlane.f32.xlu0 %v2760
      %v2762 = vpop.xlane.xlu0 %2761
      %v2763 = vsel %vm1720, %v2717, 0.0
      %2764 = vadd.xlane.f32.xlu0 %v2763
      %v2765 = vpop.xlane.xlu0 %2764
      %v2766 = vsel %vm1720, %v2719, 0.0
      %2767 = vadd.xlane.f32.xlu0 %v2766
      %v2768 = vpop.xlane.xlu0 %2767
      %v2769 = vsel %vm1720, %v2721, 0.0
      %2770 = vadd.xlane.f32.xlu0 %v2769
      %v2771 = vpop.xlane.xlu0 %2770
      %v2772 = vsel %vm1720, %v2723, 0.0
      %2773 = vadd.xlane.f32.xlu0 %v2772
      %v2774 = vpop.xlane.xlu0 %2773
      %v2775 = vrcp.pop %v2726
      %v2776 = vmul.f32 %v2691, %v2775
      %v2777 = vrcp.pop %v2729
      %v2778 = vmul.f32 %v2693, %v2777
      %v2779 = vrcp.pop %v2732
      %v2780 = vmul.f32 %v2695, %v2779
      %v2781 = vrcp.pop %v2735
      %v2782 = vmul.f32 %v2697, %v2781
      %v2783 = vrcp.pop %v2738
      %v2784 = vmul.f32 %v2699, %v2783
      %v2785 = vrcp.pop %v2741
      %v2786 = vmul.f32 %v2701, %v2785
      %v2787 = vrcp.pop %v2744
      %v2788 = vmul.f32 %v2703, %v2787
      %v2789 = vrcp.pop %v2747
      %v2790 = vmul.f32 %v2705, %v2789
      %v2791 = vrcp.pop %v2750
      %v2792 = vmul.f32 %v2707, %v2791
      %v2793 = vrcp.pop %v2753
      %v2794 = vmul.f32 %v2709, %v2793
      %v2795 = vrcp.pop %v2756
      %v2796 = vmul.f32 %v2711, %v2795
      %v2797 = vrcp.pop %v2759
      %v2798 = vmul.f32 %v2713, %v2797
      %v2799 = vrcp.pop %v2762
      %v2800 = vmul.f32 %v2715, %v2799
      %v2801 = vrcp.pop %v2765
      %v2802 = vmul.f32 %v2717, %v2801
      %v2803 = vrcp.pop %v2768
      %v2804 = vmul.f32 %v2719, %v2803
      %v2805 = vrcp.pop %v2771
      %v2806 = vmul.f32 %v2721, %v2805
      %v2807 = vrcp.pop %v2774
      %v2808 = vmul.f32 %v2723, %v2807
      %2810 = vset.pattern.permute.xlu0 0
      %2811 = vperm.xlu0 %2810, %v2776
      %v2812 = vpop.permute.xlu0 %2811
      %2815 = vset.pattern.permute.xlu0 0
      %2816 = vperm.xlu0 %2815, %v2778
      %v2817 = vpop.permute.xlu0 %2816
      %2820 = vset.pattern.permute.xlu0 0
      %2821 = vperm.xlu0 %2820, %v2780
      %v2822 = vpop.permute.xlu0 %2821
      %2825 = vset.pattern.permute.xlu0 0
      %2826 = vperm.xlu0 %2825, %v2782
      %v2827 = vpop.permute.xlu0 %2826
      %2830 = vset.pattern.permute.xlu0 0
      %2831 = vperm.xlu0 %2830, %v2784
      %v2832 = vpop.permute.xlu0 %2831
      %2835 = vset.pattern.permute.xlu0 0
      %2836 = vperm.xlu0 %2835, %v2786
      %v2837 = vpop.permute.xlu0 %2836
      %2840 = vset.pattern.permute.xlu0 0
      %2841 = vperm.xlu0 %2840, %v2788
      %v2842 = vpop.permute.xlu0 %2841
      %2845 = vset.pattern.permute.xlu0 0
      %2846 = vperm.xlu0 %2845, %v2790
      %v2847 = vpop.permute.xlu0 %2846
      %2850 = vset.pattern.permute.xlu0 0
      %2851 = vperm.xlu0 %2850, %v2792
      %v2852 = vpop.permute.xlu0 %2851
      %2855 = vset.pattern.permute.xlu0 0
      %2856 = vperm.xlu0 %2855, %v2794
      %v2857 = vpop.permute.xlu0 %2856
      %2860 = vset.pattern.permute.xlu0 0
      %2861 = vperm.xlu0 %2860, %v2796
      %v2862 = vpop.permute.xlu0 %2861
      %2865 = vset.pattern.permute.xlu0 0
      %2866 = vperm.xlu0 %2865, %v2798
      %v2867 = vpop.permute.xlu0 %2866
      %2870 = vset.pattern.permute.xlu0 0
      %2871 = vperm.xlu0 %2870, %v2800
      %v2872 = vpop.permute.xlu0 %2871
      %2875 = vset.pattern.permute.xlu0 0
      %2876 = vperm.xlu0 %2875, %v2802
      %v2877 = vpop.permute.xlu0 %2876
      %2880 = vset.pattern.permute.xlu0 0
      %2881 = vperm.xlu0 %2880, %v2804
      %v2882 = vpop.permute.xlu0 %2881
      %2885 = vset.pattern.permute.xlu0 0
      %2886 = vperm.xlu0 %2885, %v2806
      %v2887 = vpop.permute.xlu0 %2886
      %2890 = vset.pattern.permute.xlu0 0
      %2891 = vperm.xlu0 %2890, %v2808
      %v2892 = vpop.permute.xlu0 %2891
      %v2894 = vmul.f32 %v2812, %v1058
      %v2895 = vmul.f32 %v2817, %v1062
      %v2896 = vmul.f32 %v2822, %v1066
      %v2897 = vmul.f32 %v2827, %v1070
      %v2898 = vmul.f32 %v2832, %v1074
      %v2899 = vmul.f32 %v2837, %v1078
      %v2900 = vmul.f32 %v2842, %v1082
      %v2901 = vmul.f32 %v2847, %v1086
      %v2902 = vmul.f32 %v2852, %v1090
      %v2903 = vmul.f32 %v2857, %v1094
      %v2904 = vmul.f32 %v2862, %v1098
      %v2905 = vmul.f32 %v2867, %v1102
      %v2906 = vmul.f32 %v2872, %v1106
      %v2907 = vmul.f32 %v2877, %v1110
      %v2908 = vmul.f32 %v2882, %v1114
      %v2909 = vmul.f32 %v2887, %v1118
      %v2910 = vmul.f32 %v2892, %v1122
      %2911 = vset.pattern.permute.xlu0 1
      %2912 = vperm.xlu0 %2911, %v2776
      %v2913 = vpop.permute.xlu0 %2912
      %2915 = vset.pattern.permute.xlu0 1
      %2916 = vperm.xlu0 %2915, %v2778
      %v2917 = vpop.permute.xlu0 %2916
      %2919 = vset.pattern.permute.xlu0 1
      %2920 = vperm.xlu0 %2919, %v2780
      %v2921 = vpop.permute.xlu0 %2920
      %2923 = vset.pattern.permute.xlu0 1
      %2924 = vperm.xlu0 %2923, %v2782
      %v2925 = vpop.permute.xlu0 %2924
      %2927 = vset.pattern.permute.xlu0 1
      %2928 = vperm.xlu0 %2927, %v2784
      %v2929 = vpop.permute.xlu0 %2928
      %2931 = vset.pattern.permute.xlu0 1
      %2932 = vperm.xlu0 %2931, %v2786
      %v2933 = vpop.permute.xlu0 %2932
      %2935 = vset.pattern.permute.xlu0 1
      %2936 = vperm.xlu0 %2935, %v2788
      %v2937 = vpop.permute.xlu0 %2936
      %2939 = vset.pattern.permute.xlu0 1
      %2940 = vperm.xlu0 %2939, %v2790
      %v2941 = vpop.permute.xlu0 %2940
      %2943 = vset.pattern.permute.xlu0 1
      %2944 = vperm.xlu0 %2943, %v2792
      %v2945 = vpop.permute.xlu0 %2944
      %2947 = vset.pattern.permute.xlu0 1
      %2948 = vperm.xlu0 %2947, %v2794
      %v2949 = vpop.permute.xlu0 %2948
      %2951 = vset.pattern.permute.xlu0 1
      %2952 = vperm.xlu0 %2951, %v2796
      %v2953 = vpop.permute.xlu0 %2952
      %2955 = vset.pattern.permute.xlu0 1
      %2956 = vperm.xlu0 %2955, %v2798
      %v2957 = vpop.permute.xlu0 %2956
      %2959 = vset.pattern.permute.xlu0 1
      %2960 = vperm.xlu0 %2959, %v2800
      %v2961 = vpop.permute.xlu0 %2960
      %2963 = vset.pattern.permute.xlu0 1
      %2964 = vperm.xlu0 %2963, %v2802
      %v2965 = vpop.permute.xlu0 %2964
      %2967 = vset.pattern.permute.xlu0 1
      %2968 = vperm.xlu0 %2967, %v2804
      %v2969 = vpop.permute.xlu0 %2968
      %2971 = vset.pattern.permute.xlu0 1
      %2972 = vperm.xlu0 %2971, %v2806
      %v2973 = vpop.permute.xlu0 %2972
      %2975 = vset.pattern.permute.xlu0 1
      %2976 = vperm.xlu0 %2975, %v2808
      %v2977 = vpop.permute.xlu0 %2976
      %v2979 = vmul.f32 %v2913, %v1382
      %v2980 = vmul.f32 %v2917, %v1386
      %v2981 = vmul.f32 %v2921, %v1390
      %v2982 = vmul.f32 %v2925, %v1394
      %v2983 = vmul.f32 %v2929, %v1398
      %v2984 = vmul.f32 %v2933, %v1402
      %v2985 = vmul.f32 %v2937, %v1406
      %v2986 = vmul.f32 %v2941, %v1410
      %v2987 = vmul.f32 %v2945, %v1414
      %v2988 = vmul.f32 %v2949, %v1418
      %v2989 = vmul.f32 %v2953, %v1422
      %v2990 = vmul.f32 %v2957, %v1426
      %v2991 = vmul.f32 %v2961, %v1430
      %v2992 = vmul.f32 %v2965, %v1434
      %v2993 = vmul.f32 %v2969, %v1438
      %v2994 = vmul.f32 %v2973, %v1442
      %v2995 = vmul.f32 %v2977, %v1446
      %v2996 = vadd.f32 %v2894, 0.0
      %v2997 = vadd.f32 %v2895, 0.0
      %v2998 = vadd.f32 %v2896, 0.0
      %v2999 = vadd.f32 %v2897, 0.0
      %v3000 = vadd.f32 %v2898, 0.0
      %v3001 = vadd.f32 %v2899, 0.0
      %v3002 = vadd.f32 %v2900, 0.0
      %v3003 = vadd.f32 %v2901, 0.0
      %v3004 = vadd.f32 %v2902, 0.0
      %v3005 = vadd.f32 %v2903, 0.0
      %v3006 = vadd.f32 %v2904, 0.0
      %v3007 = vadd.f32 %v2905, 0.0
      %v3008 = vadd.f32 %v2906, 0.0
      %v3009 = vadd.f32 %v2907, 0.0
      %v3010 = vadd.f32 %v2908, 0.0
      %v3011 = vadd.f32 %v2909, 0.0
      %v3012 = vadd.f32 %v2910, 0.0
      %v3013 = vadd.f32 %v2996, %v2979
      %v3014 = vadd.f32 %v2997, %v2980
      %v3015 = vadd.f32 %v2998, %v2981
      %v3016 = vadd.f32 %v2999, %v2982
      %v3017 = vadd.f32 %v3000, %v2983
      %v3018 = vadd.f32 %v3001, %v2984
      %v3019 = vadd.f32 %v3002, %v2985
      %v3020 = vadd.f32 %v3003, %v2986
      %v3021 = vadd.f32 %v3004, %v2987
      %v3022 = vadd.f32 %v3005, %v2988
      %v3023 = vadd.f32 %v3006, %v2989
      %v3024 = vadd.f32 %v3007, %v2990
      %v3025 = vadd.f32 %v3008, %v2991
      %v3026 = vadd.f32 %v3009, %v2992
      %v3027 = vadd.f32 %v3010, %v2993
      %v3028 = vadd.f32 %v3011, %v2994
      %v3029 = vadd.f32 %v3012, %v2995
      %3030 = vrot.lane.b32.xlu0 %v2152, 120
      %v3031 = vpop.permute.xlu0 %3030
      %3032 = vrot.lane.b32.xlu0 %v2159, 120
      %v3033 = vpop.permute.xlu0 %3032
      %3034 = vrot.lane.b32.xlu0 %v2166, 120
      %v3035 = vpop.permute.xlu0 %3034
      %3036 = vrot.lane.b32.xlu0 %v2173, 120
      %v3037 = vpop.permute.xlu0 %3036
      %3038 = vrot.lane.b32.xlu0 %v2180, 120
      %v3039 = vpop.permute.xlu0 %3038
      %3040 = vrot.lane.b32.xlu0 %v2187, 120
      %v3041 = vpop.permute.xlu0 %3040
      %3042 = vrot.lane.b32.xlu0 %v2194, 120
      %v3043 = vpop.permute.xlu0 %3042
      %3044 = vrot.lane.b32.xlu0 %v2201, 120
      %v3045 = vpop.permute.xlu0 %3044
      %3046 = vrot.lane.b32.xlu0 %v2208, 120
      %v3047 = vpop.permute.xlu0 %3046
      %3048 = vrot.lane.b32.xlu0 %v2215, 120
      %v3049 = vpop.permute.xlu0 %3048
      %3050 = vrot.lane.b32.xlu0 %v2222, 120
      %v3051 = vpop.permute.xlu0 %3050
      %3052 = vrot.lane.b32.xlu0 %v2229, 120
      %v3053 = vpop.permute.xlu0 %3052
      %3054 = vrot.lane.b32.xlu0 %v2236, 120
      %v3055 = vpop.permute.xlu0 %3054
      %3056 = vrot.lane.b32.xlu0 %v2243, 120
      %v3057 = vpop.permute.xlu0 %3056
      %3058 = vrot.lane.b32.xlu0 %v2250, 120
      %v3059 = vpop.permute.xlu0 %3058
      %3060 = vrot.lane.b32.xlu0 %v2257, 120
      %v3061 = vpop.permute.xlu0 %3060
      %3062 = vrot.lane.b32.xlu0 %v2264, 120
      %v3063 = vpop.permute.xlu0 %3062
      %v3081 = vsel %vm1327, %v3031, 0.0
      %3082 = vadd.xlane.f32.xlu0 %v3081
      %v3083 = vpop.xlane.xlu0 %3082
      %v3084 = vsel %vm1327, %v3033, 0.0
      %3085 = vadd.xlane.f32.xlu0 %v3084
      %v3086 = vpop.xlane.xlu0 %3085
      %v3087 = vsel %vm1327, %v3035, 0.0
      %3088 = vadd.xlane.f32.xlu0 %v3087
      %v3089 = vpop.xlane.xlu0 %3088
      %v3090 = vsel %vm1327, %v3037, 0.0
      %3091 = vadd.xlane.f32.xlu0 %v3090
      %v3092 = vpop.xlane.xlu0 %3091
      %v3093 = vsel %vm1327, %v3039, 0.0
      %3094 = vadd.xlane.f32.xlu0 %v3093
      %v3095 = vpop.xlane.xlu0 %3094
      %v3096 = vsel %vm1327, %v3041, 0.0
      %3097 = vadd.xlane.f32.xlu0 %v3096
      %v3098 = vpop.xlane.xlu0 %3097
      %v3099 = vsel %vm1327, %v3043, 0.0
      %3100 = vadd.xlane.f32.xlu0 %v3099
      %v3101 = vpop.xlane.xlu0 %3100
      %v3102 = vsel %vm1327, %v3045, 0.0
      %3103 = vadd.xlane.f32.xlu0 %v3102
      %v3104 = vpop.xlane.xlu0 %3103
      %v3105 = vsel %vm1327, %v3047, 0.0
      %3106 = vadd.xlane.f32.xlu0 %v3105
      %v3107 = vpop.xlane.xlu0 %3106
      %v3108 = vsel %vm1327, %v3049, 0.0
      %3109 = vadd.xlane.f32.xlu0 %v3108
      %v3110 = vpop.xlane.xlu0 %3109
      %v3111 = vsel %vm1327, %v3051, 0.0
      %3112 = vadd.xlane.f32.xlu0 %v3111
      %v3113 = vpop.xlane.xlu0 %3112
      %v3114 = vsel %vm1327, %v3053, 0.0
      %3115 = vadd.xlane.f32.xlu0 %v3114
      %v3116 = vpop.xlane.xlu0 %3115
      %v3117 = vsel %vm1327, %v3055, 0.0
      %3118 = vadd.xlane.f32.xlu0 %v3117
      %v3119 = vpop.xlane.xlu0 %3118
      %v3120 = vsel %vm1327, %v3057, 0.0
      %3121 = vadd.xlane.f32.xlu0 %v3120
      %v3122 = vpop.xlane.xlu0 %3121
      %v3123 = vsel %vm1327, %v3059, 0.0
      %3124 = vadd.xlane.f32.xlu0 %v3123
      %v3125 = vpop.xlane.xlu0 %3124
      %v3126 = vsel %vm1327, %v3061, 0.0
      %3127 = vadd.xlane.f32.xlu0 %v3126
      %v3128 = vpop.xlane.xlu0 %3127
      %v3129 = vsel %vm1327, %v3063, 0.0
      %3130 = vadd.xlane.f32.xlu0 %v3129
      %v3131 = vpop.xlane.xlu0 %3130
      %3132 = vrot.lane.b32.xlu0 %v2390, 120
      %v3133 = vpop.permute.xlu0 %3132
      %3134 = vrot.lane.b32.xlu0 %v2397, 120
      %v3135 = vpop.permute.xlu0 %3134
      %3136 = vrot.lane.b32.xlu0 %v2404, 120
      %v3137 = vpop.permute.xlu0 %3136
      %3138 = vrot.lane.b32.xlu0 %v2411, 120
      %v3139 = vpop.permute.xlu0 %3138
      %3140 = vrot.lane.b32.xlu0 %v2418, 120
      %v3141 = vpop.permute.xlu0 %3140
      %3142 = vrot.lane.b32.xlu0 %v2425, 120
      %v3143 = vpop.permute.xlu0 %3142
      %3144 = vrot.lane.b32.xlu0 %v2432, 120
      %v3145 = vpop.permute.xlu0 %3144
      %3146 = vrot.lane.b32.xlu0 %v2439, 120
      %v3147 = vpop.permute.xlu0 %3146
      %3148 = vrot.lane.b32.xlu0 %v2446, 120
      %v3149 = vpop.permute.xlu0 %3148
      %3150 = vrot.lane.b32.xlu0 %v2453, 120
      %v3151 = vpop.permute.xlu0 %3150
      %3152 = vrot.lane.b32.xlu0 %v2460, 120
      %v3153 = vpop.permute.xlu0 %3152
      %3154 = vrot.lane.b32.xlu0 %v2467, 120
      %v3155 = vpop.permute.xlu0 %3154
      %3156 = vrot.lane.b32.xlu0 %v2474, 120
      %v3157 = vpop.permute.xlu0 %3156
      %3158 = vrot.lane.b32.xlu0 %v2481, 120
      %v3159 = vpop.permute.xlu0 %3158
      %3160 = vrot.lane.b32.xlu0 %v2488, 120
      %v3161 = vpop.permute.xlu0 %3160
      %3162 = vrot.lane.b32.xlu0 %v2495, 120
      %v3163 = vpop.permute.xlu0 %3162
      %3164 = vrot.lane.b32.xlu0 %v2502, 120
      %v3165 = vpop.permute.xlu0 %3164
      %v3183 = vsel %vm1327, %v3133, 0.0
      %3184 = vadd.xlane.f32.xlu0 %v3183
      %v3185 = vpop.xlane.xlu0 %3184
      %v3186 = vsel %vm1327, %v3135, 0.0
      %3187 = vadd.xlane.f32.xlu0 %v3186
      %v3188 = vpop.xlane.xlu0 %3187
      %v3189 = vsel %vm1327, %v3137, 0.0
      %3190 = vadd.xlane.f32.xlu0 %v3189
      %v3191 = vpop.xlane.xlu0 %3190
      %v3192 = vsel %vm1327, %v3139, 0.0
      %3193 = vadd.xlane.f32.xlu0 %v3192
      %v3194 = vpop.xlane.xlu0 %3193
      %v3195 = vsel %vm1327, %v3141, 0.0
      %3196 = vadd.xlane.f32.xlu0 %v3195
      %v3197 = vpop.xlane.xlu0 %3196
      %v3198 = vsel %vm1327, %v3143, 0.0
      %3199 = vadd.xlane.f32.xlu0 %v3198
      %v3200 = vpop.xlane.xlu0 %3199
      %v3201 = vsel %vm1327, %v3145, 0.0
      %3202 = vadd.xlane.f32.xlu0 %v3201
      %v3203 = vpop.xlane.xlu0 %3202
      %v3204 = vsel %vm1327, %v3147, 0.0
      %3205 = vadd.xlane.f32.xlu0 %v3204
      %v3206 = vpop.xlane.xlu0 %3205
      %v3207 = vsel %vm1327, %v3149, 0.0
      %3208 = vadd.xlane.f32.xlu0 %v3207
      %v3209 = vpop.xlane.xlu0 %3208
      %v3210 = vsel %vm1327, %v3151, 0.0
      %3211 = vadd.xlane.f32.xlu0 %v3210
      %v3212 = vpop.xlane.xlu0 %3211
      %v3213 = vsel %vm1327, %v3153, 0.0
      %3214 = vadd.xlane.f32.xlu0 %v3213
      %v3215 = vpop.xlane.xlu0 %3214
      %v3216 = vsel %vm1327, %v3155, 0.0
      %3217 = vadd.xlane.f32.xlu0 %v3216
      %v3218 = vpop.xlane.xlu0 %3217
      %v3219 = vsel %vm1327, %v3157, 0.0
      %3220 = vadd.xlane.f32.xlu0 %v3219
      %v3221 = vpop.xlane.xlu0 %3220
      %v3222 = vsel %vm1327, %v3159, 0.0
      %3223 = vadd.xlane.f32.xlu0 %v3222
      %v3224 = vpop.xlane.xlu0 %3223
      %v3225 = vsel %vm1327, %v3161, 0.0
      %3226 = vadd.xlane.f32.xlu0 %v3225
      %v3227 = vpop.xlane.xlu0 %3226
      %v3228 = vsel %vm1327, %v3163, 0.0
      %3229 = vadd.xlane.f32.xlu0 %v3228
      %v3230 = vpop.xlane.xlu0 %3229
      %v3231 = vsel %vm1327, %v3165, 0.0
      %3232 = vadd.xlane.f32.xlu0 %v3231
      %v3233 = vpop.xlane.xlu0 %3232
      %v3234 = vsel %vm1702, %v3083, %v3185
      %v3235 = vsel %vm1702, %v3086, %v3188
      %v3236 = vsel %vm1702, %v3089, %v3191
      %v3237 = vsel %vm1702, %v3092, %v3194
      %v3238 = vsel %vm1702, %v3095, %v3197
      %v3239 = vsel %vm1702, %v3098, %v3200
      %v3240 = vsel %vm1702, %v3101, %v3203
      %v3241 = vsel %vm1702, %v3104, %v3206
      %v3242 = vsel %vm1702, %v3107, %v3209
      %v3243 = vsel %vm1702, %v3110, %v3212
      %v3244 = vsel %vm1702, %v3113, %v3215
      %v3245 = vsel %vm1702, %v3116, %v3218
      %v3246 = vsel %vm1702, %v3119, %v3221
      %v3247 = vsel %vm1702, %v3122, %v3224
      %v3248 = vsel %vm1702, %v3125, %v3227
      %v3249 = vsel %vm1702, %v3128, %v3230
      %v3250 = vsel %vm1702, %v3131, %v3233
      %v3251 = vsel %vm1720, %v3234, -inf
      %3252 = vmax.xlane.f32.xlu0 %v3251
      %v3253 = vpop.xlane.xlu0 %3252
      %v3254 = vsel %vm1720, %v3235, -inf
      %3255 = vmax.xlane.f32.xlu0 %v3254
      %v3256 = vpop.xlane.xlu0 %3255
      %v3257 = vsel %vm1720, %v3236, -inf
      %3258 = vmax.xlane.f32.xlu0 %v3257
      %v3259 = vpop.xlane.xlu0 %3258
      %v3260 = vsel %vm1720, %v3237, -inf
      %3261 = vmax.xlane.f32.xlu0 %v3260
      %v3262 = vpop.xlane.xlu0 %3261
      %v3263 = vsel %vm1720, %v3238, -inf
      %3264 = vmax.xlane.f32.xlu0 %v3263
      %v3265 = vpop.xlane.xlu0 %3264
      %v3266 = vsel %vm1720, %v3239, -inf
      %3267 = vmax.xlane.f32.xlu0 %v3266
      %v3268 = vpop.xlane.xlu0 %3267
      %v3269 = vsel %vm1720, %v3240, -inf
      %3270 = vmax.xlane.f32.xlu0 %v3269
      %v3271 = vpop.xlane.xlu0 %3270
      %v3272 = vsel %vm1720, %v3241, -inf
      %3273 = vmax.xlane.f32.xlu0 %v3272
      %v3274 = vpop.xlane.xlu0 %3273
      %v3275 = vsel %vm1720, %v3242, -inf
      %3276 = vmax.xlane.f32.xlu0 %v3275
      %v3277 = vpop.xlane.xlu0 %3276
      %v3278 = vsel %vm1720, %v3243, -inf
      %3279 = vmax.xlane.f32.xlu0 %v3278
      %v3280 = vpop.xlane.xlu0 %3279
      %v3281 = vsel %vm1720, %v3244, -inf
      %3282 = vmax.xlane.f32.xlu0 %v3281
      %v3283 = vpop.xlane.xlu0 %3282
      %v3284 = vsel %vm1720, %v3245, -inf
      %3285 = vmax.xlane.f32.xlu0 %v3284
      %v3286 = vpop.xlane.xlu0 %3285
      %v3287 = vsel %vm1720, %v3246, -inf
      %3288 = vmax.xlane.f32.xlu0 %v3287
      %v3289 = vpop.xlane.xlu0 %3288
      %v3290 = vsel %vm1720, %v3247, -inf
      %3291 = vmax.xlane.f32.xlu0 %v3290
      %v3292 = vpop.xlane.xlu0 %3291
      %v3293 = vsel %vm1720, %v3248, -inf
      %3294 = vmax.xlane.f32.xlu0 %v3293
      %v3295 = vpop.xlane.xlu0 %3294
      %v3296 = vsel %vm1720, %v3249, -inf
      %3297 = vmax.xlane.f32.xlu0 %v3296
      %v3298 = vpop.xlane.xlu0 %3297
      %v3299 = vsel %vm1720, %v3250, -inf
      %3300 = vmax.xlane.f32.xlu0 %v3299
      %v3301 = vpop.xlane.xlu0 %3300
      %v3302 = vsub.f32 %v3234, %v3253
      %v3303 = vsub.f32 %v3235, %v3256
      %v3304 = vsub.f32 %v3236, %v3259
      %v3305 = vsub.f32 %v3237, %v3262
      %v3306 = vsub.f32 %v3238, %v3265
      %v3307 = vsub.f32 %v3239, %v3268
      %v3308 = vsub.f32 %v3240, %v3271
      %v3309 = vsub.f32 %v3241, %v3274
      %v3310 = vsub.f32 %v3242, %v3277
      %v3311 = vsub.f32 %v3243, %v3280
      %v3312 = vsub.f32 %v3244, %v3283
      %v3313 = vsub.f32 %v3245, %v3286
      %v3314 = vsub.f32 %v3246, %v3289
      %v3315 = vsub.f32 %v3247, %v3292
      %v3316 = vsub.f32 %v3248, %v3295
      %v3317 = vsub.f32 %v3249, %v3298
      %v3318 = vsub.f32 %v3250, %v3301
      %v3319 = vmul.f32 %v3302, 1.442695
      %v3320 = vpow.pop %v3319
      %v3321 = vmul.f32 %v3303, 1.442695
      %v3322 = vpow.pop %v3321
      %v3323 = vmul.f32 %v3304, 1.442695
      %v3324 = vpow.pop %v3323
      %v3325 = vmul.f32 %v3305, 1.442695
      %v3326 = vpow.pop %v3325
      %v3327 = vmul.f32 %v3306, 1.442695
      %v3328 = vpow.pop %v3327
      %v3329 = vmul.f32 %v3307, 1.442695
      %v3330 = vpow.pop %v3329
      %v3331 = vmul.f32 %v3308, 1.442695
      %v3332 = vpow.pop %v3331
      %v3333 = vmul.f32 %v3309, 1.442695
      %v3334 = vpow.pop %v3333
      %v3335 = vmul.f32 %v3310, 1.442695
      %v3336 = vpow.pop %v3335
      %v3337 = vmul.f32 %v3311, 1.442695
      %v3338 = vpow.pop %v3337
      %v3339 = vmul.f32 %v3312, 1.442695
      %v3340 = vpow.pop %v3339
      %v3341 = vmul.f32 %v3313, 1.442695
      %v3342 = vpow.pop %v3341
      %v3343 = vmul.f32 %v3314, 1.442695
      %v3344 = vpow.pop %v3343
      %v3345 = vmul.f32 %v3315, 1.442695
      %v3346 = vpow.pop %v3345
      %v3347 = vmul.f32 %v3316, 1.442695
      %v3348 = vpow.pop %v3347
      %v3349 = vmul.f32 %v3317, 1.442695
      %v3350 = vpow.pop %v3349
      %v3351 = vmul.f32 %v3318, 1.442695
      %v3352 = vpow.pop %v3351
      %v3353 = vsel %vm1720, %v3320, 0.0
      %3354 = vadd.xlane.f32.xlu0 %v3353
      %v3355 = vpop.xlane.xlu0 %3354
      %v3356 = vsel %vm1720, %v3322, 0.0
      %3357 = vadd.xlane.f32.xlu0 %v3356
      %v3358 = vpop.xlane.xlu0 %3357
      %v3359 = vsel %vm1720, %v3324, 0.0
      %3360 = vadd.xlane.f32.xlu0 %v3359
      %v3361 = vpop.xlane.xlu0 %3360
      %v3362 = vsel %vm1720, %v3326, 0.0
      %3363 = vadd.xlane.f32.xlu0 %v3362
      %v3364 = vpop.xlane.xlu0 %3363
      %v3365 = vsel %vm1720, %v3328, 0.0
      %3366 = vadd.xlane.f32.xlu0 %v3365
      %v3367 = vpop.xlane.xlu0 %3366
      %v3368 = vsel %vm1720, %v3330, 0.0
      %3369 = vadd.xlane.f32.xlu0 %v3368
      %v3370 = vpop.xlane.xlu0 %3369
      %v3371 = vsel %vm1720, %v3332, 0.0
      %3372 = vadd.xlane.f32.xlu0 %v3371
      %v3373 = vpop.xlane.xlu0 %3372
      %v3374 = vsel %vm1720, %v3334, 0.0
      %3375 = vadd.xlane.f32.xlu0 %v3374
      %v3376 = vpop.xlane.xlu0 %3375
      %v3377 = vsel %vm1720, %v3336, 0.0
      %3378 = vadd.xlane.f32.xlu0 %v3377
      %v3379 = vpop.xlane.xlu0 %3378
      %v3380 = vsel %vm1720, %v3338, 0.0
      %3381 = vadd.xlane.f32.xlu0 %v3380
      %v3382 = vpop.xlane.xlu0 %3381
      %v3383 = vsel %vm1720, %v3340, 0.0
      %3384 = vadd.xlane.f32.xlu0 %v3383
      %v3385 = vpop.xlane.xlu0 %3384
      %v3386 = vsel %vm1720, %v3342, 0.0
      %3387 = vadd.xlane.f32.xlu0 %v3386
      %v3388 = vpop.xlane.xlu0 %3387
      %v3389 = vsel %vm1720, %v3344, 0.0
      %3390 = vadd.xlane.f32.xlu0 %v3389
      %v3391 = vpop.xlane.xlu0 %3390
      %v3392 = vsel %vm1720, %v3346, 0.0
      %3393 = vadd.xlane.f32.xlu0 %v3392
      %v3394 = vpop.xlane.xlu0 %3393
      %v3395 = vsel %vm1720, %v3348, 0.0
      %3396 = vadd.xlane.f32.xlu0 %v3395
      %v3397 = vpop.xlane.xlu0 %3396
      %v3398 = vsel %vm1720, %v3350, 0.0
      %3399 = vadd.xlane.f32.xlu0 %v3398
      %v3400 = vpop.xlane.xlu0 %3399
      %v3401 = vsel %vm1720, %v3352, 0.0
      %3402 = vadd.xlane.f32.xlu0 %v3401
      %v3403 = vpop.xlane.xlu0 %3402
      %v3404 = vrcp.pop %v3355
      %v3405 = vmul.f32 %v3320, %v3404
      %v3406 = vrcp.pop %v3358
      %v3407 = vmul.f32 %v3322, %v3406
      %v3408 = vrcp.pop %v3361
      %v3409 = vmul.f32 %v3324, %v3408
      %v3410 = vrcp.pop %v3364
      %v3411 = vmul.f32 %v3326, %v3410
      %v3412 = vrcp.pop %v3367
      %v3413 = vmul.f32 %v3328, %v3412
      %v3414 = vrcp.pop %v3370
      %v3415 = vmul.f32 %v3330, %v3414
      %v3416 = vrcp.pop %v3373
      %v3417 = vmul.f32 %v3332, %v3416
      %v3418 = vrcp.pop %v3376
      %v3419 = vmul.f32 %v3334, %v3418
      %v3420 = vrcp.pop %v3379
      %v3421 = vmul.f32 %v3336, %v3420
      %v3422 = vrcp.pop %v3382
      %v3423 = vmul.f32 %v3338, %v3422
      %v3424 = vrcp.pop %v3385
      %v3425 = vmul.f32 %v3340, %v3424
      %v3426 = vrcp.pop %v3388
      %v3427 = vmul.f32 %v3342, %v3426
      %v3428 = vrcp.pop %v3391
      %v3429 = vmul.f32 %v3344, %v3428
      %v3430 = vrcp.pop %v3394
      %v3431 = vmul.f32 %v3346, %v3430
      %v3432 = vrcp.pop %v3397
      %v3433 = vmul.f32 %v3348, %v3432
      %v3434 = vrcp.pop %v3400
      %v3435 = vmul.f32 %v3350, %v3434
      %v3436 = vrcp.pop %v3403
      %v3437 = vmul.f32 %v3352, %v3436
      %3439 = vset.pattern.permute.xlu0 0
      %3440 = vperm.xlu0 %3439, %v3405
      %v3441 = vpop.permute.xlu0 %3440
      %3444 = vset.pattern.permute.xlu0 0
      %3445 = vperm.xlu0 %3444, %v3407
      %v3446 = vpop.permute.xlu0 %3445
      %3449 = vset.pattern.permute.xlu0 0
      %3450 = vperm.xlu0 %3449, %v3409
      %v3451 = vpop.permute.xlu0 %3450
      %3454 = vset.pattern.permute.xlu0 0
      %3455 = vperm.xlu0 %3454, %v3411
      %v3456 = vpop.permute.xlu0 %3455
      %3459 = vset.pattern.permute.xlu0 0
      %3460 = vperm.xlu0 %3459, %v3413
      %v3461 = vpop.permute.xlu0 %3460
      %3464 = vset.pattern.permute.xlu0 0
      %3465 = vperm.xlu0 %3464, %v3415
      %v3466 = vpop.permute.xlu0 %3465
      %3469 = vset.pattern.permute.xlu0 0
      %3470 = vperm.xlu0 %3469, %v3417
      %v3471 = vpop.permute.xlu0 %3470
      %3474 = vset.pattern.permute.xlu0 0
      %3475 = vperm.xlu0 %3474, %v3419
      %v3476 = vpop.permute.xlu0 %3475
      %3479 = vset.pattern.permute.xlu0 0
      %3480 = vperm.xlu0 %3479, %v3421
      %v3481 = vpop.permute.xlu0 %3480
      %3484 = vset.pattern.permute.xlu0 0
      %3485 = vperm.xlu0 %3484, %v3423
      %v3486 = vpop.permute.xlu0 %3485
      %3489 = vset.pattern.permute.xlu0 0
      %3490 = vperm.xlu0 %3489, %v3425
      %v3491 = vpop.permute.xlu0 %3490
      %3494 = vset.pattern.permute.xlu0 0
      %3495 = vperm.xlu0 %3494, %v3427
      %v3496 = vpop.permute.xlu0 %3495
      %3499 = vset.pattern.permute.xlu0 0
      %3500 = vperm.xlu0 %3499, %v3429
      %v3501 = vpop.permute.xlu0 %3500
      %3504 = vset.pattern.permute.xlu0 0
      %3505 = vperm.xlu0 %3504, %v3431
      %v3506 = vpop.permute.xlu0 %3505
      %3509 = vset.pattern.permute.xlu0 0
      %3510 = vperm.xlu0 %3509, %v3433
      %v3511 = vpop.permute.xlu0 %3510
      %3514 = vset.pattern.permute.xlu0 0
      %3515 = vperm.xlu0 %3514, %v3435
      %v3516 = vpop.permute.xlu0 %3515
      %3519 = vset.pattern.permute.xlu0 0
      %3520 = vperm.xlu0 %3519, %v3437
      %v3521 = vpop.permute.xlu0 %3520
      %v3523 = vmul.f32 %v3441, %v1058
      %v3524 = vmul.f32 %v3446, %v1062
      %v3525 = vmul.f32 %v3451, %v1066
      %v3526 = vmul.f32 %v3456, %v1070
      %v3527 = vmul.f32 %v3461, %v1074
      %v3528 = vmul.f32 %v3466, %v1078
      %v3529 = vmul.f32 %v3471, %v1082
      %v3530 = vmul.f32 %v3476, %v1086
      %v3531 = vmul.f32 %v3481, %v1090
      %v3532 = vmul.f32 %v3486, %v1094
      %v3533 = vmul.f32 %v3491, %v1098
      %v3534 = vmul.f32 %v3496, %v1102
      %v3535 = vmul.f32 %v3501, %v1106
      %v3536 = vmul.f32 %v3506, %v1110
      %v3537 = vmul.f32 %v3511, %v1114
      %v3538 = vmul.f32 %v3516, %v1118
      %v3539 = vmul.f32 %v3521, %v1122
      %3540 = vset.pattern.permute.xlu0 1
      %3541 = vperm.xlu0 %3540, %v3405
      %v3542 = vpop.permute.xlu0 %3541
      %3544 = vset.pattern.permute.xlu0 1
      %3545 = vperm.xlu0 %3544, %v3407
      %v3546 = vpop.permute.xlu0 %3545
      %3548 = vset.pattern.permute.xlu0 1
      %3549 = vperm.xlu0 %3548, %v3409
      %v3550 = vpop.permute.xlu0 %3549
      %3552 = vset.pattern.permute.xlu0 1
      %3553 = vperm.xlu0 %3552, %v3411
      %v3554 = vpop.permute.xlu0 %3553
      %3556 = vset.pattern.permute.xlu0 1
      %3557 = vperm.xlu0 %3556, %v3413
      %v3558 = vpop.permute.xlu0 %3557
      %3560 = vset.pattern.permute.xlu0 1
      %3561 = vperm.xlu0 %3560, %v3415
      %v3562 = vpop.permute.xlu0 %3561
      %3564 = vset.pattern.permute.xlu0 1
      %3565 = vperm.xlu0 %3564, %v3417
      %v3566 = vpop.permute.xlu0 %3565
      %3568 = vset.pattern.permute.xlu0 1
      %3569 = vperm.xlu0 %3568, %v3419
      %v3570 = vpop.permute.xlu0 %3569
      %3572 = vset.pattern.permute.xlu0 1
      %3573 = vperm.xlu0 %3572, %v3421
      %v3574 = vpop.permute.xlu0 %3573
      %3576 = vset.pattern.permute.xlu0 1
      %3577 = vperm.xlu0 %3576, %v3423
      %v3578 = vpop.permute.xlu0 %3577
      %3580 = vset.pattern.permute.xlu0 1
      %3581 = vperm.xlu0 %3580, %v3425
      %v3582 = vpop.permute.xlu0 %3581
      %3584 = vset.pattern.permute.xlu0 1
      %3585 = vperm.xlu0 %3584, %v3427
      %v3586 = vpop.permute.xlu0 %3585
      %3588 = vset.pattern.permute.xlu0 1
      %3589 = vperm.xlu0 %3588, %v3429
      %v3590 = vpop.permute.xlu0 %3589
      %3592 = vset.pattern.permute.xlu0 1
      %3593 = vperm.xlu0 %3592, %v3431
      %v3594 = vpop.permute.xlu0 %3593
      %3596 = vset.pattern.permute.xlu0 1
      %3597 = vperm.xlu0 %3596, %v3433
      %v3598 = vpop.permute.xlu0 %3597
      %3600 = vset.pattern.permute.xlu0 1
      %3601 = vperm.xlu0 %3600, %v3435
      %v3602 = vpop.permute.xlu0 %3601
      %3604 = vset.pattern.permute.xlu0 1
      %3605 = vperm.xlu0 %3604, %v3437
      %v3606 = vpop.permute.xlu0 %3605
      %v3608 = vmul.f32 %v3542, %v1382
      %v3609 = vmul.f32 %v3546, %v1386
      %v3610 = vmul.f32 %v3550, %v1390
      %v3611 = vmul.f32 %v3554, %v1394
      %v3612 = vmul.f32 %v3558, %v1398
      %v3613 = vmul.f32 %v3562, %v1402
      %v3614 = vmul.f32 %v3566, %v1406
      %v3615 = vmul.f32 %v3570, %v1410
      %v3616 = vmul.f32 %v3574, %v1414
      %v3617 = vmul.f32 %v3578, %v1418
      %v3618 = vmul.f32 %v3582, %v1422
      %v3619 = vmul.f32 %v3586, %v1426
      %v3620 = vmul.f32 %v3590, %v1430
      %v3621 = vmul.f32 %v3594, %v1434
      %v3622 = vmul.f32 %v3598, %v1438
      %v3623 = vmul.f32 %v3602, %v1442
      %v3624 = vmul.f32 %v3606, %v1446
      %v3625 = vadd.f32 %v3523, 0.0
      %v3626 = vadd.f32 %v3524, 0.0
      %v3627 = vadd.f32 %v3525, 0.0
      %v3628 = vadd.f32 %v3526, 0.0
      %v3629 = vadd.f32 %v3527, 0.0
      %v3630 = vadd.f32 %v3528, 0.0
      %v3631 = vadd.f32 %v3529, 0.0
      %v3632 = vadd.f32 %v3530, 0.0
      %v3633 = vadd.f32 %v3531, 0.0
      %v3634 = vadd.f32 %v3532, 0.0
      %v3635 = vadd.f32 %v3533, 0.0
      %v3636 = vadd.f32 %v3534, 0.0
      %v3637 = vadd.f32 %v3535, 0.0
      %v3638 = vadd.f32 %v3536, 0.0
      %v3639 = vadd.f32 %v3537, 0.0
      %v3640 = vadd.f32 %v3538, 0.0
      %v3641 = vadd.f32 %v3539, 0.0
      %v3642 = vadd.f32 %v3625, %v3608
      %v3643 = vadd.f32 %v3626, %v3609
      %v3644 = vadd.f32 %v3627, %v3610
      %v3645 = vadd.f32 %v3628, %v3611
      %v3646 = vadd.f32 %v3629, %v3612
      %v3647 = vadd.f32 %v3630, %v3613
      %v3648 = vadd.f32 %v3631, %v3614
      %v3649 = vadd.f32 %v3632, %v3615
      %v3650 = vadd.f32 %v3633, %v3616
      %v3651 = vadd.f32 %v3634, %v3617
      %v3652 = vadd.f32 %v3635, %v3618
      %v3653 = vadd.f32 %v3636, %v3619
      %v3654 = vadd.f32 %v3637, %v3620
      %v3655 = vadd.f32 %v3638, %v3621
      %v3656 = vadd.f32 %v3639, %v3622
      %v3657 = vadd.f32 %v3640, %v3623
      %v3658 = vadd.f32 %v3641, %v3624
      %3659 = vrot.lane.b32.xlu0 %v2152, 116
      %v3660 = vpop.permute.xlu0 %3659
      %3661 = vrot.lane.b32.xlu0 %v2159, 116
      %v3662 = vpop.permute.xlu0 %3661
      %3663 = vrot.lane.b32.xlu0 %v2166, 116
      %v3664 = vpop.permute.xlu0 %3663
      %3665 = vrot.lane.b32.xlu0 %v2173, 116
      %v3666 = vpop.permute.xlu0 %3665
      %3667 = vrot.lane.b32.xlu0 %v2180, 116
      %v3668 = vpop.permute.xlu0 %3667
      %3669 = vrot.lane.b32.xlu0 %v2187, 116
      %v3670 = vpop.permute.xlu0 %3669
      %3671 = vrot.lane.b32.xlu0 %v2194, 116
      %v3672 = vpop.permute.xlu0 %3671
      %3673 = vrot.lane.b32.xlu0 %v2201, 116
      %v3674 = vpop.permute.xlu0 %3673
      %3675 = vrot.lane.b32.xlu0 %v2208, 116
      %v3676 = vpop.permute.xlu0 %3675
      %3677 = vrot.lane.b32.xlu0 %v2215, 116
      %v3678 = vpop.permute.xlu0 %3677
      %3679 = vrot.lane.b32.xlu0 %v2222, 116
      %v3680 = vpop.permute.xlu0 %3679
      %3681 = vrot.lane.b32.xlu0 %v2229, 116
      %v3682 = vpop.permute.xlu0 %3681
      %3683 = vrot.lane.b32.xlu0 %v2236, 116
      %v3684 = vpop.permute.xlu0 %3683
      %3685 = vrot.lane.b32.xlu0 %v2243, 116
      %v3686 = vpop.permute.xlu0 %3685
      %3687 = vrot.lane.b32.xlu0 %v2250, 116
      %v3688 = vpop.permute.xlu0 %3687
      %3689 = vrot.lane.b32.xlu0 %v2257, 116
      %v3690 = vpop.permute.xlu0 %3689
      %3691 = vrot.lane.b32.xlu0 %v2264, 116
      %v3692 = vpop.permute.xlu0 %3691
      %v3710 = vsel %vm1327, %v3660, 0.0
      %3711 = vadd.xlane.f32.xlu0 %v3710
      %v3712 = vpop.xlane.xlu0 %3711
      %v3713 = vsel %vm1327, %v3662, 0.0
      %3714 = vadd.xlane.f32.xlu0 %v3713
      %v3715 = vpop.xlane.xlu0 %3714
      %v3716 = vsel %vm1327, %v3664, 0.0
      %3717 = vadd.xlane.f32.xlu0 %v3716
      %v3718 = vpop.xlane.xlu0 %3717
      %v3719 = vsel %vm1327, %v3666, 0.0
      %3720 = vadd.xlane.f32.xlu0 %v3719
      %v3721 = vpop.xlane.xlu0 %3720
      %v3722 = vsel %vm1327, %v3668, 0.0
      %3723 = vadd.xlane.f32.xlu0 %v3722
      %v3724 = vpop.xlane.xlu0 %3723
      %v3725 = vsel %vm1327, %v3670, 0.0
      %3726 = vadd.xlane.f32.xlu0 %v3725
      %v3727 = vpop.xlane.xlu0 %3726
      %v3728 = vsel %vm1327, %v3672, 0.0
      %3729 = vadd.xlane.f32.xlu0 %v3728
      %v3730 = vpop.xlane.xlu0 %3729
      %v3731 = vsel %vm1327, %v3674, 0.0
      %3732 = vadd.xlane.f32.xlu0 %v3731
      %v3733 = vpop.xlane.xlu0 %3732
      %v3734 = vsel %vm1327, %v3676, 0.0
      %3735 = vadd.xlane.f32.xlu0 %v3734
      %v3736 = vpop.xlane.xlu0 %3735
      %v3737 = vsel %vm1327, %v3678, 0.0
      %3738 = vadd.xlane.f32.xlu0 %v3737
      %v3739 = vpop.xlane.xlu0 %3738
      %v3740 = vsel %vm1327, %v3680, 0.0
      %3741 = vadd.xlane.f32.xlu0 %v3740
      %v3742 = vpop.xlane.xlu0 %3741
      %v3743 = vsel %vm1327, %v3682, 0.0
      %3744 = vadd.xlane.f32.xlu0 %v3743
      %v3745 = vpop.xlane.xlu0 %3744
      %v3746 = vsel %vm1327, %v3684, 0.0
      %3747 = vadd.xlane.f32.xlu0 %v3746
      %v3748 = vpop.xlane.xlu0 %3747
      %v3749 = vsel %vm1327, %v3686, 0.0
      %3750 = vadd.xlane.f32.xlu0 %v3749
      %v3751 = vpop.xlane.xlu0 %3750
      %v3752 = vsel %vm1327, %v3688, 0.0
      %3753 = vadd.xlane.f32.xlu0 %v3752
      %v3754 = vpop.xlane.xlu0 %3753
      %v3755 = vsel %vm1327, %v3690, 0.0
      %3756 = vadd.xlane.f32.xlu0 %v3755
      %v3757 = vpop.xlane.xlu0 %3756
      %v3758 = vsel %vm1327, %v3692, 0.0
      %3759 = vadd.xlane.f32.xlu0 %v3758
      %v3760 = vpop.xlane.xlu0 %3759
      %3761 = vrot.lane.b32.xlu0 %v2390, 116
      %v3762 = vpop.permute.xlu0 %3761
      %3763 = vrot.lane.b32.xlu0 %v2397, 116
      %v3764 = vpop.permute.xlu0 %3763
      %3765 = vrot.lane.b32.xlu0 %v2404, 116
      %v3766 = vpop.permute.xlu0 %3765
      %3767 = vrot.lane.b32.xlu0 %v2411, 116
      %v3768 = vpop.permute.xlu0 %3767
      %3769 = vrot.lane.b32.xlu0 %v2418, 116
      %v3770 = vpop.permute.xlu0 %3769
      %3771 = vrot.lane.b32.xlu0 %v2425, 116
      %v3772 = vpop.permute.xlu0 %3771
      %3773 = vrot.lane.b32.xlu0 %v2432, 116
      %v3774 = vpop.permute.xlu0 %3773
      %3775 = vrot.lane.b32.xlu0 %v2439, 116
      %v3776 = vpop.permute.xlu0 %3775
      %3777 = vrot.lane.b32.xlu0 %v2446, 116
      %v3778 = vpop.permute.xlu0 %3777
      %3779 = vrot.lane.b32.xlu0 %v2453, 116
      %v3780 = vpop.permute.xlu0 %3779
      %3781 = vrot.lane.b32.xlu0 %v2460, 116
      %v3782 = vpop.permute.xlu0 %3781
      %3783 = vrot.lane.b32.xlu0 %v2467, 116
      %v3784 = vpop.permute.xlu0 %3783
      %3785 = vrot.lane.b32.xlu0 %v2474, 116
      %v3786 = vpop.permute.xlu0 %3785
      %3787 = vrot.lane.b32.xlu0 %v2481, 116
      %v3788 = vpop.permute.xlu0 %3787
      %3789 = vrot.lane.b32.xlu0 %v2488, 116
      %v3790 = vpop.permute.xlu0 %3789
      %3791 = vrot.lane.b32.xlu0 %v2495, 116
      %v3792 = vpop.permute.xlu0 %3791
      %3793 = vrot.lane.b32.xlu0 %v2502, 116
      %v3794 = vpop.permute.xlu0 %3793
      %v3812 = vsel %vm1327, %v3762, 0.0
      %3813 = vadd.xlane.f32.xlu0 %v3812
      %v3814 = vpop.xlane.xlu0 %3813
      %v3815 = vsel %vm1327, %v3764, 0.0
      %3816 = vadd.xlane.f32.xlu0 %v3815
      %v3817 = vpop.xlane.xlu0 %3816
      %v3818 = vsel %vm1327, %v3766, 0.0
      %3819 = vadd.xlane.f32.xlu0 %v3818
      %v3820 = vpop.xlane.xlu0 %3819
      %v3821 = vsel %vm1327, %v3768, 0.0
      %3822 = vadd.xlane.f32.xlu0 %v3821
      %v3823 = vpop.xlane.xlu0 %3822
      %v3824 = vsel %vm1327, %v3770, 0.0
      %3825 = vadd.xlane.f32.xlu0 %v3824
      %v3826 = vpop.xlane.xlu0 %3825
      %v3827 = vsel %vm1327, %v3772, 0.0
      %3828 = vadd.xlane.f32.xlu0 %v3827
      %v3829 = vpop.xlane.xlu0 %3828
      %v3830 = vsel %vm1327, %v3774, 0.0
      %3831 = vadd.xlane.f32.xlu0 %v3830
      %v3832 = vpop.xlane.xlu0 %3831
      %v3833 = vsel %vm1327, %v3776, 0.0
      %3834 = vadd.xlane.f32.xlu0 %v3833
      %v3835 = vpop.xlane.xlu0 %3834
      %v3836 = vsel %vm1327, %v3778, 0.0
      %3837 = vadd.xlane.f32.xlu0 %v3836
      %v3838 = vpop.xlane.xlu0 %3837
      %v3839 = vsel %vm1327, %v3780, 0.0
      %3840 = vadd.xlane.f32.xlu0 %v3839
      %v3841 = vpop.xlane.xlu0 %3840
      %v3842 = vsel %vm1327, %v3782, 0.0
      %3843 = vadd.xlane.f32.xlu0 %v3842
      %v3844 = vpop.xlane.xlu0 %3843
      %v3845 = vsel %vm1327, %v3784, 0.0
      %3846 = vadd.xlane.f32.xlu0 %v3845
      %v3847 = vpop.xlane.xlu0 %3846
      %v3848 = vsel %vm1327, %v3786, 0.0
      %3849 = vadd.xlane.f32.xlu0 %v3848
      %v3850 = vpop.xlane.xlu0 %3849
      %v3851 = vsel %vm1327, %v3788, 0.0
      %3852 = vadd.xlane.f32.xlu0 %v3851
      %v3853 = vpop.xlane.xlu0 %3852
      %v3854 = vsel %vm1327, %v3790, 0.0
      %3855 = vadd.xlane.f32.xlu0 %v3854
      %v3856 = vpop.xlane.xlu0 %3855
      %v3857 = vsel %vm1327, %v3792, 0.0
      %3858 = vadd.xlane.f32.xlu0 %v3857
      %v3859 = vpop.xlane.xlu0 %3858
      %v3860 = vsel %vm1327, %v3794, 0.0
      %3861 = vadd.xlane.f32.xlu0 %v3860
      %v3862 = vpop.xlane.xlu0 %3861
      %v3863 = vsel %vm1702, %v3712, %v3814
      %v3864 = vsel %vm1702, %v3715, %v3817
      %v3865 = vsel %vm1702, %v3718, %v3820
      %v3866 = vsel %vm1702, %v3721, %v3823
      %v3867 = vsel %vm1702, %v3724, %v3826
      %v3868 = vsel %vm1702, %v3727, %v3829
      %v3869 = vsel %vm1702, %v3730, %v3832
      %v3870 = vsel %vm1702, %v3733, %v3835
      %v3871 = vsel %vm1702, %v3736, %v3838
      %v3872 = vsel %vm1702, %v3739, %v3841
      %v3873 = vsel %vm1702, %v3742, %v3844
      %v3874 = vsel %vm1702, %v3745, %v3847
      %v3875 = vsel %vm1702, %v3748, %v3850
      %v3876 = vsel %vm1702, %v3751, %v3853
      %v3877 = vsel %vm1702, %v3754, %v3856
      %v3878 = vsel %vm1702, %v3757, %v3859
      %v3879 = vsel %vm1702, %v3760, %v3862
      %v3880 = vsel %vm1720, %v3863, -inf
      %3881 = vmax.xlane.f32.xlu0 %v3880
      %v3882 = vpop.xlane.xlu0 %3881
      %v3883 = vsel %vm1720, %v3864, -inf
      %3884 = vmax.xlane.f32.xlu0 %v3883
      %v3885 = vpop.xlane.xlu0 %3884
      %v3886 = vsel %vm1720, %v3865, -inf
      %3887 = vmax.xlane.f32.xlu0 %v3886
      %v3888 = vpop.xlane.xlu0 %3887
      %v3889 = vsel %vm1720, %v3866, -inf
      %3890 = vmax.xlane.f32.xlu0 %v3889
      %v3891 = vpop.xlane.xlu0 %3890
      %v3892 = vsel %vm1720, %v3867, -inf
      %3893 = vmax.xlane.f32.xlu0 %v3892
      %v3894 = vpop.xlane.xlu0 %3893
      %v3895 = vsel %vm1720, %v3868, -inf
      %3896 = vmax.xlane.f32.xlu0 %v3895
      %v3897 = vpop.xlane.xlu0 %3896
      %v3898 = vsel %vm1720, %v3869, -inf
      %3899 = vmax.xlane.f32.xlu0 %v3898
      %v3900 = vpop.xlane.xlu0 %3899
      %v3901 = vsel %vm1720, %v3870, -inf
      %3902 = vmax.xlane.f32.xlu0 %v3901
      %v3903 = vpop.xlane.xlu0 %3902
      %v3904 = vsel %vm1720, %v3871, -inf
      %3905 = vmax.xlane.f32.xlu0 %v3904
      %v3906 = vpop.xlane.xlu0 %3905
      %v3907 = vsel %vm1720, %v3872, -inf
      %3908 = vmax.xlane.f32.xlu0 %v3907
      %v3909 = vpop.xlane.xlu0 %3908
      %v3910 = vsel %vm1720, %v3873, -inf
      %3911 = vmax.xlane.f32.xlu0 %v3910
      %v3912 = vpop.xlane.xlu0 %3911
      %v3913 = vsel %vm1720, %v3874, -inf
      %3914 = vmax.xlane.f32.xlu0 %v3913
      %v3915 = vpop.xlane.xlu0 %3914
      %v3916 = vsel %vm1720, %v3875, -inf
      %3917 = vmax.xlane.f32.xlu0 %v3916
      %v3918 = vpop.xlane.xlu0 %3917
      %v3919 = vsel %vm1720, %v3876, -inf
      %3920 = vmax.xlane.f32.xlu0 %v3919
      %v3921 = vpop.xlane.xlu0 %3920
      %v3922 = vsel %vm1720, %v3877, -inf
      %3923 = vmax.xlane.f32.xlu0 %v3922
      %v3924 = vpop.xlane.xlu0 %3923
      %v3925 = vsel %vm1720, %v3878, -inf
      %3926 = vmax.xlane.f32.xlu0 %v3925
      %v3927 = vpop.xlane.xlu0 %3926
      %v3928 = vsel %vm1720, %v3879, -inf
      %3929 = vmax.xlane.f32.xlu0 %v3928
      %v3930 = vpop.xlane.xlu0 %3929
      %v3931 = vsub.f32 %v3863, %v3882
      %v3932 = vsub.f32 %v3864, %v3885
      %v3933 = vsub.f32 %v3865, %v3888
      %v3934 = vsub.f32 %v3866, %v3891
      %v3935 = vsub.f32 %v3867, %v3894
      %v3936 = vsub.f32 %v3868, %v3897
      %v3937 = vsub.f32 %v3869, %v3900
      %v3938 = vsub.f32 %v3870, %v3903
      %v3939 = vsub.f32 %v3871, %v3906
      %v3940 = vsub.f32 %v3872, %v3909
      %v3941 = vsub.f32 %v3873, %v3912
      %v3942 = vsub.f32 %v3874, %v3915
      %v3943 = vsub.f32 %v3875, %v3918
      %v3944 = vsub.f32 %v3876, %v3921
      %v3945 = vsub.f32 %v3877, %v3924
      %v3946 = vsub.f32 %v3878, %v3927
      %v3947 = vsub.f32 %v3879, %v3930
      %v3948 = vmul.f32 %v3931, 1.442695
      %v3949 = vpow.pop %v3948
      %v3950 = vmul.f32 %v3932, 1.442695
      %v3951 = vpow.pop %v3950
      %v3952 = vmul.f32 %v3933, 1.442695
      %v3953 = vpow.pop %v3952
      %v3954 = vmul.f32 %v3934, 1.442695
      %v3955 = vpow.pop %v3954
      %v3956 = vmul.f32 %v3935, 1.442695
      %v3957 = vpow.pop %v3956
      %v3958 = vmul.f32 %v3936, 1.442695
      %v3959 = vpow.pop %v3958
      %v3960 = vmul.f32 %v3937, 1.442695
      %v3961 = vpow.pop %v3960
      %v3962 = vmul.f32 %v3938, 1.442695
      %v3963 = vpow.pop %v3962
      %v3964 = vmul.f32 %v3939, 1.442695
      %v3965 = vpow.pop %v3964
      %v3966 = vmul.f32 %v3940, 1.442695
      %v3967 = vpow.pop %v3966
      %v3968 = vmul.f32 %v3941, 1.442695
      %v3969 = vpow.pop %v3968
      %v3970 = vmul.f32 %v3942, 1.442695
      %v3971 = vpow.pop %v3970
      %v3972 = vmul.f32 %v3943, 1.442695
      %v3973 = vpow.pop %v3972
      %v3974 = vmul.f32 %v3944, 1.442695
      %v3975 = vpow.pop %v3974
      %v3976 = vmul.f32 %v3945, 1.442695
      %v3977 = vpow.pop %v3976
      %v3978 = vmul.f32 %v3946, 1.442695
      %v3979 = vpow.pop %v3978
      %v3980 = vmul.f32 %v3947, 1.442695
      %v3981 = vpow.pop %v3980
      %v3982 = vsel %vm1720, %v3949, 0.0
      %3983 = vadd.xlane.f32.xlu0 %v3982
      %v3984 = vpop.xlane.xlu0 %3983
      %v3985 = vsel %vm1720, %v3951, 0.0
      %3986 = vadd.xlane.f32.xlu0 %v3985
      %v3987 = vpop.xlane.xlu0 %3986
      %v3988 = vsel %vm1720, %v3953, 0.0
      %3989 = vadd.xlane.f32.xlu0 %v3988
      %v3990 = vpop.xlane.xlu0 %3989
      %v3991 = vsel %vm1720, %v3955, 0.0
      %3992 = vadd.xlane.f32.xlu0 %v3991
      %v3993 = vpop.xlane.xlu0 %3992
      %v3994 = vsel %vm1720, %v3957, 0.0
      %3995 = vadd.xlane.f32.xlu0 %v3994
      %v3996 = vpop.xlane.xlu0 %3995
      %v3997 = vsel %vm1720, %v3959, 0.0
      %3998 = vadd.xlane.f32.xlu0 %v3997
      %v3999 = vpop.xlane.xlu0 %3998
      %v4000 = vsel %vm1720, %v3961, 0.0
      %4001 = vadd.xlane.f32.xlu0 %v4000
      %v4002 = vpop.xlane.xlu0 %4001
      %v4003 = vsel %vm1720, %v3963, 0.0
      %4004 = vadd.xlane.f32.xlu0 %v4003
      %v4005 = vpop.xlane.xlu0 %4004
      %v4006 = vsel %vm1720, %v3965, 0.0
      %4007 = vadd.xlane.f32.xlu0 %v4006
      %v4008 = vpop.xlane.xlu0 %4007
      %v4009 = vsel %vm1720, %v3967, 0.0
      %4010 = vadd.xlane.f32.xlu0 %v4009
      %v4011 = vpop.xlane.xlu0 %4010
      %v4012 = vsel %vm1720, %v3969, 0.0
      %4013 = vadd.xlane.f32.xlu0 %v4012
      %v4014 = vpop.xlane.xlu0 %4013
      %v4015 = vsel %vm1720, %v3971, 0.0
      %4016 = vadd.xlane.f32.xlu0 %v4015
      %v4017 = vpop.xlane.xlu0 %4016
      %v4018 = vsel %vm1720, %v3973, 0.0
      %4019 = vadd.xlane.f32.xlu0 %v4018
      %v4020 = vpop.xlane.xlu0 %4019
      %v4021 = vsel %vm1720, %v3975, 0.0
      %4022 = vadd.xlane.f32.xlu0 %v4021
      %v4023 = vpop.xlane.xlu0 %4022
      %v4024 = vsel %vm1720, %v3977, 0.0
      %4025 = vadd.xlane.f32.xlu0 %v4024
      %v4026 = vpop.xlane.xlu0 %4025
      %v4027 = vsel %vm1720, %v3979, 0.0
      %4028 = vadd.xlane.f32.xlu0 %v4027
      %v4029 = vpop.xlane.xlu0 %4028
      %v4030 = vsel %vm1720, %v3981, 0.0
      %4031 = vadd.xlane.f32.xlu0 %v4030
      %v4032 = vpop.xlane.xlu0 %4031
      %v4033 = vrcp.pop %v3984
      %v4034 = vmul.f32 %v3949, %v4033
      %v4035 = vrcp.pop %v3987
      %v4036 = vmul.f32 %v3951, %v4035
      %v4037 = vrcp.pop %v3990
      %v4038 = vmul.f32 %v3953, %v4037
      %v4039 = vrcp.pop %v3993
      %v4040 = vmul.f32 %v3955, %v4039
      %v4041 = vrcp.pop %v3996
      %v4042 = vmul.f32 %v3957, %v4041
      %v4043 = vrcp.pop %v3999
      %v4044 = vmul.f32 %v3959, %v4043
      %v4045 = vrcp.pop %v4002
      %v4046 = vmul.f32 %v3961, %v4045
      %v4047 = vrcp.pop %v4005
      %v4048 = vmul.f32 %v3963, %v4047
      %v4049 = vrcp.pop %v4008
      %v4050 = vmul.f32 %v3965, %v4049
      %v4051 = vrcp.pop %v4011
      %v4052 = vmul.f32 %v3967, %v4051
      %v4053 = vrcp.pop %v4014
      %v4054 = vmul.f32 %v3969, %v4053
      %v4055 = vrcp.pop %v4017
      %v4056 = vmul.f32 %v3971, %v4055
      %v4057 = vrcp.pop %v4020
      %v4058 = vmul.f32 %v3973, %v4057
      %v4059 = vrcp.pop %v4023
      %v4060 = vmul.f32 %v3975, %v4059
      %v4061 = vrcp.pop %v4026
      %v4062 = vmul.f32 %v3977, %v4061
      %v4063 = vrcp.pop %v4029
      %v4064 = vmul.f32 %v3979, %v4063
      %v4065 = vrcp.pop %v4032
      %v4066 = vmul.f32 %v3981, %v4065
      %4068 = vset.pattern.permute.xlu0 0
      %4069 = vperm.xlu0 %4068, %v4034
      %v4070 = vpop.permute.xlu0 %4069
      %4073 = vset.pattern.permute.xlu0 0
      %4074 = vperm.xlu0 %4073, %v4036
      %v4075 = vpop.permute.xlu0 %4074
      %4078 = vset.pattern.permute.xlu0 0
      %4079 = vperm.xlu0 %4078, %v4038
      %v4080 = vpop.permute.xlu0 %4079
      %4083 = vset.pattern.permute.xlu0 0
      %4084 = vperm.xlu0 %4083, %v4040
      %v4085 = vpop.permute.xlu0 %4084
      %4088 = vset.pattern.permute.xlu0 0
      %4089 = vperm.xlu0 %4088, %v4042
      %v4090 = vpop.permute.xlu0 %4089
      %4093 = vset.pattern.permute.xlu0 0
      %4094 = vperm.xlu0 %4093, %v4044
      %v4095 = vpop.permute.xlu0 %4094
      %4098 = vset.pattern.permute.xlu0 0
      %4099 = vperm.xlu0 %4098, %v4046
      %v4100 = vpop.permute.xlu0 %4099
      %4103 = vset.pattern.permute.xlu0 0
      %4104 = vperm.xlu0 %4103, %v4048
      %v4105 = vpop.permute.xlu0 %4104
      %4108 = vset.pattern.permute.xlu0 0
      %4109 = vperm.xlu0 %4108, %v4050
      %v4110 = vpop.permute.xlu0 %4109
      %4113 = vset.pattern.permute.xlu0 0
      %4114 = vperm.xlu0 %4113, %v4052
      %v4115 = vpop.permute.xlu0 %4114
      %4118 = vset.pattern.permute.xlu0 0
      %4119 = vperm.xlu0 %4118, %v4054
      %v4120 = vpop.permute.xlu0 %4119
      %4123 = vset.pattern.permute.xlu0 0
      %4124 = vperm.xlu0 %4123, %v4056
      %v4125 = vpop.permute.xlu0 %4124
      %4128 = vset.pattern.permute.xlu0 0
      %4129 = vperm.xlu0 %4128, %v4058
      %v4130 = vpop.permute.xlu0 %4129
      %4133 = vset.pattern.permute.xlu0 0
      %4134 = vperm.xlu0 %4133, %v4060
      %v4135 = vpop.permute.xlu0 %4134
      %4138 = vset.pattern.permute.xlu0 0
      %4139 = vperm.xlu0 %4138, %v4062
      %v4140 = vpop.permute.xlu0 %4139
      %4143 = vset.pattern.permute.xlu0 0
      %4144 = vperm.xlu0 %4143, %v4064
      %v4145 = vpop.permute.xlu0 %4144
      %4148 = vset.pattern.permute.xlu0 0
      %4149 = vperm.xlu0 %4148, %v4066
      %v4150 = vpop.permute.xlu0 %4149
      %v4152 = vmul.f32 %v4070, %v1058
      %v4153 = vmul.f32 %v4075, %v1062
      %v4154 = vmul.f32 %v4080, %v1066
      %v4155 = vmul.f32 %v4085, %v1070
      %v4156 = vmul.f32 %v4090, %v1074
      %v4157 = vmul.f32 %v4095, %v1078
      %v4158 = vmul.f32 %v4100, %v1082
      %v4159 = vmul.f32 %v4105, %v1086
      %v4160 = vmul.f32 %v4110, %v1090
      %v4161 = vmul.f32 %v4115, %v1094
      %v4162 = vmul.f32 %v4120, %v1098
      %v4163 = vmul.f32 %v4125, %v1102
      %v4164 = vmul.f32 %v4130, %v1106
      %v4165 = vmul.f32 %v4135, %v1110
      %v4166 = vmul.f32 %v4140, %v1114
      %v4167 = vmul.f32 %v4145, %v1118
      %v4168 = vmul.f32 %v4150, %v1122
      %4169 = vset.pattern.permute.xlu0 1
      %4170 = vperm.xlu0 %4169, %v4034
      %v4171 = vpop.permute.xlu0 %4170
      %4173 = vset.pattern.permute.xlu0 1
      %4174 = vperm.xlu0 %4173, %v4036
      %v4175 = vpop.permute.xlu0 %4174
      %4177 = vset.pattern.permute.xlu0 1
      %4178 = vperm.xlu0 %4177, %v4038
      %v4179 = vpop.permute.xlu0 %4178
      %4181 = vset.pattern.permute.xlu0 1
      %4182 = vperm.xlu0 %4181, %v4040
      %v4183 = vpop.permute.xlu0 %4182
      %4185 = vset.pattern.permute.xlu0 1
      %4186 = vperm.xlu0 %4185, %v4042
      %v4187 = vpop.permute.xlu0 %4186
      %4189 = vset.pattern.permute.xlu0 1
      %4190 = vperm.xlu0 %4189, %v4044
      %v4191 = vpop.permute.xlu0 %4190
      %4193 = vset.pattern.permute.xlu0 1
      %4194 = vperm.xlu0 %4193, %v4046
      %v4195 = vpop.permute.xlu0 %4194
      %4197 = vset.pattern.permute.xlu0 1
      %4198 = vperm.xlu0 %4197, %v4048
      %v4199 = vpop.permute.xlu0 %4198
      %4201 = vset.pattern.permute.xlu0 1
      %4202 = vperm.xlu0 %4201, %v4050
      %v4203 = vpop.permute.xlu0 %4202
      %4205 = vset.pattern.permute.xlu0 1
      %4206 = vperm.xlu0 %4205, %v4052
      %v4207 = vpop.permute.xlu0 %4206
      %4209 = vset.pattern.permute.xlu0 1
      %4210 = vperm.xlu0 %4209, %v4054
      %v4211 = vpop.permute.xlu0 %4210
      %4213 = vset.pattern.permute.xlu0 1
      %4214 = vperm.xlu0 %4213, %v4056
      %v4215 = vpop.permute.xlu0 %4214
      %4217 = vset.pattern.permute.xlu0 1
      %4218 = vperm.xlu0 %4217, %v4058
      %v4219 = vpop.permute.xlu0 %4218
      %4221 = vset.pattern.permute.xlu0 1
      %4222 = vperm.xlu0 %4221, %v4060
      %v4223 = vpop.permute.xlu0 %4222
      %4225 = vset.pattern.permute.xlu0 1
      %4226 = vperm.xlu0 %4225, %v4062
      %v4227 = vpop.permute.xlu0 %4226
      %4229 = vset.pattern.permute.xlu0 1
      %4230 = vperm.xlu0 %4229, %v4064
      %v4231 = vpop.permute.xlu0 %4230
      %4233 = vset.pattern.permute.xlu0 1
      %4234 = vperm.xlu0 %4233, %v4066
      %v4235 = vpop.permute.xlu0 %4234
      %v4237 = vmul.f32 %v4171, %v1382
      %v4238 = vmul.f32 %v4175, %v1386
      %v4239 = vmul.f32 %v4179, %v1390
      %v4240 = vmul.f32 %v4183, %v1394
      %v4241 = vmul.f32 %v4187, %v1398
      %v4242 = vmul.f32 %v4191, %v1402
      %v4243 = vmul.f32 %v4195, %v1406
      %v4244 = vmul.f32 %v4199, %v1410
      %v4245 = vmul.f32 %v4203, %v1414
      %v4246 = vmul.f32 %v4207, %v1418
      %v4247 = vmul.f32 %v4211, %v1422
      %v4248 = vmul.f32 %v4215, %v1426
      %v4249 = vmul.f32 %v4219, %v1430
      %v4250 = vmul.f32 %v4223, %v1434
      %v4251 = vmul.f32 %v4227, %v1438
      %v4252 = vmul.f32 %v4231, %v1442
      %v4253 = vmul.f32 %v4235, %v1446
      %v4254 = vadd.f32 %v4152, 0.0
      %v4255 = vadd.f32 %v4153, 0.0
      %v4256 = vadd.f32 %v4154, 0.0
      %v4257 = vadd.f32 %v4155, 0.0
      %v4258 = vadd.f32 %v4156, 0.0
      %v4259 = vadd.f32 %v4157, 0.0
      %v4260 = vadd.f32 %v4158, 0.0
      %v4261 = vadd.f32 %v4159, 0.0
      %v4262 = vadd.f32 %v4160, 0.0
      %v4263 = vadd.f32 %v4161, 0.0
      %v4264 = vadd.f32 %v4162, 0.0
      %v4265 = vadd.f32 %v4163, 0.0
      %v4266 = vadd.f32 %v4164, 0.0
      %v4267 = vadd.f32 %v4165, 0.0
      %v4268 = vadd.f32 %v4166, 0.0
      %v4269 = vadd.f32 %v4167, 0.0
      %v4270 = vadd.f32 %v4168, 0.0
      %v4271 = vadd.f32 %v4254, %v4237
      %v4272 = vadd.f32 %v4255, %v4238
      %v4273 = vadd.f32 %v4256, %v4239
      %v4274 = vadd.f32 %v4257, %v4240
      %v4275 = vadd.f32 %v4258, %v4241
      %v4276 = vadd.f32 %v4259, %v4242
      %v4277 = vadd.f32 %v4260, %v4243
      %v4278 = vadd.f32 %v4261, %v4244
      %v4279 = vadd.f32 %v4262, %v4245
      %v4280 = vadd.f32 %v4263, %v4246
      %v4281 = vadd.f32 %v4264, %v4247
      %v4282 = vadd.f32 %v4265, %v4248
      %v4283 = vadd.f32 %v4266, %v4249
      %v4284 = vadd.f32 %v4267, %v4250
      %v4285 = vadd.f32 %v4268, %v4251
      %v4286 = vadd.f32 %v4269, %v4252
      %v4287 = vadd.f32 %v4270, %v4253
      %4288 = vrot.lane.b32.xlu0 %v2152, 112
      %v4289 = vpop.permute.xlu0 %4288
      %4290 = vrot.lane.b32.xlu0 %v2159, 112
      %v4291 = vpop.permute.xlu0 %4290
      %4292 = vrot.lane.b32.xlu0 %v2166, 112
      %v4293 = vpop.permute.xlu0 %4292
      %4294 = vrot.lane.b32.xlu0 %v2173, 112
      %v4295 = vpop.permute.xlu0 %4294
      %4296 = vrot.lane.b32.xlu0 %v2180, 112
      %v4297 = vpop.permute.xlu0 %4296
      %4298 = vrot.lane.b32.xlu0 %v2187, 112
      %v4299 = vpop.permute.xlu0 %4298
      %4300 = vrot.lane.b32.xlu0 %v2194, 112
      %v4301 = vpop.permute.xlu0 %4300
      %4302 = vrot.lane.b32.xlu0 %v2201, 112
      %v4303 = vpop.permute.xlu0 %4302
      %4304 = vrot.lane.b32.xlu0 %v2208, 112
      %v4305 = vpop.permute.xlu0 %4304
      %4306 = vrot.lane.b32.xlu0 %v2215, 112
      %v4307 = vpop.permute.xlu0 %4306
      %4308 = vrot.lane.b32.xlu0 %v2222, 112
      %v4309 = vpop.permute.xlu0 %4308
      %4310 = vrot.lane.b32.xlu0 %v2229, 112
      %v4311 = vpop.permute.xlu0 %4310
      %4312 = vrot.lane.b32.xlu0 %v2236, 112
      %v4313 = vpop.permute.xlu0 %4312
      %4314 = vrot.lane.b32.xlu0 %v2243, 112
      %v4315 = vpop.permute.xlu0 %4314
      %4316 = vrot.lane.b32.xlu0 %v2250, 112
      %v4317 = vpop.permute.xlu0 %4316
      %4318 = vrot.lane.b32.xlu0 %v2257, 112
      %v4319 = vpop.permute.xlu0 %4318
      %4320 = vrot.lane.b32.xlu0 %v2264, 112
      %v4321 = vpop.permute.xlu0 %4320
      %v4339 = vsel %vm1327, %v4289, 0.0
      %4340 = vadd.xlane.f32.xlu0 %v4339
      %v4341 = vpop.xlane.xlu0 %4340
      %v4342 = vsel %vm1327, %v4291, 0.0
      %4343 = vadd.xlane.f32.xlu0 %v4342
      %v4344 = vpop.xlane.xlu0 %4343
      %v4345 = vsel %vm1327, %v4293, 0.0
      %4346 = vadd.xlane.f32.xlu0 %v4345
      %v4347 = vpop.xlane.xlu0 %4346
      %v4348 = vsel %vm1327, %v4295, 0.0
      %4349 = vadd.xlane.f32.xlu0 %v4348
      %v4350 = vpop.xlane.xlu0 %4349
      %v4351 = vsel %vm1327, %v4297, 0.0
      %4352 = vadd.xlane.f32.xlu0 %v4351
      %v4353 = vpop.xlane.xlu0 %4352
      %v4354 = vsel %vm1327, %v4299, 0.0
      %4355 = vadd.xlane.f32.xlu0 %v4354
      %v4356 = vpop.xlane.xlu0 %4355
      %v4357 = vsel %vm1327, %v4301, 0.0
      %4358 = vadd.xlane.f32.xlu0 %v4357
      %v4359 = vpop.xlane.xlu0 %4358
      %v4360 = vsel %vm1327, %v4303, 0.0
      %4361 = vadd.xlane.f32.xlu0 %v4360
      %v4362 = vpop.xlane.xlu0 %4361
      %v4363 = vsel %vm1327, %v4305, 0.0
      %4364 = vadd.xlane.f32.xlu0 %v4363
      %v4365 = vpop.xlane.xlu0 %4364
      %v4366 = vsel %vm1327, %v4307, 0.0
      %4367 = vadd.xlane.f32.xlu0 %v4366
      %v4368 = vpop.xlane.xlu0 %4367
      %v4369 = vsel %vm1327, %v4309, 0.0
      %4370 = vadd.xlane.f32.xlu0 %v4369
      %v4371 = vpop.xlane.xlu0 %4370
      %v4372 = vsel %vm1327, %v4311, 0.0
      %4373 = vadd.xlane.f32.xlu0 %v4372
      %v4374 = vpop.xlane.xlu0 %4373
      %v4375 = vsel %vm1327, %v4313, 0.0
      %4376 = vadd.xlane.f32.xlu0 %v4375
      %v4377 = vpop.xlane.xlu0 %4376
      %v4378 = vsel %vm1327, %v4315, 0.0
      %4379 = vadd.xlane.f32.xlu0 %v4378
      %v4380 = vpop.xlane.xlu0 %4379
      %v4381 = vsel %vm1327, %v4317, 0.0
      %4382 = vadd.xlane.f32.xlu0 %v4381
      %v4383 = vpop.xlane.xlu0 %4382
      %v4384 = vsel %vm1327, %v4319, 0.0
      %4385 = vadd.xlane.f32.xlu0 %v4384
      %v4386 = vpop.xlane.xlu0 %4385
      %v4387 = vsel %vm1327, %v4321, 0.0
      %4388 = vadd.xlane.f32.xlu0 %v4387
      %v4389 = vpop.xlane.xlu0 %4388
      %4390 = vrot.lane.b32.xlu0 %v2390, 112
      %v4391 = vpop.permute.xlu0 %4390
      %4392 = vrot.lane.b32.xlu0 %v2397, 112
      %v4393 = vpop.permute.xlu0 %4392
      %4394 = vrot.lane.b32.xlu0 %v2404, 112
      %v4395 = vpop.permute.xlu0 %4394
      %4396 = vrot.lane.b32.xlu0 %v2411, 112
      %v4397 = vpop.permute.xlu0 %4396
      %4398 = vrot.lane.b32.xlu0 %v2418, 112
      %v4399 = vpop.permute.xlu0 %4398
      %4400 = vrot.lane.b32.xlu0 %v2425, 112
      %v4401 = vpop.permute.xlu0 %4400
      %4402 = vrot.lane.b32.xlu0 %v2432, 112
      %v4403 = vpop.permute.xlu0 %4402
      %4404 = vrot.lane.b32.xlu0 %v2439, 112
      %v4405 = vpop.permute.xlu0 %4404
      %4406 = vrot.lane.b32.xlu0 %v2446, 112
      %v4407 = vpop.permute.xlu0 %4406
      %4408 = vrot.lane.b32.xlu0 %v2453, 112
      %v4409 = vpop.permute.xlu0 %4408
      %4410 = vrot.lane.b32.xlu0 %v2460, 112
      %v4411 = vpop.permute.xlu0 %4410
      %4412 = vrot.lane.b32.xlu0 %v2467, 112
      %v4413 = vpop.permute.xlu0 %4412
      %4414 = vrot.lane.b32.xlu0 %v2474, 112
      %v4415 = vpop.permute.xlu0 %4414
      %4416 = vrot.lane.b32.xlu0 %v2481, 112
      %v4417 = vpop.permute.xlu0 %4416
      %4418 = vrot.lane.b32.xlu0 %v2488, 112
      %v4419 = vpop.permute.xlu0 %4418
      %4420 = vrot.lane.b32.xlu0 %v2495, 112
      %v4421 = vpop.permute.xlu0 %4420
      %4422 = vrot.lane.b32.xlu0 %v2502, 112
      %v4423 = vpop.permute.xlu0 %4422
      %v4441 = vsel %vm1327, %v4391, 0.0
      %4442 = vadd.xlane.f32.xlu0 %v4441
      %v4443 = vpop.xlane.xlu0 %4442
      %v4444 = vsel %vm1327, %v4393, 0.0
      %4445 = vadd.xlane.f32.xlu0 %v4444
      %v4446 = vpop.xlane.xlu0 %4445
      %v4447 = vsel %vm1327, %v4395, 0.0
      %4448 = vadd.xlane.f32.xlu0 %v4447
      %v4449 = vpop.xlane.xlu0 %4448
      %v4450 = vsel %vm1327, %v4397, 0.0
      %4451 = vadd.xlane.f32.xlu0 %v4450
      %v4452 = vpop.xlane.xlu0 %4451
      %v4453 = vsel %vm1327, %v4399, 0.0
      %4454 = vadd.xlane.f32.xlu0 %v4453
      %v4455 = vpop.xlane.xlu0 %4454
      %v4456 = vsel %vm1327, %v4401, 0.0
      %4457 = vadd.xlane.f32.xlu0 %v4456
      %v4458 = vpop.xlane.xlu0 %4457
      %v4459 = vsel %vm1327, %v4403, 0.0
      %4460 = vadd.xlane.f32.xlu0 %v4459
      %v4461 = vpop.xlane.xlu0 %4460
      %v4462 = vsel %vm1327, %v4405, 0.0
      %4463 = vadd.xlane.f32.xlu0 %v4462
      %v4464 = vpop.xlane.xlu0 %4463
      %v4465 = vsel %vm1327, %v4407, 0.0
      %4466 = vadd.xlane.f32.xlu0 %v4465
      %v4467 = vpop.xlane.xlu0 %4466
      %v4468 = vsel %vm1327, %v4409, 0.0
      %4469 = vadd.xlane.f32.xlu0 %v4468
      %v4470 = vpop.xlane.xlu0 %4469
      %v4471 = vsel %vm1327, %v4411, 0.0
      %4472 = vadd.xlane.f32.xlu0 %v4471
      %v4473 = vpop.xlane.xlu0 %4472
      %v4474 = vsel %vm1327, %v4413, 0.0
      %4475 = vadd.xlane.f32.xlu0 %v4474
      %v4476 = vpop.xlane.xlu0 %4475
      %v4477 = vsel %vm1327, %v4415, 0.0
      %4478 = vadd.xlane.f32.xlu0 %v4477
      %v4479 = vpop.xlane.xlu0 %4478
      %v4480 = vsel %vm1327, %v4417, 0.0
      %4481 = vadd.xlane.f32.xlu0 %v4480
      %v4482 = vpop.xlane.xlu0 %4481
      %v4483 = vsel %vm1327, %v4419, 0.0
      %4484 = vadd.xlane.f32.xlu0 %v4483
      %v4485 = vpop.xlane.xlu0 %4484
      %v4486 = vsel %vm1327, %v4421, 0.0
      %4487 = vadd.xlane.f32.xlu0 %v4486
      %v4488 = vpop.xlane.xlu0 %4487
      %v4489 = vsel %vm1327, %v4423, 0.0
      %4490 = vadd.xlane.f32.xlu0 %v4489
      %v4491 = vpop.xlane.xlu0 %4490
      %v4492 = vsel %vm1702, %v4341, %v4443
      %v4493 = vsel %vm1702, %v4344, %v4446
      %v4494 = vsel %vm1702, %v4347, %v4449
      %v4495 = vsel %vm1702, %v4350, %v4452
      %v4496 = vsel %vm1702, %v4353, %v4455
      %v4497 = vsel %vm1702, %v4356, %v4458
      %v4498 = vsel %vm1702, %v4359, %v4461
      %v4499 = vsel %vm1702, %v4362, %v4464
      %v4500 = vsel %vm1702, %v4365, %v4467
      %v4501 = vsel %vm1702, %v4368, %v4470
      %v4502 = vsel %vm1702, %v4371, %v4473
      %v4503 = vsel %vm1702, %v4374, %v4476
      %v4504 = vsel %vm1702, %v4377, %v4479
      %v4505 = vsel %vm1702, %v4380, %v4482
      %v4506 = vsel %vm1702, %v4383, %v4485
      %v4507 = vsel %vm1702, %v4386, %v4488
      %v4508 = vsel %vm1702, %v4389, %v4491
      %v4509 = vsel %vm1720, %v4492, -inf
      %4510 = vmax.xlane.f32.xlu0 %v4509
      %v4511 = vpop.xlane.xlu0 %4510
      %v4512 = vsel %vm1720, %v4493, -inf
      %4513 = vmax.xlane.f32.xlu0 %v4512
      %v4514 = vpop.xlane.xlu0 %4513
      %v4515 = vsel %vm1720, %v4494, -inf
      %4516 = vmax.xlane.f32.xlu0 %v4515
      %v4517 = vpop.xlane.xlu0 %4516
      %v4518 = vsel %vm1720, %v4495, -inf
      %4519 = vmax.xlane.f32.xlu0 %v4518
      %v4520 = vpop.xlane.xlu0 %4519
      %v4521 = vsel %vm1720, %v4496, -inf
      %4522 = vmax.xlane.f32.xlu0 %v4521
      %v4523 = vpop.xlane.xlu0 %4522
      %v4524 = vsel %vm1720, %v4497, -inf
      %4525 = vmax.xlane.f32.xlu0 %v4524
      %v4526 = vpop.xlane.xlu0 %4525
      %v4527 = vsel %vm1720, %v4498, -inf
      %4528 = vmax.xlane.f32.xlu0 %v4527
      %v4529 = vpop.xlane.xlu0 %4528
      %v4530 = vsel %vm1720, %v4499, -inf
      %4531 = vmax.xlane.f32.xlu0 %v4530
      %v4532 = vpop.xlane.xlu0 %4531
      %v4533 = vsel %vm1720, %v4500, -inf
      %4534 = vmax.xlane.f32.xlu0 %v4533
      %v4535 = vpop.xlane.xlu0 %4534
      %v4536 = vsel %vm1720, %v4501, -inf
      %4537 = vmax.xlane.f32.xlu0 %v4536
      %v4538 = vpop.xlane.xlu0 %4537
      %v4539 = vsel %vm1720, %v4502, -inf
      %4540 = vmax.xlane.f32.xlu0 %v4539
      %v4541 = vpop.xlane.xlu0 %4540
      %v4542 = vsel %vm1720, %v4503, -inf
      %4543 = vmax.xlane.f32.xlu0 %v4542
      %v4544 = vpop.xlane.xlu0 %4543
      %v4545 = vsel %vm1720, %v4504, -inf
      %4546 = vmax.xlane.f32.xlu0 %v4545
      %v4547 = vpop.xlane.xlu0 %4546
      %v4548 = vsel %vm1720, %v4505, -inf
      %4549 = vmax.xlane.f32.xlu0 %v4548
      %v4550 = vpop.xlane.xlu0 %4549
      %v4551 = vsel %vm1720, %v4506, -inf
      %4552 = vmax.xlane.f32.xlu0 %v4551
      %v4553 = vpop.xlane.xlu0 %4552
      %v4554 = vsel %vm1720, %v4507, -inf
      %4555 = vmax.xlane.f32.xlu0 %v4554
      %v4556 = vpop.xlane.xlu0 %4555
      %v4557 = vsel %vm1720, %v4508, -inf
      %4558 = vmax.xlane.f32.xlu0 %v4557
      %v4559 = vpop.xlane.xlu0 %4558
      %v4560 = vsub.f32 %v4492, %v4511
      %v4561 = vsub.f32 %v4493, %v4514
      %v4562 = vsub.f32 %v4494, %v4517
      %v4563 = vsub.f32 %v4495, %v4520
      %v4564 = vsub.f32 %v4496, %v4523
      %v4565 = vsub.f32 %v4497, %v4526
      %v4566 = vsub.f32 %v4498, %v4529
      %v4567 = vsub.f32 %v4499, %v4532
      %v4568 = vsub.f32 %v4500, %v4535
      %v4569 = vsub.f32 %v4501, %v4538
      %v4570 = vsub.f32 %v4502, %v4541
      %v4571 = vsub.f32 %v4503, %v4544
      %v4572 = vsub.f32 %v4504, %v4547
      %v4573 = vsub.f32 %v4505, %v4550
      %v4574 = vsub.f32 %v4506, %v4553
      %v4575 = vsub.f32 %v4507, %v4556
      %v4576 = vsub.f32 %v4508, %v4559
      %v4577 = vmul.f32 %v4560, 1.442695
      %v4578 = vpow.pop %v4577
      %v4579 = vmul.f32 %v4561, 1.442695
      %v4580 = vpow.pop %v4579
      %v4581 = vmul.f32 %v4562, 1.442695
      %v4582 = vpow.pop %v4581
      %v4583 = vmul.f32 %v4563, 1.442695
      %v4584 = vpow.pop %v4583
      %v4585 = vmul.f32 %v4564, 1.442695
      %v4586 = vpow.pop %v4585
      %v4587 = vmul.f32 %v4565, 1.442695
      %v4588 = vpow.pop %v4587
      %v4589 = vmul.f32 %v4566, 1.442695
      %v4590 = vpow.pop %v4589
      %v4591 = vmul.f32 %v4567, 1.442695
      %v4592 = vpow.pop %v4591
      %v4593 = vmul.f32 %v4568, 1.442695
      %v4594 = vpow.pop %v4593
      %v4595 = vmul.f32 %v4569, 1.442695
      %v4596 = vpow.pop %v4595
      %v4597 = vmul.f32 %v4570, 1.442695
      %v4598 = vpow.pop %v4597
      %v4599 = vmul.f32 %v4571, 1.442695
      %v4600 = vpow.pop %v4599
      %v4601 = vmul.f32 %v4572, 1.442695
      %v4602 = vpow.pop %v4601
      %v4603 = vmul.f32 %v4573, 1.442695
      %v4604 = vpow.pop %v4603
      %v4605 = vmul.f32 %v4574, 1.442695
      %v4606 = vpow.pop %v4605
      %v4607 = vmul.f32 %v4575, 1.442695
      %v4608 = vpow.pop %v4607
      %v4609 = vmul.f32 %v4576, 1.442695
      %v4610 = vpow.pop %v4609
      %v4611 = vsel %vm1720, %v4578, 0.0
      %4612 = vadd.xlane.f32.xlu0 %v4611
      %v4613 = vpop.xlane.xlu0 %4612
      %v4614 = vsel %vm1720, %v4580, 0.0
      %4615 = vadd.xlane.f32.xlu0 %v4614
      %v4616 = vpop.xlane.xlu0 %4615
      %v4617 = vsel %vm1720, %v4582, 0.0
      %4618 = vadd.xlane.f32.xlu0 %v4617
      %v4619 = vpop.xlane.xlu0 %4618
      %v4620 = vsel %vm1720, %v4584, 0.0
      %4621 = vadd.xlane.f32.xlu0 %v4620
      %v4622 = vpop.xlane.xlu0 %4621
      %v4623 = vsel %vm1720, %v4586, 0.0
      %4624 = vadd.xlane.f32.xlu0 %v4623
      %v4625 = vpop.xlane.xlu0 %4624
      %v4626 = vsel %vm1720, %v4588, 0.0
      %4627 = vadd.xlane.f32.xlu0 %v4626
      %v4628 = vpop.xlane.xlu0 %4627
      %v4629 = vsel %vm1720, %v4590, 0.0
      %4630 = vadd.xlane.f32.xlu0 %v4629
      %v4631 = vpop.xlane.xlu0 %4630
      %v4632 = vsel %vm1720, %v4592, 0.0
      %4633 = vadd.xlane.f32.xlu0 %v4632
      %v4634 = vpop.xlane.xlu0 %4633
      %v4635 = vsel %vm1720, %v4594, 0.0
      %4636 = vadd.xlane.f32.xlu0 %v4635
      %v4637 = vpop.xlane.xlu0 %4636
      %v4638 = vsel %vm1720, %v4596, 0.0
      %4639 = vadd.xlane.f32.xlu0 %v4638
      %v4640 = vpop.xlane.xlu0 %4639
      %v4641 = vsel %vm1720, %v4598, 0.0
      %4642 = vadd.xlane.f32.xlu0 %v4641
      %v4643 = vpop.xlane.xlu0 %4642
      %v4644 = vsel %vm1720, %v4600, 0.0
      %4645 = vadd.xlane.f32.xlu0 %v4644
      %v4646 = vpop.xlane.xlu0 %4645
      %v4647 = vsel %vm1720, %v4602, 0.0
      %4648 = vadd.xlane.f32.xlu0 %v4647
      %v4649 = vpop.xlane.xlu0 %4648
      %v4650 = vsel %vm1720, %v4604, 0.0
      %4651 = vadd.xlane.f32.xlu0 %v4650
      %v4652 = vpop.xlane.xlu0 %4651
      %v4653 = vsel %vm1720, %v4606, 0.0
      %4654 = vadd.xlane.f32.xlu0 %v4653
      %v4655 = vpop.xlane.xlu0 %4654
      %v4656 = vsel %vm1720, %v4608, 0.0
      %4657 = vadd.xlane.f32.xlu0 %v4656
      %v4658 = vpop.xlane.xlu0 %4657
      %v4659 = vsel %vm1720, %v4610, 0.0
      %4660 = vadd.xlane.f32.xlu0 %v4659
      %v4661 = vpop.xlane.xlu0 %4660
      %v4662 = vrcp.pop %v4613
      %v4663 = vmul.f32 %v4578, %v4662
      %v4664 = vrcp.pop %v4616
      %v4665 = vmul.f32 %v4580, %v4664
      %v4666 = vrcp.pop %v4619
      %v4667 = vmul.f32 %v4582, %v4666
      %v4668 = vrcp.pop %v4622
      %v4669 = vmul.f32 %v4584, %v4668
      %v4670 = vrcp.pop %v4625
      %v4671 = vmul.f32 %v4586, %v4670
      %v4672 = vrcp.pop %v4628
      %v4673 = vmul.f32 %v4588, %v4672
      %v4674 = vrcp.pop %v4631
      %v4675 = vmul.f32 %v4590, %v4674
      %v4676 = vrcp.pop %v4634
      %v4677 = vmul.f32 %v4592, %v4676
      %v4678 = vrcp.pop %v4637
      %v4679 = vmul.f32 %v4594, %v4678
      %v4680 = vrcp.pop %v4640
      %v4681 = vmul.f32 %v4596, %v4680
      %v4682 = vrcp.pop %v4643
      %v4683 = vmul.f32 %v4598, %v4682
      %v4684 = vrcp.pop %v4646
      %v4685 = vmul.f32 %v4600, %v4684
      %v4686 = vrcp.pop %v4649
      %v4687 = vmul.f32 %v4602, %v4686
      %v4688 = vrcp.pop %v4652
      %v4689 = vmul.f32 %v4604, %v4688
      %v4690 = vrcp.pop %v4655
      %v4691 = vmul.f32 %v4606, %v4690
      %v4692 = vrcp.pop %v4658
      %v4693 = vmul.f32 %v4608, %v4692
      %v4694 = vrcp.pop %v4661
      %v4695 = vmul.f32 %v4610, %v4694
      %4697 = vset.pattern.permute.xlu0 0
      %4698 = vperm.xlu0 %4697, %v4663
      %v4699 = vpop.permute.xlu0 %4698
      %4702 = vset.pattern.permute.xlu0 0
      %4703 = vperm.xlu0 %4702, %v4665
      %v4704 = vpop.permute.xlu0 %4703
      %4707 = vset.pattern.permute.xlu0 0
      %4708 = vperm.xlu0 %4707, %v4667
      %v4709 = vpop.permute.xlu0 %4708
      %4712 = vset.pattern.permute.xlu0 0
      %4713 = vperm.xlu0 %4712, %v4669
      %v4714 = vpop.permute.xlu0 %4713
      %4717 = vset.pattern.permute.xlu0 0
      %4718 = vperm.xlu0 %4717, %v4671
      %v4719 = vpop.permute.xlu0 %4718
      %4722 = vset.pattern.permute.xlu0 0
      %4723 = vperm.xlu0 %4722, %v4673
      %v4724 = vpop.permute.xlu0 %4723
      %4727 = vset.pattern.permute.xlu0 0
      %4728 = vperm.xlu0 %4727, %v4675
      %v4729 = vpop.permute.xlu0 %4728
      %4732 = vset.pattern.permute.xlu0 0
      %4733 = vperm.xlu0 %4732, %v4677
      %v4734 = vpop.permute.xlu0 %4733
      %4737 = vset.pattern.permute.xlu0 0
      %4738 = vperm.xlu0 %4737, %v4679
      %v4739 = vpop.permute.xlu0 %4738
      %4742 = vset.pattern.permute.xlu0 0
      %4743 = vperm.xlu0 %4742, %v4681
      %v4744 = vpop.permute.xlu0 %4743
      %4747 = vset.pattern.permute.xlu0 0
      %4748 = vperm.xlu0 %4747, %v4683
      %v4749 = vpop.permute.xlu0 %4748
      %4752 = vset.pattern.permute.xlu0 0
      %4753 = vperm.xlu0 %4752, %v4685
      %v4754 = vpop.permute.xlu0 %4753
      %4757 = vset.pattern.permute.xlu0 0
      %4758 = vperm.xlu0 %4757, %v4687
      %v4759 = vpop.permute.xlu0 %4758
      %4762 = vset.pattern.permute.xlu0 0
      %4763 = vperm.xlu0 %4762, %v4689
      %v4764 = vpop.permute.xlu0 %4763
      %4767 = vset.pattern.permute.xlu0 0
      %4768 = vperm.xlu0 %4767, %v4691
      %v4769 = vpop.permute.xlu0 %4768
      %4772 = vset.pattern.permute.xlu0 0
      %4773 = vperm.xlu0 %4772, %v4693
      %v4774 = vpop.permute.xlu0 %4773
      %4777 = vset.pattern.permute.xlu0 0
      %4778 = vperm.xlu0 %4777, %v4695
      %v4779 = vpop.permute.xlu0 %4778
      %v4781 = vmul.f32 %v4699, %v1058
      %v4782 = vmul.f32 %v4704, %v1062
      %v4783 = vmul.f32 %v4709, %v1066
      %v4784 = vmul.f32 %v4714, %v1070
      %v4785 = vmul.f32 %v4719, %v1074
      %v4786 = vmul.f32 %v4724, %v1078
      %v4787 = vmul.f32 %v4729, %v1082
      %v4788 = vmul.f32 %v4734, %v1086
      %v4789 = vmul.f32 %v4739, %v1090
      %v4790 = vmul.f32 %v4744, %v1094
      %v4791 = vmul.f32 %v4749, %v1098
      %v4792 = vmul.f32 %v4754, %v1102
      %v4793 = vmul.f32 %v4759, %v1106
      %v4794 = vmul.f32 %v4764, %v1110
      %v4795 = vmul.f32 %v4769, %v1114
      %v4796 = vmul.f32 %v4774, %v1118
      %v4797 = vmul.f32 %v4779, %v1122
      %4798 = vset.pattern.permute.xlu0 1
      %4799 = vperm.xlu0 %4798, %v4663
      %v4800 = vpop.permute.xlu0 %4799
      %4802 = vset.pattern.permute.xlu0 1
      %4803 = vperm.xlu0 %4802, %v4665
      %v4804 = vpop.permute.xlu0 %4803
      %4806 = vset.pattern.permute.xlu0 1
      %4807 = vperm.xlu0 %4806, %v4667
      %v4808 = vpop.permute.xlu0 %4807
      %4810 = vset.pattern.permute.xlu0 1
      %4811 = vperm.xlu0 %4810, %v4669
      %v4812 = vpop.permute.xlu0 %4811
      %4814 = vset.pattern.permute.xlu0 1
      %4815 = vperm.xlu0 %4814, %v4671
      %v4816 = vpop.permute.xlu0 %4815
      %4818 = vset.pattern.permute.xlu0 1
      %4819 = vperm.xlu0 %4818, %v4673
      %v4820 = vpop.permute.xlu0 %4819
      %4822 = vset.pattern.permute.xlu0 1
      %4823 = vperm.xlu0 %4822, %v4675
      %v4824 = vpop.permute.xlu0 %4823
      %4826 = vset.pattern.permute.xlu0 1
      %4827 = vperm.xlu0 %4826, %v4677
      %v4828 = vpop.permute.xlu0 %4827
      %4830 = vset.pattern.permute.xlu0 1
      %4831 = vperm.xlu0 %4830, %v4679
      %v4832 = vpop.permute.xlu0 %4831
      %4834 = vset.pattern.permute.xlu0 1
      %4835 = vperm.xlu0 %4834, %v4681
      %v4836 = vpop.permute.xlu0 %4835
      %4838 = vset.pattern.permute.xlu0 1
      %4839 = vperm.xlu0 %4838, %v4683
      %v4840 = vpop.permute.xlu0 %4839
      %4842 = vset.pattern.permute.xlu0 1
      %4843 = vperm.xlu0 %4842, %v4685
      %v4844 = vpop.permute.xlu0 %4843
      %4846 = vset.pattern.permute.xlu0 1
      %4847 = vperm.xlu0 %4846, %v4687
      %v4848 = vpop.permute.xlu0 %4847
      %4850 = vset.pattern.permute.xlu0 1
      %4851 = vperm.xlu0 %4850, %v4689
      %v4852 = vpop.permute.xlu0 %4851
      %4854 = vset.pattern.permute.xlu0 1
      %4855 = vperm.xlu0 %4854, %v4691
      %v4856 = vpop.permute.xlu0 %4855
      %4858 = vset.pattern.permute.xlu0 1
      %4859 = vperm.xlu0 %4858, %v4693
      %v4860 = vpop.permute.xlu0 %4859
      %4862 = vset.pattern.permute.xlu0 1
      %4863 = vperm.xlu0 %4862, %v4695
      %v4864 = vpop.permute.xlu0 %4863
      %v4866 = vmul.f32 %v4800, %v1382
      %v4867 = vmul.f32 %v4804, %v1386
      %v4868 = vmul.f32 %v4808, %v1390
      %v4869 = vmul.f32 %v4812, %v1394
      %v4870 = vmul.f32 %v4816, %v1398
      %v4871 = vmul.f32 %v4820, %v1402
      %v4872 = vmul.f32 %v4824, %v1406
      %v4873 = vmul.f32 %v4828, %v1410
      %v4874 = vmul.f32 %v4832, %v1414
      %v4875 = vmul.f32 %v4836, %v1418
      %v4876 = vmul.f32 %v4840, %v1422
      %v4877 = vmul.f32 %v4844, %v1426
      %v4878 = vmul.f32 %v4848, %v1430
      %v4879 = vmul.f32 %v4852, %v1434
      %v4880 = vmul.f32 %v4856, %v1438
      %v4881 = vmul.f32 %v4860, %v1442
      %v4882 = vmul.f32 %v4864, %v1446
      %v4883 = vadd.f32 %v4781, 0.0
      %v4884 = vadd.f32 %v4782, 0.0
      %v4885 = vadd.f32 %v4783, 0.0
      %v4886 = vadd.f32 %v4784, 0.0
      %v4887 = vadd.f32 %v4785, 0.0
      %v4888 = vadd.f32 %v4786, 0.0
      %v4889 = vadd.f32 %v4787, 0.0
      %v4890 = vadd.f32 %v4788, 0.0
      %v4891 = vadd.f32 %v4789, 0.0
      %v4892 = vadd.f32 %v4790, 0.0
      %v4893 = vadd.f32 %v4791, 0.0
      %v4894 = vadd.f32 %v4792, 0.0
      %v4895 = vadd.f32 %v4793, 0.0
      %v4896 = vadd.f32 %v4794, 0.0
      %v4897 = vadd.f32 %v4795, 0.0
      %v4898 = vadd.f32 %v4796, 0.0
      %v4899 = vadd.f32 %v4797, 0.0
      %v4900 = vadd.f32 %v4883, %v4866
      %v4901 = vadd.f32 %v4884, %v4867
      %v4902 = vadd.f32 %v4885, %v4868
      %v4903 = vadd.f32 %v4886, %v4869
      %v4904 = vadd.f32 %v4887, %v4870
      %v4905 = vadd.f32 %v4888, %v4871
      %v4906 = vadd.f32 %v4889, %v4872
      %v4907 = vadd.f32 %v4890, %v4873
      %v4908 = vadd.f32 %v4891, %v4874
      %v4909 = vadd.f32 %v4892, %v4875
      %v4910 = vadd.f32 %v4893, %v4876
      %v4911 = vadd.f32 %v4894, %v4877
      %v4912 = vadd.f32 %v4895, %v4878
      %v4913 = vadd.f32 %v4896, %v4879
      %v4914 = vadd.f32 %v4897, %v4880
      %v4915 = vadd.f32 %v4898, %v4881
      %v4916 = vadd.f32 %v4899, %v4882
      %4917 = vrot.lane.b32.xlu0 %v2152, 108
      %v4918 = vpop.permute.xlu0 %4917
      %4919 = vrot.lane.b32.xlu0 %v2159, 108
      %v4920 = vpop.permute.xlu0 %4919
      %4921 = vrot.lane.b32.xlu0 %v2166, 108
      %v4922 = vpop.permute.xlu0 %4921
      %4923 = vrot.lane.b32.xlu0 %v2173, 108
      %v4924 = vpop.permute.xlu0 %4923
      %4925 = vrot.lane.b32.xlu0 %v2180, 108
      %v4926 = vpop.permute.xlu0 %4925
      %4927 = vrot.lane.b32.xlu0 %v2187, 108
      %v4928 = vpop.permute.xlu0 %4927
      %4929 = vrot.lane.b32.xlu0 %v2194, 108
      %v4930 = vpop.permute.xlu0 %4929
      %4931 = vrot.lane.b32.xlu0 %v2201, 108
      %v4932 = vpop.permute.xlu0 %4931
      %4933 = vrot.lane.b32.xlu0 %v2208, 108
      %v4934 = vpop.permute.xlu0 %4933
      %4935 = vrot.lane.b32.xlu0 %v2215, 108
      %v4936 = vpop.permute.xlu0 %4935
      %4937 = vrot.lane.b32.xlu0 %v2222, 108
      %v4938 = vpop.permute.xlu0 %4937
      %4939 = vrot.lane.b32.xlu0 %v2229, 108
      %v4940 = vpop.permute.xlu0 %4939
      %4941 = vrot.lane.b32.xlu0 %v2236, 108
      %v4942 = vpop.permute.xlu0 %4941
      %4943 = vrot.lane.b32.xlu0 %v2243, 108
      %v4944 = vpop.permute.xlu0 %4943
      %4945 = vrot.lane.b32.xlu0 %v2250, 108
      %v4946 = vpop.permute.xlu0 %4945
      %4947 = vrot.lane.b32.xlu0 %v2257, 108
      %v4948 = vpop.permute.xlu0 %4947
      %4949 = vrot.lane.b32.xlu0 %v2264, 108
      %v4950 = vpop.permute.xlu0 %4949
      %v4968 = vsel %vm1327, %v4918, 0.0
      %4969 = vadd.xlane.f32.xlu0 %v4968
      %v4970 = vpop.xlane.xlu0 %4969
      %v4971 = vsel %vm1327, %v4920, 0.0
      %4972 = vadd.xlane.f32.xlu0 %v4971
      %v4973 = vpop.xlane.xlu0 %4972
      %v4974 = vsel %vm1327, %v4922, 0.0
      %4975 = vadd.xlane.f32.xlu0 %v4974
      %v4976 = vpop.xlane.xlu0 %4975
      %v4977 = vsel %vm1327, %v4924, 0.0
      %4978 = vadd.xlane.f32.xlu0 %v4977
      %v4979 = vpop.xlane.xlu0 %4978
      %v4980 = vsel %vm1327, %v4926, 0.0
      %4981 = vadd.xlane.f32.xlu0 %v4980
      %v4982 = vpop.xlane.xlu0 %4981
      %v4983 = vsel %vm1327, %v4928, 0.0
      %4984 = vadd.xlane.f32.xlu0 %v4983
      %v4985 = vpop.xlane.xlu0 %4984
      %v4986 = vsel %vm1327, %v4930, 0.0
      %4987 = vadd.xlane.f32.xlu0 %v4986
      %v4988 = vpop.xlane.xlu0 %4987
      %v4989 = vsel %vm1327, %v4932, 0.0
      %4990 = vadd.xlane.f32.xlu0 %v4989
      %v4991 = vpop.xlane.xlu0 %4990
      %v4992 = vsel %vm1327, %v4934, 0.0
      %4993 = vadd.xlane.f32.xlu0 %v4992
      %v4994 = vpop.xlane.xlu0 %4993
      %v4995 = vsel %vm1327, %v4936, 0.0
      %4996 = vadd.xlane.f32.xlu0 %v4995
      %v4997 = vpop.xlane.xlu0 %4996
      %v4998 = vsel %vm1327, %v4938, 0.0
      %4999 = vadd.xlane.f32.xlu0 %v4998
      %v5000 = vpop.xlane.xlu0 %4999
      %v5001 = vsel %vm1327, %v4940, 0.0
      %5002 = vadd.xlane.f32.xlu0 %v5001
      %v5003 = vpop.xlane.xlu0 %5002
      %v5004 = vsel %vm1327, %v4942, 0.0
      %5005 = vadd.xlane.f32.xlu0 %v5004
      %v5006 = vpop.xlane.xlu0 %5005
      %v5007 = vsel %vm1327, %v4944, 0.0
      %5008 = vadd.xlane.f32.xlu0 %v5007
      %v5009 = vpop.xlane.xlu0 %5008
      %v5010 = vsel %vm1327, %v4946, 0.0
      %5011 = vadd.xlane.f32.xlu0 %v5010
      %v5012 = vpop.xlane.xlu0 %5011
      %v5013 = vsel %vm1327, %v4948, 0.0
      %5014 = vadd.xlane.f32.xlu0 %v5013
      %v5015 = vpop.xlane.xlu0 %5014
      %v5016 = vsel %vm1327, %v4950, 0.0
      %5017 = vadd.xlane.f32.xlu0 %v5016
      %v5018 = vpop.xlane.xlu0 %5017
      %5019 = vrot.lane.b32.xlu0 %v2390, 108
      %v5020 = vpop.permute.xlu0 %5019
      %5021 = vrot.lane.b32.xlu0 %v2397, 108
      %v5022 = vpop.permute.xlu0 %5021
      %5023 = vrot.lane.b32.xlu0 %v2404, 108
      %v5024 = vpop.permute.xlu0 %5023
      %5025 = vrot.lane.b32.xlu0 %v2411, 108
      %v5026 = vpop.permute.xlu0 %5025
      %5027 = vrot.lane.b32.xlu0 %v2418, 108
      %v5028 = vpop.permute.xlu0 %5027
      %5029 = vrot.lane.b32.xlu0 %v2425, 108
      %v5030 = vpop.permute.xlu0 %5029
      %5031 = vrot.lane.b32.xlu0 %v2432, 108
      %v5032 = vpop.permute.xlu0 %5031
      %5033 = vrot.lane.b32.xlu0 %v2439, 108
      %v5034 = vpop.permute.xlu0 %5033
      %5035 = vrot.lane.b32.xlu0 %v2446, 108
      %v5036 = vpop.permute.xlu0 %5035
      %5037 = vrot.lane.b32.xlu0 %v2453, 108
      %v5038 = vpop.permute.xlu0 %5037
      %5039 = vrot.lane.b32.xlu0 %v2460, 108
      %v5040 = vpop.permute.xlu0 %5039
      %5041 = vrot.lane.b32.xlu0 %v2467, 108
      %v5042 = vpop.permute.xlu0 %5041
      %5043 = vrot.lane.b32.xlu0 %v2474, 108
      %v5044 = vpop.permute.xlu0 %5043
      %5045 = vrot.lane.b32.xlu0 %v2481, 108
      %v5046 = vpop.permute.xlu0 %5045
      %5047 = vrot.lane.b32.xlu0 %v2488, 108
      %v5048 = vpop.permute.xlu0 %5047
      %5049 = vrot.lane.b32.xlu0 %v2495, 108
      %v5050 = vpop.permute.xlu0 %5049
      %5051 = vrot.lane.b32.xlu0 %v2502, 108
      %v5052 = vpop.permute.xlu0 %5051
      %v5070 = vsel %vm1327, %v5020, 0.0
      %5071 = vadd.xlane.f32.xlu0 %v5070
      %v5072 = vpop.xlane.xlu0 %5071
      %v5073 = vsel %vm1327, %v5022, 0.0
      %5074 = vadd.xlane.f32.xlu0 %v5073
      %v5075 = vpop.xlane.xlu0 %5074
      %v5076 = vsel %vm1327, %v5024, 0.0
      %5077 = vadd.xlane.f32.xlu0 %v5076
      %v5078 = vpop.xlane.xlu0 %5077
      %v5079 = vsel %vm1327, %v5026, 0.0
      %5080 = vadd.xlane.f32.xlu0 %v5079
      %v5081 = vpop.xlane.xlu0 %5080
      %v5082 = vsel %vm1327, %v5028, 0.0
      %5083 = vadd.xlane.f32.xlu0 %v5082
      %v5084 = vpop.xlane.xlu0 %5083
      %v5085 = vsel %vm1327, %v5030, 0.0
      %5086 = vadd.xlane.f32.xlu0 %v5085
      %v5087 = vpop.xlane.xlu0 %5086
      %v5088 = vsel %vm1327, %v5032, 0.0
      %5089 = vadd.xlane.f32.xlu0 %v5088
      %v5090 = vpop.xlane.xlu0 %5089
      %v5091 = vsel %vm1327, %v5034, 0.0
      %5092 = vadd.xlane.f32.xlu0 %v5091
      %v5093 = vpop.xlane.xlu0 %5092
      %v5094 = vsel %vm1327, %v5036, 0.0
      %5095 = vadd.xlane.f32.xlu0 %v5094
      %v5096 = vpop.xlane.xlu0 %5095
      %v5097 = vsel %vm1327, %v5038, 0.0
      %5098 = vadd.xlane.f32.xlu0 %v5097
      %v5099 = vpop.xlane.xlu0 %5098
      %v5100 = vsel %vm1327, %v5040, 0.0
      %5101 = vadd.xlane.f32.xlu0 %v5100
      %v5102 = vpop.xlane.xlu0 %5101
      %v5103 = vsel %vm1327, %v5042, 0.0
      %5104 = vadd.xlane.f32.xlu0 %v5103
      %v5105 = vpop.xlane.xlu0 %5104
      %v5106 = vsel %vm1327, %v5044, 0.0
      %5107 = vadd.xlane.f32.xlu0 %v5106
      %v5108 = vpop.xlane.xlu0 %5107
      %v5109 = vsel %vm1327, %v5046, 0.0
      %5110 = vadd.xlane.f32.xlu0 %v5109
      %v5111 = vpop.xlane.xlu0 %5110
      %v5112 = vsel %vm1327, %v5048, 0.0
      %5113 = vadd.xlane.f32.xlu0 %v5112
      %v5114 = vpop.xlane.xlu0 %5113
      %v5115 = vsel %vm1327, %v5050, 0.0
      %5116 = vadd.xlane.f32.xlu0 %v5115
      %v5117 = vpop.xlane.xlu0 %5116
      %v5118 = vsel %vm1327, %v5052, 0.0
      %5119 = vadd.xlane.f32.xlu0 %v5118
      %v5120 = vpop.xlane.xlu0 %5119
      %v5121 = vsel %vm1702, %v4970, %v5072
      %v5122 = vsel %vm1702, %v4973, %v5075
      %v5123 = vsel %vm1702, %v4976, %v5078
      %v5124 = vsel %vm1702, %v4979, %v5081
      %v5125 = vsel %vm1702, %v4982, %v5084
      %v5126 = vsel %vm1702, %v4985, %v5087
      %v5127 = vsel %vm1702, %v4988, %v5090
      %v5128 = vsel %vm1702, %v4991, %v5093
      %v5129 = vsel %vm1702, %v4994, %v5096
      %v5130 = vsel %vm1702, %v4997, %v5099
      %v5131 = vsel %vm1702, %v5000, %v5102
      %v5132 = vsel %vm1702, %v5003, %v5105
      %v5133 = vsel %vm1702, %v5006, %v5108
      %v5134 = vsel %vm1702, %v5009, %v5111
      %v5135 = vsel %vm1702, %v5012, %v5114
      %v5136 = vsel %vm1702, %v5015, %v5117
      %v5137 = vsel %vm1702, %v5018, %v5120
      %v5138 = vsel %vm1720, %v5121, -inf
      %5139 = vmax.xlane.f32.xlu0 %v5138
      %v5140 = vpop.xlane.xlu0 %5139
      %v5141 = vsel %vm1720, %v5122, -inf
      %5142 = vmax.xlane.f32.xlu0 %v5141
      %v5143 = vpop.xlane.xlu0 %5142
      %v5144 = vsel %vm1720, %v5123, -inf
      %5145 = vmax.xlane.f32.xlu0 %v5144
      %v5146 = vpop.xlane.xlu0 %5145
      %v5147 = vsel %vm1720, %v5124, -inf
      %5148 = vmax.xlane.f32.xlu0 %v5147
      %v5149 = vpop.xlane.xlu0 %5148
      %v5150 = vsel %vm1720, %v5125, -inf
      %5151 = vmax.xlane.f32.xlu0 %v5150
      %v5152 = vpop.xlane.xlu0 %5151
      %v5153 = vsel %vm1720, %v5126, -inf
      %5154 = vmax.xlane.f32.xlu0 %v5153
      %v5155 = vpop.xlane.xlu0 %5154
      %v5156 = vsel %vm1720, %v5127, -inf
      %5157 = vmax.xlane.f32.xlu0 %v5156
      %v5158 = vpop.xlane.xlu0 %5157
      %v5159 = vsel %vm1720, %v5128, -inf
      %5160 = vmax.xlane.f32.xlu0 %v5159
      %v5161 = vpop.xlane.xlu0 %5160
      %v5162 = vsel %vm1720, %v5129, -inf
      %5163 = vmax.xlane.f32.xlu0 %v5162
      %v5164 = vpop.xlane.xlu0 %5163
      %v5165 = vsel %vm1720, %v5130, -inf
      %5166 = vmax.xlane.f32.xlu0 %v5165
      %v5167 = vpop.xlane.xlu0 %5166
      %v5168 = vsel %vm1720, %v5131, -inf
      %5169 = vmax.xlane.f32.xlu0 %v5168
      %v5170 = vpop.xlane.xlu0 %5169
      %v5171 = vsel %vm1720, %v5132, -inf
      %5172 = vmax.xlane.f32.xlu0 %v5171
      %v5173 = vpop.xlane.xlu0 %5172
      %v5174 = vsel %vm1720, %v5133, -inf
      %5175 = vmax.xlane.f32.xlu0 %v5174
      %v5176 = vpop.xlane.xlu0 %5175
      %v5177 = vsel %vm1720, %v5134, -inf
      %5178 = vmax.xlane.f32.xlu0 %v5177
      %v5179 = vpop.xlane.xlu0 %5178
      %v5180 = vsel %vm1720, %v5135, -inf
      %5181 = vmax.xlane.f32.xlu0 %v5180
      %v5182 = vpop.xlane.xlu0 %5181
      %v5183 = vsel %vm1720, %v5136, -inf
      %5184 = vmax.xlane.f32.xlu0 %v5183
      %v5185 = vpop.xlane.xlu0 %5184
      %v5186 = vsel %vm1720, %v5137, -inf
      %5187 = vmax.xlane.f32.xlu0 %v5186
      %v5188 = vpop.xlane.xlu0 %5187
      %v5189 = vsub.f32 %v5121, %v5140
      %v5190 = vsub.f32 %v5122, %v5143
      %v5191 = vsub.f32 %v5123, %v5146
      %v5192 = vsub.f32 %v5124, %v5149
      %v5193 = vsub.f32 %v5125, %v5152
      %v5194 = vsub.f32 %v5126, %v5155
      %v5195 = vsub.f32 %v5127, %v5158
      %v5196 = vsub.f32 %v5128, %v5161
      %v5197 = vsub.f32 %v5129, %v5164
      %v5198 = vsub.f32 %v5130, %v5167
      %v5199 = vsub.f32 %v5131, %v5170
      %v5200 = vsub.f32 %v5132, %v5173
      %v5201 = vsub.f32 %v5133, %v5176
      %v5202 = vsub.f32 %v5134, %v5179
      %v5203 = vsub.f32 %v5135, %v5182
      %v5204 = vsub.f32 %v5136, %v5185
      %v5205 = vsub.f32 %v5137, %v5188
      %v5206 = vmul.f32 %v5189, 1.442695
      %v5207 = vpow.pop %v5206
      %v5208 = vmul.f32 %v5190, 1.442695
      %v5209 = vpow.pop %v5208
      %v5210 = vmul.f32 %v5191, 1.442695
      %v5211 = vpow.pop %v5210
      %v5212 = vmul.f32 %v5192, 1.442695
      %v5213 = vpow.pop %v5212
      %v5214 = vmul.f32 %v5193, 1.442695
      %v5215 = vpow.pop %v5214
      %v5216 = vmul.f32 %v5194, 1.442695
      %v5217 = vpow.pop %v5216
      %v5218 = vmul.f32 %v5195, 1.442695
      %v5219 = vpow.pop %v5218
      %v5220 = vmul.f32 %v5196, 1.442695
      %v5221 = vpow.pop %v5220
      %v5222 = vmul.f32 %v5197, 1.442695
      %v5223 = vpow.pop %v5222
      %v5224 = vmul.f32 %v5198, 1.442695
      %v5225 = vpow.pop %v5224
      %v5226 = vmul.f32 %v5199, 1.442695
      %v5227 = vpow.pop %v5226
      %v5228 = vmul.f32 %v5200, 1.442695
      %v5229 = vpow.pop %v5228
      %v5230 = vmul.f32 %v5201, 1.442695
      %v5231 = vpow.pop %v5230
      %v5232 = vmul.f32 %v5202, 1.442695
      %v5233 = vpow.pop %v5232
      %v5234 = vmul.f32 %v5203, 1.442695
      %v5235 = vpow.pop %v5234
      %v5236 = vmul.f32 %v5204, 1.442695
      %v5237 = vpow.pop %v5236
      %v5238 = vmul.f32 %v5205, 1.442695
      %v5239 = vpow.pop %v5238
      %v5240 = vsel %vm1720, %v5207, 0.0
      %5241 = vadd.xlane.f32.xlu0 %v5240
      %v5242 = vpop.xlane.xlu0 %5241
      %v5243 = vsel %vm1720, %v5209, 0.0
      %5244 = vadd.xlane.f32.xlu0 %v5243
      %v5245 = vpop.xlane.xlu0 %5244
      %v5246 = vsel %vm1720, %v5211, 0.0
      %5247 = vadd.xlane.f32.xlu0 %v5246
      %v5248 = vpop.xlane.xlu0 %5247
      %v5249 = vsel %vm1720, %v5213, 0.0
      %5250 = vadd.xlane.f32.xlu0 %v5249
      %v5251 = vpop.xlane.xlu0 %5250
      %v5252 = vsel %vm1720, %v5215, 0.0
      %5253 = vadd.xlane.f32.xlu0 %v5252
      %v5254 = vpop.xlane.xlu0 %5253
      %v5255 = vsel %vm1720, %v5217, 0.0
      %5256 = vadd.xlane.f32.xlu0 %v5255
      %v5257 = vpop.xlane.xlu0 %5256
      %v5258 = vsel %vm1720, %v5219, 0.0
      %5259 = vadd.xlane.f32.xlu0 %v5258
      %v5260 = vpop.xlane.xlu0 %5259
      %v5261 = vsel %vm1720, %v5221, 0.0
      %5262 = vadd.xlane.f32.xlu0 %v5261
      %v5263 = vpop.xlane.xlu0 %5262
      %v5264 = vsel %vm1720, %v5223, 0.0
      %5265 = vadd.xlane.f32.xlu0 %v5264
      %v5266 = vpop.xlane.xlu0 %5265
      %v5267 = vsel %vm1720, %v5225, 0.0
      %5268 = vadd.xlane.f32.xlu0 %v5267
      %v5269 = vpop.xlane.xlu0 %5268
      %v5270 = vsel %vm1720, %v5227, 0.0
      %5271 = vadd.xlane.f32.xlu0 %v5270
      %v5272 = vpop.xlane.xlu0 %5271
      %v5273 = vsel %vm1720, %v5229, 0.0
      %5274 = vadd.xlane.f32.xlu0 %v5273
      %v5275 = vpop.xlane.xlu0 %5274
      %v5276 = vsel %vm1720, %v5231, 0.0
      %5277 = vadd.xlane.f32.xlu0 %v5276
      %v5278 = vpop.xlane.xlu0 %5277
      %v5279 = vsel %vm1720, %v5233, 0.0
      %5280 = vadd.xlane.f32.xlu0 %v5279
      %v5281 = vpop.xlane.xlu0 %5280
      %v5282 = vsel %vm1720, %v5235, 0.0
      %5283 = vadd.xlane.f32.xlu0 %v5282
      %v5284 = vpop.xlane.xlu0 %5283
      %v5285 = vsel %vm1720, %v5237, 0.0
      %5286 = vadd.xlane.f32.xlu0 %v5285
      %v5287 = vpop.xlane.xlu0 %5286
      %v5288 = vsel %vm1720, %v5239, 0.0
      %5289 = vadd.xlane.f32.xlu0 %v5288
      %v5290 = vpop.xlane.xlu0 %5289
      %v5291 = vrcp.pop %v5242
      %v5292 = vmul.f32 %v5207, %v5291
      %v5293 = vrcp.pop %v5245
      %v5294 = vmul.f32 %v5209, %v5293
      %v5295 = vrcp.pop %v5248
      %v5296 = vmul.f32 %v5211, %v5295
      %v5297 = vrcp.pop %v5251
      %v5298 = vmul.f32 %v5213, %v5297
      %v5299 = vrcp.pop %v5254
      %v5300 = vmul.f32 %v5215, %v5299
      %v5301 = vrcp.pop %v5257
      %v5302 = vmul.f32 %v5217, %v5301
      %v5303 = vrcp.pop %v5260
      %v5304 = vmul.f32 %v5219, %v5303
      %v5305 = vrcp.pop %v5263
      %v5306 = vmul.f32 %v5221, %v5305
      %v5307 = vrcp.pop %v5266
      %v5308 = vmul.f32 %v5223, %v5307
      %v5309 = vrcp.pop %v5269
      %v5310 = vmul.f32 %v5225, %v5309
      %v5311 = vrcp.pop %v5272
      %v5312 = vmul.f32 %v5227, %v5311
      %v5313 = vrcp.pop %v5275
      %v5314 = vmul.f32 %v5229, %v5313
      %v5315 = vrcp.pop %v5278
      %v5316 = vmul.f32 %v5231, %v5315
      %v5317 = vrcp.pop %v5281
      %v5318 = vmul.f32 %v5233, %v5317
      %v5319 = vrcp.pop %v5284
      %v5320 = vmul.f32 %v5235, %v5319
      %v5321 = vrcp.pop %v5287
      %v5322 = vmul.f32 %v5237, %v5321
      %v5323 = vrcp.pop %v5290
      %v5324 = vmul.f32 %v5239, %v5323
      %5326 = vset.pattern.permute.xlu0 0
      %5327 = vperm.xlu0 %5326, %v5292
      %v5328 = vpop.permute.xlu0 %5327
      %5331 = vset.pattern.permute.xlu0 0
      %5332 = vperm.xlu0 %5331, %v5294
      %v5333 = vpop.permute.xlu0 %5332
      %5336 = vset.pattern.permute.xlu0 0
      %5337 = vperm.xlu0 %5336, %v5296
      %v5338 = vpop.permute.xlu0 %5337
      %5341 = vset.pattern.permute.xlu0 0
      %5342 = vperm.xlu0 %5341, %v5298
      %v5343 = vpop.permute.xlu0 %5342
      %5346 = vset.pattern.permute.xlu0 0
      %5347 = vperm.xlu0 %5346, %v5300
      %v5348 = vpop.permute.xlu0 %5347
      %5351 = vset.pattern.permute.xlu0 0
      %5352 = vperm.xlu0 %5351, %v5302
      %v5353 = vpop.permute.xlu0 %5352
      %5356 = vset.pattern.permute.xlu0 0
      %5357 = vperm.xlu0 %5356, %v5304
      %v5358 = vpop.permute.xlu0 %5357
      %5361 = vset.pattern.permute.xlu0 0
      %5362 = vperm.xlu0 %5361, %v5306
      %v5363 = vpop.permute.xlu0 %5362
      %5366 = vset.pattern.permute.xlu0 0
      %5367 = vperm.xlu0 %5366, %v5308
      %v5368 = vpop.permute.xlu0 %5367
      %5371 = vset.pattern.permute.xlu0 0
      %5372 = vperm.xlu0 %5371, %v5310
      %v5373 = vpop.permute.xlu0 %5372
      %5376 = vset.pattern.permute.xlu0 0
      %5377 = vperm.xlu0 %5376, %v5312
      %v5378 = vpop.permute.xlu0 %5377
      %5381 = vset.pattern.permute.xlu0 0
      %5382 = vperm.xlu0 %5381, %v5314
      %v5383 = vpop.permute.xlu0 %5382
      %5386 = vset.pattern.permute.xlu0 0
      %5387 = vperm.xlu0 %5386, %v5316
      %v5388 = vpop.permute.xlu0 %5387
      %5391 = vset.pattern.permute.xlu0 0
      %5392 = vperm.xlu0 %5391, %v5318
      %v5393 = vpop.permute.xlu0 %5392
      %5396 = vset.pattern.permute.xlu0 0
      %5397 = vperm.xlu0 %5396, %v5320
      %v5398 = vpop.permute.xlu0 %5397
      %5401 = vset.pattern.permute.xlu0 0
      %5402 = vperm.xlu0 %5401, %v5322
      %v5403 = vpop.permute.xlu0 %5402
      %5406 = vset.pattern.permute.xlu0 0
      %5407 = vperm.xlu0 %5406, %v5324
      %v5408 = vpop.permute.xlu0 %5407
      %v5410 = vmul.f32 %v5328, %v1058
      %v5411 = vmul.f32 %v5333, %v1062
      %v5412 = vmul.f32 %v5338, %v1066
      %v5413 = vmul.f32 %v5343, %v1070
      %v5414 = vmul.f32 %v5348, %v1074
      %v5415 = vmul.f32 %v5353, %v1078
      %v5416 = vmul.f32 %v5358, %v1082
      %v5417 = vmul.f32 %v5363, %v1086
      %v5418 = vmul.f32 %v5368, %v1090
      %v5419 = vmul.f32 %v5373, %v1094
      %v5420 = vmul.f32 %v5378, %v1098
      %v5421 = vmul.f32 %v5383, %v1102
      %v5422 = vmul.f32 %v5388, %v1106
      %v5423 = vmul.f32 %v5393, %v1110
      %v5424 = vmul.f32 %v5398, %v1114
      %v5425 = vmul.f32 %v5403, %v1118
      %v5426 = vmul.f32 %v5408, %v1122
      %5427 = vset.pattern.permute.xlu0 1
      %5428 = vperm.xlu0 %5427, %v5292
      %v5429 = vpop.permute.xlu0 %5428
      %5431 = vset.pattern.permute.xlu0 1
      %5432 = vperm.xlu0 %5431, %v5294
      %v5433 = vpop.permute.xlu0 %5432
      %5435 = vset.pattern.permute.xlu0 1
      %5436 = vperm.xlu0 %5435, %v5296
      %v5437 = vpop.permute.xlu0 %5436
      %5439 = vset.pattern.permute.xlu0 1
      %5440 = vperm.xlu0 %5439, %v5298
      %v5441 = vpop.permute.xlu0 %5440
      %5443 = vset.pattern.permute.xlu0 1
      %5444 = vperm.xlu0 %5443, %v5300
      %v5445 = vpop.permute.xlu0 %5444
      %5447 = vset.pattern.permute.xlu0 1
      %5448 = vperm.xlu0 %5447, %v5302
      %v5449 = vpop.permute.xlu0 %5448
      %5451 = vset.pattern.permute.xlu0 1
      %5452 = vperm.xlu0 %5451, %v5304
      %v5453 = vpop.permute.xlu0 %5452
      %5455 = vset.pattern.permute.xlu0 1
      %5456 = vperm.xlu0 %5455, %v5306
      %v5457 = vpop.permute.xlu0 %5456
      %5459 = vset.pattern.permute.xlu0 1
      %5460 = vperm.xlu0 %5459, %v5308
      %v5461 = vpop.permute.xlu0 %5460
      %5463 = vset.pattern.permute.xlu0 1
      %5464 = vperm.xlu0 %5463, %v5310
      %v5465 = vpop.permute.xlu0 %5464
      %5467 = vset.pattern.permute.xlu0 1
      %5468 = vperm.xlu0 %5467, %v5312
      %v5469 = vpop.permute.xlu0 %5468
      %5471 = vset.pattern.permute.xlu0 1
      %5472 = vperm.xlu0 %5471, %v5314
      %v5473 = vpop.permute.xlu0 %5472
      %5475 = vset.pattern.permute.xlu0 1
      %5476 = vperm.xlu0 %5475, %v5316
      %v5477 = vpop.permute.xlu0 %5476
      %5479 = vset.pattern.permute.xlu0 1
      %5480 = vperm.xlu0 %5479, %v5318
      %v5481 = vpop.permute.xlu0 %5480
      %5483 = vset.pattern.permute.xlu0 1
      %5484 = vperm.xlu0 %5483, %v5320
      %v5485 = vpop.permute.xlu0 %5484
      %5487 = vset.pattern.permute.xlu0 1
      %5488 = vperm.xlu0 %5487, %v5322
      %v5489 = vpop.permute.xlu0 %5488
      %5491 = vset.pattern.permute.xlu0 1
      %5492 = vperm.xlu0 %5491, %v5324
      %v5493 = vpop.permute.xlu0 %5492
      %v5495 = vmul.f32 %v5429, %v1382
      %v5496 = vmul.f32 %v5433, %v1386
      %v5497 = vmul.f32 %v5437, %v1390
      %v5498 = vmul.f32 %v5441, %v1394
      %v5499 = vmul.f32 %v5445, %v1398
      %v5500 = vmul.f32 %v5449, %v1402
      %v5501 = vmul.f32 %v5453, %v1406
      %v5502 = vmul.f32 %v5457, %v1410
      %v5503 = vmul.f32 %v5461, %v1414
      %v5504 = vmul.f32 %v5465, %v1418
      %v5505 = vmul.f32 %v5469, %v1422
      %v5506 = vmul.f32 %v5473, %v1426
      %v5507 = vmul.f32 %v5477, %v1430
      %v5508 = vmul.f32 %v5481, %v1434
      %v5509 = vmul.f32 %v5485, %v1438
      %v5510 = vmul.f32 %v5489, %v1442
      %v5511 = vmul.f32 %v5493, %v1446
      %v5512 = vadd.f32 %v5410, 0.0
      %v5513 = vadd.f32 %v5411, 0.0
      %v5514 = vadd.f32 %v5412, 0.0
      %v5515 = vadd.f32 %v5413, 0.0
      %v5516 = vadd.f32 %v5414, 0.0
      %v5517 = vadd.f32 %v5415, 0.0
      %v5518 = vadd.f32 %v5416, 0.0
      %v5519 = vadd.f32 %v5417, 0.0
      %v5520 = vadd.f32 %v5418, 0.0
      %v5521 = vadd.f32 %v5419, 0.0
      %v5522 = vadd.f32 %v5420, 0.0
      %v5523 = vadd.f32 %v5421, 0.0
      %v5524 = vadd.f32 %v5422, 0.0
      %v5525 = vadd.f32 %v5423, 0.0
      %v5526 = vadd.f32 %v5424, 0.0
      %v5527 = vadd.f32 %v5425, 0.0
      %v5528 = vadd.f32 %v5426, 0.0
      %v5529 = vadd.f32 %v5512, %v5495
      %v5530 = vadd.f32 %v5513, %v5496
      %v5531 = vadd.f32 %v5514, %v5497
      %v5532 = vadd.f32 %v5515, %v5498
      %v5533 = vadd.f32 %v5516, %v5499
      %v5534 = vadd.f32 %v5517, %v5500
      %v5535 = vadd.f32 %v5518, %v5501
      %v5536 = vadd.f32 %v5519, %v5502
      %v5537 = vadd.f32 %v5520, %v5503
      %v5538 = vadd.f32 %v5521, %v5504
      %v5539 = vadd.f32 %v5522, %v5505
      %v5540 = vadd.f32 %v5523, %v5506
      %v5541 = vadd.f32 %v5524, %v5507
      %v5542 = vadd.f32 %v5525, %v5508
      %v5543 = vadd.f32 %v5526, %v5509
      %v5544 = vadd.f32 %v5527, %v5510
      %v5545 = vadd.f32 %v5528, %v5511
      %5546 = vrot.lane.b32.xlu0 %v2152, 104
      %v5547 = vpop.permute.xlu0 %5546
      %5548 = vrot.lane.b32.xlu0 %v2159, 104
      %v5549 = vpop.permute.xlu0 %5548
      %5550 = vrot.lane.b32.xlu0 %v2166, 104
      %v5551 = vpop.permute.xlu0 %5550
      %5552 = vrot.lane.b32.xlu0 %v2173, 104
      %v5553 = vpop.permute.xlu0 %5552
      %5554 = vrot.lane.b32.xlu0 %v2180, 104
      %v5555 = vpop.permute.xlu0 %5554
      %5556 = vrot.lane.b32.xlu0 %v2187, 104
      %v5557 = vpop.permute.xlu0 %5556
      %5558 = vrot.lane.b32.xlu0 %v2194, 104
      %v5559 = vpop.permute.xlu0 %5558
      %5560 = vrot.lane.b32.xlu0 %v2201, 104
      %v5561 = vpop.permute.xlu0 %5560
      %5562 = vrot.lane.b32.xlu0 %v2208, 104
      %v5563 = vpop.permute.xlu0 %5562
      %5564 = vrot.lane.b32.xlu0 %v2215, 104
      %v5565 = vpop.permute.xlu0 %5564
      %5566 = vrot.lane.b32.xlu0 %v2222, 104
      %v5567 = vpop.permute.xlu0 %5566
      %5568 = vrot.lane.b32.xlu0 %v2229, 104
      %v5569 = vpop.permute.xlu0 %5568
      %5570 = vrot.lane.b32.xlu0 %v2236, 104
      %v5571 = vpop.permute.xlu0 %5570
      %5572 = vrot.lane.b32.xlu0 %v2243, 104
      %v5573 = vpop.permute.xlu0 %5572
      %5574 = vrot.lane.b32.xlu0 %v2250, 104
      %v5575 = vpop.permute.xlu0 %5574
      %5576 = vrot.lane.b32.xlu0 %v2257, 104
      %v5577 = vpop.permute.xlu0 %5576
      %5578 = vrot.lane.b32.xlu0 %v2264, 104
      %v5579 = vpop.permute.xlu0 %5578
      %v5597 = vsel %vm1327, %v5547, 0.0
      %5598 = vadd.xlane.f32.xlu0 %v5597
      %v5599 = vpop.xlane.xlu0 %5598
      %v5600 = vsel %vm1327, %v5549, 0.0
      %5601 = vadd.xlane.f32.xlu0 %v5600
      %v5602 = vpop.xlane.xlu0 %5601
      %v5603 = vsel %vm1327, %v5551, 0.0
      %5604 = vadd.xlane.f32.xlu0 %v5603
      %v5605 = vpop.xlane.xlu0 %5604
      %v5606 = vsel %vm1327, %v5553, 0.0
      %5607 = vadd.xlane.f32.xlu0 %v5606
      %v5608 = vpop.xlane.xlu0 %5607
      %v5609 = vsel %vm1327, %v5555, 0.0
      %5610 = vadd.xlane.f32.xlu0 %v5609
      %v5611 = vpop.xlane.xlu0 %5610
      %v5612 = vsel %vm1327, %v5557, 0.0
      %5613 = vadd.xlane.f32.xlu0 %v5612
      %v5614 = vpop.xlane.xlu0 %5613
      %v5615 = vsel %vm1327, %v5559, 0.0
      %5616 = vadd.xlane.f32.xlu0 %v5615
      %v5617 = vpop.xlane.xlu0 %5616
      %v5618 = vsel %vm1327, %v5561, 0.0
      %5619 = vadd.xlane.f32.xlu0 %v5618
      %v5620 = vpop.xlane.xlu0 %5619
      %v5621 = vsel %vm1327, %v5563, 0.0
      %5622 = vadd.xlane.f32.xlu0 %v5621
      %v5623 = vpop.xlane.xlu0 %5622
      %v5624 = vsel %vm1327, %v5565, 0.0
      %5625 = vadd.xlane.f32.xlu0 %v5624
      %v5626 = vpop.xlane.xlu0 %5625
      %v5627 = vsel %vm1327, %v5567, 0.0
      %5628 = vadd.xlane.f32.xlu0 %v5627
      %v5629 = vpop.xlane.xlu0 %5628
      %v5630 = vsel %vm1327, %v5569, 0.0
      %5631 = vadd.xlane.f32.xlu0 %v5630
      %v5632 = vpop.xlane.xlu0 %5631
      %v5633 = vsel %vm1327, %v5571, 0.0
      %5634 = vadd.xlane.f32.xlu0 %v5633
      %v5635 = vpop.xlane.xlu0 %5634
      %v5636 = vsel %vm1327, %v5573, 0.0
      %5637 = vadd.xlane.f32.xlu0 %v5636
      %v5638 = vpop.xlane.xlu0 %5637
      %v5639 = vsel %vm1327, %v5575, 0.0
      %5640 = vadd.xlane.f32.xlu0 %v5639
      %v5641 = vpop.xlane.xlu0 %5640
      %v5642 = vsel %vm1327, %v5577, 0.0
      %5643 = vadd.xlane.f32.xlu0 %v5642
      %v5644 = vpop.xlane.xlu0 %5643
      %v5645 = vsel %vm1327, %v5579, 0.0
      %5646 = vadd.xlane.f32.xlu0 %v5645
      %v5647 = vpop.xlane.xlu0 %5646
      %5648 = vrot.lane.b32.xlu0 %v2390, 104
      %v5649 = vpop.permute.xlu0 %5648
      %5650 = vrot.lane.b32.xlu0 %v2397, 104
      %v5651 = vpop.permute.xlu0 %5650
      %5652 = vrot.lane.b32.xlu0 %v2404, 104
      %v5653 = vpop.permute.xlu0 %5652
      %5654 = vrot.lane.b32.xlu0 %v2411, 104
      %v5655 = vpop.permute.xlu0 %5654
      %5656 = vrot.lane.b32.xlu0 %v2418, 104
      %v5657 = vpop.permute.xlu0 %5656
      %5658 = vrot.lane.b32.xlu0 %v2425, 104
      %v5659 = vpop.permute.xlu0 %5658
      %5660 = vrot.lane.b32.xlu0 %v2432, 104
      %v5661 = vpop.permute.xlu0 %5660
      %5662 = vrot.lane.b32.xlu0 %v2439, 104
      %v5663 = vpop.permute.xlu0 %5662
      %5664 = vrot.lane.b32.xlu0 %v2446, 104
      %v5665 = vpop.permute.xlu0 %5664
      %5666 = vrot.lane.b32.xlu0 %v2453, 104
      %v5667 = vpop.permute.xlu0 %5666
      %5668 = vrot.lane.b32.xlu0 %v2460, 104
      %v5669 = vpop.permute.xlu0 %5668
      %5670 = vrot.lane.b32.xlu0 %v2467, 104
      %v5671 = vpop.permute.xlu0 %5670
      %5672 = vrot.lane.b32.xlu0 %v2474, 104
      %v5673 = vpop.permute.xlu0 %5672
      %5674 = vrot.lane.b32.xlu0 %v2481, 104
      %v5675 = vpop.permute.xlu0 %5674
      %5676 = vrot.lane.b32.xlu0 %v2488, 104
      %v5677 = vpop.permute.xlu0 %5676
      %5678 = vrot.lane.b32.xlu0 %v2495, 104
      %v5679 = vpop.permute.xlu0 %5678
      %5680 = vrot.lane.b32.xlu0 %v2502, 104
      %v5681 = vpop.permute.xlu0 %5680
      %v5699 = vsel %vm1327, %v5649, 0.0
      %5700 = vadd.xlane.f32.xlu0 %v5699
      %v5701 = vpop.xlane.xlu0 %5700
      %v5702 = vsel %vm1327, %v5651, 0.0
      %5703 = vadd.xlane.f32.xlu0 %v5702
      %v5704 = vpop.xlane.xlu0 %5703
      %v5705 = vsel %vm1327, %v5653, 0.0
      %5706 = vadd.xlane.f32.xlu0 %v5705
      %v5707 = vpop.xlane.xlu0 %5706
      %v5708 = vsel %vm1327, %v5655, 0.0
      %5709 = vadd.xlane.f32.xlu0 %v5708
      %v5710 = vpop.xlane.xlu0 %5709
      %v5711 = vsel %vm1327, %v5657, 0.0
      %5712 = vadd.xlane.f32.xlu0 %v5711
      %v5713 = vpop.xlane.xlu0 %5712
      %v5714 = vsel %vm1327, %v5659, 0.0
      %5715 = vadd.xlane.f32.xlu0 %v5714
      %v5716 = vpop.xlane.xlu0 %5715
      %v5717 = vsel %vm1327, %v5661, 0.0
      %5718 = vadd.xlane.f32.xlu0 %v5717
      %v5719 = vpop.xlane.xlu0 %5718
      %v5720 = vsel %vm1327, %v5663, 0.0
      %5721 = vadd.xlane.f32.xlu0 %v5720
      %v5722 = vpop.xlane.xlu0 %5721
      %v5723 = vsel %vm1327, %v5665, 0.0
      %5724 = vadd.xlane.f32.xlu0 %v5723
      %v5725 = vpop.xlane.xlu0 %5724
      %v5726 = vsel %vm1327, %v5667, 0.0
      %5727 = vadd.xlane.f32.xlu0 %v5726
      %v5728 = vpop.xlane.xlu0 %5727
      %v5729 = vsel %vm1327, %v5669, 0.0
      %5730 = vadd.xlane.f32.xlu0 %v5729
      %v5731 = vpop.xlane.xlu0 %5730
      %v5732 = vsel %vm1327, %v5671, 0.0
      %5733 = vadd.xlane.f32.xlu0 %v5732
      %v5734 = vpop.xlane.xlu0 %5733
      %v5735 = vsel %vm1327, %v5673, 0.0
      %5736 = vadd.xlane.f32.xlu0 %v5735
      %v5737 = vpop.xlane.xlu0 %5736
      %v5738 = vsel %vm1327, %v5675, 0.0
      %5739 = vadd.xlane.f32.xlu0 %v5738
      %v5740 = vpop.xlane.xlu0 %5739
      %v5741 = vsel %vm1327, %v5677, 0.0
      %5742 = vadd.xlane.f32.xlu0 %v5741
      %v5743 = vpop.xlane.xlu0 %5742
      %v5744 = vsel %vm1327, %v5679, 0.0
      %5745 = vadd.xlane.f32.xlu0 %v5744
      %v5746 = vpop.xlane.xlu0 %5745
      %v5747 = vsel %vm1327, %v5681, 0.0
      %5748 = vadd.xlane.f32.xlu0 %v5747
      %v5749 = vpop.xlane.xlu0 %5748
      %v5750 = vsel %vm1702, %v5599, %v5701
      %v5751 = vsel %vm1702, %v5602, %v5704
      %v5752 = vsel %vm1702, %v5605, %v5707
      %v5753 = vsel %vm1702, %v5608, %v5710
      %v5754 = vsel %vm1702, %v5611, %v5713
      %v5755 = vsel %vm1702, %v5614, %v5716
      %v5756 = vsel %vm1702, %v5617, %v5719
      %v5757 = vsel %vm1702, %v5620, %v5722
      %v5758 = vsel %vm1702, %v5623, %v5725
      %v5759 = vsel %vm1702, %v5626, %v5728
      %v5760 = vsel %vm1702, %v5629, %v5731
      %v5761 = vsel %vm1702, %v5632, %v5734
      %v5762 = vsel %vm1702, %v5635, %v5737
      %v5763 = vsel %vm1702, %v5638, %v5740
      %v5764 = vsel %vm1702, %v5641, %v5743
      %v5765 = vsel %vm1702, %v5644, %v5746
      %v5766 = vsel %vm1702, %v5647, %v5749
      %v5767 = vsel %vm1720, %v5750, -inf
      %5768 = vmax.xlane.f32.xlu0 %v5767
      %v5769 = vpop.xlane.xlu0 %5768
      %v5770 = vsel %vm1720, %v5751, -inf
      %5771 = vmax.xlane.f32.xlu0 %v5770
      %v5772 = vpop.xlane.xlu0 %5771
      %v5773 = vsel %vm1720, %v5752, -inf
      %5774 = vmax.xlane.f32.xlu0 %v5773
      %v5775 = vpop.xlane.xlu0 %5774
      %v5776 = vsel %vm1720, %v5753, -inf
      %5777 = vmax.xlane.f32.xlu0 %v5776
      %v5778 = vpop.xlane.xlu0 %5777
      %v5779 = vsel %vm1720, %v5754, -inf
      %5780 = vmax.xlane.f32.xlu0 %v5779
      %v5781 = vpop.xlane.xlu0 %5780
      %v5782 = vsel %vm1720, %v5755, -inf
      %5783 = vmax.xlane.f32.xlu0 %v5782
      %v5784 = vpop.xlane.xlu0 %5783
      %v5785 = vsel %vm1720, %v5756, -inf
      %5786 = vmax.xlane.f32.xlu0 %v5785
      %v5787 = vpop.xlane.xlu0 %5786
      %v5788 = vsel %vm1720, %v5757, -inf
      %5789 = vmax.xlane.f32.xlu0 %v5788
      %v5790 = vpop.xlane.xlu0 %5789
      %v5791 = vsel %vm1720, %v5758, -inf
      %5792 = vmax.xlane.f32.xlu0 %v5791
      %v5793 = vpop.xlane.xlu0 %5792
      %v5794 = vsel %vm1720, %v5759, -inf
      %5795 = vmax.xlane.f32.xlu0 %v5794
      %v5796 = vpop.xlane.xlu0 %5795
      %v5797 = vsel %vm1720, %v5760, -inf
      %5798 = vmax.xlane.f32.xlu0 %v5797
      %v5799 = vpop.xlane.xlu0 %5798
      %v5800 = vsel %vm1720, %v5761, -inf
      %5801 = vmax.xlane.f32.xlu0 %v5800
      %v5802 = vpop.xlane.xlu0 %5801
      %v5803 = vsel %vm1720, %v5762, -inf
      %5804 = vmax.xlane.f32.xlu0 %v5803
      %v5805 = vpop.xlane.xlu0 %5804
      %v5806 = vsel %vm1720, %v5763, -inf
      %5807 = vmax.xlane.f32.xlu0 %v5806
      %v5808 = vpop.xlane.xlu0 %5807
      %v5809 = vsel %vm1720, %v5764, -inf
      %5810 = vmax.xlane.f32.xlu0 %v5809
      %v5811 = vpop.xlane.xlu0 %5810
      %v5812 = vsel %vm1720, %v5765, -inf
      %5813 = vmax.xlane.f32.xlu0 %v5812
      %v5814 = vpop.xlane.xlu0 %5813
      %v5815 = vsel %vm1720, %v5766, -inf
      %5816 = vmax.xlane.f32.xlu0 %v5815
      %v5817 = vpop.xlane.xlu0 %5816
      %v5818 = vsub.f32 %v5750, %v5769
      %v5819 = vsub.f32 %v5751, %v5772
      %v5820 = vsub.f32 %v5752, %v5775
      %v5821 = vsub.f32 %v5753, %v5778
      %v5822 = vsub.f32 %v5754, %v5781
      %v5823 = vsub.f32 %v5755, %v5784
      %v5824 = vsub.f32 %v5756, %v5787
      %v5825 = vsub.f32 %v5757, %v5790
      %v5826 = vsub.f32 %v5758, %v5793
      %v5827 = vsub.f32 %v5759, %v5796
      %v5828 = vsub.f32 %v5760, %v5799
      %v5829 = vsub.f32 %v5761, %v5802
      %v5830 = vsub.f32 %v5762, %v5805
      %v5831 = vsub.f32 %v5763, %v5808
      %v5832 = vsub.f32 %v5764, %v5811
      %v5833 = vsub.f32 %v5765, %v5814
      %v5834 = vsub.f32 %v5766, %v5817
      %v5835 = vmul.f32 %v5818, 1.442695
      %v5836 = vpow.pop %v5835
      %v5837 = vmul.f32 %v5819, 1.442695
      %v5838 = vpow.pop %v5837
      %v5839 = vmul.f32 %v5820, 1.442695
      %v5840 = vpow.pop %v5839
      %v5841 = vmul.f32 %v5821, 1.442695
      %v5842 = vpow.pop %v5841
      %v5843 = vmul.f32 %v5822, 1.442695
      %v5844 = vpow.pop %v5843
      %v5845 = vmul.f32 %v5823, 1.442695
      %v5846 = vpow.pop %v5845
      %v5847 = vmul.f32 %v5824, 1.442695
      %v5848 = vpow.pop %v5847
      %v5849 = vmul.f32 %v5825, 1.442695
      %v5850 = vpow.pop %v5849
      %v5851 = vmul.f32 %v5826, 1.442695
      %v5852 = vpow.pop %v5851
      %v5853 = vmul.f32 %v5827, 1.442695
      %v5854 = vpow.pop %v5853
      %v5855 = vmul.f32 %v5828, 1.442695
      %v5856 = vpow.pop %v5855
      %v5857 = vmul.f32 %v5829, 1.442695
      %v5858 = vpow.pop %v5857
      %v5859 = vmul.f32 %v5830, 1.442695
      %v5860 = vpow.pop %v5859
      %v5861 = vmul.f32 %v5831, 1.442695
      %v5862 = vpow.pop %v5861
      %v5863 = vmul.f32 %v5832, 1.442695
      %v5864 = vpow.pop %v5863
      %v5865 = vmul.f32 %v5833, 1.442695
      %v5866 = vpow.pop %v5865
      %v5867 = vmul.f32 %v5834, 1.442695
      %v5868 = vpow.pop %v5867
      %v5869 = vsel %vm1720, %v5836, 0.0
      %5870 = vadd.xlane.f32.xlu0 %v5869
      %v5871 = vpop.xlane.xlu0 %5870
      %v5872 = vsel %vm1720, %v5838, 0.0
      %5873 = vadd.xlane.f32.xlu0 %v5872
      %v5874 = vpop.xlane.xlu0 %5873
      %v5875 = vsel %vm1720, %v5840, 0.0
      %5876 = vadd.xlane.f32.xlu0 %v5875
      %v5877 = vpop.xlane.xlu0 %5876
      %v5878 = vsel %vm1720, %v5842, 0.0
      %5879 = vadd.xlane.f32.xlu0 %v5878
      %v5880 = vpop.xlane.xlu0 %5879
      %v5881 = vsel %vm1720, %v5844, 0.0
      %5882 = vadd.xlane.f32.xlu0 %v5881
      %v5883 = vpop.xlane.xlu0 %5882
      %v5884 = vsel %vm1720, %v5846, 0.0
      %5885 = vadd.xlane.f32.xlu0 %v5884
      %v5886 = vpop.xlane.xlu0 %5885
      %v5887 = vsel %vm1720, %v5848, 0.0
      %5888 = vadd.xlane.f32.xlu0 %v5887
      %v5889 = vpop.xlane.xlu0 %5888
      %v5890 = vsel %vm1720, %v5850, 0.0
      %5891 = vadd.xlane.f32.xlu0 %v5890
      %v5892 = vpop.xlane.xlu0 %5891
      %v5893 = vsel %vm1720, %v5852, 0.0
      %5894 = vadd.xlane.f32.xlu0 %v5893
      %v5895 = vpop.xlane.xlu0 %5894
      %v5896 = vsel %vm1720, %v5854, 0.0
      %5897 = vadd.xlane.f32.xlu0 %v5896
      %v5898 = vpop.xlane.xlu0 %5897
      %v5899 = vsel %vm1720, %v5856, 0.0
      %5900 = vadd.xlane.f32.xlu0 %v5899
      %v5901 = vpop.xlane.xlu0 %5900
      %v5902 = vsel %vm1720, %v5858, 0.0
      %5903 = vadd.xlane.f32.xlu0 %v5902
      %v5904 = vpop.xlane.xlu0 %5903
      %v5905 = vsel %vm1720, %v5860, 0.0
      %5906 = vadd.xlane.f32.xlu0 %v5905
      %v5907 = vpop.xlane.xlu0 %5906
      %v5908 = vsel %vm1720, %v5862, 0.0
      %5909 = vadd.xlane.f32.xlu0 %v5908
      %v5910 = vpop.xlane.xlu0 %5909
      %v5911 = vsel %vm1720, %v5864, 0.0
      %5912 = vadd.xlane.f32.xlu0 %v5911
      %v5913 = vpop.xlane.xlu0 %5912
      %v5914 = vsel %vm1720, %v5866, 0.0
      %5915 = vadd.xlane.f32.xlu0 %v5914
      %v5916 = vpop.xlane.xlu0 %5915
      %v5917 = vsel %vm1720, %v5868, 0.0
      %5918 = vadd.xlane.f32.xlu0 %v5917
      %v5919 = vpop.xlane.xlu0 %5918
      %v5920 = vrcp.pop %v5871
      %v5921 = vmul.f32 %v5836, %v5920
      %v5922 = vrcp.pop %v5874
      %v5923 = vmul.f32 %v5838, %v5922
      %v5924 = vrcp.pop %v5877
      %v5925 = vmul.f32 %v5840, %v5924
      %v5926 = vrcp.pop %v5880
      %v5927 = vmul.f32 %v5842, %v5926
      %v5928 = vrcp.pop %v5883
      %v5929 = vmul.f32 %v5844, %v5928
      %v5930 = vrcp.pop %v5886
      %v5931 = vmul.f32 %v5846, %v5930
      %v5932 = vrcp.pop %v5889
      %v5933 = vmul.f32 %v5848, %v5932
      %v5934 = vrcp.pop %v5892
      %v5935 = vmul.f32 %v5850, %v5934
      %v5936 = vrcp.pop %v5895
      %v5937 = vmul.f32 %v5852, %v5936
      %v5938 = vrcp.pop %v5898
      %v5939 = vmul.f32 %v5854, %v5938
      %v5940 = vrcp.pop %v5901
      %v5941 = vmul.f32 %v5856, %v5940
      %v5942 = vrcp.pop %v5904
      %v5943 = vmul.f32 %v5858, %v5942
      %v5944 = vrcp.pop %v5907
      %v5945 = vmul.f32 %v5860, %v5944
      %v5946 = vrcp.pop %v5910
      %v5947 = vmul.f32 %v5862, %v5946
      %v5948 = vrcp.pop %v5913
      %v5949 = vmul.f32 %v5864, %v5948
      %v5950 = vrcp.pop %v5916
      %v5951 = vmul.f32 %v5866, %v5950
      %v5952 = vrcp.pop %v5919
      %v5953 = vmul.f32 %v5868, %v5952
      %5955 = vset.pattern.permute.xlu0 0
      %5956 = vperm.xlu0 %5955, %v5921
      %v5957 = vpop.permute.xlu0 %5956
      %5960 = vset.pattern.permute.xlu0 0
      %5961 = vperm.xlu0 %5960, %v5923
      %v5962 = vpop.permute.xlu0 %5961
      %5965 = vset.pattern.permute.xlu0 0
      %5966 = vperm.xlu0 %5965, %v5925
      %v5967 = vpop.permute.xlu0 %5966
      %5970 = vset.pattern.permute.xlu0 0
      %5971 = vperm.xlu0 %5970, %v5927
      %v5972 = vpop.permute.xlu0 %5971
      %5975 = vset.pattern.permute.xlu0 0
      %5976 = vperm.xlu0 %5975, %v5929
      %v5977 = vpop.permute.xlu0 %5976
      %5980 = vset.pattern.permute.xlu0 0
      %5981 = vperm.xlu0 %5980, %v5931
      %v5982 = vpop.permute.xlu0 %5981
      %5985 = vset.pattern.permute.xlu0 0
      %5986 = vperm.xlu0 %5985, %v5933
      %v5987 = vpop.permute.xlu0 %5986
      %5990 = vset.pattern.permute.xlu0 0
      %5991 = vperm.xlu0 %5990, %v5935
      %v5992 = vpop.permute.xlu0 %5991
      %5995 = vset.pattern.permute.xlu0 0
      %5996 = vperm.xlu0 %5995, %v5937
      %v5997 = vpop.permute.xlu0 %5996
      %6000 = vset.pattern.permute.xlu0 0
      %6001 = vperm.xlu0 %6000, %v5939
      %v6002 = vpop.permute.xlu0 %6001
      %6005 = vset.pattern.permute.xlu0 0
      %6006 = vperm.xlu0 %6005, %v5941
      %v6007 = vpop.permute.xlu0 %6006
      %6010 = vset.pattern.permute.xlu0 0
      %6011 = vperm.xlu0 %6010, %v5943
      %v6012 = vpop.permute.xlu0 %6011
      %6015 = vset.pattern.permute.xlu0 0
      %6016 = vperm.xlu0 %6015, %v5945
      %v6017 = vpop.permute.xlu0 %6016
      %6020 = vset.pattern.permute.xlu0 0
      %6021 = vperm.xlu0 %6020, %v5947
      %v6022 = vpop.permute.xlu0 %6021
      %6025 = vset.pattern.permute.xlu0 0
      %6026 = vperm.xlu0 %6025, %v5949
      %v6027 = vpop.permute.xlu0 %6026
      %6030 = vset.pattern.permute.xlu0 0
      %6031 = vperm.xlu0 %6030, %v5951
      %v6032 = vpop.permute.xlu0 %6031
      %6035 = vset.pattern.permute.xlu0 0
      %6036 = vperm.xlu0 %6035, %v5953
      %v6037 = vpop.permute.xlu0 %6036
      %v6039 = vmul.f32 %v5957, %v1058
      %v6040 = vmul.f32 %v5962, %v1062
      %v6041 = vmul.f32 %v5967, %v1066
      %v6042 = vmul.f32 %v5972, %v1070
      %v6043 = vmul.f32 %v5977, %v1074
      %v6044 = vmul.f32 %v5982, %v1078
      %v6045 = vmul.f32 %v5987, %v1082
      %v6046 = vmul.f32 %v5992, %v1086
      %v6047 = vmul.f32 %v5997, %v1090
      %v6048 = vmul.f32 %v6002, %v1094
      %v6049 = vmul.f32 %v6007, %v1098
      %v6050 = vmul.f32 %v6012, %v1102
      %v6051 = vmul.f32 %v6017, %v1106
      %v6052 = vmul.f32 %v6022, %v1110
      %v6053 = vmul.f32 %v6027, %v1114
      %v6054 = vmul.f32 %v6032, %v1118
      %v6055 = vmul.f32 %v6037, %v1122
      %6056 = vset.pattern.permute.xlu0 1
      %6057 = vperm.xlu0 %6056, %v5921
      %v6058 = vpop.permute.xlu0 %6057
      %6060 = vset.pattern.permute.xlu0 1
      %6061 = vperm.xlu0 %6060, %v5923
      %v6062 = vpop.permute.xlu0 %6061
      %6064 = vset.pattern.permute.xlu0 1
      %6065 = vperm.xlu0 %6064, %v5925
      %v6066 = vpop.permute.xlu0 %6065
      %6068 = vset.pattern.permute.xlu0 1
      %6069 = vperm.xlu0 %6068, %v5927
      %v6070 = vpop.permute.xlu0 %6069
      %6072 = vset.pattern.permute.xlu0 1
      %6073 = vperm.xlu0 %6072, %v5929
      %v6074 = vpop.permute.xlu0 %6073
      %6076 = vset.pattern.permute.xlu0 1
      %6077 = vperm.xlu0 %6076, %v5931
      %v6078 = vpop.permute.xlu0 %6077
      %6080 = vset.pattern.permute.xlu0 1
      %6081 = vperm.xlu0 %6080, %v5933
      %v6082 = vpop.permute.xlu0 %6081
      %6084 = vset.pattern.permute.xlu0 1
      %6085 = vperm.xlu0 %6084, %v5935
      %v6086 = vpop.permute.xlu0 %6085
      %6088 = vset.pattern.permute.xlu0 1
      %6089 = vperm.xlu0 %6088, %v5937
      %v6090 = vpop.permute.xlu0 %6089
      %6092 = vset.pattern.permute.xlu0 1
      %6093 = vperm.xlu0 %6092, %v5939
      %v6094 = vpop.permute.xlu0 %6093
      %6096 = vset.pattern.permute.xlu0 1
      %6097 = vperm.xlu0 %6096, %v5941
      %v6098 = vpop.permute.xlu0 %6097
      %6100 = vset.pattern.permute.xlu0 1
      %6101 = vperm.xlu0 %6100, %v5943
      %v6102 = vpop.permute.xlu0 %6101
      %6104 = vset.pattern.permute.xlu0 1
      %6105 = vperm.xlu0 %6104, %v5945
      %v6106 = vpop.permute.xlu0 %6105
      %6108 = vset.pattern.permute.xlu0 1
      %6109 = vperm.xlu0 %6108, %v5947
      %v6110 = vpop.permute.xlu0 %6109
      %6112 = vset.pattern.permute.xlu0 1
      %6113 = vperm.xlu0 %6112, %v5949
      %v6114 = vpop.permute.xlu0 %6113
      %6116 = vset.pattern.permute.xlu0 1
      %6117 = vperm.xlu0 %6116, %v5951
      %v6118 = vpop.permute.xlu0 %6117
      %6120 = vset.pattern.permute.xlu0 1
      %6121 = vperm.xlu0 %6120, %v5953
      %v6122 = vpop.permute.xlu0 %6121
      %v6124 = vmul.f32 %v6058, %v1382
      %v6125 = vmul.f32 %v6062, %v1386
      %v6126 = vmul.f32 %v6066, %v1390
      %v6127 = vmul.f32 %v6070, %v1394
      %v6128 = vmul.f32 %v6074, %v1398
      %v6129 = vmul.f32 %v6078, %v1402
      %v6130 = vmul.f32 %v6082, %v1406
      %v6131 = vmul.f32 %v6086, %v1410
      %v6132 = vmul.f32 %v6090, %v1414
      %v6133 = vmul.f32 %v6094, %v1418
      %v6134 = vmul.f32 %v6098, %v1422
      %v6135 = vmul.f32 %v6102, %v1426
      %v6136 = vmul.f32 %v6106, %v1430
      %v6137 = vmul.f32 %v6110, %v1434
      %v6138 = vmul.f32 %v6114, %v1438
      %v6139 = vmul.f32 %v6118, %v1442
      %v6140 = vmul.f32 %v6122, %v1446
      %v6141 = vadd.f32 %v6039, 0.0
      %v6142 = vadd.f32 %v6040, 0.0
      %v6143 = vadd.f32 %v6041, 0.0
      %v6144 = vadd.f32 %v6042, 0.0
      %v6145 = vadd.f32 %v6043, 0.0
      %v6146 = vadd.f32 %v6044, 0.0
      %v6147 = vadd.f32 %v6045, 0.0
      %v6148 = vadd.f32 %v6046, 0.0
      %v6149 = vadd.f32 %v6047, 0.0
      %v6150 = vadd.f32 %v6048, 0.0
      %v6151 = vadd.f32 %v6049, 0.0
      %v6152 = vadd.f32 %v6050, 0.0
      %v6153 = vadd.f32 %v6051, 0.0
      %v6154 = vadd.f32 %v6052, 0.0
      %v6155 = vadd.f32 %v6053, 0.0
      %v6156 = vadd.f32 %v6054, 0.0
      %v6157 = vadd.f32 %v6055, 0.0
      %v6158 = vadd.f32 %v6141, %v6124
      %v6159 = vadd.f32 %v6142, %v6125
      %v6160 = vadd.f32 %v6143, %v6126
      %v6161 = vadd.f32 %v6144, %v6127
      %v6162 = vadd.f32 %v6145, %v6128
      %v6163 = vadd.f32 %v6146, %v6129
      %v6164 = vadd.f32 %v6147, %v6130
      %v6165 = vadd.f32 %v6148, %v6131
      %v6166 = vadd.f32 %v6149, %v6132
      %v6167 = vadd.f32 %v6150, %v6133
      %v6168 = vadd.f32 %v6151, %v6134
      %v6169 = vadd.f32 %v6152, %v6135
      %v6170 = vadd.f32 %v6153, %v6136
      %v6171 = vadd.f32 %v6154, %v6137
      %v6172 = vadd.f32 %v6155, %v6138
      %v6173 = vadd.f32 %v6156, %v6139
      %v6174 = vadd.f32 %v6157, %v6140
      %6175 = vrot.lane.b32.xlu0 %v2152, 100
      %v6176 = vpop.permute.xlu0 %6175
      %6177 = vrot.lane.b32.xlu0 %v2159, 100
      %v6178 = vpop.permute.xlu0 %6177
      %6179 = vrot.lane.b32.xlu0 %v2166, 100
      %v6180 = vpop.permute.xlu0 %6179
      %6181 = vrot.lane.b32.xlu0 %v2173, 100
      %v6182 = vpop.permute.xlu0 %6181
      %6183 = vrot.lane.b32.xlu0 %v2180, 100
      %v6184 = vpop.permute.xlu0 %6183
      %6185 = vrot.lane.b32.xlu0 %v2187, 100
      %v6186 = vpop.permute.xlu0 %6185
      %6187 = vrot.lane.b32.xlu0 %v2194, 100
      %v6188 = vpop.permute.xlu0 %6187
      %6189 = vrot.lane.b32.xlu0 %v2201, 100
      %v6190 = vpop.permute.xlu0 %6189
      %6191 = vrot.lane.b32.xlu0 %v2208, 100
      %v6192 = vpop.permute.xlu0 %6191
      %6193 = vrot.lane.b32.xlu0 %v2215, 100
      %v6194 = vpop.permute.xlu0 %6193
      %6195 = vrot.lane.b32.xlu0 %v2222, 100
      %v6196 = vpop.permute.xlu0 %6195
      %6197 = vrot.lane.b32.xlu0 %v2229, 100
      %v6198 = vpop.permute.xlu0 %6197
      %6199 = vrot.lane.b32.xlu0 %v2236, 100
      %v6200 = vpop.permute.xlu0 %6199
      %6201 = vrot.lane.b32.xlu0 %v2243, 100
      %v6202 = vpop.permute.xlu0 %6201
      %6203 = vrot.lane.b32.xlu0 %v2250, 100
      %v6204 = vpop.permute.xlu0 %6203
      %6205 = vrot.lane.b32.xlu0 %v2257, 100
      %v6206 = vpop.permute.xlu0 %6205
      %6207 = vrot.lane.b32.xlu0 %v2264, 100
      %v6208 = vpop.permute.xlu0 %6207
      %v6226 = vsel %vm1327, %v6176, 0.0
      %6227 = vadd.xlane.f32.xlu0 %v6226
      %v6228 = vpop.xlane.xlu0 %6227
      %v6229 = vsel %vm1327, %v6178, 0.0
      %6230 = vadd.xlane.f32.xlu0 %v6229
      %v6231 = vpop.xlane.xlu0 %6230
      %v6232 = vsel %vm1327, %v6180, 0.0
      %6233 = vadd.xlane.f32.xlu0 %v6232
      %v6234 = vpop.xlane.xlu0 %6233
      %v6235 = vsel %vm1327, %v6182, 0.0
      %6236 = vadd.xlane.f32.xlu0 %v6235
      %v6237 = vpop.xlane.xlu0 %6236
      %v6238 = vsel %vm1327, %v6184, 0.0
      %6239 = vadd.xlane.f32.xlu0 %v6238
      %v6240 = vpop.xlane.xlu0 %6239
      %v6241 = vsel %vm1327, %v6186, 0.0
      %6242 = vadd.xlane.f32.xlu0 %v6241
      %v6243 = vpop.xlane.xlu0 %6242
      %v6244 = vsel %vm1327, %v6188, 0.0
      %6245 = vadd.xlane.f32.xlu0 %v6244
      %v6246 = vpop.xlane.xlu0 %6245
      %v6247 = vsel %vm1327, %v6190, 0.0
      %6248 = vadd.xlane.f32.xlu0 %v6247
      %v6249 = vpop.xlane.xlu0 %6248
      %v6250 = vsel %vm1327, %v6192, 0.0
      %6251 = vadd.xlane.f32.xlu0 %v6250
      %v6252 = vpop.xlane.xlu0 %6251
      %v6253 = vsel %vm1327, %v6194, 0.0
      %6254 = vadd.xlane.f32.xlu0 %v6253
      %v6255 = vpop.xlane.xlu0 %6254
      %v6256 = vsel %vm1327, %v6196, 0.0
      %6257 = vadd.xlane.f32.xlu0 %v6256
      %v6258 = vpop.xlane.xlu0 %6257
      %v6259 = vsel %vm1327, %v6198, 0.0
      %6260 = vadd.xlane.f32.xlu0 %v6259
      %v6261 = vpop.xlane.xlu0 %6260
      %v6262 = vsel %vm1327, %v6200, 0.0
      %6263 = vadd.xlane.f32.xlu0 %v6262
      %v6264 = vpop.xlane.xlu0 %6263
      %v6265 = vsel %vm1327, %v6202, 0.0
      %6266 = vadd.xlane.f32.xlu0 %v6265
      %v6267 = vpop.xlane.xlu0 %6266
      %v6268 = vsel %vm1327, %v6204, 0.0
      %6269 = vadd.xlane.f32.xlu0 %v6268
      %v6270 = vpop.xlane.xlu0 %6269
      %v6271 = vsel %vm1327, %v6206, 0.0
      %6272 = vadd.xlane.f32.xlu0 %v6271
      %v6273 = vpop.xlane.xlu0 %6272
      %v6274 = vsel %vm1327, %v6208, 0.0
      %6275 = vadd.xlane.f32.xlu0 %v6274
      %v6276 = vpop.xlane.xlu0 %6275
      %6277 = vrot.lane.b32.xlu0 %v2390, 100
      %v6278 = vpop.permute.xlu0 %6277
      %6279 = vrot.lane.b32.xlu0 %v2397, 100
      %v6280 = vpop.permute.xlu0 %6279
      %6281 = vrot.lane.b32.xlu0 %v2404, 100
      %v6282 = vpop.permute.xlu0 %6281
      %6283 = vrot.lane.b32.xlu0 %v2411, 100
      %v6284 = vpop.permute.xlu0 %6283
      %6285 = vrot.lane.b32.xlu0 %v2418, 100
      %v6286 = vpop.permute.xlu0 %6285
      %6287 = vrot.lane.b32.xlu0 %v2425, 100
      %v6288 = vpop.permute.xlu0 %6287
      %6289 = vrot.lane.b32.xlu0 %v2432, 100
      %v6290 = vpop.permute.xlu0 %6289
      %6291 = vrot.lane.b32.xlu0 %v2439, 100
      %v6292 = vpop.permute.xlu0 %6291
      %6293 = vrot.lane.b32.xlu0 %v2446, 100
      %v6294 = vpop.permute.xlu0 %6293
      %6295 = vrot.lane.b32.xlu0 %v2453, 100
      %v6296 = vpop.permute.xlu0 %6295
      %6297 = vrot.lane.b32.xlu0 %v2460, 100
      %v6298 = vpop.permute.xlu0 %6297
      %6299 = vrot.lane.b32.xlu0 %v2467, 100
      %v6300 = vpop.permute.xlu0 %6299
      %6301 = vrot.lane.b32.xlu0 %v2474, 100
      %v6302 = vpop.permute.xlu0 %6301
      %6303 = vrot.lane.b32.xlu0 %v2481, 100
      %v6304 = vpop.permute.xlu0 %6303
      %6305 = vrot.lane.b32.xlu0 %v2488, 100
      %v6306 = vpop.permute.xlu0 %6305
      %6307 = vrot.lane.b32.xlu0 %v2495, 100
      %v6308 = vpop.permute.xlu0 %6307
      %6309 = vrot.lane.b32.xlu0 %v2502, 100
      %v6310 = vpop.permute.xlu0 %6309
      %v6328 = vsel %vm1327, %v6278, 0.0
      %6329 = vadd.xlane.f32.xlu0 %v6328
      %v6330 = vpop.xlane.xlu0 %6329
      %v6331 = vsel %vm1327, %v6280, 0.0
      %6332 = vadd.xlane.f32.xlu0 %v6331
      %v6333 = vpop.xlane.xlu0 %6332
      %v6334 = vsel %vm1327, %v6282, 0.0
      %6335 = vadd.xlane.f32.xlu0 %v6334
      %v6336 = vpop.xlane.xlu0 %6335
      %v6337 = vsel %vm1327, %v6284, 0.0
      %6338 = vadd.xlane.f32.xlu0 %v6337
      %v6339 = vpop.xlane.xlu0 %6338
      %v6340 = vsel %vm1327, %v6286, 0.0
      %6341 = vadd.xlane.f32.xlu0 %v6340
      %v6342 = vpop.xlane.xlu0 %6341
      %v6343 = vsel %vm1327, %v6288, 0.0
      %6344 = vadd.xlane.f32.xlu0 %v6343
      %v6345 = vpop.xlane.xlu0 %6344
      %v6346 = vsel %vm1327, %v6290, 0.0
      %6347 = vadd.xlane.f32.xlu0 %v6346
      %v6348 = vpop.xlane.xlu0 %6347
      %v6349 = vsel %vm1327, %v6292, 0.0
      %6350 = vadd.xlane.f32.xlu0 %v6349
      %v6351 = vpop.xlane.xlu0 %6350
      %v6352 = vsel %vm1327, %v6294, 0.0
      %6353 = vadd.xlane.f32.xlu0 %v6352
      %v6354 = vpop.xlane.xlu0 %6353
      %v6355 = vsel %vm1327, %v6296, 0.0
      %6356 = vadd.xlane.f32.xlu0 %v6355
      %v6357 = vpop.xlane.xlu0 %6356
      %v6358 = vsel %vm1327, %v6298, 0.0
      %6359 = vadd.xlane.f32.xlu0 %v6358
      %v6360 = vpop.xlane.xlu0 %6359
      %v6361 = vsel %vm1327, %v6300, 0.0
      %6362 = vadd.xlane.f32.xlu0 %v6361
      %v6363 = vpop.xlane.xlu0 %6362
      %v6364 = vsel %vm1327, %v6302, 0.0
      %6365 = vadd.xlane.f32.xlu0 %v6364
      %v6366 = vpop.xlane.xlu0 %6365
      %v6367 = vsel %vm1327, %v6304, 0.0
      %6368 = vadd.xlane.f32.xlu0 %v6367
      %v6369 = vpop.xlane.xlu0 %6368
      %v6370 = vsel %vm1327, %v6306, 0.0
      %6371 = vadd.xlane.f32.xlu0 %v6370
      %v6372 = vpop.xlane.xlu0 %6371
      %v6373 = vsel %vm1327, %v6308, 0.0
      %6374 = vadd.xlane.f32.xlu0 %v6373
      %v6375 = vpop.xlane.xlu0 %6374
      %v6376 = vsel %vm1327, %v6310, 0.0
      %6377 = vadd.xlane.f32.xlu0 %v6376
      %v6378 = vpop.xlane.xlu0 %6377
      %v6379 = vsel %vm1702, %v6228, %v6330
      %v6380 = vsel %vm1702, %v6231, %v6333
      %v6381 = vsel %vm1702, %v6234, %v6336
      %v6382 = vsel %vm1702, %v6237, %v6339
      %v6383 = vsel %vm1702, %v6240, %v6342
      %v6384 = vsel %vm1702, %v6243, %v6345
      %v6385 = vsel %vm1702, %v6246, %v6348
      %v6386 = vsel %vm1702, %v6249, %v6351
      %v6387 = vsel %vm1702, %v6252, %v6354
      %v6388 = vsel %vm1702, %v6255, %v6357
      %v6389 = vsel %vm1702, %v6258, %v6360
      %v6390 = vsel %vm1702, %v6261, %v6363
      %v6391 = vsel %vm1702, %v6264, %v6366
      %v6392 = vsel %vm1702, %v6267, %v6369
      %v6393 = vsel %vm1702, %v6270, %v6372
      %v6394 = vsel %vm1702, %v6273, %v6375
      %v6395 = vsel %vm1702, %v6276, %v6378
      %v6396 = vsel %vm1720, %v6379, -inf
      %6397 = vmax.xlane.f32.xlu0 %v6396
      %v6398 = vpop.xlane.xlu0 %6397
      %v6399 = vsel %vm1720, %v6380, -inf
      %6400 = vmax.xlane.f32.xlu0 %v6399
      %v6401 = vpop.xlane.xlu0 %6400
      %v6402 = vsel %vm1720, %v6381, -inf
      %6403 = vmax.xlane.f32.xlu0 %v6402
      %v6404 = vpop.xlane.xlu0 %6403
      %v6405 = vsel %vm1720, %v6382, -inf
      %6406 = vmax.xlane.f32.xlu0 %v6405
      %v6407 = vpop.xlane.xlu0 %6406
      %v6408 = vsel %vm1720, %v6383, -inf
      %6409 = vmax.xlane.f32.xlu0 %v6408
      %v6410 = vpop.xlane.xlu0 %6409
      %v6411 = vsel %vm1720, %v6384, -inf
      %6412 = vmax.xlane.f32.xlu0 %v6411
      %v6413 = vpop.xlane.xlu0 %6412
      %v6414 = vsel %vm1720, %v6385, -inf
      %6415 = vmax.xlane.f32.xlu0 %v6414
      %v6416 = vpop.xlane.xlu0 %6415
      %v6417 = vsel %vm1720, %v6386, -inf
      %6418 = vmax.xlane.f32.xlu0 %v6417
      %v6419 = vpop.xlane.xlu0 %6418
      %v6420 = vsel %vm1720, %v6387, -inf
      %6421 = vmax.xlane.f32.xlu0 %v6420
      %v6422 = vpop.xlane.xlu0 %6421
      %v6423 = vsel %vm1720, %v6388, -inf
      %6424 = vmax.xlane.f32.xlu0 %v6423
      %v6425 = vpop.xlane.xlu0 %6424
      %v6426 = vsel %vm1720, %v6389, -inf
      %6427 = vmax.xlane.f32.xlu0 %v6426
      %v6428 = vpop.xlane.xlu0 %6427
      %v6429 = vsel %vm1720, %v6390, -inf
      %6430 = vmax.xlane.f32.xlu0 %v6429
      %v6431 = vpop.xlane.xlu0 %6430
      %v6432 = vsel %vm1720, %v6391, -inf
      %6433 = vmax.xlane.f32.xlu0 %v6432
      %v6434 = vpop.xlane.xlu0 %6433
      %v6435 = vsel %vm1720, %v6392, -inf
      %6436 = vmax.xlane.f32.xlu0 %v6435
      %v6437 = vpop.xlane.xlu0 %6436
      %v6438 = vsel %vm1720, %v6393, -inf
      %6439 = vmax.xlane.f32.xlu0 %v6438
      %v6440 = vpop.xlane.xlu0 %6439
      %v6441 = vsel %vm1720, %v6394, -inf
      %6442 = vmax.xlane.f32.xlu0 %v6441
      %v6443 = vpop.xlane.xlu0 %6442
      %v6444 = vsel %vm1720, %v6395, -inf
      %6445 = vmax.xlane.f32.xlu0 %v6444
      %v6446 = vpop.xlane.xlu0 %6445
      %v6447 = vsub.f32 %v6379, %v6398
      %v6448 = vsub.f32 %v6380, %v6401
      %v6449 = vsub.f32 %v6381, %v6404
      %v6450 = vsub.f32 %v6382, %v6407
      %v6451 = vsub.f32 %v6383, %v6410
      %v6452 = vsub.f32 %v6384, %v6413
      %v6453 = vsub.f32 %v6385, %v6416
      %v6454 = vsub.f32 %v6386, %v6419
      %v6455 = vsub.f32 %v6387, %v6422
      %v6456 = vsub.f32 %v6388, %v6425
      %v6457 = vsub.f32 %v6389, %v6428
      %v6458 = vsub.f32 %v6390, %v6431
      %v6459 = vsub.f32 %v6391, %v6434
      %v6460 = vsub.f32 %v6392, %v6437
      %v6461 = vsub.f32 %v6393, %v6440
      %v6462 = vsub.f32 %v6394, %v6443
      %v6463 = vsub.f32 %v6395, %v6446
      %v6464 = vmul.f32 %v6447, 1.442695
      %v6465 = vpow.pop %v6464
      %v6466 = vmul.f32 %v6448, 1.442695
      %v6467 = vpow.pop %v6466
      %v6468 = vmul.f32 %v6449, 1.442695
      %v6469 = vpow.pop %v6468
      %v6470 = vmul.f32 %v6450, 1.442695
      %v6471 = vpow.pop %v6470
      %v6472 = vmul.f32 %v6451, 1.442695
      %v6473 = vpow.pop %v6472
      %v6474 = vmul.f32 %v6452, 1.442695
      %v6475 = vpow.pop %v6474
      %v6476 = vmul.f32 %v6453, 1.442695
      %v6477 = vpow.pop %v6476
      %v6478 = vmul.f32 %v6454, 1.442695
      %v6479 = vpow.pop %v6478
      %v6480 = vmul.f32 %v6455, 1.442695
      %v6481 = vpow.pop %v6480
      %v6482 = vmul.f32 %v6456, 1.442695
      %v6483 = vpow.pop %v6482
      %v6484 = vmul.f32 %v6457, 1.442695
      %v6485 = vpow.pop %v6484
      %v6486 = vmul.f32 %v6458, 1.442695
      %v6487 = vpow.pop %v6486
      %v6488 = vmul.f32 %v6459, 1.442695
      %v6489 = vpow.pop %v6488
      %v6490 = vmul.f32 %v6460, 1.442695
      %v6491 = vpow.pop %v6490
      %v6492 = vmul.f32 %v6461, 1.442695
      %v6493 = vpow.pop %v6492
      %v6494 = vmul.f32 %v6462, 1.442695
      %v6495 = vpow.pop %v6494
      %v6496 = vmul.f32 %v6463, 1.442695
      %v6497 = vpow.pop %v6496
      %v6498 = vsel %vm1720, %v6465, 0.0
      %6499 = vadd.xlane.f32.xlu0 %v6498
      %v6500 = vpop.xlane.xlu0 %6499
      %v6501 = vsel %vm1720, %v6467, 0.0
      %6502 = vadd.xlane.f32.xlu0 %v6501
      %v6503 = vpop.xlane.xlu0 %6502
      %v6504 = vsel %vm1720, %v6469, 0.0
      %6505 = vadd.xlane.f32.xlu0 %v6504
      %v6506 = vpop.xlane.xlu0 %6505
      %v6507 = vsel %vm1720, %v6471, 0.0
      %6508 = vadd.xlane.f32.xlu0 %v6507
      %v6509 = vpop.xlane.xlu0 %6508
      %v6510 = vsel %vm1720, %v6473, 0.0
      %6511 = vadd.xlane.f32.xlu0 %v6510
      %v6512 = vpop.xlane.xlu0 %6511
      %v6513 = vsel %vm1720, %v6475, 0.0
      %6514 = vadd.xlane.f32.xlu0 %v6513
      %v6515 = vpop.xlane.xlu0 %6514
      %v6516 = vsel %vm1720, %v6477, 0.0
      %6517 = vadd.xlane.f32.xlu0 %v6516
      %v6518 = vpop.xlane.xlu0 %6517
      %v6519 = vsel %vm1720, %v6479, 0.0
      %6520 = vadd.xlane.f32.xlu0 %v6519
      %v6521 = vpop.xlane.xlu0 %6520
      %v6522 = vsel %vm1720, %v6481, 0.0
      %6523 = vadd.xlane.f32.xlu0 %v6522
      %v6524 = vpop.xlane.xlu0 %6523
      %v6525 = vsel %vm1720, %v6483, 0.0
      %6526 = vadd.xlane.f32.xlu0 %v6525
      %v6527 = vpop.xlane.xlu0 %6526
      %v6528 = vsel %vm1720, %v6485, 0.0
      %6529 = vadd.xlane.f32.xlu0 %v6528
      %v6530 = vpop.xlane.xlu0 %6529
      %v6531 = vsel %vm1720, %v6487, 0.0
      %6532 = vadd.xlane.f32.xlu0 %v6531
      %v6533 = vpop.xlane.xlu0 %6532
      %v6534 = vsel %vm1720, %v6489, 0.0
      %6535 = vadd.xlane.f32.xlu0 %v6534
      %v6536 = vpop.xlane.xlu0 %6535
      %v6537 = vsel %vm1720, %v6491, 0.0
      %6538 = vadd.xlane.f32.xlu0 %v6537
      %v6539 = vpop.xlane.xlu0 %6538
      %v6540 = vsel %vm1720, %v6493, 0.0
      %6541 = vadd.xlane.f32.xlu0 %v6540
      %v6542 = vpop.xlane.xlu0 %6541
      %v6543 = vsel %vm1720, %v6495, 0.0
      %6544 = vadd.xlane.f32.xlu0 %v6543
      %v6545 = vpop.xlane.xlu0 %6544
      %v6546 = vsel %vm1720, %v6497, 0.0
      %6547 = vadd.xlane.f32.xlu0 %v6546
      %v6548 = vpop.xlane.xlu0 %6547
      %v6549 = vrcp.pop %v6500
      %v6550 = vmul.f32 %v6465, %v6549
      %v6551 = vrcp.pop %v6503
      %v6552 = vmul.f32 %v6467, %v6551
      %v6553 = vrcp.pop %v6506
      %v6554 = vmul.f32 %v6469, %v6553
      %v6555 = vrcp.pop %v6509
      %v6556 = vmul.f32 %v6471, %v6555
      %v6557 = vrcp.pop %v6512
      %v6558 = vmul.f32 %v6473, %v6557
      %v6559 = vrcp.pop %v6515
      %v6560 = vmul.f32 %v6475, %v6559
      %v6561 = vrcp.pop %v6518
      %v6562 = vmul.f32 %v6477, %v6561
      %v6563 = vrcp.pop %v6521
      %v6564 = vmul.f32 %v6479, %v6563
      %v6565 = vrcp.pop %v6524
      %v6566 = vmul.f32 %v6481, %v6565
      %v6567 = vrcp.pop %v6527
      %v6568 = vmul.f32 %v6483, %v6567
      %v6569 = vrcp.pop %v6530
      %v6570 = vmul.f32 %v6485, %v6569
      %v6571 = vrcp.pop %v6533
      %v6572 = vmul.f32 %v6487, %v6571
      %v6573 = vrcp.pop %v6536
      %v6574 = vmul.f32 %v6489, %v6573
      %v6575 = vrcp.pop %v6539
      %v6576 = vmul.f32 %v6491, %v6575
      %v6577 = vrcp.pop %v6542
      %v6578 = vmul.f32 %v6493, %v6577
      %v6579 = vrcp.pop %v6545
      %v6580 = vmul.f32 %v6495, %v6579
      %v6581 = vrcp.pop %v6548
      %v6582 = vmul.f32 %v6497, %v6581
      %6584 = vset.pattern.permute.xlu0 0
      %6585 = vperm.xlu0 %6584, %v6550
      %v6586 = vpop.permute.xlu0 %6585
      %6589 = vset.pattern.permute.xlu0 0
      %6590 = vperm.xlu0 %6589, %v6552
      %v6591 = vpop.permute.xlu0 %6590
      %6594 = vset.pattern.permute.xlu0 0
      %6595 = vperm.xlu0 %6594, %v6554
      %v6596 = vpop.permute.xlu0 %6595
      %6599 = vset.pattern.permute.xlu0 0
      %6600 = vperm.xlu0 %6599, %v6556
      %v6601 = vpop.permute.xlu0 %6600
      %6604 = vset.pattern.permute.xlu0 0
      %6605 = vperm.xlu0 %6604, %v6558
      %v6606 = vpop.permute.xlu0 %6605
      %6609 = vset.pattern.permute.xlu0 0
      %6610 = vperm.xlu0 %6609, %v6560
      %v6611 = vpop.permute.xlu0 %6610
      %6614 = vset.pattern.permute.xlu0 0
      %6615 = vperm.xlu0 %6614, %v6562
      %v6616 = vpop.permute.xlu0 %6615
      %6619 = vset.pattern.permute.xlu0 0
      %6620 = vperm.xlu0 %6619, %v6564
      %v6621 = vpop.permute.xlu0 %6620
      %6624 = vset.pattern.permute.xlu0 0
      %6625 = vperm.xlu0 %6624, %v6566
      %v6626 = vpop.permute.xlu0 %6625
      %6629 = vset.pattern.permute.xlu0 0
      %6630 = vperm.xlu0 %6629, %v6568
      %v6631 = vpop.permute.xlu0 %6630
      %6634 = vset.pattern.permute.xlu0 0
      %6635 = vperm.xlu0 %6634, %v6570
      %v6636 = vpop.permute.xlu0 %6635
      %6639 = vset.pattern.permute.xlu0 0
      %6640 = vperm.xlu0 %6639, %v6572
      %v6641 = vpop.permute.xlu0 %6640
      %6644 = vset.pattern.permute.xlu0 0
      %6645 = vperm.xlu0 %6644, %v6574
      %v6646 = vpop.permute.xlu0 %6645
      %6649 = vset.pattern.permute.xlu0 0
      %6650 = vperm.xlu0 %6649, %v6576
      %v6651 = vpop.permute.xlu0 %6650
      %6654 = vset.pattern.permute.xlu0 0
      %6655 = vperm.xlu0 %6654, %v6578
      %v6656 = vpop.permute.xlu0 %6655
      %6659 = vset.pattern.permute.xlu0 0
      %6660 = vperm.xlu0 %6659, %v6580
      %v6661 = vpop.permute.xlu0 %6660
      %6664 = vset.pattern.permute.xlu0 0
      %6665 = vperm.xlu0 %6664, %v6582
      %v6666 = vpop.permute.xlu0 %6665
      %v6668 = vmul.f32 %v6586, %v1058
      %v6669 = vmul.f32 %v6591, %v1062
      %v6670 = vmul.f32 %v6596, %v1066
      %v6671 = vmul.f32 %v6601, %v1070
      %v6672 = vmul.f32 %v6606, %v1074
      %v6673 = vmul.f32 %v6611, %v1078
      %v6674 = vmul.f32 %v6616, %v1082
      %v6675 = vmul.f32 %v6621, %v1086
      %v6676 = vmul.f32 %v6626, %v1090
      %v6677 = vmul.f32 %v6631, %v1094
      %v6678 = vmul.f32 %v6636, %v1098
      %v6679 = vmul.f32 %v6641, %v1102
      %v6680 = vmul.f32 %v6646, %v1106
      %v6681 = vmul.f32 %v6651, %v1110
      %v6682 = vmul.f32 %v6656, %v1114
      %v6683 = vmul.f32 %v6661, %v1118
      %v6684 = vmul.f32 %v6666, %v1122
      %6685 = vset.pattern.permute.xlu0 1
      %6686 = vperm.xlu0 %6685, %v6550
      %v6687 = vpop.permute.xlu0 %6686
      %6689 = vset.pattern.permute.xlu0 1
      %6690 = vperm.xlu0 %6689, %v6552
      %v6691 = vpop.permute.xlu0 %6690
      %6693 = vset.pattern.permute.xlu0 1
      %6694 = vperm.xlu0 %6693, %v6554
      %v6695 = vpop.permute.xlu0 %6694
      %6697 = vset.pattern.permute.xlu0 1
      %6698 = vperm.xlu0 %6697, %v6556
      %v6699 = vpop.permute.xlu0 %6698
      %6701 = vset.pattern.permute.xlu0 1
      %6702 = vperm.xlu0 %6701, %v6558
      %v6703 = vpop.permute.xlu0 %6702
      %6705 = vset.pattern.permute.xlu0 1
      %6706 = vperm.xlu0 %6705, %v6560
      %v6707 = vpop.permute.xlu0 %6706
      %6709 = vset.pattern.permute.xlu0 1
      %6710 = vperm.xlu0 %6709, %v6562
      %v6711 = vpop.permute.xlu0 %6710
      %6713 = vset.pattern.permute.xlu0 1
      %6714 = vperm.xlu0 %6713, %v6564
      %v6715 = vpop.permute.xlu0 %6714
      %6717 = vset.pattern.permute.xlu0 1
      %6718 = vperm.xlu0 %6717, %v6566
      %v6719 = vpop.permute.xlu0 %6718
      %6721 = vset.pattern.permute.xlu0 1
      %6722 = vperm.xlu0 %6721, %v6568
      %v6723 = vpop.permute.xlu0 %6722
      %6725 = vset.pattern.permute.xlu0 1
      %6726 = vperm.xlu0 %6725, %v6570
      %v6727 = vpop.permute.xlu0 %6726
      %6729 = vset.pattern.permute.xlu0 1
      %6730 = vperm.xlu0 %6729, %v6572
      %v6731 = vpop.permute.xlu0 %6730
      %6733 = vset.pattern.permute.xlu0 1
      %6734 = vperm.xlu0 %6733, %v6574
      %v6735 = vpop.permute.xlu0 %6734
      %6737 = vset.pattern.permute.xlu0 1
      %6738 = vperm.xlu0 %6737, %v6576
      %v6739 = vpop.permute.xlu0 %6738
      %6741 = vset.pattern.permute.xlu0 1
      %6742 = vperm.xlu0 %6741, %v6578
      %v6743 = vpop.permute.xlu0 %6742
      %6745 = vset.pattern.permute.xlu0 1
      %6746 = vperm.xlu0 %6745, %v6580
      %v6747 = vpop.permute.xlu0 %6746
      %6749 = vset.pattern.permute.xlu0 1
      %6750 = vperm.xlu0 %6749, %v6582
      %v6751 = vpop.permute.xlu0 %6750
      %v6753 = vmul.f32 %v6687, %v1382
      %v6754 = vmul.f32 %v6691, %v1386
      %v6755 = vmul.f32 %v6695, %v1390
      %v6756 = vmul.f32 %v6699, %v1394
      %v6757 = vmul.f32 %v6703, %v1398
      %v6758 = vmul.f32 %v6707, %v1402
      %v6759 = vmul.f32 %v6711, %v1406
      %v6760 = vmul.f32 %v6715, %v1410
      %v6761 = vmul.f32 %v6719, %v1414
      %v6762 = vmul.f32 %v6723, %v1418
      %v6763 = vmul.f32 %v6727, %v1422
      %v6764 = vmul.f32 %v6731, %v1426
      %v6765 = vmul.f32 %v6735, %v1430
      %v6766 = vmul.f32 %v6739, %v1434
      %v6767 = vmul.f32 %v6743, %v1438
      %v6768 = vmul.f32 %v6747, %v1442
      %v6769 = vmul.f32 %v6751, %v1446
      %v6770 = vadd.f32 %v6668, 0.0
      %v6771 = vadd.f32 %v6669, 0.0
      %v6772 = vadd.f32 %v6670, 0.0
      %v6773 = vadd.f32 %v6671, 0.0
      %v6774 = vadd.f32 %v6672, 0.0
      %v6775 = vadd.f32 %v6673, 0.0
      %v6776 = vadd.f32 %v6674, 0.0
      %v6777 = vadd.f32 %v6675, 0.0
      %v6778 = vadd.f32 %v6676, 0.0
      %v6779 = vadd.f32 %v6677, 0.0
      %v6780 = vadd.f32 %v6678, 0.0
      %v6781 = vadd.f32 %v6679, 0.0
      %v6782 = vadd.f32 %v6680, 0.0
      %v6783 = vadd.f32 %v6681, 0.0
      %v6784 = vadd.f32 %v6682, 0.0
      %v6785 = vadd.f32 %v6683, 0.0
      %v6786 = vadd.f32 %v6684, 0.0
      %v6787 = vadd.f32 %v6770, %v6753
      %v6788 = vadd.f32 %v6771, %v6754
      %v6789 = vadd.f32 %v6772, %v6755
      %v6790 = vadd.f32 %v6773, %v6756
      %v6791 = vadd.f32 %v6774, %v6757
      %v6792 = vadd.f32 %v6775, %v6758
      %v6793 = vadd.f32 %v6776, %v6759
      %v6794 = vadd.f32 %v6777, %v6760
      %v6795 = vadd.f32 %v6778, %v6761
      %v6796 = vadd.f32 %v6779, %v6762
      %v6797 = vadd.f32 %v6780, %v6763
      %v6798 = vadd.f32 %v6781, %v6764
      %v6799 = vadd.f32 %v6782, %v6765
      %v6800 = vadd.f32 %v6783, %v6766
      %v6801 = vadd.f32 %v6784, %v6767
      %v6802 = vadd.f32 %v6785, %v6768
      %v6803 = vadd.f32 %v6786, %v6769
      %v6821 = vcombine.low %v2112, %v2113
      %v6822 = vcombine.low %v2114, %v2115
      %v6824 = vunpack.c.l.s4 1983009808
      %v6825 = vunpack.c.0.s8 %v6824
      %v6826 = vlaneseq
      %v6827 = vshrl.u32 %v6826, 7
      %v6828 = vsub.s32 %v6825, %v6827
      %v6829 = vrot.slane %v6821, %v6828
      %v6831 = vunpack.c.l.s4 1983009808
      %v6832 = vunpack.c.0.s8 %v6831
      %v6833 = vlaneseq
      %v6834 = vshrl.u32 %v6833, 7
      %v6835 = vsub.s32 %v6832, %v6834
      %v6836 = vrot.slane %v6822, %v6835
      %v6837 = vcombine.low %v6829, %v6836
      %v6838 = vcombine.low %v2116, %v2117
      %v6839 = vcombine.low %v2118, %v2119
      %v6841 = vunpack.c.l.s4 1983009808
      %v6842 = vunpack.c.0.s8 %v6841
      %v6843 = vlaneseq
      %v6844 = vshrl.u32 %v6843, 7
      %v6845 = vsub.s32 %v6842, %v6844
      %v6846 = vrot.slane %v6838, %v6845
      %v6848 = vunpack.c.l.s4 1983009808
      %v6849 = vunpack.c.0.s8 %v6848
      %v6850 = vlaneseq
      %v6851 = vshrl.u32 %v6850, 7
      %v6852 = vsub.s32 %v6849, %v6851
      %v6853 = vrot.slane %v6839, %v6852
      %v6854 = vcombine.low %v6846, %v6853
      %v6855 = vcombine.low %v2120, %v2121
      %v6856 = vcombine.low %v2122, %v2123
      %v6858 = vunpack.c.l.s4 1983009808
      %v6859 = vunpack.c.0.s8 %v6858
      %v6860 = vlaneseq
      %v6861 = vshrl.u32 %v6860, 7
      %v6862 = vsub.s32 %v6859, %v6861
      %v6863 = vrot.slane %v6855, %v6862
      %v6865 = vunpack.c.l.s4 1983009808
      %v6866 = vunpack.c.0.s8 %v6865
      %v6867 = vlaneseq
      %v6868 = vshrl.u32 %v6867, 7
      %v6869 = vsub.s32 %v6866, %v6868
      %v6870 = vrot.slane %v6856, %v6869
      %v6871 = vcombine.low %v6863, %v6870
      %v6872 = vcombine.low %v2124, %v2125
      %v6873 = vcombine.low %v2126, %v2127
      %v6875 = vunpack.c.l.s4 1983009808
      %v6876 = vunpack.c.0.s8 %v6875
      %v6877 = vlaneseq
      %v6878 = vshrl.u32 %v6877, 7
      %v6879 = vsub.s32 %v6876, %v6878
      %v6880 = vrot.slane %v6872, %v6879
      %v6882 = vunpack.c.l.s4 1983009808
      %v6883 = vunpack.c.0.s8 %v6882
      %v6884 = vlaneseq
      %v6885 = vshrl.u32 %v6884, 7
      %v6886 = vsub.s32 %v6883, %v6885
      %v6887 = vrot.slane %v6873, %v6886
      %v6888 = vcombine.low %v6880, %v6887
      %v6890 = vunpack.c.l.s4 1983009808
      %v6891 = vunpack.c.0.s8 %v6890
      %v6892 = vlaneseq
      %v6893 = vshrl.u32 %v6892, 7
      %v6894 = vsub.s32 %v6891, %v6893
      %v6895 = vrot.slane %v2128, %v6894
      %6896 = vrot.lane.b32.xlu0 %v6837, 64
      %v6897 = vpop.permute.xlu0 %6896
      %6898 = vrot.lane.b32.xlu0 %v6854, 64
      %v6899 = vpop.permute.xlu0 %6898
      %6900 = vrot.lane.b32.xlu0 %v6871, 64
      %v6901 = vpop.permute.xlu0 %6900
      %6902 = vrot.lane.b32.xlu0 %v6888, 64
      %v6903 = vpop.permute.xlu0 %6902
      %6904 = vrot.lane.b32.xlu0 %v6895, 64
      %v6905 = vpop.permute.xlu0 %6904
      %v6928 = vcombine.low %v3013, %v3014
      %v6929 = vcombine.low %v3015, %v3016
      %v6931 = vunpack.c.l.s4 1983009808
      %v6932 = vunpack.c.0.s8 %v6931
      %v6933 = vlaneseq
      %v6934 = vshrl.u32 %v6933, 7
      %v6935 = vsub.s32 %v6932, %v6934
      %v6936 = vrot.slane %v6928, %v6935
      %v6938 = vunpack.c.l.s4 1983009808
      %v6939 = vunpack.c.0.s8 %v6938
      %v6940 = vlaneseq
      %v6941 = vshrl.u32 %v6940, 7
      %v6942 = vsub.s32 %v6939, %v6941
      %v6943 = vrot.slane %v6929, %v6942
      %v6944 = vcombine.low %v6936, %v6943
      %v6945 = vcombine.low %v3017, %v3018
      %v6946 = vcombine.low %v3019, %v3020
      %v6948 = vunpack.c.l.s4 1983009808
      %v6949 = vunpack.c.0.s8 %v6948
      %v6950 = vlaneseq
      %v6951 = vshrl.u32 %v6950, 7
      %v6952 = vsub.s32 %v6949, %v6951
      %v6953 = vrot.slane %v6945, %v6952
      %v6955 = vunpack.c.l.s4 1983009808
      %v6956 = vunpack.c.0.s8 %v6955
      %v6957 = vlaneseq
      %v6958 = vshrl.u32 %v6957, 7
      %v6959 = vsub.s32 %v6956, %v6958
      %v6960 = vrot.slane %v6946, %v6959
      %v6961 = vcombine.low %v6953, %v6960
      %v6962 = vcombine.low %v3021, %v3022
      %v6963 = vcombine.low %v3023, %v3024
      %v6965 = vunpack.c.l.s4 1983009808
      %v6966 = vunpack.c.0.s8 %v6965
      %v6967 = vlaneseq
      %v6968 = vshrl.u32 %v6967, 7
      %v6969 = vsub.s32 %v6966, %v6968
      %v6970 = vrot.slane %v6962, %v6969
      %v6972 = vunpack.c.l.s4 1983009808
      %v6973 = vunpack.c.0.s8 %v6972
      %v6974 = vlaneseq
      %v6975 = vshrl.u32 %v6974, 7
      %v6976 = vsub.s32 %v6973, %v6975
      %v6977 = vrot.slane %v6963, %v6976
      %v6978 = vcombine.low %v6970, %v6977
      %v6979 = vcombine.low %v3025, %v3026
      %v6980 = vcombine.low %v3027, %v3028
      %v6982 = vunpack.c.l.s4 1983009808
      %v6983 = vunpack.c.0.s8 %v6982
      %v6984 = vlaneseq
      %v6985 = vshrl.u32 %v6984, 7
      %v6986 = vsub.s32 %v6983, %v6985
      %v6987 = vrot.slane %v6979, %v6986
      %v6989 = vunpack.c.l.s4 1983009808
      %v6990 = vunpack.c.0.s8 %v6989
      %v6991 = vlaneseq
      %v6992 = vshrl.u32 %v6991, 7
      %v6993 = vsub.s32 %v6990, %v6992
      %v6994 = vrot.slane %v6980, %v6993
      %v6995 = vcombine.low %v6987, %v6994
      %v6997 = vunpack.c.l.s4 1983009808
      %v6998 = vunpack.c.0.s8 %v6997
      %v6999 = vlaneseq
      %v7000 = vshrl.u32 %v6999, 7
      %v7001 = vsub.s32 %v6998, %v7000
      %v7002 = vrot.slane %v3029, %v7001
      %7003 = vrot.lane.b32.xlu0 %v6944, 64
      %v7004 = vpop.permute.xlu0 %7003
      %7005 = vrot.lane.b32.xlu0 %v6961, 64
      %v7006 = vpop.permute.xlu0 %7005
      %7007 = vrot.lane.b32.xlu0 %v6978, 64
      %v7008 = vpop.permute.xlu0 %7007
      %7009 = vrot.lane.b32.xlu0 %v6995, 64
      %v7010 = vpop.permute.xlu0 %7009
      %7011 = vrot.lane.b32.xlu0 %v7002, 64
      %v7012 = vpop.permute.xlu0 %7011
      %v7035 = vcombine.low %v3642, %v3643
      %v7036 = vcombine.low %v3644, %v3645
      %v7038 = vunpack.c.l.s4 1983009808
      %v7039 = vunpack.c.0.s8 %v7038
      %v7040 = vlaneseq
      %v7041 = vshrl.u32 %v7040, 7
      %v7042 = vsub.s32 %v7039, %v7041
      %v7043 = vrot.slane %v7035, %v7042
      %v7045 = vunpack.c.l.s4 1983009808
      %v7046 = vunpack.c.0.s8 %v7045
      %v7047 = vlaneseq
      %v7048 = vshrl.u32 %v7047, 7
      %v7049 = vsub.s32 %v7046, %v7048
      %v7050 = vrot.slane %v7036, %v7049
      %v7051 = vcombine.low %v7043, %v7050
      %v7052 = vcombine.low %v3646, %v3647
      %v7053 = vcombine.low %v3648, %v3649
      %v7055 = vunpack.c.l.s4 1983009808
      %v7056 = vunpack.c.0.s8 %v7055
      %v7057 = vlaneseq
      %v7058 = vshrl.u32 %v7057, 7
      %v7059 = vsub.s32 %v7056, %v7058
      %v7060 = vrot.slane %v7052, %v7059
      %v7062 = vunpack.c.l.s4 1983009808
      %v7063 = vunpack.c.0.s8 %v7062
      %v7064 = vlaneseq
      %v7065 = vshrl.u32 %v7064, 7
      %v7066 = vsub.s32 %v7063, %v7065
      %v7067 = vrot.slane %v7053, %v7066
      %v7068 = vcombine.low %v7060, %v7067
      %v7069 = vcombine.low %v3650, %v3651
      %v7070 = vcombine.low %v3652, %v3653
      %v7072 = vunpack.c.l.s4 1983009808
      %v7073 = vunpack.c.0.s8 %v7072
      %v7074 = vlaneseq
      %v7075 = vshrl.u32 %v7074, 7
      %v7076 = vsub.s32 %v7073, %v7075
      %v7077 = vrot.slane %v7069, %v7076
      %v7079 = vunpack.c.l.s4 1983009808
      %v7080 = vunpack.c.0.s8 %v7079
      %v7081 = vlaneseq
      %v7082 = vshrl.u32 %v7081, 7
      %v7083 = vsub.s32 %v7080, %v7082
      %v7084 = vrot.slane %v7070, %v7083
      %v7085 = vcombine.low %v7077, %v7084
      %v7086 = vcombine.low %v3654, %v3655
      %v7087 = vcombine.low %v3656, %v3657
      %v7089 = vunpack.c.l.s4 1983009808
      %v7090 = vunpack.c.0.s8 %v7089
      %v7091 = vlaneseq
      %v7092 = vshrl.u32 %v7091, 7
      %v7093 = vsub.s32 %v7090, %v7092
      %v7094 = vrot.slane %v7086, %v7093
      %v7096 = vunpack.c.l.s4 1983009808
      %v7097 = vunpack.c.0.s8 %v7096
      %v7098 = vlaneseq
      %v7099 = vshrl.u32 %v7098, 7
      %v7100 = vsub.s32 %v7097, %v7099
      %v7101 = vrot.slane %v7087, %v7100
      %v7102 = vcombine.low %v7094, %v7101
      %v7104 = vunpack.c.l.s4 1983009808
      %v7105 = vunpack.c.0.s8 %v7104
      %v7106 = vlaneseq
      %v7107 = vshrl.u32 %v7106, 7
      %v7108 = vsub.s32 %v7105, %v7107
      %v7109 = vrot.slane %v3658, %v7108
      %7110 = vrot.lane.b32.xlu0 %v7051, 64
      %v7111 = vpop.permute.xlu0 %7110
      %7112 = vrot.lane.b32.xlu0 %v7068, 64
      %v7113 = vpop.permute.xlu0 %7112
      %7114 = vrot.lane.b32.xlu0 %v7085, 64
      %v7115 = vpop.permute.xlu0 %7114
      %7116 = vrot.lane.b32.xlu0 %v7102, 64
      %v7117 = vpop.permute.xlu0 %7116
      %7118 = vrot.lane.b32.xlu0 %v7109, 64
      %v7119 = vpop.permute.xlu0 %7118
      %v7142 = vcombine.low %v4271, %v4272
      %v7143 = vcombine.low %v4273, %v4274
      %v7145 = vunpack.c.l.s4 1983009808
      %v7146 = vunpack.c.0.s8 %v7145
      %v7147 = vlaneseq
      %v7148 = vshrl.u32 %v7147, 7
      %v7149 = vsub.s32 %v7146, %v7148
      %v7150 = vrot.slane %v7142, %v7149
      %v7152 = vunpack.c.l.s4 1983009808
      %v7153 = vunpack.c.0.s8 %v7152
      %v7154 = vlaneseq
      %v7155 = vshrl.u32 %v7154, 7
      %v7156 = vsub.s32 %v7153, %v7155
      %v7157 = vrot.slane %v7143, %v7156
      %v7158 = vcombine.low %v7150, %v7157
      %v7159 = vcombine.low %v4275, %v4276
      %v7160 = vcombine.low %v4277, %v4278
      %v7162 = vunpack.c.l.s4 1983009808
      %v7163 = vunpack.c.0.s8 %v7162
      %v7164 = vlaneseq
      %v7165 = vshrl.u32 %v7164, 7
      %v7166 = vsub.s32 %v7163, %v7165
      %v7167 = vrot.slane %v7159, %v7166
      %v7169 = vunpack.c.l.s4 1983009808
      %v7170 = vunpack.c.0.s8 %v7169
      %v7171 = vlaneseq
      %v7172 = vshrl.u32 %v7171, 7
      %v7173 = vsub.s32 %v7170, %v7172
      %v7174 = vrot.slane %v7160, %v7173
      %v7175 = vcombine.low %v7167, %v7174
      %v7176 = vcombine.low %v4279, %v4280
      %v7177 = vcombine.low %v4281, %v4282
      %v7179 = vunpack.c.l.s4 1983009808
      %v7180 = vunpack.c.0.s8 %v7179
      %v7181 = vlaneseq
      %v7182 = vshrl.u32 %v7181, 7
      %v7183 = vsub.s32 %v7180, %v7182
      %v7184 = vrot.slane %v7176, %v7183
      %v7186 = vunpack.c.l.s4 1983009808
      %v7187 = vunpack.c.0.s8 %v7186
      %v7188 = vlaneseq
      %v7189 = vshrl.u32 %v7188, 7
      %v7190 = vsub.s32 %v7187, %v7189
      %v7191 = vrot.slane %v7177, %v7190
      %v7192 = vcombine.low %v7184, %v7191
      %v7193 = vcombine.low %v4283, %v4284
      %v7194 = vcombine.low %v4285, %v4286
      %v7196 = vunpack.c.l.s4 1983009808
      %v7197 = vunpack.c.0.s8 %v7196
      %v7198 = vlaneseq
      %v7199 = vshrl.u32 %v7198, 7
      %v7200 = vsub.s32 %v7197, %v7199
      %v7201 = vrot.slane %v7193, %v7200
      %v7203 = vunpack.c.l.s4 1983009808
      %v7204 = vunpack.c.0.s8 %v7203
      %v7205 = vlaneseq
      %v7206 = vshrl.u32 %v7205, 7
      %v7207 = vsub.s32 %v7204, %v7206
      %v7208 = vrot.slane %v7194, %v7207
      %v7209 = vcombine.low %v7201, %v7208
      %v7211 = vunpack.c.l.s4 1983009808
      %v7212 = vunpack.c.0.s8 %v7211
      %v7213 = vlaneseq
      %v7214 = vshrl.u32 %v7213, 7
      %v7215 = vsub.s32 %v7212, %v7214
      %v7216 = vrot.slane %v4287, %v7215
      %7217 = vrot.lane.b32.xlu0 %v7158, 64
      %v7218 = vpop.permute.xlu0 %7217
      %7219 = vrot.lane.b32.xlu0 %v7175, 64
      %v7220 = vpop.permute.xlu0 %7219
      %7221 = vrot.lane.b32.xlu0 %v7192, 64
      %v7222 = vpop.permute.xlu0 %7221
      %7223 = vrot.lane.b32.xlu0 %v7209, 64
      %v7224 = vpop.permute.xlu0 %7223
      %7225 = vrot.lane.b32.xlu0 %v7216, 64
      %v7226 = vpop.permute.xlu0 %7225
      %v7249 = vcombine.low %v4900, %v4901
      %v7250 = vcombine.low %v4902, %v4903
      %v7252 = vunpack.c.l.s4 1983009808
      %v7253 = vunpack.c.0.s8 %v7252
      %v7254 = vlaneseq
      %v7255 = vshrl.u32 %v7254, 7
      %v7256 = vsub.s32 %v7253, %v7255
      %v7257 = vrot.slane %v7249, %v7256
      %v7259 = vunpack.c.l.s4 1983009808
      %v7260 = vunpack.c.0.s8 %v7259
      %v7261 = vlaneseq
      %v7262 = vshrl.u32 %v7261, 7
      %v7263 = vsub.s32 %v7260, %v7262
      %v7264 = vrot.slane %v7250, %v7263
      %v7265 = vcombine.low %v7257, %v7264
      %v7266 = vcombine.low %v4904, %v4905
      %v7267 = vcombine.low %v4906, %v4907
      %v7269 = vunpack.c.l.s4 1983009808
      %v7270 = vunpack.c.0.s8 %v7269
      %v7271 = vlaneseq
      %v7272 = vshrl.u32 %v7271, 7
      %v7273 = vsub.s32 %v7270, %v7272
      %v7274 = vrot.slane %v7266, %v7273
      %v7276 = vunpack.c.l.s4 1983009808
      %v7277 = vunpack.c.0.s8 %v7276
      %v7278 = vlaneseq
      %v7279 = vshrl.u32 %v7278, 7
      %v7280 = vsub.s32 %v7277, %v7279
      %v7281 = vrot.slane %v7267, %v7280
      %v7282 = vcombine.low %v7274, %v7281
      %v7283 = vcombine.low %v4908, %v4909
      %v7284 = vcombine.low %v4910, %v4911
      %v7286 = vunpack.c.l.s4 1983009808
      %v7287 = vunpack.c.0.s8 %v7286
      %v7288 = vlaneseq
      %v7289 = vshrl.u32 %v7288, 7
      %v7290 = vsub.s32 %v7287, %v7289
      %v7291 = vrot.slane %v7283, %v7290
      %v7293 = vunpack.c.l.s4 1983009808
      %v7294 = vunpack.c.0.s8 %v7293
      %v7295 = vlaneseq
      %v7296 = vshrl.u32 %v7295, 7
      %v7297 = vsub.s32 %v7294, %v7296
      %v7298 = vrot.slane %v7284, %v7297
      %v7299 = vcombine.low %v7291, %v7298
      %v7300 = vcombine.low %v4912, %v4913
      %v7301 = vcombine.low %v4914, %v4915
      %v7303 = vunpack.c.l.s4 1983009808
      %v7304 = vunpack.c.0.s8 %v7303
      %v7305 = vlaneseq
      %v7306 = vshrl.u32 %v7305, 7
      %v7307 = vsub.s32 %v7304, %v7306
      %v7308 = vrot.slane %v7300, %v7307
      %v7310 = vunpack.c.l.s4 1983009808
      %v7311 = vunpack.c.0.s8 %v7310
      %v7312 = vlaneseq
      %v7313 = vshrl.u32 %v7312, 7
      %v7314 = vsub.s32 %v7311, %v7313
      %v7315 = vrot.slane %v7301, %v7314
      %v7316 = vcombine.low %v7308, %v7315
      %v7318 = vunpack.c.l.s4 1983009808
      %v7319 = vunpack.c.0.s8 %v7318
      %v7320 = vlaneseq
      %v7321 = vshrl.u32 %v7320, 7
      %v7322 = vsub.s32 %v7319, %v7321
      %v7323 = vrot.slane %v4916, %v7322
      %7324 = vrot.lane.b32.xlu0 %v7265, 64
      %v7325 = vpop.permute.xlu0 %7324
      %7326 = vrot.lane.b32.xlu0 %v7282, 64
      %v7327 = vpop.permute.xlu0 %7326
      %7328 = vrot.lane.b32.xlu0 %v7299, 64
      %v7329 = vpop.permute.xlu0 %7328
      %7330 = vrot.lane.b32.xlu0 %v7316, 64
      %v7331 = vpop.permute.xlu0 %7330
      %7332 = vrot.lane.b32.xlu0 %v7323, 64
      %v7333 = vpop.permute.xlu0 %7332
      %v7356 = vcombine.low %v5529, %v5530
      %v7357 = vcombine.low %v5531, %v5532
      %v7359 = vunpack.c.l.s4 1983009808
      %v7360 = vunpack.c.0.s8 %v7359
      %v7361 = vlaneseq
      %v7362 = vshrl.u32 %v7361, 7
      %v7363 = vsub.s32 %v7360, %v7362
      %v7364 = vrot.slane %v7356, %v7363
      %v7366 = vunpack.c.l.s4 1983009808
      %v7367 = vunpack.c.0.s8 %v7366
      %v7368 = vlaneseq
      %v7369 = vshrl.u32 %v7368, 7
      %v7370 = vsub.s32 %v7367, %v7369
      %v7371 = vrot.slane %v7357, %v7370
      %v7372 = vcombine.low %v7364, %v7371
      %v7373 = vcombine.low %v5533, %v5534
      %v7374 = vcombine.low %v5535, %v5536
      %v7376 = vunpack.c.l.s4 1983009808
      %v7377 = vunpack.c.0.s8 %v7376
      %v7378 = vlaneseq
      %v7379 = vshrl.u32 %v7378, 7
      %v7380 = vsub.s32 %v7377, %v7379
      %v7381 = vrot.slane %v7373, %v7380
      %v7383 = vunpack.c.l.s4 1983009808
      %v7384 = vunpack.c.0.s8 %v7383
      %v7385 = vlaneseq
      %v7386 = vshrl.u32 %v7385, 7
      %v7387 = vsub.s32 %v7384, %v7386
      %v7388 = vrot.slane %v7374, %v7387
      %v7389 = vcombine.low %v7381, %v7388
      %v7390 = vcombine.low %v5537, %v5538
      %v7391 = vcombine.low %v5539, %v5540
      %v7393 = vunpack.c.l.s4 1983009808
      %v7394 = vunpack.c.0.s8 %v7393
      %v7395 = vlaneseq
      %v7396 = vshrl.u32 %v7395, 7
      %v7397 = vsub.s32 %v7394, %v7396
      %v7398 = vrot.slane %v7390, %v7397
      %v7400 = vunpack.c.l.s4 1983009808
      %v7401 = vunpack.c.0.s8 %v7400
      %v7402 = vlaneseq
      %v7403 = vshrl.u32 %v7402, 7
      %v7404 = vsub.s32 %v7401, %v7403
      %v7405 = vrot.slane %v7391, %v7404
      %v7406 = vcombine.low %v7398, %v7405
      %v7407 = vcombine.low %v5541, %v5542
      %v7408 = vcombine.low %v5543, %v5544
      %v7410 = vunpack.c.l.s4 1983009808
      %v7411 = vunpack.c.0.s8 %v7410
      %v7412 = vlaneseq
      %v7413 = vshrl.u32 %v7412, 7
      %v7414 = vsub.s32 %v7411, %v7413
      %v7415 = vrot.slane %v7407, %v7414
      %v7417 = vunpack.c.l.s4 1983009808
      %v7418 = vunpack.c.0.s8 %v7417
      %v7419 = vlaneseq
      %v7420 = vshrl.u32 %v7419, 7
      %v7421 = vsub.s32 %v7418, %v7420
      %v7422 = vrot.slane %v7408, %v7421
      %v7423 = vcombine.low %v7415, %v7422
      %v7425 = vunpack.c.l.s4 1983009808
      %v7426 = vunpack.c.0.s8 %v7425
      %v7427 = vlaneseq
      %v7428 = vshrl.u32 %v7427, 7
      %v7429 = vsub.s32 %v7426, %v7428
      %v7430 = vrot.slane %v5545, %v7429
      %7431 = vrot.lane.b32.xlu0 %v7372, 64
      %v7432 = vpop.permute.xlu0 %7431
      %7433 = vrot.lane.b32.xlu0 %v7389, 64
      %v7434 = vpop.permute.xlu0 %7433
      %7435 = vrot.lane.b32.xlu0 %v7406, 64
      %v7436 = vpop.permute.xlu0 %7435
      %7437 = vrot.lane.b32.xlu0 %v7423, 64
      %v7438 = vpop.permute.xlu0 %7437
      %7439 = vrot.lane.b32.xlu0 %v7430, 64
      %v7440 = vpop.permute.xlu0 %7439
      %v7463 = vcombine.low %v6158, %v6159
      %v7464 = vcombine.low %v6160, %v6161
      %v7466 = vunpack.c.l.s4 1983009808
      %v7467 = vunpack.c.0.s8 %v7466
      %v7468 = vlaneseq
      %v7469 = vshrl.u32 %v7468, 7
      %v7470 = vsub.s32 %v7467, %v7469
      %v7471 = vrot.slane %v7463, %v7470
      %v7473 = vunpack.c.l.s4 1983009808
      %v7474 = vunpack.c.0.s8 %v7473
      %v7475 = vlaneseq
      %v7476 = vshrl.u32 %v7475, 7
      %v7477 = vsub.s32 %v7474, %v7476
      %v7478 = vrot.slane %v7464, %v7477
      %v7479 = vcombine.low %v7471, %v7478
      %v7480 = vcombine.low %v6162, %v6163
      %v7481 = vcombine.low %v6164, %v6165
      %v7483 = vunpack.c.l.s4 1983009808
      %v7484 = vunpack.c.0.s8 %v7483
      %v7485 = vlaneseq
      %v7486 = vshrl.u32 %v7485, 7
      %v7487 = vsub.s32 %v7484, %v7486
      %v7488 = vrot.slane %v7480, %v7487
      %v7490 = vunpack.c.l.s4 1983009808
      %v7491 = vunpack.c.0.s8 %v7490
      %v7492 = vlaneseq
      %v7493 = vshrl.u32 %v7492, 7
      %v7494 = vsub.s32 %v7491, %v7493
      %v7495 = vrot.slane %v7481, %v7494
      %v7496 = vcombine.low %v7488, %v7495
      %v7497 = vcombine.low %v6166, %v6167
      %v7498 = vcombine.low %v6168, %v6169
      %v7500 = vunpack.c.l.s4 1983009808
      %v7501 = vunpack.c.0.s8 %v7500
      %v7502 = vlaneseq
      %v7503 = vshrl.u32 %v7502, 7
      %v7504 = vsub.s32 %v7501, %v7503
      %v7505 = vrot.slane %v7497, %v7504
      %v7507 = vunpack.c.l.s4 1983009808
      %v7508 = vunpack.c.0.s8 %v7507
      %v7509 = vlaneseq
      %v7510 = vshrl.u32 %v7509, 7
      %v7511 = vsub.s32 %v7508, %v7510
      %v7512 = vrot.slane %v7498, %v7511
      %v7513 = vcombine.low %v7505, %v7512
      %v7514 = vcombine.low %v6170, %v6171
      %v7515 = vcombine.low %v6172, %v6173
      %v7517 = vunpack.c.l.s4 1983009808
      %v7518 = vunpack.c.0.s8 %v7517
      %v7519 = vlaneseq
      %v7520 = vshrl.u32 %v7519, 7
      %v7521 = vsub.s32 %v7518, %v7520
      %v7522 = vrot.slane %v7514, %v7521
      %v7524 = vunpack.c.l.s4 1983009808
      %v7525 = vunpack.c.0.s8 %v7524
      %v7526 = vlaneseq
      %v7527 = vshrl.u32 %v7526, 7
      %v7528 = vsub.s32 %v7525, %v7527
      %v7529 = vrot.slane %v7515, %v7528
      %v7530 = vcombine.low %v7522, %v7529
      %v7532 = vunpack.c.l.s4 1983009808
      %v7533 = vunpack.c.0.s8 %v7532
      %v7534 = vlaneseq
      %v7535 = vshrl.u32 %v7534, 7
      %v7536 = vsub.s32 %v7533, %v7535
      %v7537 = vrot.slane %v6174, %v7536
      %7538 = vrot.lane.b32.xlu0 %v7479, 64
      %v7539 = vpop.permute.xlu0 %7538
      %7540 = vrot.lane.b32.xlu0 %v7496, 64
      %v7541 = vpop.permute.xlu0 %7540
      %7542 = vrot.lane.b32.xlu0 %v7513, 64
      %v7543 = vpop.permute.xlu0 %7542
      %7544 = vrot.lane.b32.xlu0 %v7530, 64
      %v7545 = vpop.permute.xlu0 %7544
      %7546 = vrot.lane.b32.xlu0 %v7537, 64
      %v7547 = vpop.permute.xlu0 %7546
      %v7570 = vcombine.low %v6787, %v6788
      %v7571 = vcombine.low %v6789, %v6790
      %v7573 = vunpack.c.l.s4 1983009808
      %v7574 = vunpack.c.0.s8 %v7573
      %v7575 = vlaneseq
      %v7576 = vshrl.u32 %v7575, 7
      %v7577 = vsub.s32 %v7574, %v7576
      %v7578 = vrot.slane %v7570, %v7577
      %v7580 = vunpack.c.l.s4 1983009808
      %v7581 = vunpack.c.0.s8 %v7580
      %v7582 = vlaneseq
      %v7583 = vshrl.u32 %v7582, 7
      %v7584 = vsub.s32 %v7581, %v7583
      %v7585 = vrot.slane %v7571, %v7584
      %v7586 = vcombine.low %v7578, %v7585
      %v7587 = vcombine.low %v6791, %v6792
      %v7588 = vcombine.low %v6793, %v6794
      %v7590 = vunpack.c.l.s4 1983009808
      %v7591 = vunpack.c.0.s8 %v7590
      %v7592 = vlaneseq
      %v7593 = vshrl.u32 %v7592, 7
      %v7594 = vsub.s32 %v7591, %v7593
      %v7595 = vrot.slane %v7587, %v7594
      %v7597 = vunpack.c.l.s4 1983009808
      %v7598 = vunpack.c.0.s8 %v7597
      %v7599 = vlaneseq
      %v7600 = vshrl.u32 %v7599, 7
      %v7601 = vsub.s32 %v7598, %v7600
      %v7602 = vrot.slane %v7588, %v7601
      %v7603 = vcombine.low %v7595, %v7602
      %v7604 = vcombine.low %v6795, %v6796
      %v7605 = vcombine.low %v6797, %v6798
      %v7607 = vunpack.c.l.s4 1983009808
      %v7608 = vunpack.c.0.s8 %v7607
      %v7609 = vlaneseq
      %v7610 = vshrl.u32 %v7609, 7
      %v7611 = vsub.s32 %v7608, %v7610
      %v7612 = vrot.slane %v7604, %v7611
      %v7614 = vunpack.c.l.s4 1983009808
      %v7615 = vunpack.c.0.s8 %v7614
      %v7616 = vlaneseq
      %v7617 = vshrl.u32 %v7616, 7
      %v7618 = vsub.s32 %v7615, %v7617
      %v7619 = vrot.slane %v7605, %v7618
      %v7620 = vcombine.low %v7612, %v7619
      %v7621 = vcombine.low %v6799, %v6800
      %v7622 = vcombine.low %v6801, %v6802
      %v7624 = vunpack.c.l.s4 1983009808
      %v7625 = vunpack.c.0.s8 %v7624
      %v7626 = vlaneseq
      %v7627 = vshrl.u32 %v7626, 7
      %v7628 = vsub.s32 %v7625, %v7627
      %v7629 = vrot.slane %v7621, %v7628
      %v7631 = vunpack.c.l.s4 1983009808
      %v7632 = vunpack.c.0.s8 %v7631
      %v7633 = vlaneseq
      %v7634 = vshrl.u32 %v7633, 7
      %v7635 = vsub.s32 %v7632, %v7634
      %v7636 = vrot.slane %v7622, %v7635
      %v7637 = vcombine.low %v7629, %v7636
      %v7639 = vunpack.c.l.s4 1983009808
      %v7640 = vunpack.c.0.s8 %v7639
      %v7641 = vlaneseq
      %v7642 = vshrl.u32 %v7641, 7
      %v7643 = vsub.s32 %v7640, %v7642
      %v7644 = vrot.slane %v6803, %v7643
      %7645 = vrot.lane.b32.xlu0 %v7586, 64
      %v7646 = vpop.permute.xlu0 %7645
      %7647 = vrot.lane.b32.xlu0 %v7603, 64
      %v7648 = vpop.permute.xlu0 %7647
      %7649 = vrot.lane.b32.xlu0 %v7620, 64
      %v7650 = vpop.permute.xlu0 %7649
      %7651 = vrot.lane.b32.xlu0 %v7637, 64
      %v7652 = vpop.permute.xlu0 %7651
      %7653 = vrot.lane.b32.xlu0 %v7644, 64
      %v7654 = vpop.permute.xlu0 %7653
      %vm7660 = vcmask 31744
      %v7661 = vsel %vm7660, %v6897, %v7004
      %v7662 = vsel %vm7660, %v6899, %v7006
      %v7663 = vsel %vm7660, %v6901, %v7008
      %v7664 = vsel %vm7660, %v6903, %v7010
      %v7665 = vsel %vm7660, %v6905, %v7012
      %vm7666 = vcmask 64512
      %v7667 = vsel %vm7666, %v7661, %v7111
      %v7668 = vsel %vm7666, %v7662, %v7113
      %v7669 = vsel %vm7666, %v7663, %v7115
      %v7670 = vsel %vm7666, %v7664, %v7117
      %v7671 = vsel %vm7666, %v7665, %v7119
      %vm7672 = vcmask 97280
      %v7673 = vsel %vm7672, %v7667, %v7218
      %v7674 = vsel %vm7672, %v7668, %v7220
      %v7675 = vsel %vm7672, %v7669, %v7222
      %v7676 = vsel %vm7672, %v7670, %v7224
      %v7677 = vsel %vm7672, %v7671, %v7226
      %vm7678 = vcmask 130048
      %v7679 = vsel %vm7678, %v7673, %v7325
      %v7680 = vsel %vm7678, %v7674, %v7327
      %v7681 = vsel %vm7678, %v7675, %v7329
      %v7682 = vsel %vm7678, %v7676, %v7331
      %v7683 = vsel %vm7678, %v7677, %v7333
      %vm7684 = vcmask 162816
      %v7685 = vsel %vm7684, %v7679, %v7432
      %v7686 = vsel %vm7684, %v7680, %v7434
      %v7687 = vsel %vm7684, %v7681, %v7436
      %v7688 = vsel %vm7684, %v7682, %v7438
      %v7689 = vsel %vm7684, %v7683, %v7440
      %vm7690 = vcmask 195584
      %v7691 = vsel %vm7690, %v7685, %v7539
      %v7692 = vsel %vm7690, %v7686, %v7541
      %v7693 = vsel %vm7690, %v7687, %v7543
      %v7694 = vsel %vm7690, %v7688, %v7545
      %v7695 = vsel %vm7690, %v7689, %v7547
      %vm7696 = vcmask 228352
      %v7697 = vsel %vm7696, %v7691, %v7646
      %v7698 = vsel %vm7696, %v7692, %v7648
      %v7699 = vsel %vm7696, %v7693, %v7650
      %v7700 = vsel %vm7696, %v7694, %v7652
      %v7701 = vsel %vm7696, %v7695, %v7654
      %v7702 = vpack.c.bf16 %v7698, %v7697
      %v7703 = vpack.c.bf16 %v7700, %v7699
      %v7704 = vpack.c.bf16 %v7701, %v7701
      %v7705 = vld [vmem:[%s612] sm:$0xf]
      %v7706 = vld [vmem:[%s612 + $0x4] sm:$0xf]
      %v7707 = vld [vmem:[%s612 + $0x8] sm:$0xf]
      %v7708 = vld [vmem:[%s612 + $0xc] sm:$0xf]
      %v7709 = vld [vmem:[%s615] sm:$0x1]
      %v7711 = vlaneseq
      %v7712 = vshrl.u32 %v7711, 7
      %v7713 = vsub.s32 0, %v7712
      %v7714 = vrot.slane %v7709, %v7713
      %v7720 = vunpack.c.l.b16 %v7705
      %v7721 = vunpack.c.l.b16 %v7706
      %v7722 = vunpack.c.l.b16 %v7707
      %v7723 = vunpack.c.l.b16 %v7708
      %v7724 = vpack.c.b16 %v7721, %v7720
      %v7725 = vpack.c.b16 %v7723, %v7722
      %v7729 = vsel %vm675, %v7702, 0
      %v7732 = vsel %vm675, %v7703, 0
      %v7735 = vsel %vm675, %v7704, 0
      %7737 = vmatprep.subr.bf16.mxu0 0
      %7738 = vmatpush1.bf16.msra.mxu0 0
      %7739 = vmatprep.subr.bf16.mxu0 0
      %7740 = vmatpush1.bf16.msra.mxu0 0
      %7741 = vmatprep.subr.bf16.mxu0 0
      %7742 = vmatpush1.bf16.msra.mxu0 0
      %7743 = vmatprep.subr.bf16.mxu0 0
      %7744 = vmatpush1.bf16.msra.mxu0 0
      %7745 = vmatprep.subr.bf16.mxu0 0
      %7746 = vmatpush1.bf16.msra.mxu0 0
      %7747 = vmatprep.subr.bf16.mxu0 0
      %7748 = vmatpush1.bf16.msra.mxu0 0
      %7749 = vmatprep.subr.bf16.mxu0 0
      %7750 = vmatpush1.bf16.msra.mxu0 %v7725
      %7751 = vmatprep.subr.bf16.mxu0 0
      %7752 = vmatpush1.bf16.msra.mxu0 %v7724
      %7753 = vmatprep.subr.bf16.mxu0 0
      %7754 = vmatpush2.bf16.msra.mxu0 0
      %7755 = vmatprep.subr.bf16.mxu0 0
      %7756 = vmatpush2.bf16.msra.mxu0 0
      %7757 = vmatprep.subr.bf16.mxu0 0
      %7758 = vmatpush2.bf16.msra.mxu0 0
      %7759 = vmatprep.subr.bf16.mxu0 0
      %7760 = vmatpush2.bf16.msra.mxu0 0
      %7761 = vmatprep.subr.bf16.mxu0 0
      %7762 = vmatpush2.bf16.msra.mxu0 0
      %7763 = vmatprep.subr.bf16.mxu0 0
      %7764 = vmatpush2.bf16.msra.mxu0 0
      %7765 = vmatprep.subr.bf16.mxu0 0
      %7766 = vmatpush2.bf16.msra.mxu0 0
      %7767 = vmatprep.subr.bf16.mxu0 0
      %7768 = vmatpush2.bf16.msra.mxu0 0
      %7769 = vmatprep.mubr.bf16.mxu0 0
      %7770 = vmatmul.mubr.bf16.gmra.mxu0 %v7729
      %v7771 = vpop.f32.mrf.mxu0
      %v7772 = vadd.f32 %v7714, %v7771
      %v7773 = vpop.f32.mrf.mxu0
      %v7774 = vpop.f32.mrf.mxu0
      %v7775 = vadd.f32 %v7714, %v7774
      %v7776 = vpop.f32.mrf.mxu0
      %7777 = vmatprep.mubr.bf16.mxu0 0
      %7778 = vmatmul.mubr.bf16.gmra.mxu0 %v7732
      %v7779 = vpop.f32.mrf.mxu0
      %v7780 = vadd.f32 %v7714, %v7779
      %v7781 = vpop.f32.mrf.mxu0
      %v7782 = vpop.f32.mrf.mxu0
      %v7783 = vadd.f32 %v7714, %v7782
      %v7784 = vpop.f32.mrf.mxu0
      %7785 = vmatprep.mubr.bf16.mxu0 0
      %7786 = vmatmul.mubr.bf16.gmra.mxu0 %v7735
      %v7787 = vpop.f32.mrf.mxu0
      %v7788 = vadd.f32 %v7714, %v7787
      %v7789 = vpop.f32.mrf.mxu0
      %v7790 = vpop.f32.mrf.mxu0
      %v7791 = vpop.f32.mrf.mxu0
      %7792 = vdwg.mxu0
      %v7793 = vadd.f32 %v668, %v7772
      %v7794 = vadd.f32 %v669, %v7775
      %v7795 = vadd.f32 %v670, %v7780
      %v7796 = vadd.f32 %v671, %v7783
      %v7797 = vadd.f32 %v672, %v7788
      %v7798 = vld [vmem:[%s624] sm:$0x1]
      %v7799 = vld [vmem:[%s627] sm:$0x1]
      %v7800 = vsel %vm675, %v7793, 0.0
      %7801 = vadd.xlane.f32.xlu0 %v7800
      %v7802 = vpop.xlane.xlu0 %7801
      %v7803 = vsel %vm675, %v7794, 0.0
      %7804 = vadd.xlane.f32.xlu0 %v7803
      %v7805 = vpop.xlane.xlu0 %7804
      %v7806 = vsel %vm675, %v7795, 0.0
      %7807 = vadd.xlane.f32.xlu0 %v7806
      %v7808 = vpop.xlane.xlu0 %7807
      %v7809 = vsel %vm675, %v7796, 0.0
      %7810 = vadd.xlane.f32.xlu0 %v7809
      %v7811 = vpop.xlane.xlu0 %7810
      %v7812 = vsel %vm688, %v7797, 0.0
      %7813 = vadd.xlane.f32.xlu0 %v7812
      %v7814 = vpop.xlane.xlu0 %7813
      %v7815 = vmul.f32 %v7802, %v692
      %v7816 = vmul.f32 %v7805, %v692
      %v7817 = vmul.f32 %v7808, %v692
      %v7818 = vmul.f32 %v7811, %v692
      %v7819 = vmul.f32 %v7814, %v692
      %v7820 = vsub.f32 %v7793, %v7815
      %v7821 = vsub.f32 %v7794, %v7816
      %v7822 = vsub.f32 %v7795, %v7817
      %v7823 = vsub.f32 %v7796, %v7818
      %v7824 = vsub.f32 %v7797, %v7819
      %v7825 = vmul.f32 %v7820, %v7820
      %v7826 = vmul.f32 %v7821, %v7821
      %v7827 = vmul.f32 %v7822, %v7822
      %v7828 = vmul.f32 %v7823, %v7823
      %v7829 = vmul.f32 %v7824, %v7824
      %v7830 = vsel %vm675, %v7825, 0.0
      %7831 = vadd.xlane.f32.xlu0 %v7830
      %v7832 = vpop.xlane.xlu0 %7831
      %v7833 = vsel %vm675, %v7826, 0.0
      %7834 = vadd.xlane.f32.xlu0 %v7833
      %v7835 = vpop.xlane.xlu0 %7834
      %v7836 = vsel %vm675, %v7827, 0.0
      %7837 = vadd.xlane.f32.xlu0 %v7836
      %v7838 = vpop.xlane.xlu0 %7837
      %v7839 = vsel %vm675, %v7828, 0.0
      %7840 = vadd.xlane.f32.xlu0 %v7839
      %v7841 = vpop.xlane.xlu0 %7840
      %v7842 = vsel %vm688, %v7829, 0.0
      %7843 = vadd.xlane.f32.xlu0 %v7842
      %v7844 = vpop.xlane.xlu0 %7843
      %v7845 = vmul.f32 %v7832, %v692
      %v7846 = vmul.f32 %v7835, %v692
      %v7847 = vmul.f32 %v7838, %v692
      %v7848 = vmul.f32 %v7841, %v692
      %v7849 = vmul.f32 %v7844, %v692
      %v7850 = vadd.f32 %v7845, 1e-05
      %v7851 = vadd.f32 %v7846, 1e-05
      %v7852 = vadd.f32 %v7847, 1e-05
      %v7853 = vadd.f32 %v7848, 1e-05
      %v7854 = vadd.f32 %v7849, 1e-05
      %v7855 = vrsqrt.pop %v7850
      %v7856 = vrsqrt.pop %v7851
      %v7857 = vrsqrt.pop %v7852
      %v7858 = vrsqrt.pop %v7853
      %v7859 = vrsqrt.pop %v7854
      %v7860 = vmul.f32 %v7820, %v7855
      %v7861 = vmul.f32 %v7821, %v7856
      %v7862 = vmul.f32 %v7822, %v7857
      %v7863 = vmul.f32 %v7823, %v7858
      %v7864 = vmul.f32 %v7824, %v7859
      %v7866 = vlaneseq
      %v7867 = vshrl.u32 %v7866, 7
      %v7868 = vsub.s32 0, %v7867
      %v7869 = vrot.slane %v7798, %v7868
      %v7871 = vmul.f32 %v7860, %v7869
      %v7872 = vmul.f32 %v7861, %v7869
      %v7873 = vmul.f32 %v7862, %v7869
      %v7874 = vmul.f32 %v7863, %v7869
      %v7875 = vmul.f32 %v7864, %v7869
      %v7877 = vlaneseq
      %v7878 = vshrl.u32 %v7877, 7
      %v7879 = vsub.s32 0, %v7878
      %v7880 = vrot.slane %v7799, %v7879
      %v7882 = vadd.f32 %v7871, %v7880
      %v7883 = vadd.f32 %v7872, %v7880
      %v7884 = vadd.f32 %v7873, %v7880
      %v7885 = vadd.f32 %v7874, %v7880
      %v7886 = vadd.f32 %v7875, %v7880
      %v7887 = vpack.c.bf16 %v7883, %v7882
      %v7888 = vpack.c.bf16 %v7885, %v7884
      %v7889 = vpack.c.bf16 %v7886, %v7886
      %v7890 = vld [vmem:[%s632] sm:$0xff]
      %v7891 = vld [vmem:[%s632 + $0x8] sm:$0xff]
      %v7892 = vld [vmem:[%s632 + $0x10] sm:$0xff]
      %v7893 = vld [vmem:[%s632 + $0x18] sm:$0xff]
      %v7894 = vld [vmem:[%s632 + $0x20] sm:$0xff]
      %v7895 = vld [vmem:[%s632 + $0x28] sm:$0xff]
      %v7896 = vld [vmem:[%s632 + $0x30] sm:$0xff]
      %v7897 = vld [vmem:[%s632 + $0x38] sm:$0xff]
      %v7898 = vld [vmem:[%s632 + $0x40] sm:$0xff]
      %v7899 = vld [vmem:[%s632 + $0x48] sm:$0xff]
      %v7900 = vld [vmem:[%s632 + $0x50] sm:$0xff]
      %v7901 = vld [vmem:[%s632 + $0x58] sm:$0xff]
      %v7902 = vld [vmem:[%s632 + $0x60] sm:$0xff]
      %v7903 = vld [vmem:[%s632 + $0x68] sm:$0xff]
      %v7904 = vld [vmem:[%s632 + $0x70] sm:$0xff]
      %v7905 = vld [vmem:[%s632 + $0x78] sm:$0xff]
      %v7906 = vld [vmem:[%s632 + $0x80] sm:$0xff]
      %v7907 = vld [vmem:[%s632 + $0x88] sm:$0xff]
      %v7908 = vld [vmem:[%s632 + $0x90] sm:$0xff]
      %v7909 = vld [vmem:[%s632 + $0x98] sm:$0xff]
      %v7910 = vld [vmem:[%s632 + $0xa0] sm:$0xff]
      %v7911 = vld [vmem:[%s632 + $0xa8] sm:$0xff]
      %v7912 = vld [vmem:[%s632 + $0xb0] sm:$0xff]
      %v7913 = vld [vmem:[%s632 + $0xb8] sm:$0xff]
      %v7914 = vld [vmem:[%s632 + $0xc0] sm:$0xff]
      %v7915 = vld [vmem:[%s632 + $0xc8] sm:$0xff]
      %v7916 = vld [vmem:[%s632 + $0xd0] sm:$0xff]
      %v7917 = vld [vmem:[%s632 + $0xd8] sm:$0xff]
      %v7918 = vld [vmem:[%s632 + $0xe0] sm:$0xff]
      %v7919 = vld [vmem:[%s632 + $0xe8] sm:$0xff]
      %v7920 = vld [vmem:[%s632 + $0xf0] sm:$0xff]
      %v7921 = vld [vmem:[%s632 + $0xf8] sm:$0xff]
      %v7922 = vld [vmem:[%s636] sm:$0xff]
      %v7923 = vld [vmem:[%s636 + $0x8] sm:$0xff]
      %v7926 = vlaneseq
      %v7927 = vshrl.u32 %v7926, 7
      %v7928 = vsub.s32 0, %v7927
      %v7929 = vrot.slane %v7922, %v7928
      %v7930 = vlaneseq
      %v7931 = vshrl.u32 %v7930, 7
      %v7932 = vsub.s32 1, %v7931
      %v7933 = vrot.slane %v7922, %v7932
      %v7934 = vlaneseq
      %v7935 = vshrl.u32 %v7934, 7
      %v7936 = vsub.s32 2, %v7935
      %v7937 = vrot.slane %v7922, %v7936
      %v7938 = vlaneseq
      %v7939 = vshrl.u32 %v7938, 7
      %v7940 = vsub.s32 3, %v7939
      %v7941 = vrot.slane %v7922, %v7940
      %v7942 = vlaneseq
      %v7943 = vshrl.u32 %v7942, 7
      %v7944 = vsub.s32 4, %v7943
      %v7945 = vrot.slane %v7922, %v7944
      %v7946 = vlaneseq
      %v7947 = vshrl.u32 %v7946, 7
      %v7948 = vsub.s32 5, %v7947
      %v7949 = vrot.slane %v7922, %v7948
      %v7950 = vlaneseq
      %v7951 = vshrl.u32 %v7950, 7
      %v7952 = vsub.s32 6, %v7951
      %v7953 = vrot.slane %v7922, %v7952
      %v7954 = vlaneseq
      %v7955 = vshrl.u32 %v7954, 7
      %v7956 = vsub.s32 7, %v7955
      %v7957 = vrot.slane %v7922, %v7956
      %v7958 = vlaneseq
      %v7959 = vshrl.u32 %v7958, 7
      %v7960 = vsub.s32 0, %v7959
      %v7961 = vrot.slane %v7923, %v7960
      %v7962 = vlaneseq
      %v7963 = vshrl.u32 %v7962, 7
      %v7964 = vsub.s32 1, %v7963
      %v7965 = vrot.slane %v7923, %v7964
      %v7966 = vlaneseq
      %v7967 = vshrl.u32 %v7966, 7
      %v7968 = vsub.s32 2, %v7967
      %v7969 = vrot.slane %v7923, %v7968
      %v7970 = vlaneseq
      %v7971 = vshrl.u32 %v7970, 7
      %v7972 = vsub.s32 3, %v7971
      %v7973 = vrot.slane %v7923, %v7972
      %v7974 = vlaneseq
      %v7975 = vshrl.u32 %v7974, 7
      %v7976 = vsub.s32 4, %v7975
      %v7977 = vrot.slane %v7923, %v7976
      %v7978 = vlaneseq
      %v7979 = vshrl.u32 %v7978, 7
      %v7980 = vsub.s32 5, %v7979
      %v7981 = vrot.slane %v7923, %v7980
      %v7982 = vlaneseq
      %v7983 = vshrl.u32 %v7982, 7
      %v7984 = vsub.s32 6, %v7983
      %v7985 = vrot.slane %v7923, %v7984
      %v7986 = vlaneseq
      %v7987 = vshrl.u32 %v7986, 7
      %v7988 = vsub.s32 7, %v7987
      %v7989 = vrot.slane %v7923, %v7988
      %v8038 = vunpack.c.l.b16 %v7890
      %v8039 = vunpack.c.h.b16 %v7890
      %v8040 = vunpack.c.l.b16 %v7891
      %v8041 = vunpack.c.h.b16 %v7891
      %v8042 = vunpack.c.l.b16 %v7892
      %v8043 = vunpack.c.h.b16 %v7892
      %v8044 = vunpack.c.l.b16 %v7893
      %v8045 = vunpack.c.h.b16 %v7893
      %v8046 = vunpack.c.l.b16 %v7894
      %v8047 = vunpack.c.h.b16 %v7894
      %v8048 = vunpack.c.l.b16 %v7895
      %v8049 = vunpack.c.h.b16 %v7895
      %v8050 = vunpack.c.l.b16 %v7896
      %v8051 = vunpack.c.h.b16 %v7896
      %v8052 = vunpack.c.l.b16 %v7897
      %v8053 = vunpack.c.h.b16 %v7897
      %v8054 = vunpack.c.l.b16 %v7898
      %v8055 = vunpack.c.h.b16 %v7898
      %v8056 = vunpack.c.l.b16 %v7899
      %v8057 = vunpack.c.h.b16 %v7899
      %v8058 = vunpack.c.l.b16 %v7900
      %v8059 = vunpack.c.h.b16 %v7900
      %v8060 = vunpack.c.l.b16 %v7901
      %v8061 = vunpack.c.h.b16 %v7901
      %v8062 = vunpack.c.l.b16 %v7902
      %v8063 = vunpack.c.h.b16 %v7902
      %v8064 = vunpack.c.l.b16 %v7903
      %v8065 = vunpack.c.h.b16 %v7903
      %v8066 = vunpack.c.l.b16 %v7904
      %v8067 = vunpack.c.h.b16 %v7904
      %v8068 = vunpack.c.l.b16 %v7905
      %v8069 = vunpack.c.h.b16 %v7905
      %v8070 = vunpack.c.l.b16 %v7906
      %v8071 = vunpack.c.h.b16 %v7906
      %v8072 = vunpack.c.l.b16 %v7907
      %v8073 = vunpack.c.h.b16 %v7907
      %v8074 = vunpack.c.l.b16 %v7908
      %v8075 = vunpack.c.h.b16 %v7908
      %v8076 = vunpack.c.l.b16 %v7909
      %v8077 = vunpack.c.h.b16 %v7909
      %v8078 = vunpack.c.l.b16 %v7910
      %v8079 = vunpack.c.h.b16 %v7910
      %v8080 = vunpack.c.l.b16 %v7911
      %v8081 = vunpack.c.h.b16 %v7911
      %v8082 = vunpack.c.l.b16 %v7912
      %v8083 = vunpack.c.h.b16 %v7912
      %v8084 = vunpack.c.l.b16 %v7913
      %v8085 = vunpack.c.h.b16 %v7913
      %v8086 = vunpack.c.l.b16 %v7914
      %v8087 = vunpack.c.h.b16 %v7914
      %v8088 = vunpack.c.l.b16 %v7915
      %v8089 = vunpack.c.h.b16 %v7915
      %v8090 = vunpack.c.l.b16 %v7916
      %v8091 = vunpack.c.h.b16 %v7916
      %v8092 = vunpack.c.l.b16 %v7917
      %v8093 = vunpack.c.h.b16 %v7917
      %v8094 = vunpack.c.l.b16 %v7918
      %v8095 = vunpack.c.h.b16 %v7918
      %v8096 = vunpack.c.l.b16 %v7919
      %v8097 = vunpack.c.h.b16 %v7919
      %v8098 = vunpack.c.l.b16 %v7920
      %v8099 = vunpack.c.h.b16 %v7920
      %v8100 = vunpack.c.l.b16 %v7921
      %v8101 = vunpack.c.h.b16 %v7921
      %v8102 = vpack.c.b16 %v8054, %v8038
      %v8103 = vpack.c.b16 %v8055, %v8039
      %v8104 = vpack.c.b16 %v8056, %v8040
      %v8105 = vpack.c.b16 %v8057, %v8041
      %v8106 = vpack.c.b16 %v8058, %v8042
      %v8107 = vpack.c.b16 %v8059, %v8043
      %v8108 = vpack.c.b16 %v8060, %v8044
      %v8109 = vpack.c.b16 %v8061, %v8045
      %v8110 = vpack.c.b16 %v8062, %v8046
      %v8111 = vpack.c.b16 %v8063, %v8047
      %v8112 = vpack.c.b16 %v8064, %v8048
      %v8113 = vpack.c.b16 %v8065, %v8049
      %v8114 = vpack.c.b16 %v8066, %v8050
      %v8115 = vpack.c.b16 %v8067, %v8051
      %v8116 = vpack.c.b16 %v8068, %v8052
      %v8117 = vpack.c.b16 %v8069, %v8053
      %v8118 = vpack.c.b16 %v8086, %v8070
      %v8119 = vpack.c.b16 %v8087, %v8071
      %v8120 = vpack.c.b16 %v8088, %v8072
      %v8121 = vpack.c.b16 %v8089, %v8073
      %v8122 = vpack.c.b16 %v8090, %v8074
      %v8123 = vpack.c.b16 %v8091, %v8075
      %v8124 = vpack.c.b16 %v8092, %v8076
      %v8125 = vpack.c.b16 %v8093, %v8077
      %v8126 = vpack.c.b16 %v8094, %v8078
      %v8127 = vpack.c.b16 %v8095, %v8079
      %v8128 = vpack.c.b16 %v8096, %v8080
      %v8129 = vpack.c.b16 %v8097, %v8081
      %v8130 = vpack.c.b16 %v8098, %v8082
      %v8131 = vpack.c.b16 %v8099, %v8083
      %v8132 = vpack.c.b16 %v8100, %v8084
      %v8133 = vpack.c.b16 %v8101, %v8085
      %v8167 = vsel %vm675, %v7887, 0
      %v8170 = vsel %vm675, %v7888, 0
      %v8173 = vsel %vm675, %v7889, 0
      %8175 = vmatprep.subr.bf16.mxu0 0
      %8176 = vmatpush1.bf16.msra.mxu0 0
      %8177 = vmatprep.subr.bf16.mxu0 0
      %8178 = vmatpush1.bf16.msra.mxu0 0
      %8179 = vmatprep.subr.bf16.mxu0 0
      %8180 = vmatpush1.bf16.msra.mxu0 0
      %8181 = vmatprep.subr.bf16.mxu0 0
      %8182 = vmatpush1.bf16.msra.mxu0 0
      %8183 = vmatprep.subr.bf16.mxu0 0
      %8184 = vmatpush1.bf16.msra.mxu0 0
      %8185 = vmatprep.subr.bf16.mxu0 0
      %8186 = vmatpush1.bf16.msra.mxu0 0
      %8187 = vmatprep.subr.bf16.mxu0 %v8119
      %8188 = vmatpush1.bf16.msra.mxu0 %v8118
      %8189 = vmatprep.subr.bf16.mxu0 %v8103
      %8190 = vmatpush1.bf16.msra.mxu0 %v8102
      %8191 = vmatprep.subr.bf16.mxu0 0
      %8192 = vmatpush2.bf16.msra.mxu0 0
      %8193 = vmatprep.subr.bf16.mxu0 0
      %8194 = vmatpush2.bf16.msra.mxu0 0
      %8195 = vmatprep.subr.bf16.mxu0 0
      %8196 = vmatpush2.bf16.msra.mxu0 0
      %8197 = vmatprep.subr.bf16.mxu0 0
      %8198 = vmatpush2.bf16.msra.mxu0 0
      %8199 = vmatprep.subr.bf16.mxu0 0
      %8200 = vmatpush2.bf16.msra.mxu0 0
      %8201 = vmatprep.subr.bf16.mxu0 0
      %8202 = vmatpush2.bf16.msra.mxu0 0
      %8203 = vmatprep.subr.bf16.mxu0 0
      %8204 = vmatpush2.bf16.msra.mxu0 0
      %8205 = vmatprep.subr.bf16.mxu0 0
      %8206 = vmatpush2.bf16.msra.mxu0 0
      %8207 = vmatprep.mubr.bf16.mxu0 0
      %8208 = vmatmul.mubr.bf16.gmra.mxu0 %v8167
      %v8209 = vpop.f32.mrf.mxu0
      %v8210 = vadd.f32 %v7929, %v8209
      %v8211 = vpop.f32.mrf.mxu0
      %v8212 = vadd.f32 %v7933, %v8211
      %v8213 = vpop.f32.mrf.mxu0
      %v8214 = vadd.f32 %v7929, %v8213
      %v8215 = vpop.f32.mrf.mxu0
      %v8216 = vadd.f32 %v7933, %v8215
      %8217 = vmatprep.mubr.bf16.mxu0 0
      %8218 = vmatmul.mubr.bf16.gmra.mxu0 %v8170
      %v8219 = vpop.f32.mrf.mxu0
      %v8220 = vadd.f32 %v7929, %v8219
      %v8221 = vpop.f32.mrf.mxu0
      %v8222 = vadd.f32 %v7933, %v8221
      %v8223 = vpop.f32.mrf.mxu0
      %v8224 = vadd.f32 %v7929, %v8223
      %v8225 = vpop.f32.mrf.mxu0
      %v8226 = vadd.f32 %v7933, %v8225
      %8227 = vmatprep.mubr.bf16.mxu0 0
      %8228 = vmatmul.mubr.bf16.gmra.mxu0 %v8173
      %v8229 = vpop.f32.mrf.mxu0
      %v8230 = vadd.f32 %v7929, %v8229
      %v8231 = vpop.f32.mrf.mxu0
      %v8232 = vadd.f32 %v7933, %v8231
      %v8233 = vpop.f32.mrf.mxu0
      %v8234 = vpop.f32.mrf.mxu0
      %8235 = vdwg.mxu0
      %8236 = vmatprep.subr.bf16.mxu0 0
      %8237 = vmatpush1.bf16.msra.mxu0 0
      %8238 = vmatprep.subr.bf16.mxu0 0
      %8239 = vmatpush1.bf16.msra.mxu0 0
      %8240 = vmatprep.subr.bf16.mxu0 0
      %8241 = vmatpush1.bf16.msra.mxu0 0
      %8242 = vmatprep.subr.bf16.mxu0 0
      %8243 = vmatpush1.bf16.msra.mxu0 0
      %8244 = vmatprep.subr.bf16.mxu0 0
      %8245 = vmatpush1.bf16.msra.mxu0 0
      %8246 = vmatprep.subr.bf16.mxu0 0
      %8247 = vmatpush1.bf16.msra.mxu0 0
      %8248 = vmatprep.subr.bf16.mxu0 %v8121
      %8249 = vmatpush1.bf16.msra.mxu0 %v8120
      %8250 = vmatprep.subr.bf16.mxu0 %v8105
      %8251 = vmatpush1.bf16.msra.mxu0 %v8104
      %8252 = vmatprep.subr.bf16.mxu0 0
      %8253 = vmatpush2.bf16.msra.mxu0 0
      %8254 = vmatprep.subr.bf16.mxu0 0
      %8255 = vmatpush2.bf16.msra.mxu0 0
      %8256 = vmatprep.subr.bf16.mxu0 0
      %8257 = vmatpush2.bf16.msra.mxu0 0
      %8258 = vmatprep.subr.bf16.mxu0 0
      %8259 = vmatpush2.bf16.msra.mxu0 0
      %8260 = vmatprep.subr.bf16.mxu0 0
      %8261 = vmatpush2.bf16.msra.mxu0 0
      %8262 = vmatprep.subr.bf16.mxu0 0
      %8263 = vmatpush2.bf16.msra.mxu0 0
      %8264 = vmatprep.subr.bf16.mxu0 0
      %8265 = vmatpush2.bf16.msra.mxu0 0
      %8266 = vmatprep.subr.bf16.mxu0 0
      %8267 = vmatpush2.bf16.msra.mxu0 0
      %8268 = vmatprep.mubr.bf16.mxu0 0
      %8269 = vmatmul.mubr.bf16.gmra.mxu0 %v8167
      %v8270 = vpop.f32.mrf.mxu0
      %v8271 = vadd.f32 %v7937, %v8270
      %v8272 = vpop.f32.mrf.mxu0
      %v8273 = vadd.f32 %v7941, %v8272
      %v8274 = vpop.f32.mrf.mxu0
      %v8275 = vadd.f32 %v7937, %v8274
      %v8276 = vpop.f32.mrf.mxu0
      %v8277 = vadd.f32 %v7941, %v8276
      %8278 = vmatprep.mubr.bf16.mxu0 0
      %8279 = vmatmul.mubr.bf16.gmra.mxu0 %v8170
      %v8280 = vpop.f32.mrf.mxu0
      %v8281 = vadd.f32 %v7937, %v8280
      %v8282 = vpop.f32.mrf.mxu0
      %v8283 = vadd.f32 %v7941, %v8282
      %v8284 = vpop.f32.mrf.mxu0
      %v8285 = vadd.f32 %v7937, %v8284
      %v8286 = vpop.f32.mrf.mxu0
      %v8287 = vadd.f32 %v7941, %v8286
      %8288 = vmatprep.mubr.bf16.mxu0 0
      %8289 = vmatmul.mubr.bf16.gmra.mxu0 %v8173
      %v8290 = vpop.f32.mrf.mxu0
      %v8291 = vadd.f32 %v7937, %v8290
      %v8292 = vpop.f32.mrf.mxu0
      %v8293 = vadd.f32 %v7941, %v8292
      %v8294 = vpop.f32.mrf.mxu0
      %v8295 = vpop.f32.mrf.mxu0
      %8296 = vdwg.mxu0
      %8297 = vmatprep.subr.bf16.mxu0 0
      %8298 = vmatpush1.bf16.msra.mxu0 0
      %8299 = vmatprep.subr.bf16.mxu0 0
      %8300 = vmatpush1.bf16.msra.mxu0 0
      %8301 = vmatprep.subr.bf16.mxu0 0
      %8302 = vmatpush1.bf16.msra.mxu0 0
      %8303 = vmatprep.subr.bf16.mxu0 0
      %8304 = vmatpush1.bf16.msra.mxu0 0
      %8305 = vmatprep.subr.bf16.mxu0 0
      %8306 = vmatpush1.bf16.msra.mxu0 0
      %8307 = vmatprep.subr.bf16.mxu0 0
      %8308 = vmatpush1.bf16.msra.mxu0 0
      %8309 = vmatprep.subr.bf16.mxu0 %v8123
      %8310 = vmatpush1.bf16.msra.mxu0 %v8122
      %8311 = vmatprep.subr.bf16.mxu0 %v8107
      %8312 = vmatpush1.bf16.msra.mxu0 %v8106
      %8313 = vmatprep.subr.bf16.mxu0 0
      %8314 = vmatpush2.bf16.msra.mxu0 0
      %8315 = vmatprep.subr.bf16.mxu0 0
      %8316 = vmatpush2.bf16.msra.mxu0 0
      %8317 = vmatprep.subr.bf16.mxu0 0
      %8318 = vmatpush2.bf16.msra.mxu0 0
      %8319 = vmatprep.subr.bf16.mxu0 0
      %8320 = vmatpush2.bf16.msra.mxu0 0
      %8321 = vmatprep.subr.bf16.mxu0 0
      %8322 = vmatpush2.bf16.msra.mxu0 0
      %8323 = vmatprep.subr.bf16.mxu0 0
      %8324 = vmatpush2.bf16.msra.mxu0 0
      %8325 = vmatprep.subr.bf16.mxu0 0
      %8326 = vmatpush2.bf16.msra.mxu0 0
      %8327 = vmatprep.subr.bf16.mxu0 0
      %8328 = vmatpush2.bf16.msra.mxu0 0
      %8329 = vmatprep.mubr.bf16.mxu0 0
      %8330 = vmatmul.mubr.bf16.gmra.mxu0 %v8167
      %v8331 = vpop.f32.mrf.mxu0
      %v8332 = vadd.f32 %v7945, %v8331
      %v8333 = vpop.f32.mrf.mxu0
      %v8334 = vadd.f32 %v7949, %v8333
      %v8335 = vpop.f32.mrf.mxu0
      %v8336 = vadd.f32 %v7945, %v8335
      %v8337 = vpop.f32.mrf.mxu0
      %v8338 = vadd.f32 %v7949, %v8337
      %8339 = vmatprep.mubr.bf16.mxu0 0
      %8340 = vmatmul.mubr.bf16.gmra.mxu0 %v8170
      %v8341 = vpop.f32.mrf.mxu0
      %v8342 = vadd.f32 %v7945, %v8341
      %v8343 = vpop.f32.mrf.mxu0
      %v8344 = vadd.f32 %v7949, %v8343
      %v8345 = vpop.f32.mrf.mxu0
      %v8346 = vadd.f32 %v7945, %v8345
      %v8347 = vpop.f32.mrf.mxu0
      %v8348 = vadd.f32 %v7949, %v8347
      %8349 = vmatprep.mubr.bf16.mxu0 0
      %8350 = vmatmul.mubr.bf16.gmra.mxu0 %v8173
      %v8351 = vpop.f32.mrf.mxu0
      %v8352 = vadd.f32 %v7945, %v8351
      %v8353 = vpop.f32.mrf.mxu0
      %v8354 = vadd.f32 %v7949, %v8353
      %v8355 = vpop.f32.mrf.mxu0
      %v8356 = vpop.f32.mrf.mxu0
      %8357 = vdwg.mxu0
      %8358 = vmatprep.subr.bf16.mxu0 0
      %8359 = vmatpush1.bf16.msra.mxu0 0
      %8360 = vmatprep.subr.bf16.mxu0 0
      %8361 = vmatpush1.bf16.msra.mxu0 0
      %8362 = vmatprep.subr.bf16.mxu0 0
      %8363 = vmatpush1.bf16.msra.mxu0 0
      %8364 = vmatprep.subr.bf16.mxu0 0
      %8365 = vmatpush1.bf16.msra.mxu0 0
      %8366 = vmatprep.subr.bf16.mxu0 0
      %8367 = vmatpush1.bf16.msra.mxu0 0
      %8368 = vmatprep.subr.bf16.mxu0 0
      %8369 = vmatpush1.bf16.msra.mxu0 0
      %8370 = vmatprep.subr.bf16.mxu0 %v8125
      %8371 = vmatpush1.bf16.msra.mxu0 %v8124
      %8372 = vmatprep.subr.bf16.mxu0 %v8109
      %8373 = vmatpush1.bf16.msra.mxu0 %v8108
      %8374 = vmatprep.subr.bf16.mxu0 0
      %8375 = vmatpush2.bf16.msra.mxu0 0
      %8376 = vmatprep.subr.bf16.mxu0 0
      %8377 = vmatpush2.bf16.msra.mxu0 0
      %8378 = vmatprep.subr.bf16.mxu0 0
      %8379 = vmatpush2.bf16.msra.mxu0 0
      %8380 = vmatprep.subr.bf16.mxu0 0
      %8381 = vmatpush2.bf16.msra.mxu0 0
      %8382 = vmatprep.subr.bf16.mxu0 0
      %8383 = vmatpush2.bf16.msra.mxu0 0
      %8384 = vmatprep.subr.bf16.mxu0 0
      %8385 = vmatpush2.bf16.msra.mxu0 0
      %8386 = vmatprep.subr.bf16.mxu0 0
      %8387 = vmatpush2.bf16.msra.mxu0 0
      %8388 = vmatprep.subr.bf16.mxu0 0
      %8389 = vmatpush2.bf16.msra.mxu0 0
      %8390 = vmatprep.mubr.bf16.mxu0 0
      %8391 = vmatmul.mubr.bf16.gmra.mxu0 %v8167
      %v8392 = vpop.f32.mrf.mxu0
      %v8393 = vadd.f32 %v7953, %v8392
      %v8394 = vpop.f32.mrf.mxu0
      %v8395 = vadd.f32 %v7957, %v8394
      %v8396 = vpop.f32.mrf.mxu0
      %v8397 = vadd.f32 %v7953, %v8396
      %v8398 = vpop.f32.mrf.mxu0
      %v8399 = vadd.f32 %v7957, %v8398
      %8400 = vmatprep.mubr.bf16.mxu0 0
      %8401 = vmatmul.mubr.bf16.gmra.mxu0 %v8170
      %v8402 = vpop.f32.mrf.mxu0
      %v8403 = vadd.f32 %v7953, %v8402
      %v8404 = vpop.f32.mrf.mxu0
      %v8405 = vadd.f32 %v7957, %v8404
      %v8406 = vpop.f32.mrf.mxu0
      %v8407 = vadd.f32 %v7953, %v8406
      %v8408 = vpop.f32.mrf.mxu0
      %v8409 = vadd.f32 %v7957, %v8408
      %8410 = vmatprep.mubr.bf16.mxu0 0
      %8411 = vmatmul.mubr.bf16.gmra.mxu0 %v8173
      %v8412 = vpop.f32.mrf.mxu0
      %v8413 = vadd.f32 %v7953, %v8412
      %v8414 = vpop.f32.mrf.mxu0
      %v8415 = vadd.f32 %v7957, %v8414
      %v8416 = vpop.f32.mrf.mxu0
      %v8417 = vpop.f32.mrf.mxu0
      %8418 = vdwg.mxu0
      %8419 = vmatprep.subr.bf16.mxu0 0
      %8420 = vmatpush1.bf16.msra.mxu0 0
      %8421 = vmatprep.subr.bf16.mxu0 0
      %8422 = vmatpush1.bf16.msra.mxu0 0
      %8423 = vmatprep.subr.bf16.mxu0 0
      %8424 = vmatpush1.bf16.msra.mxu0 0
      %8425 = vmatprep.subr.bf16.mxu0 0
      %8426 = vmatpush1.bf16.msra.mxu0 0
      %8427 = vmatprep.subr.bf16.mxu0 0
      %8428 = vmatpush1.bf16.msra.mxu0 0
      %8429 = vmatprep.subr.bf16.mxu0 0
      %8430 = vmatpush1.bf16.msra.mxu0 0
      %8431 = vmatprep.subr.bf16.mxu0 %v8127
      %8432 = vmatpush1.bf16.msra.mxu0 %v8126
      %8433 = vmatprep.subr.bf16.mxu0 %v8111
      %8434 = vmatpush1.bf16.msra.mxu0 %v8110
      %8435 = vmatprep.subr.bf16.mxu0 0
      %8436 = vmatpush2.bf16.msra.mxu0 0
      %8437 = vmatprep.subr.bf16.mxu0 0
      %8438 = vmatpush2.bf16.msra.mxu0 0
      %8439 = vmatprep.subr.bf16.mxu0 0
      %8440 = vmatpush2.bf16.msra.mxu0 0
      %8441 = vmatprep.subr.bf16.mxu0 0
      %8442 = vmatpush2.bf16.msra.mxu0 0
      %8443 = vmatprep.subr.bf16.mxu0 0
      %8444 = vmatpush2.bf16.msra.mxu0 0
      %8445 = vmatprep.subr.bf16.mxu0 0
      %8446 = vmatpush2.bf16.msra.mxu0 0
      %8447 = vmatprep.subr.bf16.mxu0 0
      %8448 = vmatpush2.bf16.msra.mxu0 0
      %8449 = vmatprep.subr.bf16.mxu0 0
      %8450 = vmatpush2.bf16.msra.mxu0 0
      %8451 = vmatprep.mubr.bf16.mxu0 0
      %8452 = vmatmul.mubr.bf16.gmra.mxu0 %v8167
      %v8453 = vpop.f32.mrf.mxu0
      %v8454 = vadd.f32 %v7961, %v8453
      %v8455 = vpop.f32.mrf.mxu0
      %v8456 = vadd.f32 %v7965, %v8455
      %v8457 = vpop.f32.mrf.mxu0
      %v8458 = vadd.f32 %v7961, %v8457
      %v8459 = vpop.f32.mrf.mxu0
      %v8460 = vadd.f32 %v7965, %v8459
      %8461 = vmatprep.mubr.bf16.mxu0 0
      %8462 = vmatmul.mubr.bf16.gmra.mxu0 %v8170
      %v8463 = vpop.f32.mrf.mxu0
      %v8464 = vadd.f32 %v7961, %v8463
      %v8465 = vpop.f32.mrf.mxu0
      %v8466 = vadd.f32 %v7965, %v8465
      %v8467 = vpop.f32.mrf.mxu0
      %v8468 = vadd.f32 %v7961, %v8467
      %v8469 = vpop.f32.mrf.mxu0
      %v8470 = vadd.f32 %v7965, %v8469
      %8471 = vmatprep.mubr.bf16.mxu0 0
      %8472 = vmatmul.mubr.bf16.gmra.mxu0 %v8173
      %v8473 = vpop.f32.mrf.mxu0
      %v8474 = vadd.f32 %v7961, %v8473
      %v8475 = vpop.f32.mrf.mxu0
      %v8476 = vadd.f32 %v7965, %v8475
      %v8477 = vpop.f32.mrf.mxu0
      %v8478 = vpop.f32.mrf.mxu0
      %8479 = vdwg.mxu0
      %8480 = vmatprep.subr.bf16.mxu0 0
      %8481 = vmatpush1.bf16.msra.mxu0 0
      %8482 = vmatprep.subr.bf16.mxu0 0
      %8483 = vmatpush1.bf16.msra.mxu0 0
      %8484 = vmatprep.subr.bf16.mxu0 0
      %8485 = vmatpush1.bf16.msra.mxu0 0
      %8486 = vmatprep.subr.bf16.mxu0 0
      %8487 = vmatpush1.bf16.msra.mxu0 0
      %8488 = vmatprep.subr.bf16.mxu0 0
      %8489 = vmatpush1.bf16.msra.mxu0 0
      %8490 = vmatprep.subr.bf16.mxu0 0
      %8491 = vmatpush1.bf16.msra.mxu0 0
      %8492 = vmatprep.subr.bf16.mxu0 %v8129
      %8493 = vmatpush1.bf16.msra.mxu0 %v8128
      %8494 = vmatprep.subr.bf16.mxu0 %v8113
      %8495 = vmatpush1.bf16.msra.mxu0 %v8112
      %8496 = vmatprep.subr.bf16.mxu0 0
      %8497 = vmatpush2.bf16.msra.mxu0 0
      %8498 = vmatprep.subr.bf16.mxu0 0
      %8499 = vmatpush2.bf16.msra.mxu0 0
      %8500 = vmatprep.subr.bf16.mxu0 0
      %8501 = vmatpush2.bf16.msra.mxu0 0
      %8502 = vmatprep.subr.bf16.mxu0 0
      %8503 = vmatpush2.bf16.msra.mxu0 0
      %8504 = vmatprep.subr.bf16.mxu0 0
      %8505 = vmatpush2.bf16.msra.mxu0 0
      %8506 = vmatprep.subr.bf16.mxu0 0
      %8507 = vmatpush2.bf16.msra.mxu0 0
      %8508 = vmatprep.subr.bf16.mxu0 0
      %8509 = vmatpush2.bf16.msra.mxu0 0
      %8510 = vmatprep.subr.bf16.mxu0 0
      %8511 = vmatpush2.bf16.msra.mxu0 0
      %8512 = vmatprep.mubr.bf16.mxu0 0
      %8513 = vmatmul.mubr.bf16.gmra.mxu0 %v8167
      %v8514 = vpop.f32.mrf.mxu0
      %v8515 = vadd.f32 %v7969, %v8514
      %v8516 = vpop.f32.mrf.mxu0
      %v8517 = vadd.f32 %v7973, %v8516
      %v8518 = vpop.f32.mrf.mxu0
      %v8519 = vadd.f32 %v7969, %v8518
      %v8520 = vpop.f32.mrf.mxu0
      %v8521 = vadd.f32 %v7973, %v8520
      %8522 = vmatprep.mubr.bf16.mxu0 0
      %8523 = vmatmul.mubr.bf16.gmra.mxu0 %v8170
      %v8524 = vpop.f32.mrf.mxu0
      %v8525 = vadd.f32 %v7969, %v8524
      %v8526 = vpop.f32.mrf.mxu0
      %v8527 = vadd.f32 %v7973, %v8526
      %v8528 = vpop.f32.mrf.mxu0
      %v8529 = vadd.f32 %v7969, %v8528
      %v8530 = vpop.f32.mrf.mxu0
      %v8531 = vadd.f32 %v7973, %v8530
      %8532 = vmatprep.mubr.bf16.mxu0 0
      %8533 = vmatmul.mubr.bf16.gmra.mxu0 %v8173
      %v8534 = vpop.f32.mrf.mxu0
      %v8535 = vadd.f32 %v7969, %v8534
      %v8536 = vpop.f32.mrf.mxu0
      %v8537 = vadd.f32 %v7973, %v8536
      %v8538 = vpop.f32.mrf.mxu0
      %v8539 = vpop.f32.mrf.mxu0
      %8540 = vdwg.mxu0
      %8541 = vmatprep.subr.bf16.mxu0 0
      %8542 = vmatpush1.bf16.msra.mxu0 0
      %8543 = vmatprep.subr.bf16.mxu0 0
      %8544 = vmatpush1.bf16.msra.mxu0 0
      %8545 = vmatprep.subr.bf16.mxu0 0
      %8546 = vmatpush1.bf16.msra.mxu0 0
      %8547 = vmatprep.subr.bf16.mxu0 0
      %8548 = vmatpush1.bf16.msra.mxu0 0
      %8549 = vmatprep.subr.bf16.mxu0 0
      %8550 = vmatpush1.bf16.msra.mxu0 0
      %8551 = vmatprep.subr.bf16.mxu0 0
      %8552 = vmatpush1.bf16.msra.mxu0 0
      %8553 = vmatprep.subr.bf16.mxu0 %v8131
      %8554 = vmatpush1.bf16.msra.mxu0 %v8130
      %8555 = vmatprep.subr.bf16.mxu0 %v8115
      %8556 = vmatpush1.bf16.msra.mxu0 %v8114
      %8557 = vmatprep.subr.bf16.mxu0 0
      %8558 = vmatpush2.bf16.msra.mxu0 0
      %8559 = vmatprep.subr.bf16.mxu0 0
      %8560 = vmatpush2.bf16.msra.mxu0 0
      %8561 = vmatprep.subr.bf16.mxu0 0
      %8562 = vmatpush2.bf16.msra.mxu0 0
      %8563 = vmatprep.subr.bf16.mxu0 0
      %8564 = vmatpush2.bf16.msra.mxu0 0
      %8565 = vmatprep.subr.bf16.mxu0 0
      %8566 = vmatpush2.bf16.msra.mxu0 0
      %8567 = vmatprep.subr.bf16.mxu0 0
      %8568 = vmatpush2.bf16.msra.mxu0 0
      %8569 = vmatprep.subr.bf16.mxu0 0
      %8570 = vmatpush2.bf16.msra.mxu0 0
      %8571 = vmatprep.subr.bf16.mxu0 0
      %8572 = vmatpush2.bf16.msra.mxu0 0
      %8573 = vmatprep.mubr.bf16.mxu0 0
      %8574 = vmatmul.mubr.bf16.gmra.mxu0 %v8167
      %v8575 = vpop.f32.mrf.mxu0
      %v8576 = vadd.f32 %v7977, %v8575
      %v8577 = vpop.f32.mrf.mxu0
      %v8578 = vadd.f32 %v7981, %v8577
      %v8579 = vpop.f32.mrf.mxu0
      %v8580 = vadd.f32 %v7977, %v8579
      %v8581 = vpop.f32.mrf.mxu0
      %v8582 = vadd.f32 %v7981, %v8581
      %8583 = vmatprep.mubr.bf16.mxu0 0
      %8584 = vmatmul.mubr.bf16.gmra.mxu0 %v8170
      %v8585 = vpop.f32.mrf.mxu0
      %v8586 = vadd.f32 %v7977, %v8585
      %v8587 = vpop.f32.mrf.mxu0
      %v8588 = vadd.f32 %v7981, %v8587
      %v8589 = vpop.f32.mrf.mxu0
      %v8590 = vadd.f32 %v7977, %v8589
      %v8591 = vpop.f32.mrf.mxu0
      %v8592 = vadd.f32 %v7981, %v8591
      %8593 = vmatprep.mubr.bf16.mxu0 0
      %8594 = vmatmul.mubr.bf16.gmra.mxu0 %v8173
      %v8595 = vpop.f32.mrf.mxu0
      %v8596 = vadd.f32 %v7977, %v8595
      %v8597 = vpop.f32.mrf.mxu0
      %v8598 = vadd.f32 %v7981, %v8597
      %v8599 = vpop.f32.mrf.mxu0
      %v8600 = vpop.f32.mrf.mxu0
      %8601 = vdwg.mxu0
      %8602 = vmatprep.subr.bf16.mxu0 0
      %8603 = vmatpush1.bf16.msra.mxu0 0
      %8604 = vmatprep.subr.bf16.mxu0 0
      %8605 = vmatpush1.bf16.msra.mxu0 0
      %8606 = vmatprep.subr.bf16.mxu0 0
      %8607 = vmatpush1.bf16.msra.mxu0 0
      %8608 = vmatprep.subr.bf16.mxu0 0
      %8609 = vmatpush1.bf16.msra.mxu0 0
      %8610 = vmatprep.subr.bf16.mxu0 0
      %8611 = vmatpush1.bf16.msra.mxu0 0
      %8612 = vmatprep.subr.bf16.mxu0 0
      %8613 = vmatpush1.bf16.msra.mxu0 0
      %8614 = vmatprep.subr.bf16.mxu0 %v8133
      %8615 = vmatpush1.bf16.msra.mxu0 %v8132
      %8616 = vmatprep.subr.bf16.mxu0 %v8117
      %8617 = vmatpush1.bf16.msra.mxu0 %v8116
      %8618 = vmatprep.subr.bf16.mxu0 0
      %8619 = vmatpush2.bf16.msra.mxu0 0
      %8620 = vmatprep.subr.bf16.mxu0 0
      %8621 = vmatpush2.bf16.msra.mxu0 0
      %8622 = vmatprep.subr.bf16.mxu0 0
      %8623 = vmatpush2.bf16.msra.mxu0 0
      %8624 = vmatprep.subr.bf16.mxu0 0
      %8625 = vmatpush2.bf16.msra.mxu0 0
      %8626 = vmatprep.subr.bf16.mxu0 0
      %8627 = vmatpush2.bf16.msra.mxu0 0
      %8628 = vmatprep.subr.bf16.mxu0 0
      %8629 = vmatpush2.bf16.msra.mxu0 0
      %8630 = vmatprep.subr.bf16.mxu0 0
      %8631 = vmatpush2.bf16.msra.mxu0 0
      %8632 = vmatprep.subr.bf16.mxu0 0
      %8633 = vmatpush2.bf16.msra.mxu0 0
      %8634 = vmatprep.mubr.bf16.mxu0 0
      %8635 = vmatmul.mubr.bf16.gmra.mxu0 %v8167
      %v8636 = vpop.f32.mrf.mxu0
      %v8637 = vadd.f32 %v7985, %v8636
      %v8638 = vpop.f32.mrf.mxu0
      %v8639 = vadd.f32 %v7989, %v8638
      %v8640 = vpop.f32.mrf.mxu0
      %v8641 = vadd.f32 %v7985, %v8640
      %v8642 = vpop.f32.mrf.mxu0
      %v8643 = vadd.f32 %v7989, %v8642
      %8644 = vmatprep.mubr.bf16.mxu0 0
      %8645 = vmatmul.mubr.bf16.gmra.mxu0 %v8170
      %v8646 = vpop.f32.mrf.mxu0
      %v8647 = vadd.f32 %v7985, %v8646
      %v8648 = vpop.f32.mrf.mxu0
      %v8649 = vadd.f32 %v7989, %v8648
      %v8650 = vpop.f32.mrf.mxu0
      %v8651 = vadd.f32 %v7985, %v8650
      %v8652 = vpop.f32.mrf.mxu0
      %v8653 = vadd.f32 %v7989, %v8652
      %8654 = vmatprep.mubr.bf16.mxu0 0
      %8655 = vmatmul.mubr.bf16.gmra.mxu0 %v8173
      %v8656 = vpop.f32.mrf.mxu0
      %v8657 = vadd.f32 %v7985, %v8656
      %v8658 = vpop.f32.mrf.mxu0
      %v8659 = vadd.f32 %v7989, %v8658
      %v8660 = vpop.f32.mrf.mxu0
      %v8661 = vpop.f32.mrf.mxu0
      %8662 = vdwg.mxu0
      %v8663 = vmax.f32 %v8210, 0.0
      %v8664 = vmax.f32 %v8212, 0.0
      %v8665 = vmax.f32 %v8271, 0.0
      %v8666 = vmax.f32 %v8273, 0.0
      %v8667 = vmax.f32 %v8332, 0.0
      %v8668 = vmax.f32 %v8334, 0.0
      %v8669 = vmax.f32 %v8393, 0.0
      %v8670 = vmax.f32 %v8395, 0.0
      %v8671 = vmax.f32 %v8454, 0.0
      %v8672 = vmax.f32 %v8456, 0.0
      %v8673 = vmax.f32 %v8515, 0.0
      %v8674 = vmax.f32 %v8517, 0.0
      %v8675 = vmax.f32 %v8576, 0.0
      %v8676 = vmax.f32 %v8578, 0.0
      %v8677 = vmax.f32 %v8637, 0.0
      %v8678 = vmax.f32 %v8639, 0.0
      %v8679 = vmax.f32 %v8214, 0.0
      %v8680 = vmax.f32 %v8216, 0.0
      %v8681 = vmax.f32 %v8275, 0.0
      %v8682 = vmax.f32 %v8277, 0.0
      %v8683 = vmax.f32 %v8336, 0.0
      %v8684 = vmax.f32 %v8338, 0.0
      %v8685 = vmax.f32 %v8397, 0.0
      %v8686 = vmax.f32 %v8399, 0.0
      %v8687 = vmax.f32 %v8458, 0.0
      %v8688 = vmax.f32 %v8460, 0.0
      %v8689 = vmax.f32 %v8519, 0.0
      %v8690 = vmax.f32 %v8521, 0.0
      %v8691 = vmax.f32 %v8580, 0.0
      %v8692 = vmax.f32 %v8582, 0.0
      %v8693 = vmax.f32 %v8641, 0.0
      %v8694 = vmax.f32 %v8643, 0.0
      %v8695 = vmax.f32 %v8220, 0.0
      %v8696 = vmax.f32 %v8222, 0.0
      %v8697 = vmax.f32 %v8281, 0.0
      %v8698 = vmax.f32 %v8283, 0.0
      %v8699 = vmax.f32 %v8342, 0.0
      %v8700 = vmax.f32 %v8344, 0.0
      %v8701 = vmax.f32 %v8403, 0.0
      %v8702 = vmax.f32 %v8405, 0.0
      %v8703 = vmax.f32 %v8464, 0.0
      %v8704 = vmax.f32 %v8466, 0.0
      %v8705 = vmax.f32 %v8525, 0.0
      %v8706 = vmax.f32 %v8527, 0.0
      %v8707 = vmax.f32 %v8586, 0.0
      %v8708 = vmax.f32 %v8588, 0.0
      %v8709 = vmax.f32 %v8647, 0.0
      %v8710 = vmax.f32 %v8649, 0.0
      %v8711 = vmax.f32 %v8224, 0.0
      %v8712 = vmax.f32 %v8226, 0.0
      %v8713 = vmax.f32 %v8285, 0.0
      %v8714 = vmax.f32 %v8287, 0.0
      %v8715 = vmax.f32 %v8346, 0.0
      %v8716 = vmax.f32 %v8348, 0.0
      %v8717 = vmax.f32 %v8407, 0.0
      %v8718 = vmax.f32 %v8409, 0.0
      %v8719 = vmax.f32 %v8468, 0.0
      %v8720 = vmax.f32 %v8470, 0.0
      %v8721 = vmax.f32 %v8529, 0.0
      %v8722 = vmax.f32 %v8531, 0.0
      %v8723 = vmax.f32 %v8590, 0.0
      %v8724 = vmax.f32 %v8592, 0.0
      %v8725 = vmax.f32 %v8651, 0.0
      %v8726 = vmax.f32 %v8653, 0.0
      %v8727 = vmax.f32 %v8230, 0.0
      %v8728 = vmax.f32 %v8232, 0.0
      %v8729 = vmax.f32 %v8291, 0.0
      %v8730 = vmax.f32 %v8293, 0.0
      %v8731 = vmax.f32 %v8352, 0.0
      %v8732 = vmax.f32 %v8354, 0.0
      %v8733 = vmax.f32 %v8413, 0.0
      %v8734 = vmax.f32 %v8415, 0.0
      %v8735 = vmax.f32 %v8474, 0.0
      %v8736 = vmax.f32 %v8476, 0.0
      %v8737 = vmax.f32 %v8535, 0.0
      %v8738 = vmax.f32 %v8537, 0.0
      %v8739 = vmax.f32 %v8596, 0.0
      %v8740 = vmax.f32 %v8598, 0.0
      %v8741 = vmax.f32 %v8657, 0.0
      %v8742 = vmax.f32 %v8659, 0.0
      %v8743 = vpack.c.bf16 %v8679, %v8663
      %v8744 = vpack.c.bf16 %v8680, %v8664
      %v8745 = vpack.c.bf16 %v8681, %v8665
      %v8746 = vpack.c.bf16 %v8682, %v8666
      %v8747 = vpack.c.bf16 %v8683, %v8667
      %v8748 = vpack.c.bf16 %v8684, %v8668
      %v8749 = vpack.c.bf16 %v8685, %v8669
      %v8750 = vpack.c.bf16 %v8686, %v8670
      %v8751 = vpack.c.bf16 %v8687, %v8671
      %v8752 = vpack.c.bf16 %v8688, %v8672
      %v8753 = vpack.c.bf16 %v8689, %v8673
      %v8754 = vpack.c.bf16 %v8690, %v8674
      %v8755 = vpack.c.bf16 %v8691, %v8675
      %v8756 = vpack.c.bf16 %v8692, %v8676
      %v8757 = vpack.c.bf16 %v8693, %v8677
      %v8758 = vpack.c.bf16 %v8694, %v8678
      %v8759 = vpack.c.bf16 %v8711, %v8695
      %v8760 = vpack.c.bf16 %v8712, %v8696
      %v8761 = vpack.c.bf16 %v8713, %v8697
      %v8762 = vpack.c.bf16 %v8714, %v8698
      %v8763 = vpack.c.bf16 %v8715, %v8699
      %v8764 = vpack.c.bf16 %v8716, %v8700
      %v8765 = vpack.c.bf16 %v8717, %v8701
      %v8766 = vpack.c.bf16 %v8718, %v8702
      %v8767 = vpack.c.bf16 %v8719, %v8703
      %v8768 = vpack.c.bf16 %v8720, %v8704
      %v8769 = vpack.c.bf16 %v8721, %v8705
      %v8770 = vpack.c.bf16 %v8722, %v8706
      %v8771 = vpack.c.bf16 %v8723, %v8707
      %v8772 = vpack.c.bf16 %v8724, %v8708
      %v8773 = vpack.c.bf16 %v8725, %v8709
      %v8774 = vpack.c.bf16 %v8726, %v8710
      %v8775 = vpack.c.bf16 %v8727, %v8727
      %v8776 = vpack.c.bf16 %v8728, %v8728
      %v8777 = vpack.c.bf16 %v8729, %v8729
      %v8778 = vpack.c.bf16 %v8730, %v8730
      %v8779 = vpack.c.bf16 %v8731, %v8731
      %v8780 = vpack.c.bf16 %v8732, %v8732
      %v8781 = vpack.c.bf16 %v8733, %v8733
      %v8782 = vpack.c.bf16 %v8734, %v8734
      %v8783 = vpack.c.bf16 %v8735, %v8735
      %v8784 = vpack.c.bf16 %v8736, %v8736
      %v8785 = vpack.c.bf16 %v8737, %v8737
      %v8786 = vpack.c.bf16 %v8738, %v8738
      %v8787 = vpack.c.bf16 %v8739, %v8739
      %v8788 = vpack.c.bf16 %v8740, %v8740
      %v8789 = vpack.c.bf16 %v8741, %v8741
      %v8790 = vpack.c.bf16 %v8742, %v8742
      %v8791 = vld [vmem:[%s641] sm:$0xf]
      %v8792 = vld [vmem:[%s641 + $0x4] sm:$0xf]
      %v8793 = vld [vmem:[%s641 + $0x8] sm:$0xf]
      %v8794 = vld [vmem:[%s641 + $0xc] sm:$0xf]
      %v8795 = vld [vmem:[%s641 + $0x10] sm:$0xf]
      %v8796 = vld [vmem:[%s641 + $0x14] sm:$0xf]
      %v8797 = vld [vmem:[%s641 + $0x18] sm:$0xf]
      %v8798 = vld [vmem:[%s641 + $0x1c] sm:$0xf]
      %v8799 = vld [vmem:[%s641 + $0x20] sm:$0xf]
      %v8800 = vld [vmem:[%s641 + $0x24] sm:$0xf]
      %v8801 = vld [vmem:[%s641 + $0x28] sm:$0xf]
      %v8802 = vld [vmem:[%s641 + $0x2c] sm:$0xf]
      %v8803 = vld [vmem:[%s641 + $0x30] sm:$0xf]
      %v8804 = vld [vmem:[%s641 + $0x34] sm:$0xf]
      %v8805 = vld [vmem:[%s641 + $0x38] sm:$0xf]
      %v8806 = vld [vmem:[%s641 + $0x3c] sm:$0xf]
      %v8807 = vld [vmem:[%s641 + $0x40] sm:$0xf]
      %v8808 = vld [vmem:[%s641 + $0x44] sm:$0xf]
      %v8809 = vld [vmem:[%s641 + $0x48] sm:$0xf]
      %v8810 = vld [vmem:[%s641 + $0x4c] sm:$0xf]
      %v8811 = vld [vmem:[%s641 + $0x50] sm:$0xf]
      %v8812 = vld [vmem:[%s641 + $0x54] sm:$0xf]
      %v8813 = vld [vmem:[%s641 + $0x58] sm:$0xf]
      %v8814 = vld [vmem:[%s641 + $0x5c] sm:$0xf]
      %v8815 = vld [vmem:[%s641 + $0x60] sm:$0xf]
      %v8816 = vld [vmem:[%s641 + $0x64] sm:$0xf]
      %v8817 = vld [vmem:[%s641 + $0x68] sm:$0xf]
      %v8818 = vld [vmem:[%s641 + $0x6c] sm:$0xf]
      %v8819 = vld [vmem:[%s641 + $0x70] sm:$0xf]
      %v8820 = vld [vmem:[%s641 + $0x74] sm:$0xf]
      %v8821 = vld [vmem:[%s641 + $0x78] sm:$0xf]
      %v8822 = vld [vmem:[%s641 + $0x7c] sm:$0xf]
      %v8823 = vld [vmem:[%s641 + $0x80] sm:$0xf]
      %v8824 = vld [vmem:[%s641 + $0x84] sm:$0xf]
      %v8825 = vld [vmem:[%s641 + $0x88] sm:$0xf]
      %v8826 = vld [vmem:[%s641 + $0x8c] sm:$0xf]
      %v8827 = vld [vmem:[%s641 + $0x90] sm:$0xf]
      %v8828 = vld [vmem:[%s641 + $0x94] sm:$0xf]
      %v8829 = vld [vmem:[%s641 + $0x98] sm:$0xf]
      %v8830 = vld [vmem:[%s641 + $0x9c] sm:$0xf]
      %v8831 = vld [vmem:[%s641 + $0xa0] sm:$0xf]
      %v8832 = vld [vmem:[%s641 + $0xa4] sm:$0xf]
      %v8833 = vld [vmem:[%s641 + $0xa8] sm:$0xf]
      %v8834 = vld [vmem:[%s641 + $0xac] sm:$0xf]
      %v8835 = vld [vmem:[%s641 + $0xb0] sm:$0xf]
      %v8836 = vld [vmem:[%s641 + $0xb4] sm:$0xf]
      %v8837 = vld [vmem:[%s641 + $0xb8] sm:$0xf]
      %v8838 = vld [vmem:[%s641 + $0xbc] sm:$0xf]
      %v8839 = vld [vmem:[%s641 + $0xc0] sm:$0xf]
      %v8840 = vld [vmem:[%s641 + $0xc4] sm:$0xf]
      %v8841 = vld [vmem:[%s641 + $0xc8] sm:$0xf]
      %v8842 = vld [vmem:[%s641 + $0xcc] sm:$0xf]
      %v8843 = vld [vmem:[%s641 + $0xd0] sm:$0xf]
      %v8844 = vld [vmem:[%s641 + $0xd4] sm:$0xf]
      %v8845 = vld [vmem:[%s641 + $0xd8] sm:$0xf]
      %v8846 = vld [vmem:[%s641 + $0xdc] sm:$0xf]
      %v8847 = vld [vmem:[%s641 + $0xe0] sm:$0xf]
      %v8848 = vld [vmem:[%s641 + $0xe4] sm:$0xf]
      %v8849 = vld [vmem:[%s641 + $0xe8] sm:$0xf]
      %v8850 = vld [vmem:[%s641 + $0xec] sm:$0xf]
      %v8851 = vld [vmem:[%s641 + $0xf0] sm:$0xf]
      %v8852 = vld [vmem:[%s641 + $0xf4] sm:$0xf]
      %v8853 = vld [vmem:[%s641 + $0xf8] sm:$0xf]
      %v8854 = vld [vmem:[%s641 + $0xfc] sm:$0xf]
      %v8855 = vld [vmem:[%s641 + $0x100] sm:$0xf]
      %v8856 = vld [vmem:[%s641 + $0x104] sm:$0xf]
      %v8857 = vld [vmem:[%s641 + $0x108] sm:$0xf]
      %v8858 = vld [vmem:[%s641 + $0x10c] sm:$0xf]
      %v8859 = vld [vmem:[%s641 + $0x110] sm:$0xf]
      %v8860 = vld [vmem:[%s641 + $0x114] sm:$0xf]
      %v8861 = vld [vmem:[%s641 + $0x118] sm:$0xf]
      %v8862 = vld [vmem:[%s641 + $0x11c] sm:$0xf]
      %v8863 = vld [vmem:[%s641 + $0x120] sm:$0xf]
      %v8864 = vld [vmem:[%s641 + $0x124] sm:$0xf]
      %v8865 = vld [vmem:[%s641 + $0x128] sm:$0xf]
      %v8866 = vld [vmem:[%s641 + $0x12c] sm:$0xf]
      %v8867 = vld [vmem:[%s641 + $0x130] sm:$0xf]
      %v8868 = vld [vmem:[%s641 + $0x134] sm:$0xf]
      %v8869 = vld [vmem:[%s641 + $0x138] sm:$0xf]
      %v8870 = vld [vmem:[%s641 + $0x13c] sm:$0xf]
      %v8871 = vld [vmem:[%s641 + $0x140] sm:$0xf]
      %v8872 = vld [vmem:[%s641 + $0x144] sm:$0xf]
      %v8873 = vld [vmem:[%s641 + $0x148] sm:$0xf]
      %v8874 = vld [vmem:[%s641 + $0x14c] sm:$0xf]
      %v8875 = vld [vmem:[%s641 + $0x150] sm:$0xf]
      %v8876 = vld [vmem:[%s641 + $0x154] sm:$0xf]
      %v8877 = vld [vmem:[%s641 + $0x158] sm:$0xf]
      %v8878 = vld [vmem:[%s641 + $0x15c] sm:$0xf]
      %v8879 = vld [vmem:[%s641 + $0x160] sm:$0xf]
      %v8880 = vld [vmem:[%s641 + $0x164] sm:$0xf]
      %v8881 = vld [vmem:[%s641 + $0x168] sm:$0xf]
      %v8882 = vld [vmem:[%s641 + $0x16c] sm:$0xf]
      %v8883 = vld [vmem:[%s641 + $0x170] sm:$0xf]
      %v8884 = vld [vmem:[%s641 + $0x174] sm:$0xf]
      %v8885 = vld [vmem:[%s641 + $0x178] sm:$0xf]
      %v8886 = vld [vmem:[%s641 + $0x17c] sm:$0xf]
      %v8887 = vld [vmem:[%s641 + $0x180] sm:$0xf]
      %v8888 = vld [vmem:[%s641 + $0x184] sm:$0xf]
      %v8889 = vld [vmem:[%s641 + $0x188] sm:$0xf]
      %v8890 = vld [vmem:[%s641 + $0x18c] sm:$0xf]
      %v8891 = vld [vmem:[%s641 + $0x190] sm:$0xf]
      %v8892 = vld [vmem:[%s641 + $0x194] sm:$0xf]
      %v8893 = vld [vmem:[%s641 + $0x198] sm:$0xf]
      %v8894 = vld [vmem:[%s641 + $0x19c] sm:$0xf]
      %v8895 = vld [vmem:[%s641 + $0x1a0] sm:$0xf]
      %v8896 = vld [vmem:[%s641 + $0x1a4] sm:$0xf]
      %v8897 = vld [vmem:[%s641 + $0x1a8] sm:$0xf]
      %v8898 = vld [vmem:[%s641 + $0x1ac] sm:$0xf]
      %v8899 = vld [vmem:[%s641 + $0x1b0] sm:$0xf]
      %v8900 = vld [vmem:[%s641 + $0x1b4] sm:$0xf]
      %v8901 = vld [vmem:[%s641 + $0x1b8] sm:$0xf]
      %v8902 = vld [vmem:[%s641 + $0x1bc] sm:$0xf]
      %v8903 = vld [vmem:[%s641 + $0x1c0] sm:$0xf]
      %v8904 = vld [vmem:[%s641 + $0x1c4] sm:$0xf]
      %v8905 = vld [vmem:[%s641 + $0x1c8] sm:$0xf]
      %v8906 = vld [vmem:[%s641 + $0x1cc] sm:$0xf]
      %v8907 = vld [vmem:[%s641 + $0x1d0] sm:$0xf]
      %v8908 = vld [vmem:[%s641 + $0x1d4] sm:$0xf]
      %v8909 = vld [vmem:[%s641 + $0x1d8] sm:$0xf]
      %v8910 = vld [vmem:[%s641 + $0x1dc] sm:$0xf]
      %v8911 = vld [vmem:[%s641 + $0x1e0] sm:$0xf]
      %v8912 = vld [vmem:[%s641 + $0x1e4] sm:$0xf]
      %v8913 = vld [vmem:[%s641 + $0x1e8] sm:$0xf]
      %v8914 = vld [vmem:[%s641 + $0x1ec] sm:$0xf]
      %v8915 = vld [vmem:[%s641 + $0x1f0] sm:$0xf]
      %v8916 = vld [vmem:[%s641 + $0x1f4] sm:$0xf]
      %v8917 = vld [vmem:[%s641 + $0x1f8] sm:$0xf]
      %v8918 = vld [vmem:[%s641 + $0x1fc] sm:$0xf]
      %v8919 = vld [vmem:[%s641 + $0x200] sm:$0xf]
      %v8920 = vld [vmem:[%s641 + $0x204] sm:$0xf]
      %v8921 = vld [vmem:[%s641 + $0x208] sm:$0xf]
      %v8922 = vld [vmem:[%s641 + $0x20c] sm:$0xf]
      %v8923 = vld [vmem:[%s641 + $0x210] sm:$0xf]
      %v8924 = vld [vmem:[%s641 + $0x214] sm:$0xf]
      %v8925 = vld [vmem:[%s641 + $0x218] sm:$0xf]
      %v8926 = vld [vmem:[%s641 + $0x21c] sm:$0xf]
      %v8927 = vld [vmem:[%s641 + $0x220] sm:$0xf]
      %v8928 = vld [vmem:[%s641 + $0x224] sm:$0xf]
      %v8929 = vld [vmem:[%s641 + $0x228] sm:$0xf]
      %v8930 = vld [vmem:[%s641 + $0x22c] sm:$0xf]
      %v8931 = vld [vmem:[%s641 + $0x230] sm:$0xf]
      %v8932 = vld [vmem:[%s641 + $0x234] sm:$0xf]
      %v8933 = vld [vmem:[%s641 + $0x238] sm:$0xf]
      %v8934 = vld [vmem:[%s641 + $0x23c] sm:$0xf]
      %v8935 = vld [vmem:[%s641 + $0x240] sm:$0xf]
      %v8936 = vld [vmem:[%s641 + $0x244] sm:$0xf]
      %v8937 = vld [vmem:[%s641 + $0x248] sm:$0xf]
      %v8938 = vld [vmem:[%s641 + $0x24c] sm:$0xf]
      %v8939 = vld [vmem:[%s641 + $0x250] sm:$0xf]
      %v8940 = vld [vmem:[%s641 + $0x254] sm:$0xf]
      %v8941 = vld [vmem:[%s641 + $0x258] sm:$0xf]
      %v8942 = vld [vmem:[%s641 + $0x25c] sm:$0xf]
      %v8943 = vld [vmem:[%s641 + $0x260] sm:$0xf]
      %v8944 = vld [vmem:[%s641 + $0x264] sm:$0xf]
      %v8945 = vld [vmem:[%s641 + $0x268] sm:$0xf]
      %v8946 = vld [vmem:[%s641 + $0x26c] sm:$0xf]
      %v8947 = vld [vmem:[%s641 + $0x270] sm:$0xf]
      %v8948 = vld [vmem:[%s641 + $0x274] sm:$0xf]
      %v8949 = vld [vmem:[%s641 + $0x278] sm:$0xf]
      %v8950 = vld [vmem:[%s641 + $0x27c] sm:$0xf]
      %v8951 = vld [vmem:[%s641 + $0x280] sm:$0xf]
      %v8952 = vld [vmem:[%s641 + $0x284] sm:$0xf]
      %v8953 = vld [vmem:[%s641 + $0x288] sm:$0xf]
      %v8954 = vld [vmem:[%s641 + $0x28c] sm:$0xf]
      %v8955 = vld [vmem:[%s641 + $0x290] sm:$0xf]
      %v8956 = vld [vmem:[%s641 + $0x294] sm:$0xf]
      %v8957 = vld [vmem:[%s641 + $0x298] sm:$0xf]
      %v8958 = vld [vmem:[%s641 + $0x29c] sm:$0xf]
      %v8959 = vld [vmem:[%s641 + $0x2a0] sm:$0xf]
      %v8960 = vld [vmem:[%s641 + $0x2a4] sm:$0xf]
      %v8961 = vld [vmem:[%s641 + $0x2a8] sm:$0xf]
      %v8962 = vld [vmem:[%s641 + $0x2ac] sm:$0xf]
      %v8963 = vld [vmem:[%s641 + $0x2b0] sm:$0xf]
      %v8964 = vld [vmem:[%s641 + $0x2b4] sm:$0xf]
      %v8965 = vld [vmem:[%s641 + $0x2b8] sm:$0xf]
      %v8966 = vld [vmem:[%s641 + $0x2bc] sm:$0xf]
      %v8967 = vld [vmem:[%s641 + $0x2c0] sm:$0xf]
      %v8968 = vld [vmem:[%s641 + $0x2c4] sm:$0xf]
      %v8969 = vld [vmem:[%s641 + $0x2c8] sm:$0xf]
      %v8970 = vld [vmem:[%s641 + $0x2cc] sm:$0xf]
      %v8971 = vld [vmem:[%s641 + $0x2d0] sm:$0xf]
      %v8972 = vld [vmem:[%s641 + $0x2d4] sm:$0xf]
      %v8973 = vld [vmem:[%s641 + $0x2d8] sm:$0xf]
      %v8974 = vld [vmem:[%s641 + $0x2dc] sm:$0xf]
      %v8975 = vld [vmem:[%s641 + $0x2e0] sm:$0xf]
      %v8976 = vld [vmem:[%s641 + $0x2e4] sm:$0xf]
      %v8977 = vld [vmem:[%s641 + $0x2e8] sm:$0xf]
      %v8978 = vld [vmem:[%s641 + $0x2ec] sm:$0xf]
      %v8979 = vld [vmem:[%s641 + $0x2f0] sm:$0xf]
      %v8980 = vld [vmem:[%s641 + $0x2f4] sm:$0xf]
      %v8981 = vld [vmem:[%s641 + $0x2f8] sm:$0xf]
      %v8982 = vld [vmem:[%s641 + $0x2fc] sm:$0xf]
      %v8983 = vld [vmem:[%s641 + $0x300] sm:$0xf]
      %v8984 = vld [vmem:[%s641 + $0x304] sm:$0xf]
      %v8985 = vld [vmem:[%s641 + $0x308] sm:$0xf]
      %v8986 = vld [vmem:[%s641 + $0x30c] sm:$0xf]
      %v8987 = vld [vmem:[%s641 + $0x310] sm:$0xf]
      %v8988 = vld [vmem:[%s641 + $0x314] sm:$0xf]
      %v8989 = vld [vmem:[%s641 + $0x318] sm:$0xf]
      %v8990 = vld [vmem:[%s641 + $0x31c] sm:$0xf]
      %v8991 = vld [vmem:[%s641 + $0x320] sm:$0xf]
      %v8992 = vld [vmem:[%s641 + $0x324] sm:$0xf]
      %v8993 = vld [vmem:[%s641 + $0x328] sm:$0xf]
      %v8994 = vld [vmem:[%s641 + $0x32c] sm:$0xf]
      %v8995 = vld [vmem:[%s641 + $0x330] sm:$0xf]
      %v8996 = vld [vmem:[%s641 + $0x334] sm:$0xf]
      %v8997 = vld [vmem:[%s641 + $0x338] sm:$0xf]
      %v8998 = vld [vmem:[%s641 + $0x33c] sm:$0xf]
      %v8999 = vld [vmem:[%s641 + $0x340] sm:$0xf]
      %v9000 = vld [vmem:[%s641 + $0x344] sm:$0xf]
      %v9001 = vld [vmem:[%s641 + $0x348] sm:$0xf]
      %v9002 = vld [vmem:[%s641 + $0x34c] sm:$0xf]
      %v9003 = vld [vmem:[%s641 + $0x350] sm:$0xf]
      %v9004 = vld [vmem:[%s641 + $0x354] sm:$0xf]
      %v9005 = vld [vmem:[%s641 + $0x358] sm:$0xf]
      %v9006 = vld [vmem:[%s641 + $0x35c] sm:$0xf]
      %v9007 = vld [vmem:[%s641 + $0x360] sm:$0xf]
      %v9008 = vld [vmem:[%s641 + $0x364] sm:$0xf]
      %v9009 = vld [vmem:[%s641 + $0x368] sm:$0xf]
      %v9010 = vld [vmem:[%s641 + $0x36c] sm:$0xf]
      %v9011 = vld [vmem:[%s641 + $0x370] sm:$0xf]
      %v9012 = vld [vmem:[%s641 + $0x374] sm:$0xf]
      %v9013 = vld [vmem:[%s641 + $0x378] sm:$0xf]
      %v9014 = vld [vmem:[%s641 + $0x37c] sm:$0xf]
      %v9015 = vld [vmem:[%s641 + $0x380] sm:$0xf]
      %v9016 = vld [vmem:[%s641 + $0x384] sm:$0xf]
      %v9017 = vld [vmem:[%s641 + $0x388] sm:$0xf]
      %v9018 = vld [vmem:[%s641 + $0x38c] sm:$0xf]
      %v9019 = vld [vmem:[%s641 + $0x390] sm:$0xf]
      %v9020 = vld [vmem:[%s641 + $0x394] sm:$0xf]
      %v9021 = vld [vmem:[%s641 + $0x398] sm:$0xf]
      %v9022 = vld [vmem:[%s641 + $0x39c] sm:$0xf]
      %v9023 = vld [vmem:[%s641 + $0x3a0] sm:$0xf]
      %v9024 = vld [vmem:[%s641 + $0x3a4] sm:$0xf]
      %v9025 = vld [vmem:[%s641 + $0x3a8] sm:$0xf]
      %v9026 = vld [vmem:[%s641 + $0x3ac] sm:$0xf]
      %v9027 = vld [vmem:[%s641 + $0x3b0] sm:$0xf]
      %v9028 = vld [vmem:[%s641 + $0x3b4] sm:$0xf]
      %v9029 = vld [vmem:[%s641 + $0x3b8] sm:$0xf]
      %v9030 = vld [vmem:[%s641 + $0x3bc] sm:$0xf]
      %v9031 = vld [vmem:[%s641 + $0x3c0] sm:$0xf]
      %v9032 = vld [vmem:[%s641 + $0x3c4] sm:$0xf]
      %v9033 = vld [vmem:[%s641 + $0x3c8] sm:$0xf]
      %v9034 = vld [vmem:[%s641 + $0x3cc] sm:$0xf]
      %v9035 = vld [vmem:[%s641 + $0x3d0] sm:$0xf]
      %v9036 = vld [vmem:[%s641 + $0x3d4] sm:$0xf]
      %v9037 = vld [vmem:[%s641 + $0x3d8] sm:$0xf]
      %v9038 = vld [vmem:[%s641 + $0x3dc] sm:$0xf]
      %v9039 = vld [vmem:[%s641 + $0x3e0] sm:$0xf]
      %v9040 = vld [vmem:[%s641 + $0x3e4] sm:$0xf]
      %v9041 = vld [vmem:[%s641 + $0x3e8] sm:$0xf]
      %v9042 = vld [vmem:[%s641 + $0x3ec] sm:$0xf]
      %v9043 = vld [vmem:[%s641 + $0x3f0] sm:$0xf]
      %v9044 = vld [vmem:[%s641 + $0x3f4] sm:$0xf]
      %v9045 = vld [vmem:[%s641 + $0x3f8] sm:$0xf]
      %v9046 = vld [vmem:[%s641 + $0x3fc] sm:$0xf]
      %v9047 = vld [vmem:[%s644] sm:$0x1]
      %v9049 = vlaneseq
      %v9050 = vshrl.u32 %v9049, 7
      %v9051 = vsub.s32 0, %v9050
      %v9052 = vrot.slane %v9047, %v9051
      %v9310 = vunpack.c.l.b16 %v8791
      %v9311 = vunpack.c.l.b16 %v8792
      %v9312 = vunpack.c.l.b16 %v8793
      %v9313 = vunpack.c.l.b16 %v8794
      %v9314 = vunpack.c.l.b16 %v8795
      %v9315 = vunpack.c.l.b16 %v8796
      %v9316 = vunpack.c.l.b16 %v8797
      %v9317 = vunpack.c.l.b16 %v8798
      %v9318 = vunpack.c.l.b16 %v8799
      %v9319 = vunpack.c.l.b16 %v8800
      %v9320 = vunpack.c.l.b16 %v8801
      %v9321 = vunpack.c.l.b16 %v8802
      %v9322 = vunpack.c.l.b16 %v8803
      %v9323 = vunpack.c.l.b16 %v8804
      %v9324 = vunpack.c.l.b16 %v8805
      %v9325 = vunpack.c.l.b16 %v8806
      %v9326 = vunpack.c.l.b16 %v8807
      %v9327 = vunpack.c.l.b16 %v8808
      %v9328 = vunpack.c.l.b16 %v8809
      %v9329 = vunpack.c.l.b16 %v8810
      %v9330 = vunpack.c.l.b16 %v8811
      %v9331 = vunpack.c.l.b16 %v8812
      %v9332 = vunpack.c.l.b16 %v8813
      %v9333 = vunpack.c.l.b16 %v8814
      %v9334 = vunpack.c.l.b16 %v8815
      %v9335 = vunpack.c.l.b16 %v8816
      %v9336 = vunpack.c.l.b16 %v8817
      %v9337 = vunpack.c.l.b16 %v8818
      %v9338 = vunpack.c.l.b16 %v8819
      %v9339 = vunpack.c.l.b16 %v8820
      %v9340 = vunpack.c.l.b16 %v8821
      %v9341 = vunpack.c.l.b16 %v8822
      %v9342 = vunpack.c.l.b16 %v8823
      %v9343 = vunpack.c.l.b16 %v8824
      %v9344 = vunpack.c.l.b16 %v8825
      %v9345 = vunpack.c.l.b16 %v8826
      %v9346 = vunpack.c.l.b16 %v8827
      %v9347 = vunpack.c.l.b16 %v8828
      %v9348 = vunpack.c.l.b16 %v8829
      %v9349 = vunpack.c.l.b16 %v8830
      %v9350 = vunpack.c.l.b16 %v8831
      %v9351 = vunpack.c.l.b16 %v8832
      %v9352 = vunpack.c.l.b16 %v8833
      %v9353 = vunpack.c.l.b16 %v8834
      %v9354 = vunpack.c.l.b16 %v8835
      %v9355 = vunpack.c.l.b16 %v8836
      %v9356 = vunpack.c.l.b16 %v8837
      %v9357 = vunpack.c.l.b16 %v8838
      %v9358 = vunpack.c.l.b16 %v8839
      %v9359 = vunpack.c.l.b16 %v8840
      %v9360 = vunpack.c.l.b16 %v8841
      %v9361 = vunpack.c.l.b16 %v8842
      %v9362 = vunpack.c.l.b16 %v8843
      %v9363 = vunpack.c.l.b16 %v8844
      %v9364 = vunpack.c.l.b16 %v8845
      %v9365 = vunpack.c.l.b16 %v8846
      %v9366 = vunpack.c.l.b16 %v8847
      %v9367 = vunpack.c.l.b16 %v8848
      %v9368 = vunpack.c.l.b16 %v8849
      %v9369 = vunpack.c.l.b16 %v8850
      %v9370 = vunpack.c.l.b16 %v8851
      %v9371 = vunpack.c.l.b16 %v8852
      %v9372 = vunpack.c.l.b16 %v8853
      %v9373 = vunpack.c.l.b16 %v8854
      %v9374 = vunpack.c.l.b16 %v8855
      %v9375 = vunpack.c.l.b16 %v8856
      %v9376 = vunpack.c.l.b16 %v8857
      %v9377 = vunpack.c.l.b16 %v8858
      %v9378 = vunpack.c.l.b16 %v8859
      %v9379 = vunpack.c.l.b16 %v8860
      %v9380 = vunpack.c.l.b16 %v8861
      %v9381 = vunpack.c.l.b16 %v8862
      %v9382 = vunpack.c.l.b16 %v8863
      %v9383 = vunpack.c.l.b16 %v8864
      %v9384 = vunpack.c.l.b16 %v8865
      %v9385 = vunpack.c.l.b16 %v8866
      %v9386 = vunpack.c.l.b16 %v8867
      %v9387 = vunpack.c.l.b16 %v8868
      %v9388 = vunpack.c.l.b16 %v8869
      %v9389 = vunpack.c.l.b16 %v8870
      %v9390 = vunpack.c.l.b16 %v8871
      %v9391 = vunpack.c.l.b16 %v8872
      %v9392 = vunpack.c.l.b16 %v8873
      %v9393 = vunpack.c.l.b16 %v8874
      %v9394 = vunpack.c.l.b16 %v8875
      %v9395 = vunpack.c.l.b16 %v8876
      %v9396 = vunpack.c.l.b16 %v8877
      %v9397 = vunpack.c.l.b16 %v8878
      %v9398 = vunpack.c.l.b16 %v8879
      %v9399 = vunpack.c.l.b16 %v8880
      %v9400 = vunpack.c.l.b16 %v8881
      %v9401 = vunpack.c.l.b16 %v8882
      %v9402 = vunpack.c.l.b16 %v8883
      %v9403 = vunpack.c.l.b16 %v8884
      %v9404 = vunpack.c.l.b16 %v8885
      %v9405 = vunpack.c.l.b16 %v8886
      %v9406 = vunpack.c.l.b16 %v8887
      %v9407 = vunpack.c.l.b16 %v8888
      %v9408 = vunpack.c.l.b16 %v8889
      %v9409 = vunpack.c.l.b16 %v8890
      %v9410 = vunpack.c.l.b16 %v8891
      %v9411 = vunpack.c.l.b16 %v8892
      %v9412 = vunpack.c.l.b16 %v8893
      %v9413 = vunpack.c.l.b16 %v8894
      %v9414 = vunpack.c.l.b16 %v8895
      %v9415 = vunpack.c.l.b16 %v8896
      %v9416 = vunpack.c.l.b16 %v8897
      %v9417 = vunpack.c.l.b16 %v8898
      %v9418 = vunpack.c.l.b16 %v8899
      %v9419 = vunpack.c.l.b16 %v8900
      %v9420 = vunpack.c.l.b16 %v8901
      %v9421 = vunpack.c.l.b16 %v8902
      %v9422 = vunpack.c.l.b16 %v8903
      %v9423 = vunpack.c.l.b16 %v8904
      %v9424 = vunpack.c.l.b16 %v8905
      %v9425 = vunpack.c.l.b16 %v8906
      %v9426 = vunpack.c.l.b16 %v8907
      %v9427 = vunpack.c.l.b16 %v8908
      %v9428 = vunpack.c.l.b16 %v8909
      %v9429 = vunpack.c.l.b16 %v8910
      %v9430 = vunpack.c.l.b16 %v8911
      %v9431 = vunpack.c.l.b16 %v8912
      %v9432 = vunpack.c.l.b16 %v8913
      %v9433 = vunpack.c.l.b16 %v8914
      %v9434 = vunpack.c.l.b16 %v8915
      %v9435 = vunpack.c.l.b16 %v8916
      %v9436 = vunpack.c.l.b16 %v8917
      %v9437 = vunpack.c.l.b16 %v8918
      %v9438 = vunpack.c.l.b16 %v8919
      %v9439 = vunpack.c.l.b16 %v8920
      %v9440 = vunpack.c.l.b16 %v8921
      %v9441 = vunpack.c.l.b16 %v8922
      %v9442 = vunpack.c.l.b16 %v8923
      %v9443 = vunpack.c.l.b16 %v8924
      %v9444 = vunpack.c.l.b16 %v8925
      %v9445 = vunpack.c.l.b16 %v8926
      %v9446 = vunpack.c.l.b16 %v8927
      %v9447 = vunpack.c.l.b16 %v8928
      %v9448 = vunpack.c.l.b16 %v8929
      %v9449 = vunpack.c.l.b16 %v8930
      %v9450 = vunpack.c.l.b16 %v8931
      %v9451 = vunpack.c.l.b16 %v8932
      %v9452 = vunpack.c.l.b16 %v8933
      %v9453 = vunpack.c.l.b16 %v8934
      %v9454 = vunpack.c.l.b16 %v8935
      %v9455 = vunpack.c.l.b16 %v8936
      %v9456 = vunpack.c.l.b16 %v8937
      %v9457 = vunpack.c.l.b16 %v8938
      %v9458 = vunpack.c.l.b16 %v8939
      %v9459 = vunpack.c.l.b16 %v8940
      %v9460 = vunpack.c.l.b16 %v8941
      %v9461 = vunpack.c.l.b16 %v8942
      %v9462 = vunpack.c.l.b16 %v8943
      %v9463 = vunpack.c.l.b16 %v8944
      %v9464 = vunpack.c.l.b16 %v8945
      %v9465 = vunpack.c.l.b16 %v8946
      %v9466 = vunpack.c.l.b16 %v8947
      %v9467 = vunpack.c.l.b16 %v8948
      %v9468 = vunpack.c.l.b16 %v8949
      %v9469 = vunpack.c.l.b16 %v8950
      %v9470 = vunpack.c.l.b16 %v8951
      %v9471 = vunpack.c.l.b16 %v8952
      %v9472 = vunpack.c.l.b16 %v8953
      %v9473 = vunpack.c.l.b16 %v8954
      %v9474 = vunpack.c.l.b16 %v8955
      %v9475 = vunpack.c.l.b16 %v8956
      %v9476 = vunpack.c.l.b16 %v8957
      %v9477 = vunpack.c.l.b16 %v8958
      %v9478 = vunpack.c.l.b16 %v8959
      %v9479 = vunpack.c.l.b16 %v8960
      %v9480 = vunpack.c.l.b16 %v8961
      %v9481 = vunpack.c.l.b16 %v8962
      %v9482 = vunpack.c.l.b16 %v8963
      %v9483 = vunpack.c.l.b16 %v8964
      %v9484 = vunpack.c.l.b16 %v8965
      %v9485 = vunpack.c.l.b16 %v8966
      %v9486 = vunpack.c.l.b16 %v8967
      %v9487 = vunpack.c.l.b16 %v8968
      %v9488 = vunpack.c.l.b16 %v8969
      %v9489 = vunpack.c.l.b16 %v8970
      %v9490 = vunpack.c.l.b16 %v8971
      %v9491 = vunpack.c.l.b16 %v8972
      %v9492 = vunpack.c.l.b16 %v8973
      %v9493 = vunpack.c.l.b16 %v8974
      %v9494 = vunpack.c.l.b16 %v8975
      %v9495 = vunpack.c.l.b16 %v8976
      %v9496 = vunpack.c.l.b16 %v8977
      %v9497 = vunpack.c.l.b16 %v8978
      %v9498 = vunpack.c.l.b16 %v8979
      %v9499 = vunpack.c.l.b16 %v8980
      %v9500 = vunpack.c.l.b16 %v8981
      %v9501 = vunpack.c.l.b16 %v8982
      %v9502 = vunpack.c.l.b16 %v8983
      %v9503 = vunpack.c.l.b16 %v8984
      %v9504 = vunpack.c.l.b16 %v8985
      %v9505 = vunpack.c.l.b16 %v8986
      %v9506 = vunpack.c.l.b16 %v8987
      %v9507 = vunpack.c.l.b16 %v8988
      %v9508 = vunpack.c.l.b16 %v8989
      %v9509 = vunpack.c.l.b16 %v8990
      %v9510 = vunpack.c.l.b16 %v8991
      %v9511 = vunpack.c.l.b16 %v8992
      %v9512 = vunpack.c.l.b16 %v8993
      %v9513 = vunpack.c.l.b16 %v8994
      %v9514 = vunpack.c.l.b16 %v8995
      %v9515 = vunpack.c.l.b16 %v8996
      %v9516 = vunpack.c.l.b16 %v8997
      %v9517 = vunpack.c.l.b16 %v8998
      %v9518 = vunpack.c.l.b16 %v8999
      %v9519 = vunpack.c.l.b16 %v9000
      %v9520 = vunpack.c.l.b16 %v9001
      %v9521 = vunpack.c.l.b16 %v9002
      %v9522 = vunpack.c.l.b16 %v9003
      %v9523 = vunpack.c.l.b16 %v9004
      %v9524 = vunpack.c.l.b16 %v9005
      %v9525 = vunpack.c.l.b16 %v9006
      %v9526 = vunpack.c.l.b16 %v9007
      %v9527 = vunpack.c.l.b16 %v9008
      %v9528 = vunpack.c.l.b16 %v9009
      %v9529 = vunpack.c.l.b16 %v9010
      %v9530 = vunpack.c.l.b16 %v9011
      %v9531 = vunpack.c.l.b16 %v9012
      %v9532 = vunpack.c.l.b16 %v9013
      %v9533 = vunpack.c.l.b16 %v9014
      %v9534 = vunpack.c.l.b16 %v9015
      %v9535 = vunpack.c.l.b16 %v9016
      %v9536 = vunpack.c.l.b16 %v9017
      %v9537 = vunpack.c.l.b16 %v9018
      %v9538 = vunpack.c.l.b16 %v9019
      %v9539 = vunpack.c.l.b16 %v9020
      %v9540 = vunpack.c.l.b16 %v9021
      %v9541 = vunpack.c.l.b16 %v9022
      %v9542 = vunpack.c.l.b16 %v9023
      %v9543 = vunpack.c.l.b16 %v9024
      %v9544 = vunpack.c.l.b16 %v9025
      %v9545 = vunpack.c.l.b16 %v9026
      %v9546 = vunpack.c.l.b16 %v9027
      %v9547 = vunpack.c.l.b16 %v9028
      %v9548 = vunpack.c.l.b16 %v9029
      %v9549 = vunpack.c.l.b16 %v9030
      %v9550 = vunpack.c.l.b16 %v9031
      %v9551 = vunpack.c.l.b16 %v9032
      %v9552 = vunpack.c.l.b16 %v9033
      %v9553 = vunpack.c.l.b16 %v9034
      %v9554 = vunpack.c.l.b16 %v9035
      %v9555 = vunpack.c.l.b16 %v9036
      %v9556 = vunpack.c.l.b16 %v9037
      %v9557 = vunpack.c.l.b16 %v9038
      %v9558 = vunpack.c.l.b16 %v9039
      %v9559 = vunpack.c.l.b16 %v9040
      %v9560 = vunpack.c.l.b16 %v9041
      %v9561 = vunpack.c.l.b16 %v9042
      %v9562 = vunpack.c.l.b16 %v9043
      %v9563 = vunpack.c.l.b16 %v9044
      %v9564 = vunpack.c.l.b16 %v9045
      %v9565 = vunpack.c.l.b16 %v9046
      %v9566 = vpack.c.b16 %v9311, %v9310
      %v9567 = vpack.c.b16 %v9313, %v9312
      %v9568 = vpack.c.b16 %v9315, %v9314
      %v9569 = vpack.c.b16 %v9317, %v9316
      %v9570 = vpack.c.b16 %v9319, %v9318
      %v9571 = vpack.c.b16 %v9321, %v9320
      %v9572 = vpack.c.b16 %v9323, %v9322
      %v9573 = vpack.c.b16 %v9325, %v9324
      %v9574 = vpack.c.b16 %v9327, %v9326
      %v9575 = vpack.c.b16 %v9329, %v9328
      %v9576 = vpack.c.b16 %v9331, %v9330
      %v9577 = vpack.c.b16 %v9333, %v9332
      %v9578 = vpack.c.b16 %v9335, %v9334
      %v9579 = vpack.c.b16 %v9337, %v9336
      %v9580 = vpack.c.b16 %v9339, %v9338
      %v9581 = vpack.c.b16 %v9341, %v9340
      %v9582 = vpack.c.b16 %v9343, %v9342
      %v9583 = vpack.c.b16 %v9345, %v9344
      %v9584 = vpack.c.b16 %v9347, %v9346
      %v9585 = vpack.c.b16 %v9349, %v9348
      %v9586 = vpack.c.b16 %v9351, %v9350
      %v9587 = vpack.c.b16 %v9353, %v9352
      %v9588 = vpack.c.b16 %v9355, %v9354
      %v9589 = vpack.c.b16 %v9357, %v9356
      %v9590 = vpack.c.b16 %v9359, %v9358
      %v9591 = vpack.c.b16 %v9361, %v9360
      %v9592 = vpack.c.b16 %v9363, %v9362
      %v9593 = vpack.c.b16 %v9365, %v9364
      %v9594 = vpack.c.b16 %v9367, %v9366
      %v9595 = vpack.c.b16 %v9369, %v9368
      %v9596 = vpack.c.b16 %v9371, %v9370
      %v9597 = vpack.c.b16 %v9373, %v9372
      %v9598 = vpack.c.b16 %v9375, %v9374
      %v9599 = vpack.c.b16 %v9377, %v9376
      %v9600 = vpack.c.b16 %v9379, %v9378
      %v9601 = vpack.c.b16 %v9381, %v9380
      %v9602 = vpack.c.b16 %v9383, %v9382
      %v9603 = vpack.c.b16 %v9385, %v9384
      %v9604 = vpack.c.b16 %v9387, %v9386
      %v9605 = vpack.c.b16 %v9389, %v9388
      %v9606 = vpack.c.b16 %v9391, %v9390
      %v9607 = vpack.c.b16 %v9393, %v9392
      %v9608 = vpack.c.b16 %v9395, %v9394
      %v9609 = vpack.c.b16 %v9397, %v9396
      %v9610 = vpack.c.b16 %v9399, %v9398
      %v9611 = vpack.c.b16 %v9401, %v9400
      %v9612 = vpack.c.b16 %v9403, %v9402
      %v9613 = vpack.c.b16 %v9405, %v9404
      %v9614 = vpack.c.b16 %v9407, %v9406
      %v9615 = vpack.c.b16 %v9409, %v9408
      %v9616 = vpack.c.b16 %v9411, %v9410
      %v9617 = vpack.c.b16 %v9413, %v9412
      %v9618 = vpack.c.b16 %v9415, %v9414
      %v9619 = vpack.c.b16 %v9417, %v9416
      %v9620 = vpack.c.b16 %v9419, %v9418
      %v9621 = vpack.c.b16 %v9421, %v9420
      %v9622 = vpack.c.b16 %v9423, %v9422
      %v9623 = vpack.c.b16 %v9425, %v9424
      %v9624 = vpack.c.b16 %v9427, %v9426
      %v9625 = vpack.c.b16 %v9429, %v9428
      %v9626 = vpack.c.b16 %v9431, %v9430
      %v9627 = vpack.c.b16 %v9433, %v9432
      %v9628 = vpack.c.b16 %v9435, %v9434
      %v9629 = vpack.c.b16 %v9437, %v9436
      %v9630 = vpack.c.b16 %v9439, %v9438
      %v9631 = vpack.c.b16 %v9441, %v9440
      %v9632 = vpack.c.b16 %v9443, %v9442
      %v9633 = vpack.c.b16 %v9445, %v9444
      %v9634 = vpack.c.b16 %v9447, %v9446
      %v9635 = vpack.c.b16 %v9449, %v9448
      %v9636 = vpack.c.b16 %v9451, %v9450
      %v9637 = vpack.c.b16 %v9453, %v9452
      %v9638 = vpack.c.b16 %v9455, %v9454
      %v9639 = vpack.c.b16 %v9457, %v9456
      %v9640 = vpack.c.b16 %v9459, %v9458
      %v9641 = vpack.c.b16 %v9461, %v9460
      %v9642 = vpack.c.b16 %v9463, %v9462
      %v9643 = vpack.c.b16 %v9465, %v9464
      %v9644 = vpack.c.b16 %v9467, %v9466
      %v9645 = vpack.c.b16 %v9469, %v9468
      %v9646 = vpack.c.b16 %v9471, %v9470
      %v9647 = vpack.c.b16 %v9473, %v9472
      %v9648 = vpack.c.b16 %v9475, %v9474
      %v9649 = vpack.c.b16 %v9477, %v9476
      %v9650 = vpack.c.b16 %v9479, %v9478
      %v9651 = vpack.c.b16 %v9481, %v9480
      %v9652 = vpack.c.b16 %v9483, %v9482
      %v9653 = vpack.c.b16 %v9485, %v9484
      %v9654 = vpack.c.b16 %v9487, %v9486
      %v9655 = vpack.c.b16 %v9489, %v9488
      %v9656 = vpack.c.b16 %v9491, %v9490
      %v9657 = vpack.c.b16 %v9493, %v9492
      %v9658 = vpack.c.b16 %v9495, %v9494
      %v9659 = vpack.c.b16 %v9497, %v9496
      %v9660 = vpack.c.b16 %v9499, %v9498
      %v9661 = vpack.c.b16 %v9501, %v9500
      %v9662 = vpack.c.b16 %v9503, %v9502
      %v9663 = vpack.c.b16 %v9505, %v9504
      %v9664 = vpack.c.b16 %v9507, %v9506
      %v9665 = vpack.c.b16 %v9509, %v9508
      %v9666 = vpack.c.b16 %v9511, %v9510
      %v9667 = vpack.c.b16 %v9513, %v9512
      %v9668 = vpack.c.b16 %v9515, %v9514
      %v9669 = vpack.c.b16 %v9517, %v9516
      %v9670 = vpack.c.b16 %v9519, %v9518
      %v9671 = vpack.c.b16 %v9521, %v9520
      %v9672 = vpack.c.b16 %v9523, %v9522
      %v9673 = vpack.c.b16 %v9525, %v9524
      %v9674 = vpack.c.b16 %v9527, %v9526
      %v9675 = vpack.c.b16 %v9529, %v9528
      %v9676 = vpack.c.b16 %v9531, %v9530
      %v9677 = vpack.c.b16 %v9533, %v9532
      %v9678 = vpack.c.b16 %v9535, %v9534
      %v9679 = vpack.c.b16 %v9537, %v9536
      %v9680 = vpack.c.b16 %v9539, %v9538
      %v9681 = vpack.c.b16 %v9541, %v9540
      %v9682 = vpack.c.b16 %v9543, %v9542
      %v9683 = vpack.c.b16 %v9545, %v9544
      %v9684 = vpack.c.b16 %v9547, %v9546
      %v9685 = vpack.c.b16 %v9549, %v9548
      %v9686 = vpack.c.b16 %v9551, %v9550
      %v9687 = vpack.c.b16 %v9553, %v9552
      %v9688 = vpack.c.b16 %v9555, %v9554
      %v9689 = vpack.c.b16 %v9557, %v9556
      %v9690 = vpack.c.b16 %v9559, %v9558
      %v9691 = vpack.c.b16 %v9561, %v9560
      %v9692 = vpack.c.b16 %v9563, %v9562
      %v9693 = vpack.c.b16 %v9565, %v9564
      %9822 = vmatprep.subr.bf16.mxu0 0
      %9823 = vmatpush1.bf16.msra.mxu0 %v9573
      %9824 = vmatprep.subr.bf16.mxu0 0
      %9825 = vmatpush1.bf16.msra.mxu0 %v9572
      %9826 = vmatprep.subr.bf16.mxu0 0
      %9827 = vmatpush1.bf16.msra.mxu0 %v9571
      %9828 = vmatprep.subr.bf16.mxu0 0
      %9829 = vmatpush1.bf16.msra.mxu0 %v9570
      %9830 = vmatprep.subr.bf16.mxu0 0
      %9831 = vmatpush1.bf16.msra.mxu0 %v9569
      %9832 = vmatprep.subr.bf16.mxu0 0
      %9833 = vmatpush1.bf16.msra.mxu0 %v9568
      %9834 = vmatprep.subr.bf16.mxu0 0
      %9835 = vmatpush1.bf16.msra.mxu0 %v9567
      %9836 = vmatprep.subr.bf16.mxu0 0
      %9837 = vmatpush1.bf16.msra.mxu0 %v9566
      %9838 = vmatprep.subr.bf16.mxu0 0
      %9839 = vmatpush2.bf16.msra.mxu0 %v9581
      %9840 = vmatprep.subr.bf16.mxu0 0
      %9841 = vmatpush2.bf16.msra.mxu0 %v9580
      %9842 = vmatprep.subr.bf16.mxu0 0
      %9843 = vmatpush2.bf16.msra.mxu0 %v9579
      %9844 = vmatprep.subr.bf16.mxu0 0
      %9845 = vmatpush2.bf16.msra.mxu0 %v9578
      %9846 = vmatprep.subr.bf16.mxu0 0
      %9847 = vmatpush2.bf16.msra.mxu0 %v9577
      %9848 = vmatprep.subr.bf16.mxu0 0
      %9849 = vmatpush2.bf16.msra.mxu0 %v9576
      %9850 = vmatprep.subr.bf16.mxu0 0
      %9851 = vmatpush2.bf16.msra.mxu0 %v9575
      %9852 = vmatprep.subr.bf16.mxu0 0
      %9853 = vmatpush2.bf16.msra.mxu0 %v9574
      %9854 = vmatprep.mubr.bf16.mxu0 %v8744
      %9855 = vmatmul.mubr.bf16.gmra.mxu0 %v8743
      %v9856 = vpop.f32.mrf.mxu0
      %v9857 = vadd.f32 %v9052, %v9856
      %v9858 = vpop.f32.mrf.mxu0
      %v9859 = vpop.f32.mrf.mxu0
      %v9860 = vadd.f32 %v9052, %v9859
      %v9861 = vpop.f32.mrf.mxu0
      %9862 = vmatprep.mubr.bf16.mxu0 %v8760
      %9863 = vmatmul.mubr.bf16.gmra.mxu0 %v8759
      %v9864 = vpop.f32.mrf.mxu0
      %v9865 = vadd.f32 %v9052, %v9864
      %v9866 = vpop.f32.mrf.mxu0
      %v9867 = vpop.f32.mrf.mxu0
      %v9868 = vadd.f32 %v9052, %v9867
      %v9869 = vpop.f32.mrf.mxu0
      %9870 = vmatprep.mubr.bf16.mxu0 %v8776
      %9871 = vmatmul.mubr.bf16.gmra.mxu0 %v8775
      %v9872 = vpop.f32.mrf.mxu0
      %v9873 = vadd.f32 %v9052, %v9872
      %v9874 = vpop.f32.mrf.mxu0
      %v9875 = vpop.f32.mrf.mxu0
      %v9876 = vpop.f32.mrf.mxu0
      %9877 = vdwg.mxu0
      %9878 = vmatprep.subr.bf16.mxu0 0
      %9879 = vmatpush1.bf16.msra.mxu0 %v9589
      %9880 = vmatprep.subr.bf16.mxu0 0
      %9881 = vmatpush1.bf16.msra.mxu0 %v9588
      %9882 = vmatprep.subr.bf16.mxu0 0
      %9883 = vmatpush1.bf16.msra.mxu0 %v9587
      %9884 = vmatprep.subr.bf16.mxu0 0
      %9885 = vmatpush1.bf16.msra.mxu0 %v9586
      %9886 = vmatprep.subr.bf16.mxu0 0
      %9887 = vmatpush1.bf16.msra.mxu0 %v9585
      %9888 = vmatprep.subr.bf16.mxu0 0
      %9889 = vmatpush1.bf16.msra.mxu0 %v9584
      %9890 = vmatprep.subr.bf16.mxu0 0
      %9891 = vmatpush1.bf16.msra.mxu0 %v9583
      %9892 = vmatprep.subr.bf16.mxu0 0
      %9893 = vmatpush1.bf16.msra.mxu0 %v9582
      %9894 = vmatprep.subr.bf16.mxu0 0
      %9895 = vmatpush2.bf16.msra.mxu0 %v9597
      %9896 = vmatprep.subr.bf16.mxu0 0
      %9897 = vmatpush2.bf16.msra.mxu0 %v9596
      %9898 = vmatprep.subr.bf16.mxu0 0
      %9899 = vmatpush2.bf16.msra.mxu0 %v9595
      %9900 = vmatprep.subr.bf16.mxu0 0
      %9901 = vmatpush2.bf16.msra.mxu0 %v9594
      %9902 = vmatprep.subr.bf16.mxu0 0
      %9903 = vmatpush2.bf16.msra.mxu0 %v9593
      %9904 = vmatprep.subr.bf16.mxu0 0
      %9905 = vmatpush2.bf16.msra.mxu0 %v9592
      %9906 = vmatprep.subr.bf16.mxu0 0
      %9907 = vmatpush2.bf16.msra.mxu0 %v9591
      %9908 = vmatprep.subr.bf16.mxu0 0
      %9909 = vmatpush2.bf16.msra.mxu0 %v9590
      %9910 = vmatprep.mubr.bf16.mxu0 %v8746
      %9911 = vmatmul.mubr.bf16.gmra.mxu0 %v8745
      %v9912 = vpop.f32.mrf.mxu0
      %v9913 = vadd.f32 %v9857, %v9912
      %v9914 = vpop.f32.mrf.mxu0
      %v9915 = vpop.f32.mrf.mxu0
      %v9916 = vadd.f32 %v9860, %v9915
      %v9917 = vpop.f32.mrf.mxu0
      %9918 = vmatprep.mubr.bf16.mxu0 %v8762
      %9919 = vmatmul.mubr.bf16.gmra.mxu0 %v8761
      %v9920 = vpop.f32.mrf.mxu0
      %v9921 = vadd.f32 %v9865, %v9920
      %v9922 = vpop.f32.mrf.mxu0
      %v9923 = vpop.f32.mrf.mxu0
      %v9924 = vadd.f32 %v9868, %v9923
      %v9925 = vpop.f32.mrf.mxu0
      %9926 = vmatprep.mubr.bf16.mxu0 %v8778
      %9927 = vmatmul.mubr.bf16.gmra.mxu0 %v8777
      %v9928 = vpop.f32.mrf.mxu0
      %v9929 = vadd.f32 %v9873, %v9928
      %v9930 = vpop.f32.mrf.mxu0
      %v9931 = vpop.f32.mrf.mxu0
      %v9932 = vpop.f32.mrf.mxu0
      %9933 = vdwg.mxu0
      %9934 = vmatprep.subr.bf16.mxu0 0
      %9935 = vmatpush1.bf16.msra.mxu0 %v9605
      %9936 = vmatprep.subr.bf16.mxu0 0
      %9937 = vmatpush1.bf16.msra.mxu0 %v9604
      %9938 = vmatprep.subr.bf16.mxu0 0
      %9939 = vmatpush1.bf16.msra.mxu0 %v9603
      %9940 = vmatprep.subr.bf16.mxu0 0
      %9941 = vmatpush1.bf16.msra.mxu0 %v9602
      %9942 = vmatprep.subr.bf16.mxu0 0
      %9943 = vmatpush1.bf16.msra.mxu0 %v9601
      %9944 = vmatprep.subr.bf16.mxu0 0
      %9945 = vmatpush1.bf16.msra.mxu0 %v9600
      %9946 = vmatprep.subr.bf16.mxu0 0
      %9947 = vmatpush1.bf16.msra.mxu0 %v9599
      %9948 = vmatprep.subr.bf16.mxu0 0
      %9949 = vmatpush1.bf16.msra.mxu0 %v9598
      %9950 = vmatprep.subr.bf16.mxu0 0
      %9951 = vmatpush2.bf16.msra.mxu0 %v9613
      %9952 = vmatprep.subr.bf16.mxu0 0
      %9953 = vmatpush2.bf16.msra.mxu0 %v9612
      %9954 = vmatprep.subr.bf16.mxu0 0
      %9955 = vmatpush2.bf16.msra.mxu0 %v9611
      %9956 = vmatprep.subr.bf16.mxu0 0
      %9957 = vmatpush2.bf16.msra.mxu0 %v9610
      %9958 = vmatprep.subr.bf16.mxu0 0
      %9959 = vmatpush2.bf16.msra.mxu0 %v9609
      %9960 = vmatprep.subr.bf16.mxu0 0
      %9961 = vmatpush2.bf16.msra.mxu0 %v9608
      %9962 = vmatprep.subr.bf16.mxu0 0
      %9963 = vmatpush2.bf16.msra.mxu0 %v9607
      %9964 = vmatprep.subr.bf16.mxu0 0
      %9965 = vmatpush2.bf16.msra.mxu0 %v9606
      %9966 = vmatprep.mubr.bf16.mxu0 %v8748
      %9967 = vmatmul.mubr.bf16.gmra.mxu0 %v8747
      %v9968 = vpop.f32.mrf.mxu0
      %v9969 = vadd.f32 %v9913, %v9968
      %v9970 = vpop.f32.mrf.mxu0
      %v9971 = vpop.f32.mrf.mxu0
      %v9972 = vadd.f32 %v9916, %v9971
      %v9973 = vpop.f32.mrf.mxu0
      %9974 = vmatprep.mubr.bf16.mxu0 %v8764
      %9975 = vmatmul.mubr.bf16.gmra.mxu0 %v8763
      %v9976 = vpop.f32.mrf.mxu0
      %v9977 = vadd.f32 %v9921, %v9976
      %v9978 = vpop.f32.mrf.mxu0
      %v9979 = vpop.f32.mrf.mxu0
      %v9980 = vadd.f32 %v9924, %v9979
      %v9981 = vpop.f32.mrf.mxu0
      %9982 = vmatprep.mubr.bf16.mxu0 %v8780
      %9983 = vmatmul.mubr.bf16.gmra.mxu0 %v8779
      %v9984 = vpop.f32.mrf.mxu0
      %v9985 = vadd.f32 %v9929, %v9984
      %v9986 = vpop.f32.mrf.mxu0
      %v9987 = vpop.f32.mrf.mxu0
      %v9988 = vpop.f32.mrf.mxu0
      %9989 = vdwg.mxu0
      %9990 = vmatprep.subr.bf16.mxu0 0
      %9991 = vmatpush1.bf16.msra.mxu0 %v9621
      %9992 = vmatprep.subr.bf16.mxu0 0
      %9993 = vmatpush1.bf16.msra.mxu0 %v9620
      %9994 = vmatprep.subr.bf16.mxu0 0
      %9995 = vmatpush1.bf16.msra.mxu0 %v9619
      %9996 = vmatprep.subr.bf16.mxu0 0
      %9997 = vmatpush1.bf16.msra.mxu0 %v9618
      %9998 = vmatprep.subr.bf16.mxu0 0
      %9999 = vmatpush1.bf16.msra.mxu0 %v9617
      %10000 = vmatprep.subr.bf16.mxu0 0
      %10001 = vmatpush1.bf16.msra.mxu0 %v9616
      %10002 = vmatprep.subr.bf16.mxu0 0
      %10003 = vmatpush1.bf16.msra.mxu0 %v9615
      %10004 = vmatprep.subr.bf16.mxu0 0
      %10005 = vmatpush1.bf16.msra.mxu0 %v9614
      %10006 = vmatprep.subr.bf16.mxu0 0
      %10007 = vmatpush2.bf16.msra.mxu0 %v9629
      %10008 = vmatprep.subr.bf16.mxu0 0
      %10009 = vmatpush2.bf16.msra.mxu0 %v9628
      %10010 = vmatprep.subr.bf16.mxu0 0
      %10011 = vmatpush2.bf16.msra.mxu0 %v9627
      %10012 = vmatprep.subr.bf16.mxu0 0
      %10013 = vmatpush2.bf16.msra.mxu0 %v9626
      %10014 = vmatprep.subr.bf16.mxu0 0
      %10015 = vmatpush2.bf16.msra.mxu0 %v9625
      %10016 = vmatprep.subr.bf16.mxu0 0
      %10017 = vmatpush2.bf16.msra.mxu0 %v9624
      %10018 = vmatprep.subr.bf16.mxu0 0
      %10019 = vmatpush2.bf16.msra.mxu0 %v9623
      %10020 = vmatprep.subr.bf16.mxu0 0
      %10021 = vmatpush2.bf16.msra.mxu0 %v9622
      %10022 = vmatprep.mubr.bf16.mxu0 %v8750
      %10023 = vmatmul.mubr.bf16.gmra.mxu0 %v8749
      %v10024 = vpop.f32.mrf.mxu0
      %v10025 = vadd.f32 %v9969, %v10024
      %v10026 = vpop.f32.mrf.mxu0
      %v10027 = vpop.f32.mrf.mxu0
      %v10028 = vadd.f32 %v9972, %v10027
      %v10029 = vpop.f32.mrf.mxu0
      %10030 = vmatprep.mubr.bf16.mxu0 %v8766
      %10031 = vmatmul.mubr.bf16.gmra.mxu0 %v8765
      %v10032 = vpop.f32.mrf.mxu0
      %v10033 = vadd.f32 %v9977, %v10032
      %v10034 = vpop.f32.mrf.mxu0
      %v10035 = vpop.f32.mrf.mxu0
      %v10036 = vadd.f32 %v9980, %v10035
      %v10037 = vpop.f32.mrf.mxu0
      %10038 = vmatprep.mubr.bf16.mxu0 %v8782
      %10039 = vmatmul.mubr.bf16.gmra.mxu0 %v8781
      %v10040 = vpop.f32.mrf.mxu0
      %v10041 = vadd.f32 %v9985, %v10040
      %v10042 = vpop.f32.mrf.mxu0
      %v10043 = vpop.f32.mrf.mxu0
      %v10044 = vpop.f32.mrf.mxu0
      %10045 = vdwg.mxu0
      %10046 = vmatprep.subr.bf16.mxu0 0
      %10047 = vmatpush1.bf16.msra.mxu0 %v9637
      %10048 = vmatprep.subr.bf16.mxu0 0
      %10049 = vmatpush1.bf16.msra.mxu0 %v9636
      %10050 = vmatprep.subr.bf16.mxu0 0
      %10051 = vmatpush1.bf16.msra.mxu0 %v9635
      %10052 = vmatprep.subr.bf16.mxu0 0
      %10053 = vmatpush1.bf16.msra.mxu0 %v9634
      %10054 = vmatprep.subr.bf16.mxu0 0
      %10055 = vmatpush1.bf16.msra.mxu0 %v9633
      %10056 = vmatprep.subr.bf16.mxu0 0
      %10057 = vmatpush1.bf16.msra.mxu0 %v9632
      %10058 = vmatprep.subr.bf16.mxu0 0
      %10059 = vmatpush1.bf16.msra.mxu0 %v9631
      %10060 = vmatprep.subr.bf16.mxu0 0
      %10061 = vmatpush1.bf16.msra.mxu0 %v9630
      %10062 = vmatprep.subr.bf16.mxu0 0
      %10063 = vmatpush2.bf16.msra.mxu0 %v9645
      %10064 = vmatprep.subr.bf16.mxu0 0
      %10065 = vmatpush2.bf16.msra.mxu0 %v9644
      %10066 = vmatprep.subr.bf16.mxu0 0
      %10067 = vmatpush2.bf16.msra.mxu0 %v9643
      %10068 = vmatprep.subr.bf16.mxu0 0
      %10069 = vmatpush2.bf16.msra.mxu0 %v9642
      %10070 = vmatprep.subr.bf16.mxu0 0
      %10071 = vmatpush2.bf16.msra.mxu0 %v9641
      %10072 = vmatprep.subr.bf16.mxu0 0
      %10073 = vmatpush2.bf16.msra.mxu0 %v9640
      %10074 = vmatprep.subr.bf16.mxu0 0
      %10075 = vmatpush2.bf16.msra.mxu0 %v9639
      %10076 = vmatprep.subr.bf16.mxu0 0
      %10077 = vmatpush2.bf16.msra.mxu0 %v9638
      %10078 = vmatprep.mubr.bf16.mxu0 %v8752
      %10079 = vmatmul.mubr.bf16.gmra.mxu0 %v8751
      %v10080 = vpop.f32.mrf.mxu0
      %v10081 = vadd.f32 %v10025, %v10080
      %v10082 = vpop.f32.mrf.mxu0
      %v10083 = vpop.f32.mrf.mxu0
      %v10084 = vadd.f32 %v10028, %v10083
      %v10085 = vpop.f32.mrf.mxu0
      %10086 = vmatprep.mubr.bf16.mxu0 %v8768
      %10087 = vmatmul.mubr.bf16.gmra.mxu0 %v8767
      %v10088 = vpop.f32.mrf.mxu0
      %v10089 = vadd.f32 %v10033, %v10088
      %v10090 = vpop.f32.mrf.mxu0
      %v10091 = vpop.f32.mrf.mxu0
      %v10092 = vadd.f32 %v10036, %v10091
      %v10093 = vpop.f32.mrf.mxu0
      %10094 = vmatprep.mubr.bf16.mxu0 %v8784
      %10095 = vmatmul.mubr.bf16.gmra.mxu0 %v8783
      %v10096 = vpop.f32.mrf.mxu0
      %v10097 = vadd.f32 %v10041, %v10096
      %v10098 = vpop.f32.mrf.mxu0
      %v10099 = vpop.f32.mrf.mxu0
      %v10100 = vpop.f32.mrf.mxu0
      %10101 = vdwg.mxu0
      %10102 = vmatprep.subr.bf16.mxu0 0
      %10103 = vmatpush1.bf16.msra.mxu0 %v9653
      %10104 = vmatprep.subr.bf16.mxu0 0
      %10105 = vmatpush1.bf16.msra.mxu0 %v9652
      %10106 = vmatprep.subr.bf16.mxu0 0
      %10107 = vmatpush1.bf16.msra.mxu0 %v9651
      %10108 = vmatprep.subr.bf16.mxu0 0
      %10109 = vmatpush1.bf16.msra.mxu0 %v9650
      %10110 = vmatprep.subr.bf16.mxu0 0
      %10111 = vmatpush1.bf16.msra.mxu0 %v9649
      %10112 = vmatprep.subr.bf16.mxu0 0
      %10113 = vmatpush1.bf16.msra.mxu0 %v9648
      %10114 = vmatprep.subr.bf16.mxu0 0
      %10115 = vmatpush1.bf16.msra.mxu0 %v9647
      %10116 = vmatprep.subr.bf16.mxu0 0
      %10117 = vmatpush1.bf16.msra.mxu0 %v9646
      %10118 = vmatprep.subr.bf16.mxu0 0
      %10119 = vmatpush2.bf16.msra.mxu0 %v9661
      %10120 = vmatprep.subr.bf16.mxu0 0
      %10121 = vmatpush2.bf16.msra.mxu0 %v9660
      %10122 = vmatprep.subr.bf16.mxu0 0
      %10123 = vmatpush2.bf16.msra.mxu0 %v9659
      %10124 = vmatprep.subr.bf16.mxu0 0
      %10125 = vmatpush2.bf16.msra.mxu0 %v9658
      %10126 = vmatprep.subr.bf16.mxu0 0
      %10127 = vmatpush2.bf16.msra.mxu0 %v9657
      %10128 = vmatprep.subr.bf16.mxu0 0
      %10129 = vmatpush2.bf16.msra.mxu0 %v9656
      %10130 = vmatprep.subr.bf16.mxu0 0
      %10131 = vmatpush2.bf16.msra.mxu0 %v9655
      %10132 = vmatprep.subr.bf16.mxu0 0
      %10133 = vmatpush2.bf16.msra.mxu0 %v9654
      %10134 = vmatprep.mubr.bf16.mxu0 %v8754
      %10135 = vmatmul.mubr.bf16.gmra.mxu0 %v8753
      %v10136 = vpop.f32.mrf.mxu0
      %v10137 = vadd.f32 %v10081, %v10136
      %v10138 = vpop.f32.mrf.mxu0
      %v10139 = vpop.f32.mrf.mxu0
      %v10140 = vadd.f32 %v10084, %v10139
      %v10141 = vpop.f32.mrf.mxu0
      %10142 = vmatprep.mubr.bf16.mxu0 %v8770
      %10143 = vmatmul.mubr.bf16.gmra.mxu0 %v8769
      %v10144 = vpop.f32.mrf.mxu0
      %v10145 = vadd.f32 %v10089, %v10144
      %v10146 = vpop.f32.mrf.mxu0
      %v10147 = vpop.f32.mrf.mxu0
      %v10148 = vadd.f32 %v10092, %v10147
      %v10149 = vpop.f32.mrf.mxu0
      %10150 = vmatprep.mubr.bf16.mxu0 %v8786
      %10151 = vmatmul.mubr.bf16.gmra.mxu0 %v8785
      %v10152 = vpop.f32.mrf.mxu0
      %v10153 = vadd.f32 %v10097, %v10152
      %v10154 = vpop.f32.mrf.mxu0
      %v10155 = vpop.f32.mrf.mxu0
      %v10156 = vpop.f32.mrf.mxu0
      %10157 = vdwg.mxu0
      %10158 = vmatprep.subr.bf16.mxu0 0
      %10159 = vmatpush1.bf16.msra.mxu0 %v9669
      %10160 = vmatprep.subr.bf16.mxu0 0
      %10161 = vmatpush1.bf16.msra.mxu0 %v9668
      %10162 = vmatprep.subr.bf16.mxu0 0
      %10163 = vmatpush1.bf16.msra.mxu0 %v9667
      %10164 = vmatprep.subr.bf16.mxu0 0
      %10165 = vmatpush1.bf16.msra.mxu0 %v9666
      %10166 = vmatprep.subr.bf16.mxu0 0
      %10167 = vmatpush1.bf16.msra.mxu0 %v9665
      %10168 = vmatprep.subr.bf16.mxu0 0
      %10169 = vmatpush1.bf16.msra.mxu0 %v9664
      %10170 = vmatprep.subr.bf16.mxu0 0
      %10171 = vmatpush1.bf16.msra.mxu0 %v9663
      %10172 = vmatprep.subr.bf16.mxu0 0
      %10173 = vmatpush1.bf16.msra.mxu0 %v9662
      %10174 = vmatprep.subr.bf16.mxu0 0
      %10175 = vmatpush2.bf16.msra.mxu0 %v9677
      %10176 = vmatprep.subr.bf16.mxu0 0
      %10177 = vmatpush2.bf16.msra.mxu0 %v9676
      %10178 = vmatprep.subr.bf16.mxu0 0
      %10179 = vmatpush2.bf16.msra.mxu0 %v9675
      %10180 = vmatprep.subr.bf16.mxu0 0
      %10181 = vmatpush2.bf16.msra.mxu0 %v9674
      %10182 = vmatprep.subr.bf16.mxu0 0
      %10183 = vmatpush2.bf16.msra.mxu0 %v9673
      %10184 = vmatprep.subr.bf16.mxu0 0
      %10185 = vmatpush2.bf16.msra.mxu0 %v9672
      %10186 = vmatprep.subr.bf16.mxu0 0
      %10187 = vmatpush2.bf16.msra.mxu0 %v9671
      %10188 = vmatprep.subr.bf16.mxu0 0
      %10189 = vmatpush2.bf16.msra.mxu0 %v9670
      %10190 = vmatprep.mubr.bf16.mxu0 %v8756
      %10191 = vmatmul.mubr.bf16.gmra.mxu0 %v8755
      %v10192 = vpop.f32.mrf.mxu0
      %v10193 = vadd.f32 %v10137, %v10192
      %v10194 = vpop.f32.mrf.mxu0
      %v10195 = vpop.f32.mrf.mxu0
      %v10196 = vadd.f32 %v10140, %v10195
      %v10197 = vpop.f32.mrf.mxu0
      %10198 = vmatprep.mubr.bf16.mxu0 %v8772
      %10199 = vmatmul.mubr.bf16.gmra.mxu0 %v8771
      %v10200 = vpop.f32.mrf.mxu0
      %v10201 = vadd.f32 %v10145, %v10200
      %v10202 = vpop.f32.mrf.mxu0
      %v10203 = vpop.f32.mrf.mxu0
      %v10204 = vadd.f32 %v10148, %v10203
      %v10205 = vpop.f32.mrf.mxu0
      %10206 = vmatprep.mubr.bf16.mxu0 %v8788
      %10207 = vmatmul.mubr.bf16.gmra.mxu0 %v8787
      %v10208 = vpop.f32.mrf.mxu0
      %v10209 = vadd.f32 %v10153, %v10208
      %v10210 = vpop.f32.mrf.mxu0
      %v10211 = vpop.f32.mrf.mxu0
      %v10212 = vpop.f32.mrf.mxu0
      %10213 = vdwg.mxu0
      %10214 = vmatprep.subr.bf16.mxu0 0
      %10215 = vmatpush1.bf16.msra.mxu0 %v9685
      %10216 = vmatprep.subr.bf16.mxu0 0
      %10217 = vmatpush1.bf16.msra.mxu0 %v9684
      %10218 = vmatprep.subr.bf16.mxu0 0
      %10219 = vmatpush1.bf16.msra.mxu0 %v9683
      %10220 = vmatprep.subr.bf16.mxu0 0
      %10221 = vmatpush1.bf16.msra.mxu0 %v9682
      %10222 = vmatprep.subr.bf16.mxu0 0
      %10223 = vmatpush1.bf16.msra.mxu0 %v9681
      %10224 = vmatprep.subr.bf16.mxu0 0
      %10225 = vmatpush1.bf16.msra.mxu0 %v9680
      %10226 = vmatprep.subr.bf16.mxu0 0
      %10227 = vmatpush1.bf16.msra.mxu0 %v9679
      %10228 = vmatprep.subr.bf16.mxu0 0
      %10229 = vmatpush1.bf16.msra.mxu0 %v9678
      %10230 = vmatprep.subr.bf16.mxu0 0
      %10231 = vmatpush2.bf16.msra.mxu0 %v9693
      %10232 = vmatprep.subr.bf16.mxu0 0
      %10233 = vmatpush2.bf16.msra.mxu0 %v9692
      %10234 = vmatprep.subr.bf16.mxu0 0
      %10235 = vmatpush2.bf16.msra.mxu0 %v9691
      %10236 = vmatprep.subr.bf16.mxu0 0
      %10237 = vmatpush2.bf16.msra.mxu0 %v9690
      %10238 = vmatprep.subr.bf16.mxu0 0
      %10239 = vmatpush2.bf16.msra.mxu0 %v9689
      %10240 = vmatprep.subr.bf16.mxu0 0
      %10241 = vmatpush2.bf16.msra.mxu0 %v9688
      %10242 = vmatprep.subr.bf16.mxu0 0
      %10243 = vmatpush2.bf16.msra.mxu0 %v9687
      %10244 = vmatprep.subr.bf16.mxu0 0
      %10245 = vmatpush2.bf16.msra.mxu0 %v9686
      %10246 = vmatprep.mubr.bf16.mxu0 %v8758
      %10247 = vmatmul.mubr.bf16.gmra.mxu0 %v8757
      %v10248 = vpop.f32.mrf.mxu0
      %v10249 = vadd.f32 %v10193, %v10248
      %v10250 = vpop.f32.mrf.mxu0
      %v10251 = vpop.f32.mrf.mxu0
      %v10252 = vadd.f32 %v10196, %v10251
      %v10253 = vpop.f32.mrf.mxu0
      %10254 = vmatprep.mubr.bf16.mxu0 %v8774
      %10255 = vmatmul.mubr.bf16.gmra.mxu0 %v8773
      %v10256 = vpop.f32.mrf.mxu0
      %v10257 = vadd.f32 %v10201, %v10256
      %v10258 = vpop.f32.mrf.mxu0
      %v10259 = vpop.f32.mrf.mxu0
      %v10260 = vadd.f32 %v10204, %v10259
      %v10261 = vpop.f32.mrf.mxu0
      %10262 = vmatprep.mubr.bf16.mxu0 %v8790
      %10263 = vmatmul.mubr.bf16.gmra.mxu0 %v8789
      %v10264 = vpop.f32.mrf.mxu0
      %v10265 = vadd.f32 %v10209, %v10264
      %v10266 = vpop.f32.mrf.mxu0
      %v10267 = vpop.f32.mrf.mxu0
      %v10268 = vpop.f32.mrf.mxu0
      %10269 = vdwg.mxu0
      %v10270 = vadd.f32 %v7793, %v10249
      %v10271 = vadd.f32 %v7794, %v10252
      %v10272 = vadd.f32 %v7795, %v10257
      %v10273 = vadd.f32 %v7796, %v10260
      %v10274 = vadd.f32 %v7797, %v10265
      %10275 = vst.msk [vmem:[#allocation2] sm:$0xff] %vm675, %v10270
      %10276 = vst.msk [vmem:[#allocation2 + $0x8] sm:$0xff] %vm675, %v10271
      %10277 = vst.msk [vmem:[#allocation2 + $0x10] sm:$0xff] %vm675, %v10272
      %10278 = vst.msk [vmem:[#allocation2 + $0x18] sm:$0xff] %vm675, %v10273
      %10279 = vst.msk [vmem:[#allocation2 + $0x20] sm:$0x3] %vm688, %v10274
      %p10280 = scmp.eq.s32.totalorder %s29, 3
      // Predicated region
      $region77: #{image_transformer_forward.3} parent=71 // pred_check
        %p10281 = pneg %p10280
      $region78: #{image_transformer_forward.3} parent=71 // pred_check_branch
        %10283 = sbr.rel (%p10281) target = $region80
      $region79: #{image_transformer_forward.3} parent=71 // pred_region
        %10284 = vst.msk [vmem:[%s649] sm:$0xff] %vm675, %v10270
        %10285 = vst.msk [vmem:[%s649 + $0x8] sm:$0xff] %vm675, %v10271
        %10286 = vst.msk [vmem:[%s649 + $0x10] sm:$0xff] %vm675, %v10272
        %10287 = vst.msk [vmem:[%s649 + $0x18] sm:$0xff] %vm675, %v10273
        %10288 = vst.msk [vmem:[%s649 + $0x20] sm:$0x3] %vm688, %v10274
      $region80: #{image_transformer_forward.3} parent=71 // pred_fallthru
        _
      %s10289 = smul.u32 5, %s28
      %p10290 = scmp.lt.s32.totalorder %s10289, 4
      %s10291 = scalar_select %p10290, %s10289, 4
      %s10292 = smul.addr %s10291, 8
      %s10293 = scalar_lea.vmem %s13, %s10292
      // Predicated region
      $region81: #{image_transformer_forward.3} parent=71 // pred_check
        %p10294 = pneg %p392
      $region82: #{image_transformer_forward.3} parent=71 // pred_check_branch
        %10296 = sbr.rel (%p10294) target = $region84
      $region83: #{image_transformer_forward.3} parent=71 // pred_region
        %s10297 = smul.u32 5, %s28
      $region84: #{image_transformer_forward.3} parent=71 // pred_fallthru
        _
      // Predicated region
      $region85: #{image_transformer_forward.3} parent=71 // pred_check
        %p10298 = pneg %p392
      $region86: #{image_transformer_forward.3} parent=71 // pred_check_branch
        %10300 = sbr.rel (%p10298) target = $region88
      $region87: #{image_transformer_forward.3} parent=71 // pred_region
        %s10301 = smul.u32 5, %s28
        %p10302 = scmp.lt.s32.totalorder %s10301, 4
        %s10303 = scalar_select %p10302, %s10301, 4
        %s10304 = smul.addr %s10303, 8
        %s10305 = scalar_lea.vmem %s13, %s10304
      $region88: #{image_transformer_forward.3} parent=71 // pred_fallthru
        _
    $region72: #{image_transformer_forward.3} parent=5 // pred_fallthru
      _
    %p10306 = scmp.le.s32.totalorder 2, %s19
    // Predicated region
    $region89: #{image_transformer_forward.3} parent=5 // pred_check
      %p10307 = pneg %p10306
    $region90: #{image_transformer_forward.3} parent=5 // pred_check_branch
      %10309 = sbr.rel (%p10307) target = $region92
    $region91: #{image_transformer_forward.3} parent=5 // pred_region
      %s10310 = ssub.s32 %s19, 2
    $region92: #{image_transformer_forward.3} parent=5 // pred_fallthru
      _
  $region6: #{image_transformer_forward.3} parent=0 // loop_footer
    %s23 = sadd.s32 1, %s19
  $region7: #{image_transformer_forward.3} parent=0 // loop_footer_branch
    %18 = sbr.rel target = $region3
  $region8: #{image_transformer_forward.3} parent=0 // loop_exit
    _

</llo_original>
